<compile_context>
chip_gen: v7x
topology: tpu7x:2x2x1
jax: 0.10.0
libtpu: 0.0.40
codegen_flags: <defaults>
</compile_context>

<pallas_src>
import functools

import jax
import jax.numpy as jnp
from jax.experimental import pallas as pl
from jax.experimental.pallas import tpu as pltpu

# ----------------------------------------------------------------------------
# Model config
# ----------------------------------------------------------------------------
IN_CHANNELS = 3
BACKBONE_CHANNELS = (8, 16, 32, 64)   # feature_channels at strides 4, 8, 16, 32
BACKBONE_STRIDES = (4, 2, 2, 2)       # per-stage downsample factors
HIDDEN = 32                           # pixel-decoder feature_size
MASK_DIM = 32                         # pixel-decoder mask_feature_size

# bf16 matmul operands (f32 accumulation) -> ~2x HBM traffic saving and native
# v6e/v7x MXU path. Set to jnp.float32 to match the f32 PyTorch reference more
# closely (accumulation is f32 either way).
COMPUTE_DTYPE = jnp.bfloat16

_VMEM_LIMIT_BYTES = 48 * 1024 * 1024  # above v5e/v6e/v7x scoped defaults, below v7x physical


def _cparams(grid_rank):
    return pltpu.CompilerParams(
        dimension_semantics=("parallel",) * grid_rank,
        vmem_limit_bytes=_VMEM_LIMIT_BYTES,
    )


def _pick_h_tile(h, bytes_per_row, budget):
    """Largest divisor of h whose block (tile_rows * bytes_per_row) fits budget."""
    best = 1
    for t in range(1, h + 1):
        if h % t == 0 and t * bytes_per_row <= budget:
            best = t
    return best


def _const_spec(shape):
    # Block = whole (small) array; constant index_map -> stays resident in VMEM.
    return pl.BlockSpec(shape, lambda b, i: (0,) * len(shape))


# ----------------------------------------------------------------------------
# Backbone stage kernel: Conv2d(kernel=s, stride=s) + bias + ReLU, NHWC.
# The W-direction patchify is a *free* contiguous reshape done outside; the
# H-direction patchify is s sub-matmuls in-kernel, so no im2col hits HBM.
# ----------------------------------------------------------------------------
def _patch_conv_kernel(x_ref, w_ref, b_ref, o_ref, *, s, sc, relu):
    # x_ref: (th*s, Wo, s*Cin)   (W already patchified)
    # w_ref: (s*s*Cin, Cout), b_ref: (1, Cout), o_ref: (th, Wo, Cout)
    th, wo, cout = o_ref.shape
    x = x_ref[...].reshape(th, s, wo, sc)     # split leading rows; lane dim unchanged
    w = w_ref[...]
    acc = jnp.zeros((th * wo, cout), jnp.float32)
    for a in range(s):                        # patch-row a vs weight rows [a*sc, (a+1)*sc)
        xa = x[:, a, :, :].reshape(th * wo, sc)
        acc = acc + jnp.dot(xa, w[a * sc:(a + 1) * sc, :],
                            preferred_element_type=jnp.float32)
    acc = acc + b_ref[...]
    if relu:
        acc = jnp.maximum(acc, 0.0)
    o_ref[...] = acc.reshape(th, wo, cout).astype(o_ref.dtype)


def patch_conv(x, w, b, s, *, relu=True):
    """NHWC patchify-conv (k=s, stride=s) + bias (+ReLU) as one Pallas kernel."""
    B, H, W, Cin = x.shape
    Cout = w.shape[1]
    Ho, Wo = H // s, W // s
    sc = s * Cin
    xw = x.reshape(B, H, Wo, sc)              # contiguous reshape: no data movement

    itm = jnp.dtype(x.dtype).itemsize
    row_bytes = s * Wo * sc * itm + Wo * Cout * itm     # in + out per output row
    th = _pick_h_tile(Ho, row_bytes, budget=2 * 1024 * 1024)

    return pl.pallas_call(
        functools.partial(_patch_conv_kernel, s=s, sc=sc, relu=relu),
        out_shape=jax.ShapeDtypeStruct((B, Ho, Wo, Cout), x.dtype),
        grid=(B, Ho // th),
        in_specs=[
            pl.BlockSpec((None, th * s, Wo, sc), lambda bb, i: (bb, i, 0, 0)),
            _const_spec(w.shape),
            _const_spec(b.shape),
        ],
        out_specs=pl.BlockSpec((None, th, Wo, Cout), lambda bb, i: (bb, i, 0, 0)),
        compiler_params=_cparams(2),
    )(xw, w, b)


# ----------------------------------------------------------------------------
# Fused pixel-decoder kernel (projections + FPN + lateral + out + mask)
# ----------------------------------------------------------------------------
def _up2x(y):
    """Nearest-neighbor 2x spatial upsample of (h, w, c) -> (2h, 2w, c).

    Only leading-dim broadcasts/reshapes (lane dim 'c' untouched)."""
    h, w, c = y.shape
    y = jnp.broadcast_to(y[:, None, :, :], (h, 2, w, c)).reshape(2 * h, w, c)
    y = y.reshape(2 * h * w, c)
    y = jnp.broadcast_to(y[:, None, :], (2 * h * w, 2, c)).reshape(4 * h * w, c)
    return y.reshape(2 * h, 2 * w, c)


def _decoder_kernel(f3_ref, f2_ref, f1_ref, f0_ref,
                    w3_ref, b3_ref, w2_ref, b2_ref, w1_ref, b1_ref,
                    wl_ref, bl_ref, wo_ref, bo_ref, wm_ref, bm_ref,
                    y3_ref, y2_ref, y1_ref, mask_ref):
    def mm(x2d, w_ref, b_ref, relu=False):
        acc = jnp.dot(x2d.astype(w_ref.dtype), w_ref[...],
                      preferred_element_type=jnp.float32)
        acc = acc + b_ref[...]
        if relu:
            acc = jnp.maximum(acc, 0.0)
        return acc

    hid = w3_ref.shape[1]

    # stride-32 level: projection only
    h3, w3s, c3 = f3_ref.shape
    y3 = mm(f3_ref[...].reshape(h3 * w3s, c3), w3_ref, b3_ref).reshape(h3, w3s, hid)
    y3_ref[...] = y3.astype(y3_ref.dtype)

    # stride-16 level: upsample(y3) + proj(f2)
    h2, w2s, c2 = f2_ref.shape
    p2 = mm(f2_ref[...].reshape(h2 * w2s, c2), w2_ref, b2_ref).reshape(h2, w2s, hid)
    y2 = _up2x(y3) + p2
    y2_ref[...] = y2.astype(y2_ref.dtype)

    # stride-8 level: upsample(y2) + proj(f1)
    h1, w1s, c1 = f1_ref.shape
    p1 = mm(f1_ref[...].reshape(h1 * w1s, c1), w1_ref, b1_ref).reshape(h1, w1s, hid)
    y1 = _up2x(y2) + p1
    y1_ref[...] = y1.astype(y1_ref.dtype)

    # stride-4 level: lateral conv + fuse + out conv (ReLU) + mask conv
    h0, w0s, c0 = f0_ref.shape
    lat = mm(f0_ref[...].reshape(h0 * w0s, c0), wl_ref, bl_ref)
    fused = _up2x(y1).reshape(h0 * w0s, hid) + lat
    fused = mm(fused, wo_ref, bo_ref, relu=True)
    mask = mm(fused, wm_ref, bm_ref)
    mask_ref[...] = mask.reshape(h0, w0s, mask.shape[1]).astype(mask_ref.dtype)


def pixel_decoder_fused(feats, params):
    """feats = (stride4, stride8, stride16, stride32) NHWC feature maps."""
    f_s4, f_s8, f_s16, f_s32 = feats
    B, H32, W32, C3 = f_s32.shape
    _, H16, W16, C2 = f_s16.shape
    _, H8, W8, C1 = f_s8.shape
    _, H4, W4, C0 = f_s4.shape

    itm = jnp.dtype(f_s4.dtype).itemsize
    # bytes of input + f32 output per stride-32 row (across all pyramid levels)
    row_bytes = (W32 * C3 + 2 * W16 * C2 + 4 * W8 * C1 + 8 * W4 * C0) * itm
    row_bytes += (W32 + 2 * W16 + 4 * W8 + 8 * W4) * HIDDEN * 4
    th32 = _pick_h_tile(H32, row_bytes, budget=3 * 1024 * 1024)

    fmap = lambda b, i: (b, i, 0, 0)
    in_specs = [
        pl.BlockSpec((None, th32, W32, C3), fmap),
        pl.BlockSpec((None, 2 * th32, W16, C2), fmap),
        pl.BlockSpec((None, 4 * th32, W8, C1), fmap),
        pl.BlockSpec((None, 8 * th32, W4, C0), fmap),
    ]
    weight_args = []
    for name in ("proj3", "proj2", "proj1", "lateral", "out", "mask"):
        w = params[f"{name}_w"]
        b = params[f"{name}_b"]
        in_specs.append(_const_spec(w.shape))
        in_specs.append(_const_spec(b.shape))
        weight_args += [w, b]

    out_shapes = (
        jax.ShapeDtypeStruct((B, H32, W32, HIDDEN), jnp.float32),
        jax.ShapeDtypeStruct((B, H16, W16, HIDDEN), jnp.float32),
        jax.ShapeDtypeStruct((B, H8, W8, HIDDEN), jnp.float32),
        jax.ShapeDtypeStruct((B, H4, W4, MASK_DIM), jnp.float32),
    )
    out_specs = (
        pl.BlockSpec((None, th32, W32, HIDDEN), fmap),
        pl.BlockSpec((None, 2 * th32, W16, HIDDEN), fmap),
        pl.BlockSpec((None, 4 * th32, W8, HIDDEN), fmap),
        pl.BlockSpec((None, 8 * th32, W4, MASK_DIM), fmap),
    )

    y3, y2, y1, mask = pl.pallas_call(
        _decoder_kernel,
        out_shape=out_shapes,
        grid=(B, H32 // th32),
        in_specs=in_specs,
        out_specs=out_specs,
        compiler_params=_cparams(2),
    )(f_s32, f_s16, f_s8, f_s4, *weight_args)
    return mask, (y3, y2, y1)


# ----------------------------------------------------------------------------
# Parameter init (deterministic)
# ----------------------------------------------------------------------------
def _dense(key, k, n, dtype):
    kw, kb = jax.random.split(key)
    w = (jax.random.normal(kw, (k, n), jnp.float32) / jnp.sqrt(float(k))).astype(dtype)
    b = jax.random.normal(kb, (1, n), jnp.float32) * 0.01   # f32 bias, stored as (1, N)
    return w, b


def init_params(key, dtype=COMPUTE_DTYPE):
    params = {}
    keys = jax.random.split(key, 16)
    cin = IN_CHANNELS
    for i, (s, cout) in enumerate(zip(BACKBONE_STRIDES, BACKBONE_CHANNELS)):
        w, b = _dense(keys[i], s * s * cin, cout, dtype)
        params[f"stage{i}_w"], params[f"stage{i}_b"] = w, b
        cin = cout
    specs = (("proj3", BACKBONE_CHANNELS[3], HIDDEN),
             ("proj2", BACKBONE_CHANNELS[2], HIDDEN),
             ("proj1", BACKBONE_CHANNELS[1], HIDDEN),
             ("lateral", BACKBONE_CHANNELS[0], HIDDEN),
             ("out", HIDDEN, HIDDEN),
             ("mask", HIDDEN, MASK_DIM))
    for j, (name, k, n) in enumerate(specs):
        w, b = _dense(keys[4 + j], k, n, dtype)
        params[f"{name}_w"], params[f"{name}_b"] = w, b
    return params


# ----------------------------------------------------------------------------
# Forward pass (mirrors VideoMask2FormerPixelLevelModuleAnyBackbone.forward)
# ----------------------------------------------------------------------------
def pixel_level_module_forward(params, pixel_values, output_hidden_states=False):
    B, C, H, W = pixel_values.shape
    assert H % 32 == 0 and W % 32 == 0, "spatial dims must be divisible by 32"
    # NCHW (PyTorch) -> NHWC for the kernels (channels on the lane axis)
    x = jnp.transpose(pixel_values, (0, 2, 3, 1)).astype(COMPUTE_DTYPE)

    # ---------------- encoder (backbone) ----------------
    feats = []
    h = x
    for i, s in enumerate(BACKBONE_STRIDES):
        h = patch_conv(h, params[f"stage{i}_w"], params[f"stage{i}_b"], s, relu=True)
        feats.append(h)

    # ---------------- decoder (pixel decoder, fully fused) ----------------
    # TODO(synk): deformable-attention transformer encoder of the real
    #   VideoMask2FormerPixelDecoder is omitted (replaced by proj + FPN path).
    mask_features, multi_scale = pixel_decoder_fused(tuple(feats), params)

    to_nchw = lambda t: jnp.transpose(t, (0, 3, 1, 2))
    return {
        "encoder_last_hidden_state": to_nchw(feats[-1]).astype(jnp.float32),
        "encoder_hidden_states": tuple(to_nchw(f).astype(jnp.float32) for f in feats)
        if output_hidden_states
        else None,
        "decoder_last_hidden_state": to_nchw(mask_features),
        "decoder_hidden_states": tuple(to_nchw(m) for m in multi_scale),
    }


# ----------------------------------------------------------------------------
if __name__ == "__main__":
    key = jax.random.PRNGKey(0)

    B, C, H, W = 2, IN_CHANNELS, 64, 64   # (batch*num_frames, C, H, W)
    pixel_values = jax.random.normal(key, (B, C, H, W), jnp.float32)
    params = init_params(jax.random.PRNGKey(42))

    fwd = jax.jit(functools.partial(pixel_level_module_forward,
                                    output_hidden_states=True))
    out = fwd(params, pixel_values)
    jax.block_until_ready(out)

    # light sanity checks on shapes
    assert out["encoder_last_hidden_state"].shape == (B, BACKBONE_CHANNELS[-1], H // 32, W // 32)
    assert out["decoder_last_hidden_state"].shape == (B, MASK_DIM, H // 4, W // 4)
    assert len(out["decoder_hidden_states"]) == 3
    assert len(out["encoder_hidden_states"]) == 4

    print("KERNEL_OK")
</pallas_src>

<mosaic_0001>
module attributes {stable_mosaic.version = 11 : i64} {
  func.func @_patch_conv_kernel(%arg0: i32, %arg1: i32, %arg2: memref<1x64x16x12xbf16, #tpu.memory_space<vmem>>, %arg3: memref<48x8xbf16, #tpu.memory_space<vmem>>, %arg4: memref<1x8xf32, #tpu.memory_space<vmem>>, %arg5: memref<1x16x16x8xbf16, #tpu.memory_space<vmem>>) attributes {dimension_semantics = [#tpu.dimension_semantics<parallel>, #tpu.dimension_semantics<parallel>], iteration_bounds = array<i64: 2, 1>, scalar_prefetch = 0 : i64, scratch_operands = 0 : i64, tpu.core_type = #tpu.core_type<tc>, window_params = [{transform_indices = @transform_0, window_bounds = array<i64: 1, 64, 16, 12>}, {pipeline_mode = #tpu.pipeline_mode<synchronous>, transform_indices = @transform_1, window_bounds = array<i64: 48, 8>}, {pipeline_mode = #tpu.pipeline_mode<synchronous>, transform_indices = @transform_2, window_bounds = array<i64: 1, 8>}, {transform_indices = @transform_3, window_bounds = array<i64: 1, 16, 16, 8>}]} {
    %c0 = arith.constant 0 : index
    %c0_0 = arith.constant 0 : index
    %c0_1 = arith.constant 0 : index
    %c0_2 = arith.constant 0 : index
    %0 = vector.load %arg2[%c0, %c0_0, %c0_1, %c0_2] : memref<1x64x16x12xbf16, #tpu.memory_space<vmem>>, vector<1x64x16x12xbf16>
    %1 = vector.shape_cast %0 : vector<1x64x16x12xbf16> to vector<64x16x12xbf16>
    %2 = vector.shape_cast %1 : vector<64x16x12xbf16> to vector<16x4x16x12xbf16>
    %c0_3 = arith.constant 0 : index
    %c0_4 = arith.constant 0 : index
    %3 = vector.load %arg3[%c0_3, %c0_4] : memref<48x8xbf16, #tpu.memory_space<vmem>>, vector<48x8xbf16>
    %cst = arith.constant 0.000000e+00 : f32
    %4 = vector.broadcast %cst : f32 to vector<256x8xf32>
    %5 = vector.extract_strided_slice %2 {offsets = [0, 0, 0, 0], sizes = [16, 1, 16, 12], strides = [1, 1, 1, 1]} : vector<16x4x16x12xbf16> to vector<16x1x16x12xbf16>
    %6 = vector.shape_cast %5 : vector<16x1x16x12xbf16> to vector<16x16x12xbf16>
    %7 = vector.shape_cast %6 : vector<16x16x12xbf16> to vector<256x12xbf16>
    %8 = vector.extract_strided_slice %3 {offsets = [0, 0], sizes = [12, 8], strides = [1, 1]} : vector<48x8xbf16> to vector<12x8xbf16>
    %cst_5 = arith.constant dense<0.000000e+00> : vector<256x8xf32>
    %9 = tpu.matmul %7, %8, %cst_5 {dimension_numbers = #tpu.dot_dimension_numbers<[1], [0], [0], [1], [0, 0, 1, 1], [], []>} : vector<256x12xbf16>, vector<12x8xbf16>, vector<256x8xf32> -> vector<256x8xf32>
    %10 = arith.addf %4, %9 : vector<256x8xf32>
    %11 = vector.extract_strided_slice %2 {offsets = [0, 1, 0, 0], sizes = [16, 1, 16, 12], strides = [1, 1, 1, 1]} : vector<16x4x16x12xbf16> to vector<16x1x16x12xbf16>
    %12 = vector.shape_cast %11 : vector<16x1x16x12xbf16> to vector<16x16x12xbf16>
    %13 = vector.shape_cast %12 : vector<16x16x12xbf16> to vector<256x12xbf16>
    %14 = vector.extract_strided_slice %3 {offsets = [12, 0], sizes = [12, 8], strides = [1, 1]} : vector<48x8xbf16> to vector<12x8xbf16>
    %cst_6 = arith.constant dense<0.000000e+00> : vector<256x8xf32>
    %15 = tpu.matmul %13, %14, %cst_6 {dimension_numbers = #tpu.dot_dimension_numbers<[1], [0], [0], [1], [0, 0, 1, 1], [], []>} : vector<256x12xbf16>, vector<12x8xbf16>, vector<256x8xf32> -> vector<256x8xf32>
    %16 = arith.addf %10, %15 : vector<256x8xf32>
    %17 = vector.extract_strided_slice %2 {offsets = [0, 2, 0, 0], sizes = [16, 1, 16, 12], strides = [1, 1, 1, 1]} : vector<16x4x16x12xbf16> to vector<16x1x16x12xbf16>
    %18 = vector.shape_cast %17 : vector<16x1x16x12xbf16> to vector<16x16x12xbf16>
    %19 = vector.shape_cast %18 : vector<16x16x12xbf16> to vector<256x12xbf16>
    %20 = vector.extract_strided_slice %3 {offsets = [24, 0], sizes = [12, 8], strides = [1, 1]} : vector<48x8xbf16> to vector<12x8xbf16>
    %cst_7 = arith.constant dense<0.000000e+00> : vector<256x8xf32>
    %21 = tpu.matmul %19, %20, %cst_7 {dimension_numbers = #tpu.dot_dimension_numbers<[1], [0], [0], [1], [0, 0, 1, 1], [], []>} : vector<256x12xbf16>, vector<12x8xbf16>, vector<256x8xf32> -> vector<256x8xf32>
    %22 = arith.addf %16, %21 : vector<256x8xf32>
    %23 = vector.extract_strided_slice %2 {offsets = [0, 3, 0, 0], sizes = [16, 1, 16, 12], strides = [1, 1, 1, 1]} : vector<16x4x16x12xbf16> to vector<16x1x16x12xbf16>
    %24 = vector.shape_cast %23 : vector<16x1x16x12xbf16> to vector<16x16x12xbf16>
    %25 = vector.shape_cast %24 : vector<16x16x12xbf16> to vector<256x12xbf16>
    %26 = vector.extract_strided_slice %3 {offsets = [36, 0], sizes = [12, 8], strides = [1, 1]} : vector<48x8xbf16> to vector<12x8xbf16>
    %cst_8 = arith.constant dense<0.000000e+00> : vector<256x8xf32>
    %27 = tpu.matmul %25, %26, %cst_8 {dimension_numbers = #tpu.dot_dimension_numbers<[1], [0], [0], [1], [0, 0, 1, 1], [], []>} : vector<256x12xbf16>, vector<12x8xbf16>, vector<256x8xf32> -> vector<256x8xf32>
    %28 = arith.addf %22, %27 : vector<256x8xf32>
    %c0_9 = arith.constant 0 : index
    %c0_10 = arith.constant 0 : index
    %29 = vector.load %arg4[%c0_9, %c0_10] : memref<1x8xf32, #tpu.memory_space<vmem>>, vector<1x8xf32>
    %30 = vector.broadcast %29 : vector<1x8xf32> to vector<256x8xf32>
    %31 = arith.addf %28, %30 : vector<256x8xf32>
    %cst_11 = arith.constant 0.000000e+00 : f32
    %32 = vector.broadcast %cst_11 : f32 to vector<256x8xf32>
    %33 = arith.maximumf %31, %32 : vector<256x8xf32>
    %34 = vector.shape_cast %33 : vector<256x8xf32> to vector<16x16x8xf32>
    %35 = arith.truncf %34 : vector<16x16x8xf32> to vector<16x16x8xbf16>
    %c0_12 = arith.constant 0 : index
    %c0_13 = arith.constant 0 : index
    %c0_14 = arith.constant 0 : index
    %c0_15 = arith.constant 0 : index
    %36 = vector.load %arg5[%c0_12, %c0_13, %c0_14, %c0_15] : memref<1x16x16x8xbf16, #tpu.memory_space<vmem>>, vector<1x16x16x8xbf16>
    %37 = vector.shape_cast %36 : vector<1x16x16x8xbf16> to vector<16x16x8xbf16>
    %38 = vector.shape_cast %35 : vector<16x16x8xbf16> to vector<1x16x16x8xbf16>
    tpu.vector_store %arg5[%c0_12, %c0_13, %c0_14, %c0_15], %38 {strides = array<i32>} : memref<1x16x16x8xbf16, #tpu.memory_space<vmem>>, vector<1x16x16x8xbf16>,
    return
  }
  func.func @transform_0(%arg0: i32, %arg1: i32) -> (i32, i32, i32, i32) {
    %c0_i32 = arith.constant 0 : i32
    %c0_i32_0 = arith.constant 0 : i32
    %c0_i32_1 = arith.constant 0 : i32
    return %arg0, %arg1, %c0_i32, %c0_i32_0 : i32, i32, i32, i32
  }
  func.func @transform_1(%arg0: i32, %arg1: i32) -> (i32, i32) {
    %c0_i32 = arith.constant 0 : i32
    %c0_i32_0 = arith.constant 0 : i32
    %c0_i32_1 = arith.constant 0 : i32
    return %c0_i32, %c0_i32_0 : i32, i32
  }
  func.func @transform_2(%arg0: i32, %arg1: i32) -> (i32, i32) {
    %c0_i32 = arith.constant 0 : i32
    %c0_i32_0 = arith.constant 0 : i32
    %c0_i32_1 = arith.constant 0 : i32
    return %c0_i32, %c0_i32_0 : i32, i32
  }
  func.func @transform_3(%arg0: i32, %arg1: i32) -> (i32, i32, i32, i32) {
    %c0_i32 = arith.constant 0 : i32
    %c0_i32_0 = arith.constant 0 : i32
    %c0_i32_1 = arith.constant 0 : i32
    return %arg0, %arg1, %c0_i32, %c0_i32_0 : i32, i32, i32, i32
  }
}

module attributes {stable_mosaic.version = 11 : i64} {
  func.func @_patch_conv_kernel(%arg0: i32, %arg1: i32, %arg2: memref<1x16x8x16xbf16, #tpu.memory_space<vmem>>, %arg3: memref<32x16xbf16, #tpu.memory_space<vmem>>, %arg4: memref<1x16xf32, #tpu.memory_space<vmem>>, %arg5: memref<1x8x8x16xbf16, #tpu.memory_space<vmem>>) attributes {dimension_semantics = [#tpu.dimension_semantics<parallel>, #tpu.dimension_semantics<parallel>], iteration_bounds = array<i64: 2, 1>, scalar_prefetch = 0 : i64, scratch_operands = 0 : i64, tpu.core_type = #tpu.core_type<tc>, window_params = [{transform_indices = @transform_0, window_bounds = array<i64: 1, 16, 8, 16>}, {pipeline_mode = #tpu.pipeline_mode<synchronous>, transform_indices = @transform_1, window_bounds = array<i64: 32, 16>}, {pipeline_mode = #tpu.pipeline_mode<synchronous>, transform_indices = @transform_2, window_bounds = array<i64: 1, 16>}, {transform_indices = @transform_3, window_bounds = array<i64: 1, 8, 8, 16>}]} {
    %c0 = arith.constant 0 : index
    %c0_0 = arith.constant 0 : index
    %c0_1 = arith.constant 0 : index
    %c0_2 = arith.constant 0 : index
    %0 = vector.load %arg2[%c0, %c0_0, %c0_1, %c0_2] : memref<1x16x8x16xbf16, #tpu.memory_space<vmem>>, vector<1x16x8x16xbf16>
    %1 = vector.shape_cast %0 : vector<1x16x8x16xbf16> to vector<16x8x16xbf16>
    %2 = vector.shape_cast %1 : vector<16x8x16xbf16> to vector<8x2x8x16xbf16>
    %c0_3 = arith.constant 0 : index
    %c0_4 = arith.constant 0 : index
    %3 = vector.load %arg3[%c0_3, %c0_4] : memref<32x16xbf16, #tpu.memory_space<vmem>>, vector<32x16xbf16>
    %cst = arith.constant 0.000000e+00 : f32
    %4 = vector.broadcast %cst : f32 to vector<64x16xf32>
    %5 = vector.extract_strided_slice %2 {offsets = [0, 0, 0, 0], sizes = [8, 1, 8, 16], strides = [1, 1, 1, 1]} : vector<8x2x8x16xbf16> to vector<8x1x8x16xbf16>
    %6 = vector.shape_cast %5 : vector<8x1x8x16xbf16> to vector<8x8x16xbf16>
    %7 = vector.shape_cast %6 : vector<8x8x16xbf16> to vector<64x16xbf16>
    %8 = vector.extract_strided_slice %3 {offsets = [0, 0], sizes = [16, 16], strides = [1, 1]} : vector<32x16xbf16> to vector<16x16xbf16>
    %cst_5 = arith.constant dense<0.000000e+00> : vector<64x16xf32>
    %9 = tpu.matmul %7, %8, %cst_5 {dimension_numbers = #tpu.dot_dimension_numbers<[1], [0], [0], [1], [0, 0, 1, 1], [], []>} : vector<64x16xbf16>, vector<16x16xbf16>, vector<64x16xf32> -> vector<64x16xf32>
    %10 = arith.addf %4, %9 : vector<64x16xf32>
    %11 = vector.extract_strided_slice %2 {offsets = [0, 1, 0, 0], sizes = [8, 1, 8, 16], strides = [1, 1, 1, 1]} : vector<8x2x8x16xbf16> to vector<8x1x8x16xbf16>
    %12 = vector.shape_cast %11 : vector<8x1x8x16xbf16> to vector<8x8x16xbf16>
    %13 = vector.shape_cast %12 : vector<8x8x16xbf16> to vector<64x16xbf16>
    %14 = vector.extract_strided_slice %3 {offsets = [16, 0], sizes = [16, 16], strides = [1, 1]} : vector<32x16xbf16> to vector<16x16xbf16>
    %cst_6 = arith.constant dense<0.000000e+00> : vector<64x16xf32>
    %15 = tpu.matmul %13, %14, %cst_6 {dimension_numbers = #tpu.dot_dimension_numbers<[1], [0], [0], [1], [0, 0, 1, 1], [], []>} : vector<64x16xbf16>, vector<16x16xbf16>, vector<64x16xf32> -> vector<64x16xf32>
    %16 = arith.addf %10, %15 : vector<64x16xf32>
    %c0_7 = arith.constant 0 : index
    %c0_8 = arith.constant 0 : index
    %17 = vector.load %arg4[%c0_7, %c0_8] : memref<1x16xf32, #tpu.memory_space<vmem>>, vector<1x16xf32>
    %18 = vector.broadcast %17 : vector<1x16xf32> to vector<64x16xf32>
    %19 = arith.addf %16, %18 : vector<64x16xf32>
    %cst_9 = arith.constant 0.000000e+00 : f32
    %20 = vector.broadcast %cst_9 : f32 to vector<64x16xf32>
    %21 = arith.maximumf %19, %20 : vector<64x16xf32>
    %22 = vector.shape_cast %21 : vector<64x16xf32> to vector<8x8x16xf32>
    %23 = arith.truncf %22 : vector<8x8x16xf32> to vector<8x8x16xbf16>
    %c0_10 = arith.constant 0 : index
    %c0_11 = arith.constant 0 : index
    %c0_12 = arith.constant 0 : index
    %c0_13 = arith.constant 0 : index
    %24 = vector.load %arg5[%c0_10, %c0_11, %c0_12, %c0_13] : memref<1x8x8x16xbf16, #tpu.memory_space<vmem>>, vector<1x8x8x16xbf16>
    %25 = vector.shape_cast %24 : vector<1x8x8x16xbf16> to vector<8x8x16xbf16>
    %26 = vector.shape_cast %23 : vector<8x8x16xbf16> to vector<1x8x8x16xbf16>
    tpu.vector_store %arg5[%c0_10, %c0_11, %c0_12, %c0_13], %26 {strides = array<i32>} : memref<1x8x8x16xbf16, #tpu.memory_space<vmem>>, vector<1x8x8x16xbf16>,
    return
  }
  func.func @transform_0(%arg0: i32, %arg1: i32) -> (i32, i32, i32, i32) {
    %c0_i32 = arith.constant 0 : i32
    %c0_i32_0 = arith.constant 0 : i32
    %c0_i32_1 = arith.constant 0 : i32
    return %arg0, %arg1, %c0_i32, %c0_i32_0 : i32, i32, i32, i32
  }
  func.func @transform_1(%arg0: i32, %arg1: i32) -> (i32, i32) {
    %c0_i32 = arith.constant 0 : i32
    %c0_i32_0 = arith.constant 0 : i32
    %c0_i32_1 = arith.constant 0 : i32
    return %c0_i32, %c0_i32_0 : i32, i32
  }
  func.func @transform_2(%arg0: i32, %arg1: i32) -> (i32, i32) {
    %c0_i32 = arith.constant 0 : i32
    %c0_i32_0 = arith.constant 0 : i32
    %c0_i32_1 = arith.constant 0 : i32
    return %c0_i32, %c0_i32_0 : i32, i32
  }
  func.func @transform_3(%arg0: i32, %arg1: i32) -> (i32, i32, i32, i32) {
    %c0_i32 = arith.constant 0 : i32
    %c0_i32_0 = arith.constant 0 : i32
    %c0_i32_1 = arith.constant 0 : i32
    return %arg0, %arg1, %c0_i32, %c0_i32_0 : i32, i32, i32, i32
  }
}

module attributes {stable_mosaic.version = 11 : i64} {
  func.func @_patch_conv_kernel(%arg0: i32, %arg1: i32, %arg2: memref<1x8x4x32xbf16, #tpu.memory_space<vmem>>, %arg3: memref<64x32xbf16, #tpu.memory_space<vmem>>, %arg4: memref<1x32xf32, #tpu.memory_space<vmem>>, %arg5: memref<1x4x4x32xbf16, #tpu.memory_space<vmem>>) attributes {dimension_semantics = [#tpu.dimension_semantics<parallel>, #tpu.dimension_semantics<parallel>], iteration_bounds = array<i64: 2, 1>, scalar_prefetch = 0 : i64, scratch_operands = 0 : i64, tpu.core_type = #tpu.core_type<tc>, window_params = [{transform_indices = @transform_0, window_bounds = array<i64: 1, 8, 4, 32>}, {pipeline_mode = #tpu.pipeline_mode<synchronous>, transform_indices = @transform_1, window_bounds = array<i64: 64, 32>}, {pipeline_mode = #tpu.pipeline_mode<synchronous>, transform_indices = @transform_2, window_bounds = array<i64: 1, 32>}, {transform_indices = @transform_3, window_bounds = array<i64: 1, 4, 4, 32>}]} {
    %c0 = arith.constant 0 : index
    %c0_0 = arith.constant 0 : index
    %c0_1 = arith.constant 0 : index
    %c0_2 = arith.constant 0 : index
    %0 = vector.load %arg2[%c0, %c0_0, %c0_1, %c0_2] : memref<1x8x4x32xbf16, #tpu.memory_space<vmem>>, vector<1x8x4x32xbf16>
    %1 = vector.shape_cast %0 : vector<1x8x4x32xbf16> to vector<8x4x32xbf16>
    %2 = vector.shape_cast %1 : vector<8x4x32xbf16> to vector<4x2x4x32xbf16>
    %c0_3 = arith.constant 0 : index
    %c0_4 = arith.constant 0 : index
    %3 = vector.load %arg3[%c0_3, %c0_4] : memref<64x32xbf16, #tpu.memory_space<vmem>>, vector<64x32xbf16>
    %cst = arith.constant 0.000000e+00 : f32
    %4 = vector.broadcast %cst : f32 to vector<16x32xf32>
    %5 = vector.extract_strided_slice %2 {offsets = [0, 0, 0, 0], sizes = [4, 1, 4, 32], strides = [1, 1, 1, 1]} : vector<4x2x4x32xbf16> to vector<4x1x4x32xbf16>
    %6 = vector.shape_cast %5 : vector<4x1x4x32xbf16> to vector<4x4x32xbf16>
    %7 = vector.shape_cast %6 : vector<4x4x32xbf16> to vector<16x32xbf16>
    %8 = vector.extract_strided_slice %3 {offsets = [0, 0], sizes = [32, 32], strides = [1, 1]} : vector<64x32xbf16> to vector<32x32xbf16>
    %cst_5 = arith.constant dense<0.000000e+00> : vector<16x32xf32>
    %9 = tpu.matmul %7, %8, %cst_5 {dimension_numbers = #tpu.dot_dimension_numbers<[1], [0], [0], [1], [0, 0, 1, 1], [], []>} : vector<16x32xbf16>, vector<32x32xbf16>, vector<16x32xf32> -> vector<16x32xf32>
    %10 = arith.addf %4, %9 : vector<16x32xf32>
    %11 = vector.extract_strided_slice %2 {offsets = [0, 1, 0, 0], sizes = [4, 1, 4, 32], strides = [1, 1, 1, 1]} : vector<4x2x4x32xbf16> to vector<4x1x4x32xbf16>
    %12 = vector.shape_cast %11 : vector<4x1x4x32xbf16> to vector<4x4x32xbf16>
    %13 = vector.shape_cast %12 : vector<4x4x32xbf16> to vector<16x32xbf16>
    %14 = vector.extract_strided_slice %3 {offsets = [32, 0], sizes = [32, 32], strides = [1, 1]} : vector<64x32xbf16> to vector<32x32xbf16>
    %cst_6 = arith.constant dense<0.000000e+00> : vector<16x32xf32>
    %15 = tpu.matmul %13, %14, %cst_6 {dimension_numbers = #tpu.dot_dimension_numbers<[1], [0], [0], [1], [0, 0, 1, 1], [], []>} : vector<16x32xbf16>, vector<32x32xbf16>, vector<16x32xf32> -> vector<16x32xf32>
    %16 = arith.addf %10, %15 : vector<16x32xf32>
    %c0_7 = arith.constant 0 : index
    %c0_8 = arith.constant 0 : index
    %17 = vector.load %arg4[%c0_7, %c0_8] : memref<1x32xf32, #tpu.memory_space<vmem>>, vector<1x32xf32>
    %18 = vector.broadcast %17 : vector<1x32xf32> to vector<16x32xf32>
    %19 = arith.addf %16, %18 : vector<16x32xf32>
    %cst_9 = arith.constant 0.000000e+00 : f32
    %20 = vector.broadcast %cst_9 : f32 to vector<16x32xf32>
    %21 = arith.maximumf %19, %20 : vector<16x32xf32>
    %22 = vector.shape_cast %21 : vector<16x32xf32> to vector<4x4x32xf32>
    %23 = arith.truncf %22 : vector<4x4x32xf32> to vector<4x4x32xbf16>
    %c0_10 = arith.constant 0 : index
    %c0_11 = arith.constant 0 : index
    %c0_12 = arith.constant 0 : index
    %c0_13 = arith.constant 0 : index
    %24 = vector.load %arg5[%c0_10, %c0_11, %c0_12, %c0_13] : memref<1x4x4x32xbf16, #tpu.memory_space<vmem>>, vector<1x4x4x32xbf16>
    %25 = vector.shape_cast %24 : vector<1x4x4x32xbf16> to vector<4x4x32xbf16>
    %26 = vector.shape_cast %23 : vector<4x4x32xbf16> to vector<1x4x4x32xbf16>
    tpu.vector_store %arg5[%c0_10, %c0_11, %c0_12, %c0_13], %26 {strides = array<i32>} : memref<1x4x4x32xbf16, #tpu.memory_space<vmem>>, vector<1x4x4x32xbf16>,
    return
  }
  func.func @transform_0(%arg0: i32, %arg1: i32) -> (i32, i32, i32, i32) {
    %c0_i32 = arith.constant 0 : i32
    %c0_i32_0 = arith.constant 0 : i32
    %c0_i32_1 = arith.constant 0 : i32
    return %arg0, %arg1, %c0_i32, %c0_i32_0 : i32, i32, i32, i32
  }
  func.func @transform_1(%arg0: i32, %arg1: i32) -> (i32, i32) {
    %c0_i32 = arith.constant 0 : i32
    %c0_i32_0 = arith.constant 0 : i32
    %c0_i32_1 = arith.constant 0 : i32
    return %c0_i32, %c0_i32_0 : i32, i32
  }
  func.func @transform_2(%arg0: i32, %arg1: i32) -> (i32, i32) {
    %c0_i32 = arith.constant 0 : i32
    %c0_i32_0 = arith.constant 0 : i32
    %c0_i32_1 = arith.constant 0 : i32
    return %c0_i32, %c0_i32_0 : i32, i32
  }
  func.func @transform_3(%arg0: i32, %arg1: i32) -> (i32, i32, i32, i32) {
    %c0_i32 = arith.constant 0 : i32
    %c0_i32_0 = arith.constant 0 : i32
    %c0_i32_1 = arith.constant 0 : i32
    return %arg0, %arg1, %c0_i32, %c0_i32_0 : i32, i32, i32, i32
  }
}

module attributes {stable_mosaic.version = 11 : i64} {
  func.func @_patch_conv_kernel(%arg0: i32, %arg1: i32, %arg2: memref<1x4x2x64xbf16, #tpu.memory_space<vmem>>, %arg3: memref<128x64xbf16, #tpu.memory_space<vmem>>, %arg4: memref<1x64xf32, #tpu.memory_space<vmem>>, %arg5: memref<1x2x2x64xbf16, #tpu.memory_space<vmem>>) attributes {dimension_semantics = [#tpu.dimension_semantics<parallel>, #tpu.dimension_semantics<parallel>], iteration_bounds = array<i64: 2, 1>, scalar_prefetch = 0 : i64, scratch_operands = 0 : i64, tpu.core_type = #tpu.core_type<tc>, window_params = [{transform_indices = @transform_0, window_bounds = array<i64: 1, 4, 2, 64>}, {pipeline_mode = #tpu.pipeline_mode<synchronous>, transform_indices = @transform_1, window_bounds = array<i64: 128, 64>}, {pipeline_mode = #tpu.pipeline_mode<synchronous>, transform_indices = @transform_2, window_bounds = array<i64: 1, 64>}, {transform_indices = @transform_3, window_bounds = array<i64: 1, 2, 2, 64>}]} {
    %c0 = arith.constant 0 : index
    %c0_0 = arith.constant 0 : index
    %c0_1 = arith.constant 0 : index
    %c0_2 = arith.constant 0 : index
    %0 = vector.load %arg2[%c0, %c0_0, %c0_1, %c0_2] : memref<1x4x2x64xbf16, #tpu.memory_space<vmem>>, vector<1x4x2x64xbf16>
    %1 = vector.shape_cast %0 : vector<1x4x2x64xbf16> to vector<4x2x64xbf16>
    %2 = vector.shape_cast %1 : vector<4x2x64xbf16> to vector<2x2x2x64xbf16>
    %c0_3 = arith.constant 0 : index
    %c0_4 = arith.constant 0 : index
    %3 = vector.load %arg3[%c0_3, %c0_4] : memref<128x64xbf16, #tpu.memory_space<vmem>>, vector<128x64xbf16>
    %cst = arith.constant 0.000000e+00 : f32
    %4 = vector.broadcast %cst : f32 to vector<4x64xf32>
    %5 = vector.extract_strided_slice %2 {offsets = [0, 0, 0, 0], sizes = [2, 1, 2, 64], strides = [1, 1, 1, 1]} : vector<2x2x2x64xbf16> to vector<2x1x2x64xbf16>
    %6 = vector.shape_cast %5 : vector<2x1x2x64xbf16> to vector<2x2x64xbf16>
    %7 = vector.shape_cast %6 : vector<2x2x64xbf16> to vector<4x64xbf16>
    %8 = vector.extract_strided_slice %3 {offsets = [0, 0], sizes = [64, 64], strides = [1, 1]} : vector<128x64xbf16> to vector<64x64xbf16>
    %cst_5 = arith.constant dense<0.000000e+00> : vector<4x64xf32>
    %9 = tpu.matmul %7, %8, %cst_5 {dimension_numbers = #tpu.dot_dimension_numbers<[1], [0], [0], [1], [0, 0, 1, 1], [], []>} : vector<4x64xbf16>, vector<64x64xbf16>, vector<4x64xf32> -> vector<4x64xf32>
    %10 = arith.addf %4, %9 : vector<4x64xf32>
    %11 = vector.extract_strided_slice %2 {offsets = [0, 1, 0, 0], sizes = [2, 1, 2, 64], strides = [1, 1, 1, 1]} : vector<2x2x2x64xbf16> to vector<2x1x2x64xbf16>
    %12 = vector.shape_cast %11 : vector<2x1x2x64xbf16> to vector<2x2x64xbf16>
    %13 = vector.shape_cast %12 : vector<2x2x64xbf16> to vector<4x64xbf16>
    %14 = vector.extract_strided_slice %3 {offsets = [64, 0], sizes = [64, 64], strides = [1, 1]} : vector<128x64xbf16> to vector<64x64xbf16>
    %cst_6 = arith.constant dense<0.000000e+00> : vector<4x64xf32>
    %15 = tpu.matmul %13, %14, %cst_6 {dimension_numbers = #tpu.dot_dimension_numbers<[1], [0], [0], [1], [0, 0, 1, 1], [], []>} : vector<4x64xbf16>, vector<64x64xbf16>, vector<4x64xf32> -> vector<4x64xf32>
    %16 = arith.addf %10, %15 : vector<4x64xf32>
    %c0_7 = arith.constant 0 : index
    %c0_8 = arith.constant 0 : index
    %17 = vector.load %arg4[%c0_7, %c0_8] : memref<1x64xf32, #tpu.memory_space<vmem>>, vector<1x64xf32>
    %18 = vector.broadcast %17 : vector<1x64xf32> to vector<4x64xf32>
    %19 = arith.addf %16, %18 : vector<4x64xf32>
    %cst_9 = arith.constant 0.000000e+00 : f32
    %20 = vector.broadcast %cst_9 : f32 to vector<4x64xf32>
    %21 = arith.maximumf %19, %20 : vector<4x64xf32>
    %22 = vector.shape_cast %21 : vector<4x64xf32> to vector<2x2x64xf32>
    %23 = arith.truncf %22 : vector<2x2x64xf32> to vector<2x2x64xbf16>
    %c0_10 = arith.constant 0 : index
    %c0_11 = arith.constant 0 : index
    %c0_12 = arith.constant 0 : index
    %c0_13 = arith.constant 0 : index
    %24 = vector.load %arg5[%c0_10, %c0_11, %c0_12, %c0_13] : memref<1x2x2x64xbf16, #tpu.memory_space<vmem>>, vector<1x2x2x64xbf16>
    %25 = vector.shape_cast %24 : vector<1x2x2x64xbf16> to vector<2x2x64xbf16>
    %26 = vector.shape_cast %23 : vector<2x2x64xbf16> to vector<1x2x2x64xbf16>
    tpu.vector_store %arg5[%c0_10, %c0_11, %c0_12, %c0_13], %26 {strides = array<i32>} : memref<1x2x2x64xbf16, #tpu.memory_space<vmem>>, vector<1x2x2x64xbf16>,
    return
  }
  func.func @transform_0(%arg0: i32, %arg1: i32) -> (i32, i32, i32, i32) {
    %c0_i32 = arith.constant 0 : i32
    %c0_i32_0 = arith.constant 0 : i32
    %c0_i32_1 = arith.constant 0 : i32
    return %arg0, %arg1, %c0_i32, %c0_i32_0 : i32, i32, i32, i32
  }
  func.func @transform_1(%arg0: i32, %arg1: i32) -> (i32, i32) {
    %c0_i32 = arith.constant 0 : i32
    %c0_i32_0 = arith.constant 0 : i32
    %c0_i32_1 = arith.constant 0 : i32
    return %c0_i32, %c0_i32_0 : i32, i32
  }
  func.func @transform_2(%arg0: i32, %arg1: i32) -> (i32, i32) {
    %c0_i32 = arith.constant 0 : i32
    %c0_i32_0 = arith.constant 0 : i32
    %c0_i32_1 = arith.constant 0 : i32
    return %c0_i32, %c0_i32_0 : i32, i32
  }
  func.func @transform_3(%arg0: i32, %arg1: i32) -> (i32, i32, i32, i32) {
    %c0_i32 = arith.constant 0 : i32
    %c0_i32_0 = arith.constant 0 : i32
    %c0_i32_1 = arith.constant 0 : i32
    return %arg0, %arg1, %c0_i32, %c0_i32_0 : i32, i32, i32, i32
  }
}

module attributes {stable_mosaic.version = 11 : i64} {
  func.func @_decoder_kernel(%arg0: i32, %arg1: i32, %arg2: memref<1x2x2x64xbf16, #tpu.memory_space<vmem>>, %arg3: memref<1x4x4x32xbf16, #tpu.memory_space<vmem>>, %arg4: memref<1x8x8x16xbf16, #tpu.memory_space<vmem>>, %arg5: memref<1x16x16x8xbf16, #tpu.memory_space<vmem>>, %arg6: memref<64x32xbf16, #tpu.memory_space<vmem>>, %arg7: memref<1x32xf32, #tpu.memory_space<vmem>>, %arg8: memref<32x32xbf16, #tpu.memory_space<vmem>>, %arg9: memref<1x32xf32, #tpu.memory_space<vmem>>, %arg10: memref<16x32xbf16, #tpu.memory_space<vmem>>, %arg11: memref<1x32xf32, #tpu.memory_space<vmem>>, %arg12: memref<8x32xbf16, #tpu.memory_space<vmem>>, %arg13: memref<1x32xf32, #tpu.memory_space<vmem>>, %arg14: memref<32x32xbf16, #tpu.memory_space<vmem>>, %arg15: memref<1x32xf32, #tpu.memory_space<vmem>>, %arg16: memref<32x32xbf16, #tpu.memory_space<vmem>>, %arg17: memref<1x32xf32, #tpu.memory_space<vmem>>, %arg18: memref<1x2x2x32xf32, #tpu.memory_space<vmem>>, %arg19: memref<1x4x4x32xf32, #tpu.memory_space<vmem>>, %arg20: memref<1x8x8x32xf32, #tpu.memory_space<vmem>>, %arg21: memref<1x16x16x32xf32, #tpu.memory_space<vmem>>) attributes {dimension_semantics = [#tpu.dimension_semantics<parallel>, #tpu.dimension_semantics<parallel>], iteration_bounds = array<i64: 2, 1>, scalar_prefetch = 0 : i64, scratch_operands = 0 : i64, tpu.core_type = #tpu.core_type<tc>, window_params = [{transform_indices = @transform_0, window_bounds = array<i64: 1, 2, 2, 64>}, {transform_indices = @transform_1, window_bounds = array<i64: 1, 4, 4, 32>}, {transform_indices = @transform_2, window_bounds = array<i64: 1, 8, 8, 16>}, {transform_indices = @transform_3, window_bounds = array<i64: 1, 16, 16, 8>}, {pipeline_mode = #tpu.pipeline_mode<synchronous>, transform_indices = @transform_4, window_bounds = array<i64: 64, 32>}, {pipeline_mode = #tpu.pipeline_mode<synchronous>, transform_indices = @transform_5, window_bounds = array<i64: 1, 32>}, {pipeline_mode = #tpu.pipeline_mode<synchronous>, transform_indices = @transform_6, window_bounds = array<i64: 32, 32>}, {pipeline_mode = #tpu.pipeline_mode<synchronous>, transform_indices = @transform_7, window_bounds = array<i64: 1, 32>}, {pipeline_mode = #tpu.pipeline_mode<synchronous>, transform_indices = @transform_8, window_bounds = array<i64: 16, 32>}, {pipeline_mode = #tpu.pipeline_mode<synchronous>, transform_indices = @transform_9, window_bounds = array<i64: 1, 32>}, {pipeline_mode = #tpu.pipeline_mode<synchronous>, transform_indices = @transform_10, window_bounds = array<i64: 8, 32>}, {pipeline_mode = #tpu.pipeline_mode<synchronous>, transform_indices = @transform_11, window_bounds = array<i64: 1, 32>}, {pipeline_mode = #tpu.pipeline_mode<synchronous>, transform_indices = @transform_12, window_bounds = array<i64: 32, 32>}, {pipeline_mode = #tpu.pipeline_mode<synchronous>, transform_indices = @transform_13, window_bounds = array<i64: 1, 32>}, {pipeline_mode = #tpu.pipeline_mode<synchronous>, transform_indices = @transform_14, window_bounds = array<i64: 32, 32>}, {pipeline_mode = #tpu.pipeline_mode<synchronous>, transform_indices = @transform_15, window_bounds = array<i64: 1, 32>}, {transform_indices = @transform_16, window_bounds = array<i64: 1, 2, 2, 32>}, {transform_indices = @transform_17, window_bounds = array<i64: 1, 4, 4, 32>}, {transform_indices = @transform_18, window_bounds = array<i64: 1, 8, 8, 32>}, {transform_indices = @transform_19, window_bounds = array<i64: 1, 16, 16, 32>}]} {
    %c0 = arith.constant 0 : index
    %c0_0 = arith.constant 0 : index
    %c0_1 = arith.constant 0 : index
    %c0_2 = arith.constant 0 : index
    %0 = vector.load %arg2[%c0, %c0_0, %c0_1, %c0_2] : memref<1x2x2x64xbf16, #tpu.memory_space<vmem>>, vector<1x2x2x64xbf16>
    %1 = vector.shape_cast %0 : vector<1x2x2x64xbf16> to vector<2x2x64xbf16>
    %2 = vector.shape_cast %1 : vector<2x2x64xbf16> to vector<4x64xbf16>
    %c0_3 = arith.constant 0 : index
    %c0_4 = arith.constant 0 : index
    %3 = vector.load %arg6[%c0_3, %c0_4] : memref<64x32xbf16, #tpu.memory_space<vmem>>, vector<64x32xbf16>
    %cst = arith.constant dense<0.000000e+00> : vector<4x32xf32>
    %4 = tpu.matmul %2, %3, %cst {dimension_numbers = #tpu.dot_dimension_numbers<[1], [0], [0], [1], [0, 0, 1, 1], [], []>} : vector<4x64xbf16>, vector<64x32xbf16>, vector<4x32xf32> -> vector<4x32xf32>
    %c0_5 = arith.constant 0 : index
    %c0_6 = arith.constant 0 : index
    %5 = vector.load %arg7[%c0_5, %c0_6] : memref<1x32xf32, #tpu.memory_space<vmem>>, vector<1x32xf32>
    %6 = vector.broadcast %5 : vector<1x32xf32> to vector<4x32xf32>
    %7 = arith.addf %4, %6 : vector<4x32xf32>
    %8 = vector.shape_cast %7 : vector<4x32xf32> to vector<2x2x32xf32>
    %c0_7 = arith.constant 0 : index
    %c0_8 = arith.constant 0 : index
    %c0_9 = arith.constant 0 : index
    %c0_10 = arith.constant 0 : index
    %9 = vector.load %arg18[%c0_7, %c0_8, %c0_9, %c0_10] : memref<1x2x2x32xf32, #tpu.memory_space<vmem>>, vector<1x2x2x32xf32>
    %10 = vector.shape_cast %9 : vector<1x2x2x32xf32> to vector<2x2x32xf32>
    %11 = vector.shape_cast %8 : vector<2x2x32xf32> to vector<1x2x2x32xf32>
    tpu.vector_store %arg18[%c0_7, %c0_8, %c0_9, %c0_10], %11 {strides = array<i32>} : memref<1x2x2x32xf32, #tpu.memory_space<vmem>>, vector<1x2x2x32xf32>,
    %c0_11 = arith.constant 0 : index
    %c0_12 = arith.constant 0 : index
    %c0_13 = arith.constant 0 : index
    %c0_14 = arith.constant 0 : index
    %12 = vector.load %arg3[%c0_11, %c0_12, %c0_13, %c0_14] : memref<1x4x4x32xbf16, #tpu.memory_space<vmem>>, vector<1x4x4x32xbf16>
    %13 = vector.shape_cast %12 : vector<1x4x4x32xbf16> to vector<4x4x32xbf16>
    %14 = vector.shape_cast %13 : vector<4x4x32xbf16> to vector<16x32xbf16>
    %c0_15 = arith.constant 0 : index
    %c0_16 = arith.constant 0 : index
    %15 = vector.load %arg8[%c0_15, %c0_16] : memref<32x32xbf16, #tpu.memory_space<vmem>>, vector<32x32xbf16>
    %cst_17 = arith.constant dense<0.000000e+00> : vector<16x32xf32>
    %16 = tpu.matmul %14, %15, %cst_17 {dimension_numbers = #tpu.dot_dimension_numbers<[1], [0], [0], [1], [0, 0, 1, 1], [], []>} : vector<16x32xbf16>, vector<32x32xbf16>, vector<16x32xf32> -> vector<16x32xf32>
    %c0_18 = arith.constant 0 : index
    %c0_19 = arith.constant 0 : index
    %17 = vector.load %arg9[%c0_18, %c0_19] : memref<1x32xf32, #tpu.memory_space<vmem>>, vector<1x32xf32>
    %18 = vector.broadcast %17 : vector<1x32xf32> to vector<16x32xf32>
    %19 = arith.addf %16, %18 : vector<16x32xf32>
    %20 = vector.shape_cast %19 : vector<16x32xf32> to vector<4x4x32xf32>
    %21 = vector.shape_cast %8 : vector<2x2x32xf32> to vector<2x1x2x32xf32>
    %22 = vector.shape_cast %21 : vector<2x1x2x32xf32> to vector<2x1x2x32xf32>
    %23 = vector.broadcast %22 : vector<2x1x2x32xf32> to vector<2x2x2x32xf32>
    %24 = vector.shape_cast %23 : vector<2x2x2x32xf32> to vector<4x2x32xf32>
    %25 = vector.shape_cast %24 : vector<4x2x32xf32> to vector<8x32xf32>
    %26 = vector.shape_cast %25 : vector<8x32xf32> to vector<8x1x32xf32>
    %27 = vector.shape_cast %26 : vector<8x1x32xf32> to vector<8x1x32xf32>
    %28 = vector.broadcast %27 : vector<8x1x32xf32> to vector<8x2x32xf32>
    %29 = vector.shape_cast %28 : vector<8x2x32xf32> to vector<16x32xf32>
    %30 = vector.shape_cast %29 : vector<16x32xf32> to vector<4x4x32xf32>
    %31 = arith.addf %30, %20 : vector<4x4x32xf32>
    %c0_20 = arith.constant 0 : index
    %c0_21 = arith.constant 0 : index
    %c0_22 = arith.constant 0 : index
    %c0_23 = arith.constant 0 : index
    %32 = vector.load %arg19[%c0_20, %c0_21, %c0_22, %c0_23] : memref<1x4x4x32xf32, #tpu.memory_space<vmem>>, vector<1x4x4x32xf32>
    %33 = vector.shape_cast %32 : vector<1x4x4x32xf32> to vector<4x4x32xf32>
    %34 = vector.shape_cast %31 : vector<4x4x32xf32> to vector<1x4x4x32xf32>
    tpu.vector_store %arg19[%c0_20, %c0_21, %c0_22, %c0_23], %34 {strides = array<i32>} : memref<1x4x4x32xf32, #tpu.memory_space<vmem>>, vector<1x4x4x32xf32>,
    %c0_24 = arith.constant 0 : index
    %c0_25 = arith.constant 0 : index
    %c0_26 = arith.constant 0 : index
    %c0_27 = arith.constant 0 : index
    %35 = vector.load %arg4[%c0_24, %c0_25, %c0_26, %c0_27] : memref<1x8x8x16xbf16, #tpu.memory_space<vmem>>, vector<1x8x8x16xbf16>
    %36 = vector.shape_cast %35 : vector<1x8x8x16xbf16> to vector<8x8x16xbf16>
    %37 = vector.shape_cast %36 : vector<8x8x16xbf16> to vector<64x16xbf16>
    %c0_28 = arith.constant 0 : index
    %c0_29 = arith.constant 0 : index
    %38 = vector.load %arg10[%c0_28, %c0_29] : memref<16x32xbf16, #tpu.memory_space<vmem>>, vector<16x32xbf16>
    %cst_30 = arith.constant dense<0.000000e+00> : vector<64x32xf32>
    %39 = tpu.matmul %37, %38, %cst_30 {dimension_numbers = #tpu.dot_dimension_numbers<[1], [0], [0], [1], [0, 0, 1, 1], [], []>} : vector<64x16xbf16>, vector<16x32xbf16>, vector<64x32xf32> -> vector<64x32xf32>
    %c0_31 = arith.constant 0 : index
    %c0_32 = arith.constant 0 : index
    %40 = vector.load %arg11[%c0_31, %c0_32] : memref<1x32xf32, #tpu.memory_space<vmem>>, vector<1x32xf32>
    %41 = vector.broadcast %40 : vector<1x32xf32> to vector<64x32xf32>
    %42 = arith.addf %39, %41 : vector<64x32xf32>
    %43 = vector.shape_cast %42 : vector<64x32xf32> to vector<8x8x32xf32>
    %44 = vector.shape_cast %31 : vector<4x4x32xf32> to vector<4x1x4x32xf32>
    %45 = vector.shape_cast %44 : vector<4x1x4x32xf32> to vector<4x1x4x32xf32>
    %46 = vector.broadcast %45 : vector<4x1x4x32xf32> to vector<4x2x4x32xf32>
    %47 = vector.shape_cast %46 : vector<4x2x4x32xf32> to vector<8x4x32xf32>
    %48 = vector.shape_cast %47 : vector<8x4x32xf32> to vector<32x32xf32>
    %49 = vector.shape_cast %48 : vector<32x32xf32> to vector<32x1x32xf32>
    %50 = vector.shape_cast %49 : vector<32x1x32xf32> to vector<32x1x32xf32>
    %51 = vector.broadcast %50 : vector<32x1x32xf32> to vector<32x2x32xf32>
    %52 = vector.shape_cast %51 : vector<32x2x32xf32> to vector<64x32xf32>
    %53 = vector.shape_cast %52 : vector<64x32xf32> to vector<8x8x32xf32>
    %54 = arith.addf %53, %43 : vector<8x8x32xf32>
    %c0_33 = arith.constant 0 : index
    %c0_34 = arith.constant 0 : index
    %c0_35 = arith.constant 0 : index
    %c0_36 = arith.constant 0 : index
    %55 = vector.load %arg20[%c0_33, %c0_34, %c0_35, %c0_36] : memref<1x8x8x32xf32, #tpu.memory_space<vmem>>, vector<1x8x8x32xf32>
    %56 = vector.shape_cast %55 : vector<1x8x8x32xf32> to vector<8x8x32xf32>
    %57 = vector.shape_cast %54 : vector<8x8x32xf32> to vector<1x8x8x32xf32>
    tpu.vector_store %arg20[%c0_33, %c0_34, %c0_35, %c0_36], %57 {strides = array<i32>} : memref<1x8x8x32xf32, #tpu.memory_space<vmem>>, vector<1x8x8x32xf32>,
    %c0_37 = arith.constant 0 : index
    %c0_38 = arith.constant 0 : index
    %c0_39 = arith.constant 0 : index
    %c0_40 = arith.constant 0 : index
    %58 = vector.load %arg5[%c0_37, %c0_38, %c0_39, %c0_40] : memref<1x16x16x8xbf16, #tpu.memory_space<vmem>>, vector<1x16x16x8xbf16>
    %59 = vector.shape_cast %58 : vector<1x16x16x8xbf16> to vector<16x16x8xbf16>
    %60 = vector.shape_cast %59 : vector<16x16x8xbf16> to vector<256x8xbf16>
    %c0_41 = arith.constant 0 : index
    %c0_42 = arith.constant 0 : index
    %61 = vector.load %arg12[%c0_41, %c0_42] : memref<8x32xbf16, #tpu.memory_space<vmem>>, vector<8x32xbf16>
    %cst_43 = arith.constant dense<0.000000e+00> : vector<256x32xf32>
    %62 = tpu.matmul %60, %61, %cst_43 {dimension_numbers = #tpu.dot_dimension_numbers<[1], [0], [0], [1], [0, 0, 1, 1], [], []>} : vector<256x8xbf16>, vector<8x32xbf16>, vector<256x32xf32> -> vector<256x32xf32>
    %c0_44 = arith.constant 0 : index
    %c0_45 = arith.constant 0 : index
    %63 = vector.load %arg13[%c0_44, %c0_45] : memref<1x32xf32, #tpu.memory_space<vmem>>, vector<1x32xf32>
    %64 = vector.broadcast %63 : vector<1x32xf32> to vector<256x32xf32>
    %65 = arith.addf %62, %64 : vector<256x32xf32>
    %66 = vector.shape_cast %54 : vector<8x8x32xf32> to vector<8x1x8x32xf32>
    %67 = vector.shape_cast %66 : vector<8x1x8x32xf32> to vector<8x1x8x32xf32>
    %68 = vector.broadcast %67 : vector<8x1x8x32xf32> to vector<8x2x8x32xf32>
    %69 = vector.shape_cast %68 : vector<8x2x8x32xf32> to vector<16x8x32xf32>
    %70 = vector.shape_cast %69 : vector<16x8x32xf32> to vector<128x32xf32>
    %71 = vector.shape_cast %70 : vector<128x32xf32> to vector<128x1x32xf32>
    %72 = vector.shape_cast %71 : vector<128x1x32xf32> to vector<128x1x32xf32>
    %73 = vector.broadcast %72 : vector<128x1x32xf32> to vector<128x2x32xf32>
    %74 = vector.shape_cast %73 : vector<128x2x32xf32> to vector<256x32xf32>
    %75 = vector.shape_cast %74 : vector<256x32xf32> to vector<16x16x32xf32>
    %76 = vector.shape_cast %75 : vector<16x16x32xf32> to vector<256x32xf32>
    %77 = arith.addf %76, %65 : vector<256x32xf32>
    %78 = arith.truncf %77 : vector<256x32xf32> to vector<256x32xbf16>
    %c0_46 = arith.constant 0 : index
    %c0_47 = arith.constant 0 : index
    %79 = vector.load %arg14[%c0_46, %c0_47] : memref<32x32xbf16, #tpu.memory_space<vmem>>, vector<32x32xbf16>
    %cst_48 = arith.constant dense<0.000000e+00> : vector<256x32xf32>
    %80 = tpu.matmul %78, %79, %cst_48 {dimension_numbers = #tpu.dot_dimension_numbers<[1], [0], [0], [1], [0, 0, 1, 1], [], []>} : vector<256x32xbf16>, vector<32x32xbf16>, vector<256x32xf32> -> vector<256x32xf32>
    %c0_49 = arith.constant 0 : index
    %c0_50 = arith.constant 0 : index
    %81 = vector.load %arg15[%c0_49, %c0_50] : memref<1x32xf32, #tpu.memory_space<vmem>>, vector<1x32xf32>
    %82 = vector.broadcast %81 : vector<1x32xf32> to vector<256x32xf32>
    %83 = arith.addf %80, %82 : vector<256x32xf32>
    %cst_51 = arith.constant 0.000000e+00 : f32
    %84 = vector.broadcast %cst_51 : f32 to vector<256x32xf32>
    %85 = arith.maximumf %83, %84 : vector<256x32xf32>
    %86 = arith.truncf %85 : vector<256x32xf32> to vector<256x32xbf16>
    %c0_52 = arith.constant 0 : index
    %c0_53 = arith.constant 0 : index
    %87 = vector.load %arg16[%c0_52, %c0_53] : memref<32x32xbf16, #tpu.memory_space<vmem>>, vector<32x32xbf16>
    %cst_54 = arith.constant dense<0.000000e+00> : vector<256x32xf32>
    %88 = tpu.matmul %86, %87, %cst_54 {dimension_numbers = #tpu.dot_dimension_numbers<[1], [0], [0], [1], [0, 0, 1, 1], [], []>} : vector<256x32xbf16>, vector<32x32xbf16>, vector<256x32xf32> -> vector<256x32xf32>
    %c0_55 = arith.constant 0 : index
    %c0_56 = arith.constant 0 : index
    %89 = vector.load %arg17[%c0_55, %c0_56] : memref<1x32xf32, #tpu.memory_space<vmem>>, vector<1x32xf32>
    %90 = vector.broadcast %89 : vector<1x32xf32> to vector<256x32xf32>
    %91 = arith.addf %88, %90 : vector<256x32xf32>
    %92 = vector.shape_cast %91 : vector<256x32xf32> to vector<16x16x32xf32>
    %c0_57 = arith.constant 0 : index
    %c0_58 = arith.constant 0 : index
    %c0_59 = arith.constant 0 : index
    %c0_60 = arith.constant 0 : index
    %93 = vector.load %arg21[%c0_57, %c0_58, %c0_59, %c0_60] : memref<1x16x16x32xf32, #tpu.memory_space<vmem>>, vector<1x16x16x32xf32>
    %94 = vector.shape_cast %93 : vector<1x16x16x32xf32> to vector<16x16x32xf32>
    %95 = vector.shape_cast %92 : vector<16x16x32xf32> to vector<1x16x16x32xf32>
    tpu.vector_store %arg21[%c0_57, %c0_58, %c0_59, %c0_60], %95 {strides = array<i32>} : memref<1x16x16x32xf32, #tpu.memory_space<vmem>>, vector<1x16x16x32xf32>,
    return
  }
  func.func @transform_0(%arg0: i32, %arg1: i32) -> (i32, i32, i32, i32) {
    %c0_i32 = arith.constant 0 : i32
    %c0_i32_0 = arith.constant 0 : i32
    %c0_i32_1 = arith.constant 0 : i32
    return %arg0, %arg1, %c0_i32, %c0_i32_0 : i32, i32, i32, i32
  }
  func.func @transform_1(%arg0: i32, %arg1: i32) -> (i32, i32, i32, i32) {
    %c0_i32 = arith.constant 0 : i32
    %c0_i32_0 = arith.constant 0 : i32
    %c0_i32_1 = arith.constant 0 : i32
    return %arg0, %arg1, %c0_i32, %c0_i32_0 : i32, i32, i32, i32
  }
  func.func @transform_2(%arg0: i32, %arg1: i32) -> (i32, i32, i32, i32) {
    %c0_i32 = arith.constant 0 : i32
    %c0_i32_0 = arith.constant 0 : i32
    %c0_i32_1 = arith.constant 0 : i32
    return %arg0, %arg1, %c0_i32, %c0_i32_0 : i32, i32, i32, i32
  }
  func.func @transform_3(%arg0: i32, %arg1: i32) -> (i32, i32, i32, i32) {
    %c0_i32 = arith.constant 0 : i32
    %c0_i32_0 = arith.constant 0 : i32
    %c0_i32_1 = arith.constant 0 : i32
    return %arg0, %arg1, %c0_i32, %c0_i32_0 : i32, i32, i32, i32
  }
  func.func @transform_4(%arg0: i32, %arg1: i32) -> (i32, i32) {
    %c0_i32 = arith.constant 0 : i32
    %c0_i32_0 = arith.constant 0 : i32
    %c0_i32_1 = arith.constant 0 : i32
    return %c0_i32, %c0_i32_0 : i32, i32
  }
  func.func @transform_5(%arg0: i32, %arg1: i32) -> (i32, i32) {
    %c0_i32 = arith.constant 0 : i32
    %c0_i32_0 = arith.constant 0 : i32
    %c0_i32_1 = arith.constant 0 : i32
    return %c0_i32, %c0_i32_0 : i32, i32
  }
  func.func @transform_6(%arg0: i32, %arg1: i32) -> (i32, i32) {
    %c0_i32 = arith.constant 0 : i32
    %c0_i32_0 = arith.constant 0 : i32
    %c0_i32_1 = arith.constant 0 : i32
    return %c0_i32, %c0_i32_0 : i32, i32
  }
  func.func @transform_7(%arg0: i32, %arg1: i32) -> (i32, i32) {
    %c0_i32 = arith.constant 0 : i32
    %c0_i32_0 = arith.constant 0 : i32
    %c0_i32_1 = arith.constant 0 : i32
    return %c0_i32, %c0_i32_0 : i32, i32
  }
  func.func @transform_8(%arg0: i32, %arg1: i32) -> (i32, i32) {
    %c0_i32 = arith.constant 0 : i32
    %c0_i32_0 = arith.constant 0 : i32
    %c0_i32_1 = arith.constant 0 : i32
    return %c0_i32, %c0_i32_0 : i32, i32
  }
  func.func @transform_9(%arg0: i32, %arg1: i32) -> (i32, i32) {
    %c0_i32 = arith.constant 0 : i32
    %c0_i32_0 = arith.constant 0 : i32
    %c0_i32_1 = arith.constant 0 : i32
    return %c0_i32, %c0_i32_0 : i32, i32
  }
  func.func @transform_10(%arg0: i32, %arg1: i32) -> (i32, i32) {
    %c0_i32 = arith.constant 0 : i32
    %c0_i32_0 = arith.constant 0 : i32
    %c0_i32_1 = arith.constant 0 : i32
    return %c0_i32, %c0_i32_0 : i32, i32
  }
  func.func @transform_11(%arg0: i32, %arg1: i32) -> (i32, i32) {
    %c0_i32 = arith.constant 0 : i32
    %c0_i32_0 = arith.constant 0 : i32
    %c0_i32_1 = arith.constant 0 : i32
    return %c0_i32, %c0_i32_0 : i32, i32
  }
  func.func @transform_12(%arg0: i32, %arg1: i32) -> (i32, i32) {
    %c0_i32 = arith.constant 0 : i32
    %c0_i32_0 = arith.constant 0 : i32
    %c0_i32_1 = arith.constant 0 : i32
    return %c0_i32, %c0_i32_0 : i32, i32
  }
  func.func @transform_13(%arg0: i32, %arg1: i32) -> (i32, i32) {
    %c0_i32 = arith.constant 0 : i32
    %c0_i32_0 = arith.constant 0 : i32
    %c0_i32_1 = arith.constant 0 : i32
    return %c0_i32, %c0_i32_0 : i32, i32
  }
  func.func @transform_14(%arg0: i32, %arg1: i32) -> (i32, i32) {
    %c0_i32 = arith.constant 0 : i32
    %c0_i32_0 = arith.constant 0 : i32
    %c0_i32_1 = arith.constant 0 : i32
    return %c0_i32, %c0_i32_0 : i32, i32
  }
  func.func @transform_15(%arg0: i32, %arg1: i32) -> (i32, i32) {
    %c0_i32 = arith.constant 0 : i32
    %c0_i32_0 = arith.constant 0 : i32
    %c0_i32_1 = arith.constant 0 : i32
    return %c0_i32, %c0_i32_0 : i32, i32
  }
  func.func @transform_16(%arg0: i32, %arg1: i32) -> (i32, i32, i32, i32) {
    %c0_i32 = arith.constant 0 : i32
    %c0_i32_0 = arith.constant 0 : i32
    %c0_i32_1 = arith.constant 0 : i32
    return %arg0, %arg1, %c0_i32, %c0_i32_0 : i32, i32, i32, i32
  }
  func.func @transform_17(%arg0: i32, %arg1: i32) -> (i32, i32, i32, i32) {
    %c0_i32 = arith.constant 0 : i32
    %c0_i32_0 = arith.constant 0 : i32
    %c0_i32_1 = arith.constant 0 : i32
    return %arg0, %arg1, %c0_i32, %c0_i32_0 : i32, i32, i32, i32
  }
  func.func @transform_18(%arg0: i32, %arg1: i32) -> (i32, i32, i32, i32) {
    %c0_i32 = arith.constant 0 : i32
    %c0_i32_0 = arith.constant 0 : i32
    %c0_i32_1 = arith.constant 0 : i32
    return %arg0, %arg1, %c0_i32, %c0_i32_0 : i32, i32, i32, i32
  }
  func.func @transform_19(%arg0: i32, %arg1: i32) -> (i32, i32, i32, i32) {
    %c0_i32 = arith.constant 0 : i32
    %c0_i32_0 = arith.constant 0 : i32
    %c0_i32_1 = arith.constant 0 : i32
    return %arg0, %arg1, %c0_i32, %c0_i32_0 : i32, i32, i32, i32
  }
}

</mosaic_0001>

<llo_original>
// kernel: pixel_level_module_forward.6
$region0: #{pixel_level_module_forward.6}
  #allocation0 [shape = 'u32[]', space=smem, size = 0x4, offset = 0x4, fixed_abs, tag = 'smem constant byte address 0x4 - core index']
  #allocation1 [shape = 'u32[144,128]{1,0:T(1,128)}', space=vmem, size = 0x12000, scoped, tag = 'internal scratch']
  %s0 = inlined_call_operand.vmem [shape: bf16[2,16,8,16], index: 0, kind: input, shape index: {}]
  %s1 = inlined_call_operand.vmem [shape: bf16[32,16], index: 1, kind: input, shape index: {}]
  %s2 = inlined_call_operand.vmem [shape: f32[1,16], index: 2, kind: input, shape index: {}]
  %s3 = inlined_call_operand.vmem [shape: bf16[2,8,8,16], index: 3, kind: output, shape index: {}]
  %s4 = sld [smem:[#allocation0]]
  $region45: #{pixel_level_module_forward.6} parent=0
    _
  %s6 = ssub.s32 1, %s4
  %s7 = scalar_select 0, %s6, %s4
  loop: start=0, step=1, limit=4
  $region2: #{pixel_level_module_forward.6} parent=0 // loop_pre_header
    _
  $region3: #{pixel_level_module_forward.6} parent=0 // loop_header
    %s9 = sphi 0, %s13
    %p10 = scmp.ge.s32.totalorder %s9, 4
    %s16 = sphi 0, %s28
    %s17 = sphi 0, %s24
    %s18 = sphi 0, %s16
    %s19 = sphi 0, %s17
    %s20 = sphi 0, %s18
    %s21 = sphi 0, %s19
    %s33 = sphi 0, %s35
    %s36 = sphi 0, %s33
    %s37 = sphi 0, %s36
    %s53 = sphi 0, %s37
    %s57 = sphi 0, %s57
    %s59 = sphi 0, %s57
    %s60 = sphi 0, %s59
    %s74 = sphi 0, %s60
    %s78 = sphi 0, %s78
    %s80 = sphi 0, %s78
    %s81 = sphi 0, %s80
    %s95 = sphi 0, %s81
    %s103 = sphi 0, %s105
    %s106 = sphi 0, %s103
    %s107 = sphi 0, %s106
    %s123 = sphi 0, %s107
  $region4: #{pixel_level_module_forward.6} parent=0 // loop_header_branch
    %12 = sbr.rel (%p10) target = $region8
  $region5: #{pixel_level_module_forward.6} parent=0 // loop_body
    %s14 = ssub.s32 %s9, 1
    %s15 = ssub.s32 %s9, 2
    %s22 = sadd.s32 1, %s17
    %p23 = scmp.ge.s32.totalorder %s22, 1
    %s24 = scalar_select %p23, 0, %s22
    %s25 = sadd.s32 1, %s16
    %s26 = scalar_select %p23, %s25, %s16
    %p27 = scmp.ge.s32.totalorder %s26, 2
    %s28 = scalar_select %p27, 0, %s26
    %s29 = ssub.s32 %s16, %s28
    %s30 = ssub.s32 %s17, %s24
    %s31 = sor.u32 %s29, %s30
    %p32 = scmp.eq.s32.totalorder %s31, 0
    %s34 = sadd.s32 %s33, 1
    %s35 = scalar_select %p32, %s33, %s34
    %p38 = pneg %p32
    %p39 = scmp.eq.s32.totalorder %s9, 1
    %p40 = por %p38, %p39
    %p41 = scmp.ne.s32.totalorder %s33, %s36
    %p42 = scmp.eq.s32.totalorder %s9, 0
    %p43 = por %p41, %p42
    %p44 = scmp.ne.s32.totalorder %s33, %s36
    %p45 = scmp.eq.s32.totalorder %s14, 1
    %p46 = por %p44, %p45
    %p47 = scmp.ne.s32.totalorder %s36, %s37
    %p48 = scmp.eq.s32.totalorder %s14, 0
    %p49 = por %p47, %p48
    %p50 = scmp.ne.s32.totalorder %s36, %s37
    %p51 = scmp.eq.s32.totalorder %s15, 1
    %p52 = por %p50, %p51
    %p54 = scmp.ne.s32.totalorder %s37, %s53
    %p55 = scmp.eq.s32.totalorder %s15, 0
    %p56 = por %p54, %p55
    %s58 = sadd.s32 %s57, 1
    %p61 = scmp.eq.s32.totalorder %s9, 1
    %p62 = scmp.ne.s32.totalorder %s57, %s59
    %p63 = scmp.eq.s32.totalorder %s9, 0
    %p64 = por %p62, %p63
    %p65 = scmp.ne.s32.totalorder %s57, %s59
    %p66 = scmp.eq.s32.totalorder %s14, 1
    %p67 = por %p65, %p66
    %p68 = scmp.ne.s32.totalorder %s59, %s60
    %p69 = scmp.eq.s32.totalorder %s14, 0
    %p70 = por %p68, %p69
    %p71 = scmp.ne.s32.totalorder %s59, %s60
    %p72 = scmp.eq.s32.totalorder %s15, 1
    %p73 = por %p71, %p72
    %p75 = scmp.ne.s32.totalorder %s60, %s74
    %p76 = scmp.eq.s32.totalorder %s15, 0
    %p77 = por %p75, %p76
    %s79 = sadd.s32 %s78, 1
    %p82 = scmp.eq.s32.totalorder %s9, 1
    %p83 = scmp.ne.s32.totalorder %s78, %s80
    %p84 = scmp.eq.s32.totalorder %s9, 0
    %p85 = por %p83, %p84
    %p86 = scmp.ne.s32.totalorder %s78, %s80
    %p87 = scmp.eq.s32.totalorder %s14, 1
    %p88 = por %p86, %p87
    %p89 = scmp.ne.s32.totalorder %s80, %s81
    %p90 = scmp.eq.s32.totalorder %s14, 0
    %p91 = por %p89, %p90
    %p92 = scmp.ne.s32.totalorder %s80, %s81
    %p93 = scmp.eq.s32.totalorder %s15, 1
    %p94 = por %p92, %p93
    %p96 = scmp.ne.s32.totalorder %s81, %s95
    %p97 = scmp.eq.s32.totalorder %s15, 0
    %p98 = por %p96, %p97
    %s99 = ssub.s32 %s16, %s28
    %s100 = ssub.s32 %s17, %s24
    %s101 = sor.u32 %s99, %s100
    %p102 = scmp.eq.s32.totalorder %s101, 0
    %s104 = sadd.s32 %s103, 1
    %s105 = scalar_select %p102, %s103, %s104
    %p108 = pneg %p102
    %p109 = scmp.eq.s32.totalorder %s9, 1
    %p110 = por %p108, %p109
    %p111 = scmp.ne.s32.totalorder %s103, %s106
    %p112 = scmp.eq.s32.totalorder %s9, 0
    %p113 = por %p111, %p112
    %p114 = scmp.ne.s32.totalorder %s103, %s106
    %p115 = scmp.eq.s32.totalorder %s14, 1
    %p116 = por %p114, %p115
    %p117 = scmp.ne.s32.totalorder %s106, %s107
    %p118 = scmp.eq.s32.totalorder %s14, 0
    %p119 = por %p117, %p118
    %p120 = scmp.ne.s32.totalorder %s106, %s107
    %p121 = scmp.eq.s32.totalorder %s15, 1
    %p122 = por %p120, %p121
    %p124 = scmp.ne.s32.totalorder %s107, %s123
    %p125 = scmp.eq.s32.totalorder %s15, 0
    %p126 = por %p124, %p125
    %p127 = scmp.le.s32.totalorder 1, %s9
    %p128 = scmp.lt.s32.totalorder %s9, 3
    %p129 = pnand %p127, %p128
    %p130 = pneg %p129
    // Predicated region
    $region9: #{pixel_level_module_forward.6} parent=5 // pred_check
      _
    $region10: #{pixel_level_module_forward.6} parent=5 // pred_check_branch
      %132 = sbr.rel (%p129) target = $region12
    $region11: #{pixel_level_module_forward.6} parent=5 // pred_region
      %s133 = ssub.s32 %s9, 1
      // Predicated region
      $region13: #{pixel_level_module_forward.6} parent=11 // pred_check
        %p134 = pneg %p70
      $region14: #{pixel_level_module_forward.6} parent=11 // pred_check_branch
        %136 = sbr.rel (%p134) target = $region16
      $region15: #{pixel_level_module_forward.6} parent=11 // pred_region
        _
      $region16: #{pixel_level_module_forward.6} parent=11 // pred_fallthru
        _
      // Predicated region
      $region17: #{pixel_level_module_forward.6} parent=11 // pred_check
        %p137 = pneg %p91
      $region18: #{pixel_level_module_forward.6} parent=11 // pred_check_branch
        %139 = sbr.rel (%p137) target = $region20
      $region19: #{pixel_level_module_forward.6} parent=11 // pred_region
        _
      $region20: #{pixel_level_module_forward.6} parent=11 // pred_fallthru
        _
    $region12: #{pixel_level_module_forward.6} parent=5 // pred_fallthru
      _
    %p140 = scmp.lt.s32.totalorder %s9, 2
    // Predicated region
    $region21: #{pixel_level_module_forward.6} parent=5 // pred_check
      %p141 = pneg %p140
    $region22: #{pixel_level_module_forward.6} parent=5 // pred_check_branch
      %143 = sbr.rel (%p141) target = $region24
    $region23: #{pixel_level_module_forward.6} parent=5 // pred_region
      // Predicated region
      $region25: #{pixel_level_module_forward.6} parent=23 // pred_check
        %p144 = pneg %p43
      $region26: #{pixel_level_module_forward.6} parent=23 // pred_check_branch
        %146 = sbr.rel (%p144) target = $region28
      $region27: #{pixel_level_module_forward.6} parent=23 // pred_region
        %s147 = smul.u32 16, %s17
        %p148 = scmp.lt.s32.totalorder %s16, 1
        %s149 = scalar_select %p148, %s16, 1
        %p150 = scmp.lt.s32.totalorder %s147, 15
        %s151 = scalar_select %p150, %s147, 15
        %s152 = smul.addr %s149, 16
        %s153 = sadd.s32 %s151, %s152
        %s154 = smul.addr %s153, 4
        %s155 = scalar_lea.vmem %s0, %s154
        %s156 = smul.u32 16, %s17
      $region28: #{pixel_level_module_forward.6} parent=23 // pred_fallthru
        _
    $region24: #{pixel_level_module_forward.6} parent=5 // pred_fallthru
      _
    %p157 = scmp.le.s32.totalorder 1, %s9
    %p158 = scmp.lt.s32.totalorder %s9, 3
    %p159 = pnand %p157, %p158
    %p160 = pneg %p159
    // Predicated region
    $region29: #{pixel_level_module_forward.6} parent=5 // pred_check
      _
    $region30: #{pixel_level_module_forward.6} parent=5 // pred_check_branch
      %162 = sbr.rel (%p159) target = $region32
    $region31: #{pixel_level_module_forward.6} parent=5 // pred_region
      %s163 = ssub.s32 %s9, 1
      %s164 = smul.u32 16, %s19
      %p165 = scmp.lt.s32.totalorder %s18, 1
      %s166 = scalar_select %p165, %s18, 1
      %p167 = scmp.lt.s32.totalorder %s164, 15
      %s168 = scalar_select %p167, %s164, 15
      %s169 = smul.addr %s166, 16
      %s170 = sadd.s32 %s168, %s169
      %s171 = smul.addr %s170, 4
      %s172 = scalar_lea.vmem %s0, %s171
      %p173 = pneg %p49
      %p174 = pneg %p46
      %p175 = pneg %p70
      %p176 = pneg %p67
      %p177 = pneg %p91
      %p178 = pneg %p88
      %p179 = pneg %p119
      %p180 = pneg %p116
      %s181 = smul.u32 8, %s19
      %p182 = scmp.lt.s32.totalorder %s18, 1
      %s183 = scalar_select %p182, %s18, 1
      %p184 = scmp.lt.s32.totalorder %s181, 7
      %s185 = scalar_select %p184, %s181, 7
      %s186 = smul.addr %s183, 8
      %s187 = sadd.s32 %s185, %s186
      %s188 = smul.addr %s187, 4
      %s189 = scalar_lea.vmem %s3, %s188
      %s190 = smul.u32 16, %s19
      %p191 = scmp.lt.s32.totalorder %s18, 1
      %s192 = scalar_select %p191, %s18, 1
      %p193 = scmp.lt.s32.totalorder %s190, 15
      %s194 = scalar_select %p193, %s190, 15
      %s195 = smul.addr %s192, 16
      %s196 = sadd.s32 %s194, %s195
      %s197 = smul.addr %s196, 4
      %s198 = scalar_lea.vmem %s0, %s197
      %s199 = smul.u32 16, %s19
      %s200 = smul.u32 8, %s19
      %p201 = scmp.lt.s32.totalorder %s18, 1
      %s202 = scalar_select %p201, %s18, 1
      %p203 = scmp.lt.s32.totalorder %s200, 7
      %s204 = scalar_select %p203, %s200, 7
      %s205 = smul.addr %s202, 8
      %s206 = sadd.s32 %s204, %s205
      %s207 = smul.addr %s206, 4
      %s208 = scalar_lea.vmem %s3, %s207
      %s209 = smul.u32 8, %s19
      %v211 = vld [vmem:[%s198] sm:$0xf]
      %v212 = vld [vmem:[%s198 + $0x4] sm:$0xf]
      %v213 = vld [vmem:[%s198 + $0x8] sm:$0xf]
      %v214 = vld [vmem:[%s198 + $0xc] sm:$0xf]
      %v215 = vld [vmem:[%s198 + $0x10] sm:$0xf]
      %v216 = vld [vmem:[%s198 + $0x14] sm:$0xf]
      %v217 = vld [vmem:[%s198 + $0x18] sm:$0xf]
      %v218 = vld [vmem:[%s198 + $0x1c] sm:$0xf]
      %v219 = vld [vmem:[%s198 + $0x20] sm:$0xf]
      %v220 = vld [vmem:[%s198 + $0x24] sm:$0xf]
      %v221 = vld [vmem:[%s198 + $0x28] sm:$0xf]
      %v222 = vld [vmem:[%s198 + $0x2c] sm:$0xf]
      %v223 = vld [vmem:[%s198 + $0x30] sm:$0xf]
      %v224 = vld [vmem:[%s198 + $0x34] sm:$0xf]
      %v225 = vld [vmem:[%s198 + $0x38] sm:$0xf]
      %v226 = vld [vmem:[%s198 + $0x3c] sm:$0xf]
      %v227 = vld [vmem:[%s1] sm:$0xf]
      %v228 = vld [vmem:[%s1 + $0x4] sm:$0xf]
      %v229 = vld [vmem:[%s1 + $0x8] sm:$0xf]
      %v230 = vld [vmem:[%s1 + $0xc] sm:$0xf]
      %v239 = vunpack.c.l.b16 %v212
      %v240 = vunpack.c.l.b16 %v214
      %v241 = vunpack.c.l.b16 %v216
      %v242 = vunpack.c.l.b16 %v218
      %v243 = vunpack.c.l.b16 %v220
      %v244 = vunpack.c.l.b16 %v222
      %v245 = vunpack.c.l.b16 %v224
      %v246 = vunpack.c.l.b16 %v226
      %v247 = vpack.c.b16 %v240, %v239
      %v248 = vpack.c.b16 %v242, %v241
      %v249 = vpack.c.b16 %v244, %v243
      %v250 = vpack.c.b16 %v246, %v245
      %v253 = vunpack.c.l.b16 %v229
      %v254 = vunpack.c.l.b16 %v230
      %v255 = vpack.c.b16 %v254, %v253
      %vm257 = vcmask 130048
      %v259 = vsel %vm257, %v247, 0
      %v262 = vsel %vm257, %v248, 0
      %v265 = vsel %vm257, %v249, 0
      %v268 = vsel %vm257, %v250, 0
      %270 = vmatprep.subr.bf16.mxu0 0
      %271 = vmatpush1.bf16.msra.mxu0 %v255
      %272 = vmatprep.subr.bf16.mxu0 0
      %273 = vmatpush1.bf16.msra.mxu0 0
      %274 = vmatprep.subr.bf16.mxu0 0
      %275 = vmatpush1.bf16.msra.mxu0 0
      %276 = vmatprep.subr.bf16.mxu0 0
      %277 = vmatpush1.bf16.msra.mxu0 0
      %278 = vmatprep.subr.bf16.mxu0 0
      %279 = vmatpush1.bf16.msra.mxu0 0
      %280 = vmatprep.subr.bf16.mxu0 0
      %281 = vmatpush1.bf16.msra.mxu0 0
      %282 = vmatprep.subr.bf16.mxu0 0
      %283 = vmatpush1.bf16.msra.mxu0 0
      %284 = vmatprep.subr.bf16.mxu0 0
      %285 = vmatpush1.bf16.msra.mxu0 0
      %286 = vmatprep.subr.bf16.mxu0 0
      %287 = vmatpush1.bf16.msra.mxu0 0
      %288 = vmatprep.subr.bf16.mxu0 0
      %289 = vmatpush1.bf16.msra.mxu0 0
      %290 = vmatprep.subr.bf16.mxu0 0
      %291 = vmatpush1.bf16.msra.mxu0 0
      %292 = vmatprep.subr.bf16.mxu0 0
      %293 = vmatpush1.bf16.msra.mxu0 0
      %294 = vmatprep.subr.bf16.mxu0 0
      %295 = vmatpush1.bf16.msra.mxu0 0
      %296 = vmatprep.subr.bf16.mxu0 0
      %297 = vmatpush1.bf16.msra.mxu0 0
      %298 = vmatprep.subr.bf16.mxu0 0
      %299 = vmatpush1.bf16.msra.mxu0 0
      %300 = vmatprep.subr.bf16.mxu0 0
      %301 = vmatpush1.bf16.msra.mxu0 0
      %302 = vmatprep.mubr.bf16.mxu0 0
      %303 = vmatmul.mubr.bf16.gmra.mrb[0].mxu0 %v259
      %v304 = vpop.f32.mrb[0].mxu0
      %v305 = vadd.f32 0.0, %v304
      %v306 = vpop.f32.mrb[0].mxu0
      %v307 = vpop.f32.mrb[0].mxu0
      %v308 = vadd.f32 0.0, %v307
      %v309 = vpop.f32.mrb[0].mxu0
      %310 = vmatprep.mubr.bf16.mxu0 0
      %311 = vmatmul.mubr.bf16.gmra.mrb[0].mxu0 %v262
      %v312 = vpop.f32.mrb[0].mxu0
      %v313 = vadd.f32 0.0, %v312
      %v314 = vpop.f32.mrb[0].mxu0
      %v315 = vpop.f32.mrb[0].mxu0
      %v316 = vadd.f32 0.0, %v315
      %v317 = vpop.f32.mrb[0].mxu0
      %318 = vmatprep.mubr.bf16.mxu0 0
      %319 = vmatmul.mubr.bf16.gmra.mrb[0].mxu0 %v265
      %v320 = vpop.f32.mrb[0].mxu0
      %v321 = vadd.f32 0.0, %v320
      %v322 = vpop.f32.mrb[0].mxu0
      %v323 = vpop.f32.mrb[0].mxu0
      %v324 = vadd.f32 0.0, %v323
      %v325 = vpop.f32.mrb[0].mxu0
      %326 = vmatprep.mubr.bf16.mxu0 0
      %327 = vmatmul.mubr.bf16.gmra.mrb[0].mxu0 %v268
      %v328 = vpop.f32.mrb[0].mxu0
      %v329 = vadd.f32 0.0, %v328
      %v330 = vpop.f32.mrb[0].mxu0
      %v331 = vpop.f32.mrb[0].mxu0
      %v332 = vadd.f32 0.0, %v331
      %v333 = vpop.f32.mrb[0].mxu0
      %334 = vdwg.mxu0
      %v343 = vunpack.c.l.b16 %v211
      %v344 = vunpack.c.l.b16 %v213
      %v345 = vunpack.c.l.b16 %v215
      %v346 = vunpack.c.l.b16 %v217
      %v347 = vunpack.c.l.b16 %v219
      %v348 = vunpack.c.l.b16 %v221
      %v349 = vunpack.c.l.b16 %v223
      %v350 = vunpack.c.l.b16 %v225
      %v351 = vpack.c.b16 %v344, %v343
      %v352 = vpack.c.b16 %v346, %v345
      %v353 = vpack.c.b16 %v348, %v347
      %v354 = vpack.c.b16 %v350, %v349
      %v357 = vunpack.c.l.b16 %v227
      %v358 = vunpack.c.l.b16 %v228
      %v359 = vpack.c.b16 %v358, %v357
      %v362 = vsel %vm257, %v351, 0
      %v365 = vsel %vm257, %v352, 0
      %v368 = vsel %vm257, %v353, 0
      %v371 = vsel %vm257, %v354, 0
      %373 = vmatprep.subr.bf16.mxu0 0
      %374 = vmatpush1.bf16.msra.mxu0 %v359
      %375 = vmatprep.subr.bf16.mxu0 0
      %376 = vmatpush1.bf16.msra.mxu0 0
      %377 = vmatprep.subr.bf16.mxu0 0
      %378 = vmatpush1.bf16.msra.mxu0 0
      %379 = vmatprep.subr.bf16.mxu0 0
      %380 = vmatpush1.bf16.msra.mxu0 0
      %381 = vmatprep.subr.bf16.mxu0 0
      %382 = vmatpush1.bf16.msra.mxu0 0
      %383 = vmatprep.subr.bf16.mxu0 0
      %384 = vmatpush1.bf16.msra.mxu0 0
      %385 = vmatprep.subr.bf16.mxu0 0
      %386 = vmatpush1.bf16.msra.mxu0 0
      %387 = vmatprep.subr.bf16.mxu0 0
      %388 = vmatpush1.bf16.msra.mxu0 0
      %389 = vmatprep.subr.bf16.mxu0 0
      %390 = vmatpush1.bf16.msra.mxu0 0
      %391 = vmatprep.subr.bf16.mxu0 0
      %392 = vmatpush1.bf16.msra.mxu0 0
      %393 = vmatprep.subr.bf16.mxu0 0
      %394 = vmatpush1.bf16.msra.mxu0 0
      %395 = vmatprep.subr.bf16.mxu0 0
      %396 = vmatpush1.bf16.msra.mxu0 0
      %397 = vmatprep.subr.bf16.mxu0 0
      %398 = vmatpush1.bf16.msra.mxu0 0
      %399 = vmatprep.subr.bf16.mxu0 0
      %400 = vmatpush1.bf16.msra.mxu0 0
      %401 = vmatprep.subr.bf16.mxu0 0
      %402 = vmatpush1.bf16.msra.mxu0 0
      %403 = vmatprep.subr.bf16.mxu0 0
      %404 = vmatpush1.bf16.msra.mxu0 0
      %405 = vmatprep.mubr.bf16.mxu0 0
      %406 = vmatmul.mubr.bf16.gmra.mrb[0].mxu0 %v362
      %v407 = vpop.f32.mrb[0].mxu0
      %v408 = vadd.f32 %v305, %v407
      %v409 = vpop.f32.mrb[0].mxu0
      %v410 = vpop.f32.mrb[0].mxu0
      %v411 = vadd.f32 %v308, %v410
      %v412 = vpop.f32.mrb[0].mxu0
      %413 = vmatprep.mubr.bf16.mxu0 0
      %414 = vmatmul.mubr.bf16.gmra.mrb[0].mxu0 %v365
      %v415 = vpop.f32.mrb[0].mxu0
      %v416 = vadd.f32 %v313, %v415
      %v417 = vpop.f32.mrb[0].mxu0
      %v418 = vpop.f32.mrb[0].mxu0
      %v419 = vadd.f32 %v316, %v418
      %v420 = vpop.f32.mrb[0].mxu0
      %421 = vmatprep.mubr.bf16.mxu0 0
      %422 = vmatmul.mubr.bf16.gmra.mrb[0].mxu0 %v368
      %v423 = vpop.f32.mrb[0].mxu0
      %v424 = vadd.f32 %v321, %v423
      %v425 = vpop.f32.mrb[0].mxu0
      %v426 = vpop.f32.mrb[0].mxu0
      %v427 = vadd.f32 %v324, %v426
      %v428 = vpop.f32.mrb[0].mxu0
      %429 = vmatprep.mubr.bf16.mxu0 0
      %430 = vmatmul.mubr.bf16.gmra.mrb[0].mxu0 %v371
      %v431 = vpop.f32.mrb[0].mxu0
      %v432 = vadd.f32 %v329, %v431
      %v433 = vpop.f32.mrb[0].mxu0
      %v434 = vpop.f32.mrb[0].mxu0
      %v435 = vadd.f32 %v332, %v434
      %v436 = vpop.f32.mrb[0].mxu0
      %437 = vdwg.mxu0
      %v438 = vld [vmem:[%s2] sm:$0x1]
      %v440 = vlaneseq
      %v441 = vshrl.u32 %v440, 7
      %v442 = vsub.s32 0, %v441
      %v443 = vrot.slane %v438, %v442
      %v445 = vadd.f32 %v408, %v443
      %v446 = vadd.f32 %v411, %v443
      %v447 = vadd.f32 %v416, %v443
      %v448 = vadd.f32 %v419, %v443
      %v449 = vadd.f32 %v424, %v443
      %v450 = vadd.f32 %v427, %v443
      %v451 = vadd.f32 %v432, %v443
      %v452 = vadd.f32 %v435, %v443
      %v453 = vmax.f32 %v445, 0.0
      %v454 = vmax.f32 %v446, 0.0
      %v455 = vmax.f32 %v447, 0.0
      %v456 = vmax.f32 %v448, 0.0
      %v457 = vmax.f32 %v449, 0.0
      %v458 = vmax.f32 %v450, 0.0
      %v459 = vmax.f32 %v451, 0.0
      %v460 = vmax.f32 %v452, 0.0
      %v461 = vpack.c.bf16 %v453, %v453
      %v462 = vpack.c.bf16 %v454, %v454
      %v463 = vpack.c.bf16 %v455, %v455
      %v464 = vpack.c.bf16 %v456, %v456
      %v465 = vpack.c.bf16 %v457, %v457
      %v466 = vpack.c.bf16 %v458, %v458
      %v467 = vpack.c.bf16 %v459, %v459
      %v468 = vpack.c.bf16 %v460, %v460
      %vm469 = vcmask 125952
      %470 = vst.msk [vmem:[%s208] sm:$0xf] %vm469, %v461
      %471 = vst.msk [vmem:[%s208 + $0x4] sm:$0xf] %vm469, %v462
      %472 = vst.msk [vmem:[%s208 + $0x8] sm:$0xf] %vm469, %v463
      %473 = vst.msk [vmem:[%s208 + $0xc] sm:$0xf] %vm469, %v464
      %474 = vst.msk [vmem:[%s208 + $0x10] sm:$0xf] %vm469, %v465
      %475 = vst.msk [vmem:[%s208 + $0x14] sm:$0xf] %vm469, %v466
      %476 = vst.msk [vmem:[%s208 + $0x18] sm:$0xf] %vm469, %v467
      %477 = vst.msk [vmem:[%s208 + $0x1c] sm:$0xf] %vm469, %v468
      %s478 = smul.u32 8, %s19
      %p479 = scmp.lt.s32.totalorder %s18, 1
      %s480 = scalar_select %p479, %s18, 1
      %p481 = scmp.lt.s32.totalorder %s478, 7
      %s482 = scalar_select %p481, %s478, 7
      %s483 = smul.addr %s480, 8
      %s484 = sadd.s32 %s482, %s483
      %s485 = smul.addr %s484, 4
      %s486 = scalar_lea.vmem %s3, %s485
      // Predicated region
      $region33: #{pixel_level_module_forward.6} parent=31 // pred_check
        %p487 = pneg %p116
      $region34: #{pixel_level_module_forward.6} parent=31 // pred_check_branch
        %489 = sbr.rel (%p487) target = $region36
      $region35: #{pixel_level_module_forward.6} parent=31 // pred_region
        %s490 = smul.u32 8, %s19
      $region36: #{pixel_level_module_forward.6} parent=31 // pred_fallthru
        _
    $region32: #{pixel_level_module_forward.6} parent=5 // pred_fallthru
      _
    %p491 = scmp.le.s32.totalorder 2, %s9
    // Predicated region
    $region37: #{pixel_level_module_forward.6} parent=5 // pred_check
      %p492 = pneg %p491
    $region38: #{pixel_level_module_forward.6} parent=5 // pred_check_branch
      %494 = sbr.rel (%p492) target = $region40
    $region39: #{pixel_level_module_forward.6} parent=5 // pred_region
      %s495 = ssub.s32 %s9, 2
      // Predicated region
      $region41: #{pixel_level_module_forward.6} parent=39 // pred_check
        %p496 = pneg %p122
      $region42: #{pixel_level_module_forward.6} parent=39 // pred_check_branch
        %498 = sbr.rel (%p496) target = $region44
      $region43: #{pixel_level_module_forward.6} parent=39 // pred_region
        %s499 = smul.u32 8, %s21
        %p500 = scmp.lt.s32.totalorder %s20, 1
        %s501 = scalar_select %p500, %s20, 1
        %p502 = scmp.lt.s32.totalorder %s499, 7
        %s503 = scalar_select %p502, %s499, 7
        %s504 = smul.addr %s501, 8
        %s505 = sadd.s32 %s503, %s504
        %s506 = smul.addr %s505, 4
        %s507 = scalar_lea.vmem %s3, %s506
      $region44: #{pixel_level_module_forward.6} parent=39 // pred_fallthru
        _
    $region40: #{pixel_level_module_forward.6} parent=5 // pred_fallthru
      _
  $region6: #{pixel_level_module_forward.6} parent=0 // loop_footer
    %s13 = sadd.s32 1, %s9
  $region7: #{pixel_level_module_forward.6} parent=0 // loop_footer_branch
    %8 = sbr.rel target = $region3
  $region8: #{pixel_level_module_forward.6} parent=0 // loop_exit
    _

// kernel: pixel_level_module_forward.5
$region0: #{pixel_level_module_forward.5}
  #allocation0 [shape = 'u32[]', space=smem, size = 0x4, offset = 0x4, fixed_abs, tag = 'smem constant byte address 0x4 - core index']
  #allocation1 [shape = 'u32[144,128]{1,0:T(1,128)}', space=vmem, size = 0x12000, scoped, tag = 'internal scratch']
  %s0 = inlined_call_operand.vmem [shape: bf16[2,64,16,12], index: 0, kind: input, shape index: {}]
  %s1 = inlined_call_operand.vmem [shape: bf16[48,8], index: 1, kind: input, shape index: {}]
  %s2 = inlined_call_operand.vmem [shape: f32[1,8], index: 2, kind: input, shape index: {}]
  %s3 = inlined_call_operand.vmem [shape: bf16[2,16,16,8], index: 3, kind: output, shape index: {}]
  %s4 = sld [smem:[#allocation0]]
  $region45: #{pixel_level_module_forward.5} parent=0
    _
  %s6 = ssub.s32 1, %s4
  %s7 = scalar_select 0, %s6, %s4
  loop: start=0, step=1, limit=4
  $region2: #{pixel_level_module_forward.5} parent=0 // loop_pre_header
    _
  $region3: #{pixel_level_module_forward.5} parent=0 // loop_header
    %s9 = sphi 0, %s13
    %p10 = scmp.ge.s32.totalorder %s9, 4
    %s16 = sphi 0, %s28
    %s17 = sphi 0, %s24
    %s18 = sphi 0, %s16
    %s19 = sphi 0, %s17
    %s20 = sphi 0, %s18
    %s21 = sphi 0, %s19
    %s33 = sphi 0, %s35
    %s36 = sphi 0, %s33
    %s37 = sphi 0, %s36
    %s53 = sphi 0, %s37
    %s57 = sphi 0, %s57
    %s59 = sphi 0, %s57
    %s60 = sphi 0, %s59
    %s74 = sphi 0, %s60
    %s78 = sphi 0, %s78
    %s80 = sphi 0, %s78
    %s81 = sphi 0, %s80
    %s95 = sphi 0, %s81
    %s103 = sphi 0, %s105
    %s106 = sphi 0, %s103
    %s107 = sphi 0, %s106
    %s123 = sphi 0, %s107
  $region4: #{pixel_level_module_forward.5} parent=0 // loop_header_branch
    %12 = sbr.rel (%p10) target = $region8
  $region5: #{pixel_level_module_forward.5} parent=0 // loop_body
    %s14 = ssub.s32 %s9, 1
    %s15 = ssub.s32 %s9, 2
    %s22 = sadd.s32 1, %s17
    %p23 = scmp.ge.s32.totalorder %s22, 1
    %s24 = scalar_select %p23, 0, %s22
    %s25 = sadd.s32 1, %s16
    %s26 = scalar_select %p23, %s25, %s16
    %p27 = scmp.ge.s32.totalorder %s26, 2
    %s28 = scalar_select %p27, 0, %s26
    %s29 = ssub.s32 %s16, %s28
    %s30 = ssub.s32 %s17, %s24
    %s31 = sor.u32 %s29, %s30
    %p32 = scmp.eq.s32.totalorder %s31, 0
    %s34 = sadd.s32 %s33, 1
    %s35 = scalar_select %p32, %s33, %s34
    %p38 = pneg %p32
    %p39 = scmp.eq.s32.totalorder %s9, 1
    %p40 = por %p38, %p39
    %p41 = scmp.ne.s32.totalorder %s33, %s36
    %p42 = scmp.eq.s32.totalorder %s9, 0
    %p43 = por %p41, %p42
    %p44 = scmp.ne.s32.totalorder %s33, %s36
    %p45 = scmp.eq.s32.totalorder %s14, 1
    %p46 = por %p44, %p45
    %p47 = scmp.ne.s32.totalorder %s36, %s37
    %p48 = scmp.eq.s32.totalorder %s14, 0
    %p49 = por %p47, %p48
    %p50 = scmp.ne.s32.totalorder %s36, %s37
    %p51 = scmp.eq.s32.totalorder %s15, 1
    %p52 = por %p50, %p51
    %p54 = scmp.ne.s32.totalorder %s37, %s53
    %p55 = scmp.eq.s32.totalorder %s15, 0
    %p56 = por %p54, %p55
    %s58 = sadd.s32 %s57, 1
    %p61 = scmp.eq.s32.totalorder %s9, 1
    %p62 = scmp.ne.s32.totalorder %s57, %s59
    %p63 = scmp.eq.s32.totalorder %s9, 0
    %p64 = por %p62, %p63
    %p65 = scmp.ne.s32.totalorder %s57, %s59
    %p66 = scmp.eq.s32.totalorder %s14, 1
    %p67 = por %p65, %p66
    %p68 = scmp.ne.s32.totalorder %s59, %s60
    %p69 = scmp.eq.s32.totalorder %s14, 0
    %p70 = por %p68, %p69
    %p71 = scmp.ne.s32.totalorder %s59, %s60
    %p72 = scmp.eq.s32.totalorder %s15, 1
    %p73 = por %p71, %p72
    %p75 = scmp.ne.s32.totalorder %s60, %s74
    %p76 = scmp.eq.s32.totalorder %s15, 0
    %p77 = por %p75, %p76
    %s79 = sadd.s32 %s78, 1
    %p82 = scmp.eq.s32.totalorder %s9, 1
    %p83 = scmp.ne.s32.totalorder %s78, %s80
    %p84 = scmp.eq.s32.totalorder %s9, 0
    %p85 = por %p83, %p84
    %p86 = scmp.ne.s32.totalorder %s78, %s80
    %p87 = scmp.eq.s32.totalorder %s14, 1
    %p88 = por %p86, %p87
    %p89 = scmp.ne.s32.totalorder %s80, %s81
    %p90 = scmp.eq.s32.totalorder %s14, 0
    %p91 = por %p89, %p90
    %p92 = scmp.ne.s32.totalorder %s80, %s81
    %p93 = scmp.eq.s32.totalorder %s15, 1
    %p94 = por %p92, %p93
    %p96 = scmp.ne.s32.totalorder %s81, %s95
    %p97 = scmp.eq.s32.totalorder %s15, 0
    %p98 = por %p96, %p97
    %s99 = ssub.s32 %s16, %s28
    %s100 = ssub.s32 %s17, %s24
    %s101 = sor.u32 %s99, %s100
    %p102 = scmp.eq.s32.totalorder %s101, 0
    %s104 = sadd.s32 %s103, 1
    %s105 = scalar_select %p102, %s103, %s104
    %p108 = pneg %p102
    %p109 = scmp.eq.s32.totalorder %s9, 1
    %p110 = por %p108, %p109
    %p111 = scmp.ne.s32.totalorder %s103, %s106
    %p112 = scmp.eq.s32.totalorder %s9, 0
    %p113 = por %p111, %p112
    %p114 = scmp.ne.s32.totalorder %s103, %s106
    %p115 = scmp.eq.s32.totalorder %s14, 1
    %p116 = por %p114, %p115
    %p117 = scmp.ne.s32.totalorder %s106, %s107
    %p118 = scmp.eq.s32.totalorder %s14, 0
    %p119 = por %p117, %p118
    %p120 = scmp.ne.s32.totalorder %s106, %s107
    %p121 = scmp.eq.s32.totalorder %s15, 1
    %p122 = por %p120, %p121
    %p124 = scmp.ne.s32.totalorder %s107, %s123
    %p125 = scmp.eq.s32.totalorder %s15, 0
    %p126 = por %p124, %p125
    %p127 = scmp.le.s32.totalorder 1, %s9
    %p128 = scmp.lt.s32.totalorder %s9, 3
    %p129 = pnand %p127, %p128
    %p130 = pneg %p129
    // Predicated region
    $region9: #{pixel_level_module_forward.5} parent=5 // pred_check
      _
    $region10: #{pixel_level_module_forward.5} parent=5 // pred_check_branch
      %132 = sbr.rel (%p129) target = $region12
    $region11: #{pixel_level_module_forward.5} parent=5 // pred_region
      %s133 = ssub.s32 %s9, 1
      // Predicated region
      $region13: #{pixel_level_module_forward.5} parent=11 // pred_check
        %p134 = pneg %p70
      $region14: #{pixel_level_module_forward.5} parent=11 // pred_check_branch
        %136 = sbr.rel (%p134) target = $region16
      $region15: #{pixel_level_module_forward.5} parent=11 // pred_region
        _
      $region16: #{pixel_level_module_forward.5} parent=11 // pred_fallthru
        _
      // Predicated region
      $region17: #{pixel_level_module_forward.5} parent=11 // pred_check
        %p137 = pneg %p91
      $region18: #{pixel_level_module_forward.5} parent=11 // pred_check_branch
        %139 = sbr.rel (%p137) target = $region20
      $region19: #{pixel_level_module_forward.5} parent=11 // pred_region
        _
      $region20: #{pixel_level_module_forward.5} parent=11 // pred_fallthru
        _
    $region12: #{pixel_level_module_forward.5} parent=5 // pred_fallthru
      _
    %p140 = scmp.lt.s32.totalorder %s9, 2
    // Predicated region
    $region21: #{pixel_level_module_forward.5} parent=5 // pred_check
      %p141 = pneg %p140
    $region22: #{pixel_level_module_forward.5} parent=5 // pred_check_branch
      %143 = sbr.rel (%p141) target = $region24
    $region23: #{pixel_level_module_forward.5} parent=5 // pred_region
      // Predicated region
      $region25: #{pixel_level_module_forward.5} parent=23 // pred_check
        %p144 = pneg %p43
      $region26: #{pixel_level_module_forward.5} parent=23 // pred_check_branch
        %146 = sbr.rel (%p144) target = $region28
      $region27: #{pixel_level_module_forward.5} parent=23 // pred_region
        %s147 = smul.u32 64, %s17
        %p148 = scmp.lt.s32.totalorder %s16, 1
        %s149 = scalar_select %p148, %s16, 1
        %p150 = scmp.lt.s32.totalorder %s147, 63
        %s151 = scalar_select %p150, %s147, 63
        %s152 = smul.addr %s151, 2
        %s153 = smul.addr %s149, 128
        %s154 = sadd.s32 %s152, %s153
        %s155 = smul.addr %s154, 4
        %s156 = scalar_lea.vmem %s0, %s155
        %s157 = smul.u32 64, %s17
      $region28: #{pixel_level_module_forward.5} parent=23 // pred_fallthru
        _
    $region24: #{pixel_level_module_forward.5} parent=5 // pred_fallthru
      _
    %p158 = scmp.le.s32.totalorder 1, %s9
    %p159 = scmp.lt.s32.totalorder %s9, 3
    %p160 = pnand %p158, %p159
    %p161 = pneg %p160
    // Predicated region
    $region29: #{pixel_level_module_forward.5} parent=5 // pred_check
      _
    $region30: #{pixel_level_module_forward.5} parent=5 // pred_check_branch
      %163 = sbr.rel (%p160) target = $region32
    $region31: #{pixel_level_module_forward.5} parent=5 // pred_region
      %s164 = ssub.s32 %s9, 1
      %s165 = smul.u32 64, %s19
      %p166 = scmp.lt.s32.totalorder %s18, 1
      %s167 = scalar_select %p166, %s18, 1
      %p168 = scmp.lt.s32.totalorder %s165, 63
      %s169 = scalar_select %p168, %s165, 63
      %s170 = smul.addr %s169, 2
      %s171 = smul.addr %s167, 128
      %s172 = sadd.s32 %s170, %s171
      %s173 = smul.addr %s172, 4
      %s174 = scalar_lea.vmem %s0, %s173
      %p175 = pneg %p49
      %p176 = pneg %p46
      %p177 = pneg %p70
      %p178 = pneg %p67
      %p179 = pneg %p91
      %p180 = pneg %p88
      %p181 = pneg %p119
      %p182 = pneg %p116
      %s183 = smul.u32 16, %s19
      %p184 = scmp.lt.s32.totalorder %s18, 1
      %s185 = scalar_select %p184, %s18, 1
      %p186 = scmp.lt.s32.totalorder %s183, 15
      %s187 = scalar_select %p186, %s183, 15
      %s188 = smul.addr %s187, 2
      %s189 = smul.addr %s185, 32
      %s190 = sadd.s32 %s188, %s189
      %s191 = smul.addr %s190, 4
      %s192 = scalar_lea.vmem %s3, %s191
      %s193 = smul.u32 64, %s19
      %p194 = scmp.lt.s32.totalorder %s18, 1
      %s195 = scalar_select %p194, %s18, 1
      %p196 = scmp.lt.s32.totalorder %s193, 63
      %s197 = scalar_select %p196, %s193, 63
      %s198 = smul.addr %s197, 2
      %s199 = smul.addr %s195, 128
      %s200 = sadd.s32 %s198, %s199
      %s201 = smul.addr %s200, 4
      %s202 = scalar_lea.vmem %s0, %s201
      %s203 = smul.u32 64, %s19
      %s204 = smul.u32 16, %s19
      %p205 = scmp.lt.s32.totalorder %s18, 1
      %s206 = scalar_select %p205, %s18, 1
      %p207 = scmp.lt.s32.totalorder %s204, 15
      %s208 = scalar_select %p207, %s204, 15
      %s209 = smul.addr %s208, 2
      %s210 = smul.addr %s206, 32
      %s211 = sadd.s32 %s209, %s210
      %s212 = smul.addr %s211, 4
      %s213 = scalar_lea.vmem %s3, %s212
      %s214 = smul.u32 16, %s19
      %v216 = vld [vmem:[%s202] sm:$0xf]
      %v217 = vld [vmem:[%s202 + $0x4] sm:$0xf]
      %v218 = vld [vmem:[%s202 + $0x8] sm:$0xf]
      %v219 = vld [vmem:[%s202 + $0xc] sm:$0xf]
      %v220 = vld [vmem:[%s202 + $0x10] sm:$0xf]
      %v221 = vld [vmem:[%s202 + $0x14] sm:$0xf]
      %v222 = vld [vmem:[%s202 + $0x18] sm:$0xf]
      %v223 = vld [vmem:[%s202 + $0x1c] sm:$0xf]
      %v224 = vld [vmem:[%s202 + $0x20] sm:$0xf]
      %v225 = vld [vmem:[%s202 + $0x24] sm:$0xf]
      %v226 = vld [vmem:[%s202 + $0x28] sm:$0xf]
      %v227 = vld [vmem:[%s202 + $0x2c] sm:$0xf]
      %v228 = vld [vmem:[%s202 + $0x30] sm:$0xf]
      %v229 = vld [vmem:[%s202 + $0x34] sm:$0xf]
      %v230 = vld [vmem:[%s202 + $0x38] sm:$0xf]
      %v231 = vld [vmem:[%s202 + $0x3c] sm:$0xf]
      %v232 = vld [vmem:[%s202 + $0x40] sm:$0xf]
      %v233 = vld [vmem:[%s202 + $0x44] sm:$0xf]
      %v234 = vld [vmem:[%s202 + $0x48] sm:$0xf]
      %v235 = vld [vmem:[%s202 + $0x4c] sm:$0xf]
      %v236 = vld [vmem:[%s202 + $0x50] sm:$0xf]
      %v237 = vld [vmem:[%s202 + $0x54] sm:$0xf]
      %v238 = vld [vmem:[%s202 + $0x58] sm:$0xf]
      %v239 = vld [vmem:[%s202 + $0x5c] sm:$0xf]
      %v240 = vld [vmem:[%s202 + $0x60] sm:$0xf]
      %v241 = vld [vmem:[%s202 + $0x64] sm:$0xf]
      %v242 = vld [vmem:[%s202 + $0x68] sm:$0xf]
      %v243 = vld [vmem:[%s202 + $0x6c] sm:$0xf]
      %v244 = vld [vmem:[%s202 + $0x70] sm:$0xf]
      %v245 = vld [vmem:[%s202 + $0x74] sm:$0xf]
      %v246 = vld [vmem:[%s202 + $0x78] sm:$0xf]
      %v247 = vld [vmem:[%s202 + $0x7c] sm:$0xf]
      %v248 = vld [vmem:[%s202 + $0x80] sm:$0xf]
      %v249 = vld [vmem:[%s202 + $0x84] sm:$0xf]
      %v250 = vld [vmem:[%s202 + $0x88] sm:$0xf]
      %v251 = vld [vmem:[%s202 + $0x8c] sm:$0xf]
      %v252 = vld [vmem:[%s202 + $0x90] sm:$0xf]
      %v253 = vld [vmem:[%s202 + $0x94] sm:$0xf]
      %v254 = vld [vmem:[%s202 + $0x98] sm:$0xf]
      %v255 = vld [vmem:[%s202 + $0x9c] sm:$0xf]
      %v256 = vld [vmem:[%s202 + $0xa0] sm:$0xf]
      %v257 = vld [vmem:[%s202 + $0xa4] sm:$0xf]
      %v258 = vld [vmem:[%s202 + $0xa8] sm:$0xf]
      %v259 = vld [vmem:[%s202 + $0xac] sm:$0xf]
      %v260 = vld [vmem:[%s202 + $0xb0] sm:$0xf]
      %v261 = vld [vmem:[%s202 + $0xb4] sm:$0xf]
      %v262 = vld [vmem:[%s202 + $0xb8] sm:$0xf]
      %v263 = vld [vmem:[%s202 + $0xbc] sm:$0xf]
      %v264 = vld [vmem:[%s202 + $0xc0] sm:$0xf]
      %v265 = vld [vmem:[%s202 + $0xc4] sm:$0xf]
      %v266 = vld [vmem:[%s202 + $0xc8] sm:$0xf]
      %v267 = vld [vmem:[%s202 + $0xcc] sm:$0xf]
      %v268 = vld [vmem:[%s202 + $0xd0] sm:$0xf]
      %v269 = vld [vmem:[%s202 + $0xd4] sm:$0xf]
      %v270 = vld [vmem:[%s202 + $0xd8] sm:$0xf]
      %v271 = vld [vmem:[%s202 + $0xdc] sm:$0xf]
      %v272 = vld [vmem:[%s202 + $0xe0] sm:$0xf]
      %v273 = vld [vmem:[%s202 + $0xe4] sm:$0xf]
      %v274 = vld [vmem:[%s202 + $0xe8] sm:$0xf]
      %v275 = vld [vmem:[%s202 + $0xec] sm:$0xf]
      %v276 = vld [vmem:[%s202 + $0xf0] sm:$0xf]
      %v277 = vld [vmem:[%s202 + $0xf4] sm:$0xf]
      %v278 = vld [vmem:[%s202 + $0xf8] sm:$0xf]
      %v279 = vld [vmem:[%s202 + $0xfc] sm:$0xf]
      %v280 = vld [vmem:[%s202 + $0x100] sm:$0xf]
      %v281 = vld [vmem:[%s202 + $0x104] sm:$0xf]
      %v282 = vld [vmem:[%s202 + $0x108] sm:$0xf]
      %v283 = vld [vmem:[%s202 + $0x10c] sm:$0xf]
      %v284 = vld [vmem:[%s202 + $0x110] sm:$0xf]
      %v285 = vld [vmem:[%s202 + $0x114] sm:$0xf]
      %v286 = vld [vmem:[%s202 + $0x118] sm:$0xf]
      %v287 = vld [vmem:[%s202 + $0x11c] sm:$0xf]
      %v288 = vld [vmem:[%s202 + $0x120] sm:$0xf]
      %v289 = vld [vmem:[%s202 + $0x124] sm:$0xf]
      %v290 = vld [vmem:[%s202 + $0x128] sm:$0xf]
      %v291 = vld [vmem:[%s202 + $0x12c] sm:$0xf]
      %v292 = vld [vmem:[%s202 + $0x130] sm:$0xf]
      %v293 = vld [vmem:[%s202 + $0x134] sm:$0xf]
      %v294 = vld [vmem:[%s202 + $0x138] sm:$0xf]
      %v295 = vld [vmem:[%s202 + $0x13c] sm:$0xf]
      %v296 = vld [vmem:[%s202 + $0x140] sm:$0xf]
      %v297 = vld [vmem:[%s202 + $0x144] sm:$0xf]
      %v298 = vld [vmem:[%s202 + $0x148] sm:$0xf]
      %v299 = vld [vmem:[%s202 + $0x14c] sm:$0xf]
      %v300 = vld [vmem:[%s202 + $0x150] sm:$0xf]
      %v301 = vld [vmem:[%s202 + $0x154] sm:$0xf]
      %v302 = vld [vmem:[%s202 + $0x158] sm:$0xf]
      %v303 = vld [vmem:[%s202 + $0x15c] sm:$0xf]
      %v304 = vld [vmem:[%s202 + $0x160] sm:$0xf]
      %v305 = vld [vmem:[%s202 + $0x164] sm:$0xf]
      %v306 = vld [vmem:[%s202 + $0x168] sm:$0xf]
      %v307 = vld [vmem:[%s202 + $0x16c] sm:$0xf]
      %v308 = vld [vmem:[%s202 + $0x170] sm:$0xf]
      %v309 = vld [vmem:[%s202 + $0x174] sm:$0xf]
      %v310 = vld [vmem:[%s202 + $0x178] sm:$0xf]
      %v311 = vld [vmem:[%s202 + $0x17c] sm:$0xf]
      %v312 = vld [vmem:[%s202 + $0x180] sm:$0xf]
      %v313 = vld [vmem:[%s202 + $0x184] sm:$0xf]
      %v314 = vld [vmem:[%s202 + $0x188] sm:$0xf]
      %v315 = vld [vmem:[%s202 + $0x18c] sm:$0xf]
      %v316 = vld [vmem:[%s202 + $0x190] sm:$0xf]
      %v317 = vld [vmem:[%s202 + $0x194] sm:$0xf]
      %v318 = vld [vmem:[%s202 + $0x198] sm:$0xf]
      %v319 = vld [vmem:[%s202 + $0x19c] sm:$0xf]
      %v320 = vld [vmem:[%s202 + $0x1a0] sm:$0xf]
      %v321 = vld [vmem:[%s202 + $0x1a4] sm:$0xf]
      %v322 = vld [vmem:[%s202 + $0x1a8] sm:$0xf]
      %v323 = vld [vmem:[%s202 + $0x1ac] sm:$0xf]
      %v324 = vld [vmem:[%s202 + $0x1b0] sm:$0xf]
      %v325 = vld [vmem:[%s202 + $0x1b4] sm:$0xf]
      %v326 = vld [vmem:[%s202 + $0x1b8] sm:$0xf]
      %v327 = vld [vmem:[%s202 + $0x1bc] sm:$0xf]
      %v328 = vld [vmem:[%s202 + $0x1c0] sm:$0xf]
      %v329 = vld [vmem:[%s202 + $0x1c4] sm:$0xf]
      %v330 = vld [vmem:[%s202 + $0x1c8] sm:$0xf]
      %v331 = vld [vmem:[%s202 + $0x1cc] sm:$0xf]
      %v332 = vld [vmem:[%s202 + $0x1d0] sm:$0xf]
      %v333 = vld [vmem:[%s202 + $0x1d4] sm:$0xf]
      %v334 = vld [vmem:[%s202 + $0x1d8] sm:$0xf]
      %v335 = vld [vmem:[%s202 + $0x1dc] sm:$0xf]
      %v336 = vld [vmem:[%s202 + $0x1e0] sm:$0xf]
      %v337 = vld [vmem:[%s202 + $0x1e4] sm:$0xf]
      %v338 = vld [vmem:[%s202 + $0x1e8] sm:$0xf]
      %v339 = vld [vmem:[%s202 + $0x1ec] sm:$0xf]
      %v340 = vld [vmem:[%s202 + $0x1f0] sm:$0xf]
      %v341 = vld [vmem:[%s202 + $0x1f4] sm:$0xf]
      %v342 = vld [vmem:[%s202 + $0x1f8] sm:$0xf]
      %v343 = vld [vmem:[%s202 + $0x1fc] sm:$0xf]
      %v344 = vld [vmem:[%s1] sm:$0xf]
      %v345 = vld [vmem:[%s1 + $0x4] sm:$0xf]
      %v346 = vld [vmem:[%s1 + $0x8] sm:$0xf]
      %v347 = vld [vmem:[%s1 + $0xc] sm:$0xf]
      %v348 = vld [vmem:[%s1 + $0x10] sm:$0xf]
      %v349 = vld [vmem:[%s1 + $0x14] sm:$0xf]
      %v382 = vunpack.c.l.b16 %v218
      %v383 = vunpack.c.l.b16 %v219
      %v384 = vunpack.c.l.b16 %v226
      %v385 = vunpack.c.l.b16 %v227
      %v386 = vunpack.c.l.b16 %v234
      %v387 = vunpack.c.l.b16 %v235
      %v388 = vunpack.c.l.b16 %v242
      %v389 = vunpack.c.l.b16 %v243
      %v390 = vunpack.c.l.b16 %v250
      %v391 = vunpack.c.l.b16 %v251
      %v392 = vunpack.c.l.b16 %v258
      %v393 = vunpack.c.l.b16 %v259
      %v394 = vunpack.c.l.b16 %v266
      %v395 = vunpack.c.l.b16 %v267
      %v396 = vunpack.c.l.b16 %v274
      %v397 = vunpack.c.l.b16 %v275
      %v398 = vunpack.c.l.b16 %v282
      %v399 = vunpack.c.l.b16 %v283
      %v400 = vunpack.c.l.b16 %v290
      %v401 = vunpack.c.l.b16 %v291
      %v402 = vunpack.c.l.b16 %v298
      %v403 = vunpack.c.l.b16 %v299
      %v404 = vunpack.c.l.b16 %v306
      %v405 = vunpack.c.l.b16 %v307
      %v406 = vunpack.c.l.b16 %v314
      %v407 = vunpack.c.l.b16 %v315
      %v408 = vunpack.c.l.b16 %v322
      %v409 = vunpack.c.l.b16 %v323
      %v410 = vunpack.c.l.b16 %v330
      %v411 = vunpack.c.l.b16 %v331
      %v412 = vunpack.c.l.b16 %v338
      %v413 = vunpack.c.l.b16 %v339
      %v414 = vpack.c.b16 %v383, %v382
      %v415 = vpack.c.b16 %v385, %v384
      %v416 = vpack.c.b16 %v387, %v386
      %v417 = vpack.c.b16 %v389, %v388
      %v418 = vpack.c.b16 %v391, %v390
      %v419 = vpack.c.b16 %v393, %v392
      %v420 = vpack.c.b16 %v395, %v394
      %v421 = vpack.c.b16 %v397, %v396
      %v422 = vpack.c.b16 %v399, %v398
      %v423 = vpack.c.b16 %v401, %v400
      %v424 = vpack.c.b16 %v403, %v402
      %v425 = vpack.c.b16 %v405, %v404
      %v426 = vpack.c.b16 %v407, %v406
      %v427 = vpack.c.b16 %v409, %v408
      %v428 = vpack.c.b16 %v411, %v410
      %v429 = vpack.c.b16 %v413, %v412
      %v432 = vunpack.c.l.b16 %v345
      %v433 = vunpack.c.l.b16 %v346
      %v434 = vpack.c.b16 %v433, %v432
      %v435 = vrot.slane %v434, 2
      %vm436 = vcmask 97280
      %v438 = vsel %vm436, %v414, 0
      %v441 = vsel %vm436, %v415, 0
      %v444 = vsel %vm436, %v416, 0
      %v447 = vsel %vm436, %v417, 0
      %v450 = vsel %vm436, %v418, 0
      %v453 = vsel %vm436, %v419, 0
      %v456 = vsel %vm436, %v420, 0
      %v459 = vsel %vm436, %v421, 0
      %v462 = vsel %vm436, %v422, 0
      %v465 = vsel %vm436, %v423, 0
      %v468 = vsel %vm436, %v424, 0
      %v471 = vsel %vm436, %v425, 0
      %v474 = vsel %vm436, %v426, 0
      %v477 = vsel %vm436, %v427, 0
      %v480 = vsel %vm436, %v428, 0
      %v483 = vsel %vm436, %v429, 0
      %vm485 = vcmask 1045504
      %v487 = vsel %vm485, %v435, 0
      %489 = vmatprep.subr.bf16.mxu0 0
      %490 = vmatpush1.bf16.msra.mxu0 %v487
      %491 = vmatprep.subr.bf16.mxu0 0
      %492 = vmatpush1.bf16.msra.mxu0 0
      %493 = vmatprep.subr.bf16.mxu0 0
      %494 = vmatpush1.bf16.msra.mxu0 0
      %495 = vmatprep.subr.bf16.mxu0 0
      %496 = vmatpush1.bf16.msra.mxu0 0
      %497 = vmatprep.subr.bf16.mxu0 0
      %498 = vmatpush1.bf16.msra.mxu0 0
      %499 = vmatprep.subr.bf16.mxu0 0
      %500 = vmatpush1.bf16.msra.mxu0 0
      %501 = vmatprep.subr.bf16.mxu0 0
      %502 = vmatpush1.bf16.msra.mxu0 0
      %503 = vmatprep.subr.bf16.mxu0 0
      %504 = vmatpush1.bf16.msra.mxu0 0
      %505 = vmatprep.subr.bf16.mxu0 0
      %506 = vmatpush1.bf16.msra.mxu0 0
      %507 = vmatprep.subr.bf16.mxu0 0
      %508 = vmatpush1.bf16.msra.mxu0 0
      %509 = vmatprep.subr.bf16.mxu0 0
      %510 = vmatpush1.bf16.msra.mxu0 0
      %511 = vmatprep.subr.bf16.mxu0 0
      %512 = vmatpush1.bf16.msra.mxu0 0
      %513 = vmatprep.subr.bf16.mxu0 0
      %514 = vmatpush1.bf16.msra.mxu0 0
      %515 = vmatprep.subr.bf16.mxu0 0
      %516 = vmatpush1.bf16.msra.mxu0 0
      %517 = vmatprep.subr.bf16.mxu0 0
      %518 = vmatpush1.bf16.msra.mxu0 0
      %519 = vmatprep.subr.bf16.mxu0 0
      %520 = vmatpush1.bf16.msra.mxu0 0
      %521 = vmatprep.mubr.bf16.mxu0 0
      %522 = vmatmul.mubr.bf16.gmra.mrb[0].mxu0 %v438
      %v523 = vpop.f32.mrb[0].mxu0
      %v524 = vadd.f32 0.0, %v523
      %v525 = vpop.f32.mrb[0].mxu0
      %v526 = vpop.f32.mrb[0].mxu0
      %v527 = vadd.f32 0.0, %v526
      %v528 = vpop.f32.mrb[0].mxu0
      %529 = vmatprep.mubr.bf16.mxu0 0
      %530 = vmatmul.mubr.bf16.gmra.mrb[0].mxu0 %v441
      %v531 = vpop.f32.mrb[0].mxu0
      %v532 = vadd.f32 0.0, %v531
      %v533 = vpop.f32.mrb[0].mxu0
      %v534 = vpop.f32.mrb[0].mxu0
      %v535 = vadd.f32 0.0, %v534
      %v536 = vpop.f32.mrb[0].mxu0
      %537 = vmatprep.mubr.bf16.mxu0 0
      %538 = vmatmul.mubr.bf16.gmra.mrb[0].mxu0 %v444
      %v539 = vpop.f32.mrb[0].mxu0
      %v540 = vadd.f32 0.0, %v539
      %v541 = vpop.f32.mrb[0].mxu0
      %v542 = vpop.f32.mrb[0].mxu0
      %v543 = vadd.f32 0.0, %v542
      %v544 = vpop.f32.mrb[0].mxu0
      %545 = vmatprep.mubr.bf16.mxu0 0
      %546 = vmatmul.mubr.bf16.gmra.mrb[0].mxu0 %v447
      %v547 = vpop.f32.mrb[0].mxu0
      %v548 = vadd.f32 0.0, %v547
      %v549 = vpop.f32.mrb[0].mxu0
      %v550 = vpop.f32.mrb[0].mxu0
      %v551 = vadd.f32 0.0, %v550
      %v552 = vpop.f32.mrb[0].mxu0
      %553 = vmatprep.mubr.bf16.mxu0 0
      %554 = vmatmul.mubr.bf16.gmra.mrb[0].mxu0 %v450
      %v555 = vpop.f32.mrb[0].mxu0
      %v556 = vadd.f32 0.0, %v555
      %v557 = vpop.f32.mrb[0].mxu0
      %v558 = vpop.f32.mrb[0].mxu0
      %v559 = vadd.f32 0.0, %v558
      %v560 = vpop.f32.mrb[0].mxu0
      %561 = vmatprep.mubr.bf16.mxu0 0
      %562 = vmatmul.mubr.bf16.gmra.mrb[0].mxu0 %v453
      %v563 = vpop.f32.mrb[0].mxu0
      %v564 = vadd.f32 0.0, %v563
      %v565 = vpop.f32.mrb[0].mxu0
      %v566 = vpop.f32.mrb[0].mxu0
      %v567 = vadd.f32 0.0, %v566
      %v568 = vpop.f32.mrb[0].mxu0
      %569 = vmatprep.mubr.bf16.mxu0 0
      %570 = vmatmul.mubr.bf16.gmra.mrb[0].mxu0 %v456
      %v571 = vpop.f32.mrb[0].mxu0
      %v572 = vadd.f32 0.0, %v571
      %v573 = vpop.f32.mrb[0].mxu0
      %v574 = vpop.f32.mrb[0].mxu0
      %v575 = vadd.f32 0.0, %v574
      %v576 = vpop.f32.mrb[0].mxu0
      %577 = vmatprep.mubr.bf16.mxu0 0
      %578 = vmatmul.mubr.bf16.gmra.mrb[0].mxu0 %v459
      %v579 = vpop.f32.mrb[0].mxu0
      %v580 = vadd.f32 0.0, %v579
      %v581 = vpop.f32.mrb[0].mxu0
      %v582 = vpop.f32.mrb[0].mxu0
      %v583 = vadd.f32 0.0, %v582
      %v584 = vpop.f32.mrb[0].mxu0
      %585 = vmatprep.mubr.bf16.mxu0 0
      %586 = vmatmul.mubr.bf16.gmra.mrb[0].mxu0 %v462
      %v587 = vpop.f32.mrb[0].mxu0
      %v588 = vadd.f32 0.0, %v587
      %v589 = vpop.f32.mrb[0].mxu0
      %v590 = vpop.f32.mrb[0].mxu0
      %v591 = vadd.f32 0.0, %v590
      %v592 = vpop.f32.mrb[0].mxu0
      %593 = vmatprep.mubr.bf16.mxu0 0
      %594 = vmatmul.mubr.bf16.gmra.mrb[0].mxu0 %v465
      %v595 = vpop.f32.mrb[0].mxu0
      %v596 = vadd.f32 0.0, %v595
      %v597 = vpop.f32.mrb[0].mxu0
      %v598 = vpop.f32.mrb[0].mxu0
      %v599 = vadd.f32 0.0, %v598
      %v600 = vpop.f32.mrb[0].mxu0
      %601 = vmatprep.mubr.bf16.mxu0 0
      %602 = vmatmul.mubr.bf16.gmra.mrb[0].mxu0 %v468
      %v603 = vpop.f32.mrb[0].mxu0
      %v604 = vadd.f32 0.0, %v603
      %v605 = vpop.f32.mrb[0].mxu0
      %v606 = vpop.f32.mrb[0].mxu0
      %v607 = vadd.f32 0.0, %v606
      %v608 = vpop.f32.mrb[0].mxu0
      %609 = vmatprep.mubr.bf16.mxu0 0
      %610 = vmatmul.mubr.bf16.gmra.mrb[0].mxu0 %v471
      %v611 = vpop.f32.mrb[0].mxu0
      %v612 = vadd.f32 0.0, %v611
      %v613 = vpop.f32.mrb[0].mxu0
      %v614 = vpop.f32.mrb[0].mxu0
      %v615 = vadd.f32 0.0, %v614
      %v616 = vpop.f32.mrb[0].mxu0
      %617 = vmatprep.mubr.bf16.mxu0 0
      %618 = vmatmul.mubr.bf16.gmra.mrb[0].mxu0 %v474
      %v619 = vpop.f32.mrb[0].mxu0
      %v620 = vadd.f32 0.0, %v619
      %v621 = vpop.f32.mrb[0].mxu0
      %v622 = vpop.f32.mrb[0].mxu0
      %v623 = vadd.f32 0.0, %v622
      %v624 = vpop.f32.mrb[0].mxu0
      %625 = vmatprep.mubr.bf16.mxu0 0
      %626 = vmatmul.mubr.bf16.gmra.mrb[0].mxu0 %v477
      %v627 = vpop.f32.mrb[0].mxu0
      %v628 = vadd.f32 0.0, %v627
      %v629 = vpop.f32.mrb[0].mxu0
      %v630 = vpop.f32.mrb[0].mxu0
      %v631 = vadd.f32 0.0, %v630
      %v632 = vpop.f32.mrb[0].mxu0
      %633 = vmatprep.mubr.bf16.mxu0 0
      %634 = vmatmul.mubr.bf16.gmra.mrb[0].mxu0 %v480
      %v635 = vpop.f32.mrb[0].mxu0
      %v636 = vadd.f32 0.0, %v635
      %v637 = vpop.f32.mrb[0].mxu0
      %v638 = vpop.f32.mrb[0].mxu0
      %v639 = vadd.f32 0.0, %v638
      %v640 = vpop.f32.mrb[0].mxu0
      %641 = vmatprep.mubr.bf16.mxu0 0
      %642 = vmatmul.mubr.bf16.gmra.mrb[0].mxu0 %v483
      %v643 = vpop.f32.mrb[0].mxu0
      %v644 = vadd.f32 0.0, %v643
      %v645 = vpop.f32.mrb[0].mxu0
      %v646 = vpop.f32.mrb[0].mxu0
      %v647 = vadd.f32 0.0, %v646
      %v648 = vpop.f32.mrb[0].mxu0
      %649 = vdwg.mxu0
      %v682 = vunpack.c.l.b16 %v216
      %v683 = vunpack.c.l.b16 %v217
      %v684 = vunpack.c.l.b16 %v224
      %v685 = vunpack.c.l.b16 %v225
      %v686 = vunpack.c.l.b16 %v232
      %v687 = vunpack.c.l.b16 %v233
      %v688 = vunpack.c.l.b16 %v240
      %v689 = vunpack.c.l.b16 %v241
      %v690 = vunpack.c.l.b16 %v248
      %v691 = vunpack.c.l.b16 %v249
      %v692 = vunpack.c.l.b16 %v256
      %v693 = vunpack.c.l.b16 %v257
      %v694 = vunpack.c.l.b16 %v264
      %v695 = vunpack.c.l.b16 %v265
      %v696 = vunpack.c.l.b16 %v272
      %v697 = vunpack.c.l.b16 %v273
      %v698 = vunpack.c.l.b16 %v280
      %v699 = vunpack.c.l.b16 %v281
      %v700 = vunpack.c.l.b16 %v288
      %v701 = vunpack.c.l.b16 %v289
      %v702 = vunpack.c.l.b16 %v296
      %v703 = vunpack.c.l.b16 %v297
      %v704 = vunpack.c.l.b16 %v304
      %v705 = vunpack.c.l.b16 %v305
      %v706 = vunpack.c.l.b16 %v312
      %v707 = vunpack.c.l.b16 %v313
      %v708 = vunpack.c.l.b16 %v320
      %v709 = vunpack.c.l.b16 %v321
      %v710 = vunpack.c.l.b16 %v328
      %v711 = vunpack.c.l.b16 %v329
      %v712 = vunpack.c.l.b16 %v336
      %v713 = vunpack.c.l.b16 %v337
      %v714 = vpack.c.b16 %v683, %v682
      %v715 = vpack.c.b16 %v685, %v684
      %v716 = vpack.c.b16 %v687, %v686
      %v717 = vpack.c.b16 %v689, %v688
      %v718 = vpack.c.b16 %v691, %v690
      %v719 = vpack.c.b16 %v693, %v692
      %v720 = vpack.c.b16 %v695, %v694
      %v721 = vpack.c.b16 %v697, %v696
      %v722 = vpack.c.b16 %v699, %v698
      %v723 = vpack.c.b16 %v701, %v700
      %v724 = vpack.c.b16 %v703, %v702
      %v725 = vpack.c.b16 %v705, %v704
      %v726 = vpack.c.b16 %v707, %v706
      %v727 = vpack.c.b16 %v709, %v708
      %v728 = vpack.c.b16 %v711, %v710
      %v729 = vpack.c.b16 %v713, %v712
      %v731 = vunpack.c.l.b16 %v344
      %v732 = vpack.c.b16 %v432, %v731
      %v734 = vsel %vm436, %v714, 0
      %v737 = vsel %vm436, %v715, 0
      %v740 = vsel %vm436, %v716, 0
      %v743 = vsel %vm436, %v717, 0
      %v746 = vsel %vm436, %v718, 0
      %v749 = vsel %vm436, %v719, 0
      %v752 = vsel %vm436, %v720, 0
      %v755 = vsel %vm436, %v721, 0
      %v758 = vsel %vm436, %v722, 0
      %v761 = vsel %vm436, %v723, 0
      %v764 = vsel %vm436, %v724, 0
      %v767 = vsel %vm436, %v725, 0
      %v770 = vsel %vm436, %v726, 0
      %v773 = vsel %vm436, %v727, 0
      %v776 = vsel %vm436, %v728, 0
      %v779 = vsel %vm436, %v729, 0
      %v782 = vsel %vm485, %v732, 0
      %784 = vmatprep.subr.bf16.mxu0 0
      %785 = vmatpush1.bf16.msra.mxu0 %v782
      %786 = vmatprep.subr.bf16.mxu0 0
      %787 = vmatpush1.bf16.msra.mxu0 0
      %788 = vmatprep.subr.bf16.mxu0 0
      %789 = vmatpush1.bf16.msra.mxu0 0
      %790 = vmatprep.subr.bf16.mxu0 0
      %791 = vmatpush1.bf16.msra.mxu0 0
      %792 = vmatprep.subr.bf16.mxu0 0
      %793 = vmatpush1.bf16.msra.mxu0 0
      %794 = vmatprep.subr.bf16.mxu0 0
      %795 = vmatpush1.bf16.msra.mxu0 0
      %796 = vmatprep.subr.bf16.mxu0 0
      %797 = vmatpush1.bf16.msra.mxu0 0
      %798 = vmatprep.subr.bf16.mxu0 0
      %799 = vmatpush1.bf16.msra.mxu0 0
      %800 = vmatprep.subr.bf16.mxu0 0
      %801 = vmatpush1.bf16.msra.mxu0 0
      %802 = vmatprep.subr.bf16.mxu0 0
      %803 = vmatpush1.bf16.msra.mxu0 0
      %804 = vmatprep.subr.bf16.mxu0 0
      %805 = vmatpush1.bf16.msra.mxu0 0
      %806 = vmatprep.subr.bf16.mxu0 0
      %807 = vmatpush1.bf16.msra.mxu0 0
      %808 = vmatprep.subr.bf16.mxu0 0
      %809 = vmatpush1.bf16.msra.mxu0 0
      %810 = vmatprep.subr.bf16.mxu0 0
      %811 = vmatpush1.bf16.msra.mxu0 0
      %812 = vmatprep.subr.bf16.mxu0 0
      %813 = vmatpush1.bf16.msra.mxu0 0
      %814 = vmatprep.subr.bf16.mxu0 0
      %815 = vmatpush1.bf16.msra.mxu0 0
      %816 = vmatprep.mubr.bf16.mxu0 0
      %817 = vmatmul.mubr.bf16.gmra.mrb[0].mxu0 %v734
      %v818 = vpop.f32.mrb[0].mxu0
      %v819 = vadd.f32 %v524, %v818
      %v820 = vpop.f32.mrb[0].mxu0
      %v821 = vpop.f32.mrb[0].mxu0
      %v822 = vadd.f32 %v527, %v821
      %v823 = vpop.f32.mrb[0].mxu0
      %824 = vmatprep.mubr.bf16.mxu0 0
      %825 = vmatmul.mubr.bf16.gmra.mrb[0].mxu0 %v737
      %v826 = vpop.f32.mrb[0].mxu0
      %v827 = vadd.f32 %v532, %v826
      %v828 = vpop.f32.mrb[0].mxu0
      %v829 = vpop.f32.mrb[0].mxu0
      %v830 = vadd.f32 %v535, %v829
      %v831 = vpop.f32.mrb[0].mxu0
      %832 = vmatprep.mubr.bf16.mxu0 0
      %833 = vmatmul.mubr.bf16.gmra.mrb[0].mxu0 %v740
      %v834 = vpop.f32.mrb[0].mxu0
      %v835 = vadd.f32 %v540, %v834
      %v836 = vpop.f32.mrb[0].mxu0
      %v837 = vpop.f32.mrb[0].mxu0
      %v838 = vadd.f32 %v543, %v837
      %v839 = vpop.f32.mrb[0].mxu0
      %840 = vmatprep.mubr.bf16.mxu0 0
      %841 = vmatmul.mubr.bf16.gmra.mrb[0].mxu0 %v743
      %v842 = vpop.f32.mrb[0].mxu0
      %v843 = vadd.f32 %v548, %v842
      %v844 = vpop.f32.mrb[0].mxu0
      %v845 = vpop.f32.mrb[0].mxu0
      %v846 = vadd.f32 %v551, %v845
      %v847 = vpop.f32.mrb[0].mxu0
      %848 = vmatprep.mubr.bf16.mxu0 0
      %849 = vmatmul.mubr.bf16.gmra.mrb[0].mxu0 %v746
      %v850 = vpop.f32.mrb[0].mxu0
      %v851 = vadd.f32 %v556, %v850
      %v852 = vpop.f32.mrb[0].mxu0
      %v853 = vpop.f32.mrb[0].mxu0
      %v854 = vadd.f32 %v559, %v853
      %v855 = vpop.f32.mrb[0].mxu0
      %856 = vmatprep.mubr.bf16.mxu0 0
      %857 = vmatmul.mubr.bf16.gmra.mrb[0].mxu0 %v749
      %v858 = vpop.f32.mrb[0].mxu0
      %v859 = vadd.f32 %v564, %v858
      %v860 = vpop.f32.mrb[0].mxu0
      %v861 = vpop.f32.mrb[0].mxu0
      %v862 = vadd.f32 %v567, %v861
      %v863 = vpop.f32.mrb[0].mxu0
      %864 = vmatprep.mubr.bf16.mxu0 0
      %865 = vmatmul.mubr.bf16.gmra.mrb[0].mxu0 %v752
      %v866 = vpop.f32.mrb[0].mxu0
      %v867 = vadd.f32 %v572, %v866
      %v868 = vpop.f32.mrb[0].mxu0
      %v869 = vpop.f32.mrb[0].mxu0
      %v870 = vadd.f32 %v575, %v869
      %v871 = vpop.f32.mrb[0].mxu0
      %872 = vmatprep.mubr.bf16.mxu0 0
      %873 = vmatmul.mubr.bf16.gmra.mrb[0].mxu0 %v755
      %v874 = vpop.f32.mrb[0].mxu0
      %v875 = vadd.f32 %v580, %v874
      %v876 = vpop.f32.mrb[0].mxu0
      %v877 = vpop.f32.mrb[0].mxu0
      %v878 = vadd.f32 %v583, %v877
      %v879 = vpop.f32.mrb[0].mxu0
      %880 = vmatprep.mubr.bf16.mxu0 0
      %881 = vmatmul.mubr.bf16.gmra.mrb[0].mxu0 %v758
      %v882 = vpop.f32.mrb[0].mxu0
      %v883 = vadd.f32 %v588, %v882
      %v884 = vpop.f32.mrb[0].mxu0
      %v885 = vpop.f32.mrb[0].mxu0
      %v886 = vadd.f32 %v591, %v885
      %v887 = vpop.f32.mrb[0].mxu0
      %888 = vmatprep.mubr.bf16.mxu0 0
      %889 = vmatmul.mubr.bf16.gmra.mrb[0].mxu0 %v761
      %v890 = vpop.f32.mrb[0].mxu0
      %v891 = vadd.f32 %v596, %v890
      %v892 = vpop.f32.mrb[0].mxu0
      %v893 = vpop.f32.mrb[0].mxu0
      %v894 = vadd.f32 %v599, %v893
      %v895 = vpop.f32.mrb[0].mxu0
      %896 = vmatprep.mubr.bf16.mxu0 0
      %897 = vmatmul.mubr.bf16.gmra.mrb[0].mxu0 %v764
      %v898 = vpop.f32.mrb[0].mxu0
      %v899 = vadd.f32 %v604, %v898
      %v900 = vpop.f32.mrb[0].mxu0
      %v901 = vpop.f32.mrb[0].mxu0
      %v902 = vadd.f32 %v607, %v901
      %v903 = vpop.f32.mrb[0].mxu0
      %904 = vmatprep.mubr.bf16.mxu0 0
      %905 = vmatmul.mubr.bf16.gmra.mrb[0].mxu0 %v767
      %v906 = vpop.f32.mrb[0].mxu0
      %v907 = vadd.f32 %v612, %v906
      %v908 = vpop.f32.mrb[0].mxu0
      %v909 = vpop.f32.mrb[0].mxu0
      %v910 = vadd.f32 %v615, %v909
      %v911 = vpop.f32.mrb[0].mxu0
      %912 = vmatprep.mubr.bf16.mxu0 0
      %913 = vmatmul.mubr.bf16.gmra.mrb[0].mxu0 %v770
      %v914 = vpop.f32.mrb[0].mxu0
      %v915 = vadd.f32 %v620, %v914
      %v916 = vpop.f32.mrb[0].mxu0
      %v917 = vpop.f32.mrb[0].mxu0
      %v918 = vadd.f32 %v623, %v917
      %v919 = vpop.f32.mrb[0].mxu0
      %920 = vmatprep.mubr.bf16.mxu0 0
      %921 = vmatmul.mubr.bf16.gmra.mrb[0].mxu0 %v773
      %v922 = vpop.f32.mrb[0].mxu0
      %v923 = vadd.f32 %v628, %v922
      %v924 = vpop.f32.mrb[0].mxu0
      %v925 = vpop.f32.mrb[0].mxu0
      %v926 = vadd.f32 %v631, %v925
      %v927 = vpop.f32.mrb[0].mxu0
      %928 = vmatprep.mubr.bf16.mxu0 0
      %929 = vmatmul.mubr.bf16.gmra.mrb[0].mxu0 %v776
      %v930 = vpop.f32.mrb[0].mxu0
      %v931 = vadd.f32 %v636, %v930
      %v932 = vpop.f32.mrb[0].mxu0
      %v933 = vpop.f32.mrb[0].mxu0
      %v934 = vadd.f32 %v639, %v933
      %v935 = vpop.f32.mrb[0].mxu0
      %936 = vmatprep.mubr.bf16.mxu0 0
      %937 = vmatmul.mubr.bf16.gmra.mrb[0].mxu0 %v779
      %v938 = vpop.f32.mrb[0].mxu0
      %v939 = vadd.f32 %v644, %v938
      %v940 = vpop.f32.mrb[0].mxu0
      %v941 = vpop.f32.mrb[0].mxu0
      %v942 = vadd.f32 %v647, %v941
      %v943 = vpop.f32.mrb[0].mxu0
      %944 = vdwg.mxu0
      %v977 = vunpack.c.l.b16 %v220
      %v978 = vunpack.c.l.b16 %v221
      %v979 = vunpack.c.l.b16 %v228
      %v980 = vunpack.c.l.b16 %v229
      %v981 = vunpack.c.l.b16 %v236
      %v982 = vunpack.c.l.b16 %v237
      %v983 = vunpack.c.l.b16 %v244
      %v984 = vunpack.c.l.b16 %v245
      %v985 = vunpack.c.l.b16 %v252
      %v986 = vunpack.c.l.b16 %v253
      %v987 = vunpack.c.l.b16 %v260
      %v988 = vunpack.c.l.b16 %v261
      %v989 = vunpack.c.l.b16 %v268
      %v990 = vunpack.c.l.b16 %v269
      %v991 = vunpack.c.l.b16 %v276
      %v992 = vunpack.c.l.b16 %v277
      %v993 = vunpack.c.l.b16 %v284
      %v994 = vunpack.c.l.b16 %v285
      %v995 = vunpack.c.l.b16 %v292
      %v996 = vunpack.c.l.b16 %v293
      %v997 = vunpack.c.l.b16 %v300
      %v998 = vunpack.c.l.b16 %v301
      %v999 = vunpack.c.l.b16 %v308
      %v1000 = vunpack.c.l.b16 %v309
      %v1001 = vunpack.c.l.b16 %v316
      %v1002 = vunpack.c.l.b16 %v317
      %v1003 = vunpack.c.l.b16 %v324
      %v1004 = vunpack.c.l.b16 %v325
      %v1005 = vunpack.c.l.b16 %v332
      %v1006 = vunpack.c.l.b16 %v333
      %v1007 = vunpack.c.l.b16 %v340
      %v1008 = vunpack.c.l.b16 %v341
      %v1009 = vpack.c.b16 %v978, %v977
      %v1010 = vpack.c.b16 %v980, %v979
      %v1011 = vpack.c.b16 %v982, %v981
      %v1012 = vpack.c.b16 %v984, %v983
      %v1013 = vpack.c.b16 %v986, %v985
      %v1014 = vpack.c.b16 %v988, %v987
      %v1015 = vpack.c.b16 %v990, %v989
      %v1016 = vpack.c.b16 %v992, %v991
      %v1017 = vpack.c.b16 %v994, %v993
      %v1018 = vpack.c.b16 %v996, %v995
      %v1019 = vpack.c.b16 %v998, %v997
      %v1020 = vpack.c.b16 %v1000, %v999
      %v1021 = vpack.c.b16 %v1002, %v1001
      %v1022 = vpack.c.b16 %v1004, %v1003
      %v1023 = vpack.c.b16 %v1006, %v1005
      %v1024 = vpack.c.b16 %v1008, %v1007
      %v1027 = vunpack.c.l.b16 %v347
      %v1028 = vunpack.c.l.b16 %v348
      %v1029 = vpack.c.b16 %v1028, %v1027
      %v1031 = vsel %vm436, %v1009, 0
      %v1034 = vsel %vm436, %v1010, 0
      %v1037 = vsel %vm436, %v1011, 0
      %v1040 = vsel %vm436, %v1012, 0
      %v1043 = vsel %vm436, %v1013, 0
      %v1046 = vsel %vm436, %v1014, 0
      %v1049 = vsel %vm436, %v1015, 0
      %v1052 = vsel %vm436, %v1016, 0
      %v1055 = vsel %vm436, %v1017, 0
      %v1058 = vsel %vm436, %v1018, 0
      %v1061 = vsel %vm436, %v1019, 0
      %v1064 = vsel %vm436, %v1020, 0
      %v1067 = vsel %vm436, %v1021, 0
      %v1070 = vsel %vm436, %v1022, 0
      %v1073 = vsel %vm436, %v1023, 0
      %v1076 = vsel %vm436, %v1024, 0
      %v1079 = vsel %vm485, %v1029, 0
      %1081 = vmatprep.subr.bf16.mxu0 0
      %1082 = vmatpush1.bf16.msra.mxu0 %v1079
      %1083 = vmatprep.subr.bf16.mxu0 0
      %1084 = vmatpush1.bf16.msra.mxu0 0
      %1085 = vmatprep.subr.bf16.mxu0 0
      %1086 = vmatpush1.bf16.msra.mxu0 0
      %1087 = vmatprep.subr.bf16.mxu0 0
      %1088 = vmatpush1.bf16.msra.mxu0 0
      %1089 = vmatprep.subr.bf16.mxu0 0
      %1090 = vmatpush1.bf16.msra.mxu0 0
      %1091 = vmatprep.subr.bf16.mxu0 0
      %1092 = vmatpush1.bf16.msra.mxu0 0
      %1093 = vmatprep.subr.bf16.mxu0 0
      %1094 = vmatpush1.bf16.msra.mxu0 0
      %1095 = vmatprep.subr.bf16.mxu0 0
      %1096 = vmatpush1.bf16.msra.mxu0 0
      %1097 = vmatprep.subr.bf16.mxu0 0
      %1098 = vmatpush1.bf16.msra.mxu0 0
      %1099 = vmatprep.subr.bf16.mxu0 0
      %1100 = vmatpush1.bf16.msra.mxu0 0
      %1101 = vmatprep.subr.bf16.mxu0 0
      %1102 = vmatpush1.bf16.msra.mxu0 0
      %1103 = vmatprep.subr.bf16.mxu0 0
      %1104 = vmatpush1.bf16.msra.mxu0 0
      %1105 = vmatprep.subr.bf16.mxu0 0
      %1106 = vmatpush1.bf16.msra.mxu0 0
      %1107 = vmatprep.subr.bf16.mxu0 0
      %1108 = vmatpush1.bf16.msra.mxu0 0
      %1109 = vmatprep.subr.bf16.mxu0 0
      %1110 = vmatpush1.bf16.msra.mxu0 0
      %1111 = vmatprep.subr.bf16.mxu0 0
      %1112 = vmatpush1.bf16.msra.mxu0 0
      %1113 = vmatprep.mubr.bf16.mxu0 0
      %1114 = vmatmul.mubr.bf16.gmra.mrb[0].mxu0 %v1031
      %v1115 = vpop.f32.mrb[0].mxu0
      %v1116 = vadd.f32 0.0, %v1115
      %v1117 = vpop.f32.mrb[0].mxu0
      %v1118 = vpop.f32.mrb[0].mxu0
      %v1119 = vadd.f32 0.0, %v1118
      %v1120 = vpop.f32.mrb[0].mxu0
      %1121 = vmatprep.mubr.bf16.mxu0 0
      %1122 = vmatmul.mubr.bf16.gmra.mrb[0].mxu0 %v1034
      %v1123 = vpop.f32.mrb[0].mxu0
      %v1124 = vadd.f32 0.0, %v1123
      %v1125 = vpop.f32.mrb[0].mxu0
      %v1126 = vpop.f32.mrb[0].mxu0
      %v1127 = vadd.f32 0.0, %v1126
      %v1128 = vpop.f32.mrb[0].mxu0
      %1129 = vmatprep.mubr.bf16.mxu0 0
      %1130 = vmatmul.mubr.bf16.gmra.mrb[0].mxu0 %v1037
      %v1131 = vpop.f32.mrb[0].mxu0
      %v1132 = vadd.f32 0.0, %v1131
      %v1133 = vpop.f32.mrb[0].mxu0
      %v1134 = vpop.f32.mrb[0].mxu0
      %v1135 = vadd.f32 0.0, %v1134
      %v1136 = vpop.f32.mrb[0].mxu0
      %1137 = vmatprep.mubr.bf16.mxu0 0
      %1138 = vmatmul.mubr.bf16.gmra.mrb[0].mxu0 %v1040
      %v1139 = vpop.f32.mrb[0].mxu0
      %v1140 = vadd.f32 0.0, %v1139
      %v1141 = vpop.f32.mrb[0].mxu0
      %v1142 = vpop.f32.mrb[0].mxu0
      %v1143 = vadd.f32 0.0, %v1142
      %v1144 = vpop.f32.mrb[0].mxu0
      %1145 = vmatprep.mubr.bf16.mxu0 0
      %1146 = vmatmul.mubr.bf16.gmra.mrb[0].mxu0 %v1043
      %v1147 = vpop.f32.mrb[0].mxu0
      %v1148 = vadd.f32 0.0, %v1147
      %v1149 = vpop.f32.mrb[0].mxu0
      %v1150 = vpop.f32.mrb[0].mxu0
      %v1151 = vadd.f32 0.0, %v1150
      %v1152 = vpop.f32.mrb[0].mxu0
      %1153 = vmatprep.mubr.bf16.mxu0 0
      %1154 = vmatmul.mubr.bf16.gmra.mrb[0].mxu0 %v1046
      %v1155 = vpop.f32.mrb[0].mxu0
      %v1156 = vadd.f32 0.0, %v1155
      %v1157 = vpop.f32.mrb[0].mxu0
      %v1158 = vpop.f32.mrb[0].mxu0
      %v1159 = vadd.f32 0.0, %v1158
      %v1160 = vpop.f32.mrb[0].mxu0
      %1161 = vmatprep.mubr.bf16.mxu0 0
      %1162 = vmatmul.mubr.bf16.gmra.mrb[0].mxu0 %v1049
      %v1163 = vpop.f32.mrb[0].mxu0
      %v1164 = vadd.f32 0.0, %v1163
      %v1165 = vpop.f32.mrb[0].mxu0
      %v1166 = vpop.f32.mrb[0].mxu0
      %v1167 = vadd.f32 0.0, %v1166
      %v1168 = vpop.f32.mrb[0].mxu0
      %1169 = vmatprep.mubr.bf16.mxu0 0
      %1170 = vmatmul.mubr.bf16.gmra.mrb[0].mxu0 %v1052
      %v1171 = vpop.f32.mrb[0].mxu0
      %v1172 = vadd.f32 0.0, %v1171
      %v1173 = vpop.f32.mrb[0].mxu0
      %v1174 = vpop.f32.mrb[0].mxu0
      %v1175 = vadd.f32 0.0, %v1174
      %v1176 = vpop.f32.mrb[0].mxu0
      %1177 = vmatprep.mubr.bf16.mxu0 0
      %1178 = vmatmul.mubr.bf16.gmra.mrb[0].mxu0 %v1055
      %v1179 = vpop.f32.mrb[0].mxu0
      %v1180 = vadd.f32 0.0, %v1179
      %v1181 = vpop.f32.mrb[0].mxu0
      %v1182 = vpop.f32.mrb[0].mxu0
      %v1183 = vadd.f32 0.0, %v1182
      %v1184 = vpop.f32.mrb[0].mxu0
      %1185 = vmatprep.mubr.bf16.mxu0 0
      %1186 = vmatmul.mubr.bf16.gmra.mrb[0].mxu0 %v1058
      %v1187 = vpop.f32.mrb[0].mxu0
      %v1188 = vadd.f32 0.0, %v1187
      %v1189 = vpop.f32.mrb[0].mxu0
      %v1190 = vpop.f32.mrb[0].mxu0
      %v1191 = vadd.f32 0.0, %v1190
      %v1192 = vpop.f32.mrb[0].mxu0
      %1193 = vmatprep.mubr.bf16.mxu0 0
      %1194 = vmatmul.mubr.bf16.gmra.mrb[0].mxu0 %v1061
      %v1195 = vpop.f32.mrb[0].mxu0
      %v1196 = vadd.f32 0.0, %v1195
      %v1197 = vpop.f32.mrb[0].mxu0
      %v1198 = vpop.f32.mrb[0].mxu0
      %v1199 = vadd.f32 0.0, %v1198
      %v1200 = vpop.f32.mrb[0].mxu0
      %1201 = vmatprep.mubr.bf16.mxu0 0
      %1202 = vmatmul.mubr.bf16.gmra.mrb[0].mxu0 %v1064
      %v1203 = vpop.f32.mrb[0].mxu0
      %v1204 = vadd.f32 0.0, %v1203
      %v1205 = vpop.f32.mrb[0].mxu0
      %v1206 = vpop.f32.mrb[0].mxu0
      %v1207 = vadd.f32 0.0, %v1206
      %v1208 = vpop.f32.mrb[0].mxu0
      %1209 = vmatprep.mubr.bf16.mxu0 0
      %1210 = vmatmul.mubr.bf16.gmra.mrb[0].mxu0 %v1067
      %v1211 = vpop.f32.mrb[0].mxu0
      %v1212 = vadd.f32 0.0, %v1211
      %v1213 = vpop.f32.mrb[0].mxu0
      %v1214 = vpop.f32.mrb[0].mxu0
      %v1215 = vadd.f32 0.0, %v1214
      %v1216 = vpop.f32.mrb[0].mxu0
      %1217 = vmatprep.mubr.bf16.mxu0 0
      %1218 = vmatmul.mubr.bf16.gmra.mrb[0].mxu0 %v1070
      %v1219 = vpop.f32.mrb[0].mxu0
      %v1220 = vadd.f32 0.0, %v1219
      %v1221 = vpop.f32.mrb[0].mxu0
      %v1222 = vpop.f32.mrb[0].mxu0
      %v1223 = vadd.f32 0.0, %v1222
      %v1224 = vpop.f32.mrb[0].mxu0
      %1225 = vmatprep.mubr.bf16.mxu0 0
      %1226 = vmatmul.mubr.bf16.gmra.mrb[0].mxu0 %v1073
      %v1227 = vpop.f32.mrb[0].mxu0
      %v1228 = vadd.f32 0.0, %v1227
      %v1229 = vpop.f32.mrb[0].mxu0
      %v1230 = vpop.f32.mrb[0].mxu0
      %v1231 = vadd.f32 0.0, %v1230
      %v1232 = vpop.f32.mrb[0].mxu0
      %1233 = vmatprep.mubr.bf16.mxu0 0
      %1234 = vmatmul.mubr.bf16.gmra.mrb[0].mxu0 %v1076
      %v1235 = vpop.f32.mrb[0].mxu0
      %v1236 = vadd.f32 0.0, %v1235
      %v1237 = vpop.f32.mrb[0].mxu0
      %v1238 = vpop.f32.mrb[0].mxu0
      %v1239 = vadd.f32 0.0, %v1238
      %v1240 = vpop.f32.mrb[0].mxu0
      %1241 = vdwg.mxu0
      %v1242 = vadd.f32 %v819, %v1116
      %v1243 = vadd.f32 %v822, %v1119
      %v1244 = vadd.f32 %v827, %v1124
      %v1245 = vadd.f32 %v830, %v1127
      %v1246 = vadd.f32 %v835, %v1132
      %v1247 = vadd.f32 %v838, %v1135
      %v1248 = vadd.f32 %v843, %v1140
      %v1249 = vadd.f32 %v846, %v1143
      %v1250 = vadd.f32 %v851, %v1148
      %v1251 = vadd.f32 %v854, %v1151
      %v1252 = vadd.f32 %v859, %v1156
      %v1253 = vadd.f32 %v862, %v1159
      %v1254 = vadd.f32 %v867, %v1164
      %v1255 = vadd.f32 %v870, %v1167
      %v1256 = vadd.f32 %v875, %v1172
      %v1257 = vadd.f32 %v878, %v1175
      %v1258 = vadd.f32 %v883, %v1180
      %v1259 = vadd.f32 %v886, %v1183
      %v1260 = vadd.f32 %v891, %v1188
      %v1261 = vadd.f32 %v894, %v1191
      %v1262 = vadd.f32 %v899, %v1196
      %v1263 = vadd.f32 %v902, %v1199
      %v1264 = vadd.f32 %v907, %v1204
      %v1265 = vadd.f32 %v910, %v1207
      %v1266 = vadd.f32 %v915, %v1212
      %v1267 = vadd.f32 %v918, %v1215
      %v1268 = vadd.f32 %v923, %v1220
      %v1269 = vadd.f32 %v926, %v1223
      %v1270 = vadd.f32 %v931, %v1228
      %v1271 = vadd.f32 %v934, %v1231
      %v1272 = vadd.f32 %v939, %v1236
      %v1273 = vadd.f32 %v942, %v1239
      %v1306 = vunpack.c.l.b16 %v222
      %v1307 = vunpack.c.l.b16 %v223
      %v1308 = vunpack.c.l.b16 %v230
      %v1309 = vunpack.c.l.b16 %v231
      %v1310 = vunpack.c.l.b16 %v238
      %v1311 = vunpack.c.l.b16 %v239
      %v1312 = vunpack.c.l.b16 %v246
      %v1313 = vunpack.c.l.b16 %v247
      %v1314 = vunpack.c.l.b16 %v254
      %v1315 = vunpack.c.l.b16 %v255
      %v1316 = vunpack.c.l.b16 %v262
      %v1317 = vunpack.c.l.b16 %v263
      %v1318 = vunpack.c.l.b16 %v270
      %v1319 = vunpack.c.l.b16 %v271
      %v1320 = vunpack.c.l.b16 %v278
      %v1321 = vunpack.c.l.b16 %v279
      %v1322 = vunpack.c.l.b16 %v286
      %v1323 = vunpack.c.l.b16 %v287
      %v1324 = vunpack.c.l.b16 %v294
      %v1325 = vunpack.c.l.b16 %v295
      %v1326 = vunpack.c.l.b16 %v302
      %v1327 = vunpack.c.l.b16 %v303
      %v1328 = vunpack.c.l.b16 %v310
      %v1329 = vunpack.c.l.b16 %v311
      %v1330 = vunpack.c.l.b16 %v318
      %v1331 = vunpack.c.l.b16 %v319
      %v1332 = vunpack.c.l.b16 %v326
      %v1333 = vunpack.c.l.b16 %v327
      %v1334 = vunpack.c.l.b16 %v334
      %v1335 = vunpack.c.l.b16 %v335
      %v1336 = vunpack.c.l.b16 %v342
      %v1337 = vunpack.c.l.b16 %v343
      %v1338 = vpack.c.b16 %v1307, %v1306
      %v1339 = vpack.c.b16 %v1309, %v1308
      %v1340 = vpack.c.b16 %v1311, %v1310
      %v1341 = vpack.c.b16 %v1313, %v1312
      %v1342 = vpack.c.b16 %v1315, %v1314
      %v1343 = vpack.c.b16 %v1317, %v1316
      %v1344 = vpack.c.b16 %v1319, %v1318
      %v1345 = vpack.c.b16 %v1321, %v1320
      %v1346 = vpack.c.b16 %v1323, %v1322
      %v1347 = vpack.c.b16 %v1325, %v1324
      %v1348 = vpack.c.b16 %v1327, %v1326
      %v1349 = vpack.c.b16 %v1329, %v1328
      %v1350 = vpack.c.b16 %v1331, %v1330
      %v1351 = vpack.c.b16 %v1333, %v1332
      %v1352 = vpack.c.b16 %v1335, %v1334
      %v1353 = vpack.c.b16 %v1337, %v1336
      %v1355 = vunpack.c.l.b16 %v349
      %v1356 = vpack.c.b16 %v1355, %v1028
      %v1357 = vrot.slane %v1356, 2
      %v1359 = vsel %vm436, %v1338, 0
      %v1362 = vsel %vm436, %v1339, 0
      %v1365 = vsel %vm436, %v1340, 0
      %v1368 = vsel %vm436, %v1341, 0
      %v1371 = vsel %vm436, %v1342, 0
      %v1374 = vsel %vm436, %v1343, 0
      %v1377 = vsel %vm436, %v1344, 0
      %v1380 = vsel %vm436, %v1345, 0
      %v1383 = vsel %vm436, %v1346, 0
      %v1386 = vsel %vm436, %v1347, 0
      %v1389 = vsel %vm436, %v1348, 0
      %v1392 = vsel %vm436, %v1349, 0
      %v1395 = vsel %vm436, %v1350, 0
      %v1398 = vsel %vm436, %v1351, 0
      %v1401 = vsel %vm436, %v1352, 0
      %v1404 = vsel %vm436, %v1353, 0
      %v1407 = vsel %vm485, %v1357, 0
      %1409 = vmatprep.subr.bf16.mxu0 0
      %1410 = vmatpush1.bf16.msra.mxu0 %v1407
      %1411 = vmatprep.subr.bf16.mxu0 0
      %1412 = vmatpush1.bf16.msra.mxu0 0
      %1413 = vmatprep.subr.bf16.mxu0 0
      %1414 = vmatpush1.bf16.msra.mxu0 0
      %1415 = vmatprep.subr.bf16.mxu0 0
      %1416 = vmatpush1.bf16.msra.mxu0 0
      %1417 = vmatprep.subr.bf16.mxu0 0
      %1418 = vmatpush1.bf16.msra.mxu0 0
      %1419 = vmatprep.subr.bf16.mxu0 0
      %1420 = vmatpush1.bf16.msra.mxu0 0
      %1421 = vmatprep.subr.bf16.mxu0 0
      %1422 = vmatpush1.bf16.msra.mxu0 0
      %1423 = vmatprep.subr.bf16.mxu0 0
      %1424 = vmatpush1.bf16.msra.mxu0 0
      %1425 = vmatprep.subr.bf16.mxu0 0
      %1426 = vmatpush1.bf16.msra.mxu0 0
      %1427 = vmatprep.subr.bf16.mxu0 0
      %1428 = vmatpush1.bf16.msra.mxu0 0
      %1429 = vmatprep.subr.bf16.mxu0 0
      %1430 = vmatpush1.bf16.msra.mxu0 0
      %1431 = vmatprep.subr.bf16.mxu0 0
      %1432 = vmatpush1.bf16.msra.mxu0 0
      %1433 = vmatprep.subr.bf16.mxu0 0
      %1434 = vmatpush1.bf16.msra.mxu0 0
      %1435 = vmatprep.subr.bf16.mxu0 0
      %1436 = vmatpush1.bf16.msra.mxu0 0
      %1437 = vmatprep.subr.bf16.mxu0 0
      %1438 = vmatpush1.bf16.msra.mxu0 0
      %1439 = vmatprep.subr.bf16.mxu0 0
      %1440 = vmatpush1.bf16.msra.mxu0 0
      %1441 = vmatprep.mubr.bf16.mxu0 0
      %1442 = vmatmul.mubr.bf16.gmra.mrb[0].mxu0 %v1359
      %v1443 = vpop.f32.mrb[0].mxu0
      %v1444 = vadd.f32 0.0, %v1443
      %v1445 = vpop.f32.mrb[0].mxu0
      %v1446 = vpop.f32.mrb[0].mxu0
      %v1447 = vadd.f32 0.0, %v1446
      %v1448 = vpop.f32.mrb[0].mxu0
      %1449 = vmatprep.mubr.bf16.mxu0 0
      %1450 = vmatmul.mubr.bf16.gmra.mrb[0].mxu0 %v1362
      %v1451 = vpop.f32.mrb[0].mxu0
      %v1452 = vadd.f32 0.0, %v1451
      %v1453 = vpop.f32.mrb[0].mxu0
      %v1454 = vpop.f32.mrb[0].mxu0
      %v1455 = vadd.f32 0.0, %v1454
      %v1456 = vpop.f32.mrb[0].mxu0
      %1457 = vmatprep.mubr.bf16.mxu0 0
      %1458 = vmatmul.mubr.bf16.gmra.mrb[0].mxu0 %v1365
      %v1459 = vpop.f32.mrb[0].mxu0
      %v1460 = vadd.f32 0.0, %v1459
      %v1461 = vpop.f32.mrb[0].mxu0
      %v1462 = vpop.f32.mrb[0].mxu0
      %v1463 = vadd.f32 0.0, %v1462
      %v1464 = vpop.f32.mrb[0].mxu0
      %1465 = vmatprep.mubr.bf16.mxu0 0
      %1466 = vmatmul.mubr.bf16.gmra.mrb[0].mxu0 %v1368
      %v1467 = vpop.f32.mrb[0].mxu0
      %v1468 = vadd.f32 0.0, %v1467
      %v1469 = vpop.f32.mrb[0].mxu0
      %v1470 = vpop.f32.mrb[0].mxu0
      %v1471 = vadd.f32 0.0, %v1470
      %v1472 = vpop.f32.mrb[0].mxu0
      %1473 = vmatprep.mubr.bf16.mxu0 0
      %1474 = vmatmul.mubr.bf16.gmra.mrb[0].mxu0 %v1371
      %v1475 = vpop.f32.mrb[0].mxu0
      %v1476 = vadd.f32 0.0, %v1475
      %v1477 = vpop.f32.mrb[0].mxu0
      %v1478 = vpop.f32.mrb[0].mxu0
      %v1479 = vadd.f32 0.0, %v1478
      %v1480 = vpop.f32.mrb[0].mxu0
      %1481 = vmatprep.mubr.bf16.mxu0 0
      %1482 = vmatmul.mubr.bf16.gmra.mrb[0].mxu0 %v1374
      %v1483 = vpop.f32.mrb[0].mxu0
      %v1484 = vadd.f32 0.0, %v1483
      %v1485 = vpop.f32.mrb[0].mxu0
      %v1486 = vpop.f32.mrb[0].mxu0
      %v1487 = vadd.f32 0.0, %v1486
      %v1488 = vpop.f32.mrb[0].mxu0
      %1489 = vmatprep.mubr.bf16.mxu0 0
      %1490 = vmatmul.mubr.bf16.gmra.mrb[0].mxu0 %v1377
      %v1491 = vpop.f32.mrb[0].mxu0
      %v1492 = vadd.f32 0.0, %v1491
      %v1493 = vpop.f32.mrb[0].mxu0
      %v1494 = vpop.f32.mrb[0].mxu0
      %v1495 = vadd.f32 0.0, %v1494
      %v1496 = vpop.f32.mrb[0].mxu0
      %1497 = vmatprep.mubr.bf16.mxu0 0
      %1498 = vmatmul.mubr.bf16.gmra.mrb[0].mxu0 %v1380
      %v1499 = vpop.f32.mrb[0].mxu0
      %v1500 = vadd.f32 0.0, %v1499
      %v1501 = vpop.f32.mrb[0].mxu0
      %v1502 = vpop.f32.mrb[0].mxu0
      %v1503 = vadd.f32 0.0, %v1502
      %v1504 = vpop.f32.mrb[0].mxu0
      %1505 = vmatprep.mubr.bf16.mxu0 0
      %1506 = vmatmul.mubr.bf16.gmra.mrb[0].mxu0 %v1383
      %v1507 = vpop.f32.mrb[0].mxu0
      %v1508 = vadd.f32 0.0, %v1507
      %v1509 = vpop.f32.mrb[0].mxu0
      %v1510 = vpop.f32.mrb[0].mxu0
      %v1511 = vadd.f32 0.0, %v1510
      %v1512 = vpop.f32.mrb[0].mxu0
      %1513 = vmatprep.mubr.bf16.mxu0 0
      %1514 = vmatmul.mubr.bf16.gmra.mrb[0].mxu0 %v1386
      %v1515 = vpop.f32.mrb[0].mxu0
      %v1516 = vadd.f32 0.0, %v1515
      %v1517 = vpop.f32.mrb[0].mxu0
      %v1518 = vpop.f32.mrb[0].mxu0
      %v1519 = vadd.f32 0.0, %v1518
      %v1520 = vpop.f32.mrb[0].mxu0
      %1521 = vmatprep.mubr.bf16.mxu0 0
      %1522 = vmatmul.mubr.bf16.gmra.mrb[0].mxu0 %v1389
      %v1523 = vpop.f32.mrb[0].mxu0
      %v1524 = vadd.f32 0.0, %v1523
      %v1525 = vpop.f32.mrb[0].mxu0
      %v1526 = vpop.f32.mrb[0].mxu0
      %v1527 = vadd.f32 0.0, %v1526
      %v1528 = vpop.f32.mrb[0].mxu0
      %1529 = vmatprep.mubr.bf16.mxu0 0
      %1530 = vmatmul.mubr.bf16.gmra.mrb[0].mxu0 %v1392
      %v1531 = vpop.f32.mrb[0].mxu0
      %v1532 = vadd.f32 0.0, %v1531
      %v1533 = vpop.f32.mrb[0].mxu0
      %v1534 = vpop.f32.mrb[0].mxu0
      %v1535 = vadd.f32 0.0, %v1534
      %v1536 = vpop.f32.mrb[0].mxu0
      %1537 = vmatprep.mubr.bf16.mxu0 0
      %1538 = vmatmul.mubr.bf16.gmra.mrb[0].mxu0 %v1395
      %v1539 = vpop.f32.mrb[0].mxu0
      %v1540 = vadd.f32 0.0, %v1539
      %v1541 = vpop.f32.mrb[0].mxu0
      %v1542 = vpop.f32.mrb[0].mxu0
      %v1543 = vadd.f32 0.0, %v1542
      %v1544 = vpop.f32.mrb[0].mxu0
      %1545 = vmatprep.mubr.bf16.mxu0 0
      %1546 = vmatmul.mubr.bf16.gmra.mrb[0].mxu0 %v1398
      %v1547 = vpop.f32.mrb[0].mxu0
      %v1548 = vadd.f32 0.0, %v1547
      %v1549 = vpop.f32.mrb[0].mxu0
      %v1550 = vpop.f32.mrb[0].mxu0
      %v1551 = vadd.f32 0.0, %v1550
      %v1552 = vpop.f32.mrb[0].mxu0
      %1553 = vmatprep.mubr.bf16.mxu0 0
      %1554 = vmatmul.mubr.bf16.gmra.mrb[0].mxu0 %v1401
      %v1555 = vpop.f32.mrb[0].mxu0
      %v1556 = vadd.f32 0.0, %v1555
      %v1557 = vpop.f32.mrb[0].mxu0
      %v1558 = vpop.f32.mrb[0].mxu0
      %v1559 = vadd.f32 0.0, %v1558
      %v1560 = vpop.f32.mrb[0].mxu0
      %1561 = vmatprep.mubr.bf16.mxu0 0
      %1562 = vmatmul.mubr.bf16.gmra.mrb[0].mxu0 %v1404
      %v1563 = vpop.f32.mrb[0].mxu0
      %v1564 = vadd.f32 0.0, %v1563
      %v1565 = vpop.f32.mrb[0].mxu0
      %v1566 = vpop.f32.mrb[0].mxu0
      %v1567 = vadd.f32 0.0, %v1566
      %v1568 = vpop.f32.mrb[0].mxu0
      %1569 = vdwg.mxu0
      %v1570 = vadd.f32 %v1242, %v1444
      %v1571 = vadd.f32 %v1243, %v1447
      %v1572 = vadd.f32 %v1244, %v1452
      %v1573 = vadd.f32 %v1245, %v1455
      %v1574 = vadd.f32 %v1246, %v1460
      %v1575 = vadd.f32 %v1247, %v1463
      %v1576 = vadd.f32 %v1248, %v1468
      %v1577 = vadd.f32 %v1249, %v1471
      %v1578 = vadd.f32 %v1250, %v1476
      %v1579 = vadd.f32 %v1251, %v1479
      %v1580 = vadd.f32 %v1252, %v1484
      %v1581 = vadd.f32 %v1253, %v1487
      %v1582 = vadd.f32 %v1254, %v1492
      %v1583 = vadd.f32 %v1255, %v1495
      %v1584 = vadd.f32 %v1256, %v1500
      %v1585 = vadd.f32 %v1257, %v1503
      %v1586 = vadd.f32 %v1258, %v1508
      %v1587 = vadd.f32 %v1259, %v1511
      %v1588 = vadd.f32 %v1260, %v1516
      %v1589 = vadd.f32 %v1261, %v1519
      %v1590 = vadd.f32 %v1262, %v1524
      %v1591 = vadd.f32 %v1263, %v1527
      %v1592 = vadd.f32 %v1264, %v1532
      %v1593 = vadd.f32 %v1265, %v1535
      %v1594 = vadd.f32 %v1266, %v1540
      %v1595 = vadd.f32 %v1267, %v1543
      %v1596 = vadd.f32 %v1268, %v1548
      %v1597 = vadd.f32 %v1269, %v1551
      %v1598 = vadd.f32 %v1270, %v1556
      %v1599 = vadd.f32 %v1271, %v1559
      %v1600 = vadd.f32 %v1272, %v1564
      %v1601 = vadd.f32 %v1273, %v1567
      %v1602 = vld [vmem:[%s2] sm:$0x1]
      %v1604 = vlaneseq
      %v1605 = vshrl.u32 %v1604, 7
      %v1606 = vsub.s32 0, %v1605
      %v1607 = vrot.slane %v1602, %v1606
      %v1609 = vadd.f32 %v1570, %v1607
      %v1610 = vadd.f32 %v1571, %v1607
      %v1611 = vadd.f32 %v1572, %v1607
      %v1612 = vadd.f32 %v1573, %v1607
      %v1613 = vadd.f32 %v1574, %v1607
      %v1614 = vadd.f32 %v1575, %v1607
      %v1615 = vadd.f32 %v1576, %v1607
      %v1616 = vadd.f32 %v1577, %v1607
      %v1617 = vadd.f32 %v1578, %v1607
      %v1618 = vadd.f32 %v1579, %v1607
      %v1619 = vadd.f32 %v1580, %v1607
      %v1620 = vadd.f32 %v1581, %v1607
      %v1621 = vadd.f32 %v1582, %v1607
      %v1622 = vadd.f32 %v1583, %v1607
      %v1623 = vadd.f32 %v1584, %v1607
      %v1624 = vadd.f32 %v1585, %v1607
      %v1625 = vadd.f32 %v1586, %v1607
      %v1626 = vadd.f32 %v1587, %v1607
      %v1627 = vadd.f32 %v1588, %v1607
      %v1628 = vadd.f32 %v1589, %v1607
      %v1629 = vadd.f32 %v1590, %v1607
      %v1630 = vadd.f32 %v1591, %v1607
      %v1631 = vadd.f32 %v1592, %v1607
      %v1632 = vadd.f32 %v1593, %v1607
      %v1633 = vadd.f32 %v1594, %v1607
      %v1634 = vadd.f32 %v1595, %v1607
      %v1635 = vadd.f32 %v1596, %v1607
      %v1636 = vadd.f32 %v1597, %v1607
      %v1637 = vadd.f32 %v1598, %v1607
      %v1638 = vadd.f32 %v1599, %v1607
      %v1639 = vadd.f32 %v1600, %v1607
      %v1640 = vadd.f32 %v1601, %v1607
      %v1641 = vmax.f32 %v1609, 0.0
      %v1642 = vmax.f32 %v1610, 0.0
      %v1643 = vmax.f32 %v1611, 0.0
      %v1644 = vmax.f32 %v1612, 0.0
      %v1645 = vmax.f32 %v1613, 0.0
      %v1646 = vmax.f32 %v1614, 0.0
      %v1647 = vmax.f32 %v1615, 0.0
      %v1648 = vmax.f32 %v1616, 0.0
      %v1649 = vmax.f32 %v1617, 0.0
      %v1650 = vmax.f32 %v1618, 0.0
      %v1651 = vmax.f32 %v1619, 0.0
      %v1652 = vmax.f32 %v1620, 0.0
      %v1653 = vmax.f32 %v1621, 0.0
      %v1654 = vmax.f32 %v1622, 0.0
      %v1655 = vmax.f32 %v1623, 0.0
      %v1656 = vmax.f32 %v1624, 0.0
      %v1657 = vmax.f32 %v1625, 0.0
      %v1658 = vmax.f32 %v1626, 0.0
      %v1659 = vmax.f32 %v1627, 0.0
      %v1660 = vmax.f32 %v1628, 0.0
      %v1661 = vmax.f32 %v1629, 0.0
      %v1662 = vmax.f32 %v1630, 0.0
      %v1663 = vmax.f32 %v1631, 0.0
      %v1664 = vmax.f32 %v1632, 0.0
      %v1665 = vmax.f32 %v1633, 0.0
      %v1666 = vmax.f32 %v1634, 0.0
      %v1667 = vmax.f32 %v1635, 0.0
      %v1668 = vmax.f32 %v1636, 0.0
      %v1669 = vmax.f32 %v1637, 0.0
      %v1670 = vmax.f32 %v1638, 0.0
      %v1671 = vmax.f32 %v1639, 0.0
      %v1672 = vmax.f32 %v1640, 0.0
      %v1673 = vpack.c.bf16 %v1642, %v1641
      %v1674 = vpack.c.bf16 %v1644, %v1643
      %v1675 = vpack.c.bf16 %v1646, %v1645
      %v1676 = vpack.c.bf16 %v1648, %v1647
      %v1677 = vpack.c.bf16 %v1650, %v1649
      %v1678 = vpack.c.bf16 %v1652, %v1651
      %v1679 = vpack.c.bf16 %v1654, %v1653
      %v1680 = vpack.c.bf16 %v1656, %v1655
      %v1681 = vpack.c.bf16 %v1658, %v1657
      %v1682 = vpack.c.bf16 %v1660, %v1659
      %v1683 = vpack.c.bf16 %v1662, %v1661
      %v1684 = vpack.c.bf16 %v1664, %v1663
      %v1685 = vpack.c.bf16 %v1666, %v1665
      %v1686 = vpack.c.bf16 %v1668, %v1667
      %v1687 = vpack.c.bf16 %v1670, %v1669
      %v1688 = vpack.c.bf16 %v1672, %v1671
      %v1705 = vunpack.c.l.b16 %v1673
      %v1706 = vunpack.c.h.b16 %v1673
      %v1707 = vunpack.c.l.b16 %v1674
      %v1708 = vunpack.c.h.b16 %v1674
      %v1709 = vunpack.c.l.b16 %v1675
      %v1710 = vunpack.c.h.b16 %v1675
      %v1711 = vunpack.c.l.b16 %v1676
      %v1712 = vunpack.c.h.b16 %v1676
      %v1713 = vunpack.c.l.b16 %v1677
      %v1714 = vunpack.c.h.b16 %v1677
      %v1715 = vunpack.c.l.b16 %v1678
      %v1716 = vunpack.c.h.b16 %v1678
      %v1717 = vunpack.c.l.b16 %v1679
      %v1718 = vunpack.c.h.b16 %v1679
      %v1719 = vunpack.c.l.b16 %v1680
      %v1720 = vunpack.c.h.b16 %v1680
      %v1721 = vunpack.c.l.b16 %v1681
      %v1722 = vunpack.c.h.b16 %v1681
      %v1723 = vunpack.c.l.b16 %v1682
      %v1724 = vunpack.c.h.b16 %v1682
      %v1725 = vunpack.c.l.b16 %v1683
      %v1726 = vunpack.c.h.b16 %v1683
      %v1727 = vunpack.c.l.b16 %v1684
      %v1728 = vunpack.c.h.b16 %v1684
      %v1729 = vunpack.c.l.b16 %v1685
      %v1730 = vunpack.c.h.b16 %v1685
      %v1731 = vunpack.c.l.b16 %v1686
      %v1732 = vunpack.c.h.b16 %v1686
      %v1733 = vunpack.c.l.b16 %v1687
      %v1734 = vunpack.c.h.b16 %v1687
      %v1735 = vunpack.c.l.b16 %v1688
      %v1736 = vunpack.c.h.b16 %v1688
      %v1737 = vpack.c.b16 %v1705, %v1705
      %v1738 = vpack.c.b16 %v1706, %v1706
      %v1739 = vpack.c.b16 %v1707, %v1707
      %v1740 = vpack.c.b16 %v1708, %v1708
      %v1741 = vpack.c.b16 %v1709, %v1709
      %v1742 = vpack.c.b16 %v1710, %v1710
      %v1743 = vpack.c.b16 %v1711, %v1711
      %v1744 = vpack.c.b16 %v1712, %v1712
      %v1745 = vpack.c.b16 %v1713, %v1713
      %v1746 = vpack.c.b16 %v1714, %v1714
      %v1747 = vpack.c.b16 %v1715, %v1715
      %v1748 = vpack.c.b16 %v1716, %v1716
      %v1749 = vpack.c.b16 %v1717, %v1717
      %v1750 = vpack.c.b16 %v1718, %v1718
      %v1751 = vpack.c.b16 %v1719, %v1719
      %v1752 = vpack.c.b16 %v1720, %v1720
      %v1753 = vpack.c.b16 %v1721, %v1721
      %v1754 = vpack.c.b16 %v1722, %v1722
      %v1755 = vpack.c.b16 %v1723, %v1723
      %v1756 = vpack.c.b16 %v1724, %v1724
      %v1757 = vpack.c.b16 %v1725, %v1725
      %v1758 = vpack.c.b16 %v1726, %v1726
      %v1759 = vpack.c.b16 %v1727, %v1727
      %v1760 = vpack.c.b16 %v1728, %v1728
      %v1761 = vpack.c.b16 %v1729, %v1729
      %v1762 = vpack.c.b16 %v1730, %v1730
      %v1763 = vpack.c.b16 %v1731, %v1731
      %v1764 = vpack.c.b16 %v1732, %v1732
      %v1765 = vpack.c.b16 %v1733, %v1733
      %v1766 = vpack.c.b16 %v1734, %v1734
      %v1767 = vpack.c.b16 %v1735, %v1735
      %v1768 = vpack.c.b16 %v1736, %v1736
      %vm1801 = vcmask 60416
      %1802 = vst.msk [vmem:[%s213] sm:$0xf] %vm1801, %v1737
      %1803 = vst.msk [vmem:[%s213 + $0x4] sm:$0xf] %vm1801, %v1738
      %1804 = vst.msk [vmem:[%s213 + $0x8] sm:$0xf] %vm1801, %v1739
      %1805 = vst.msk [vmem:[%s213 + $0xc] sm:$0xf] %vm1801, %v1740
      %1806 = vst.msk [vmem:[%s213 + $0x10] sm:$0xf] %vm1801, %v1741
      %1807 = vst.msk [vmem:[%s213 + $0x14] sm:$0xf] %vm1801, %v1742
      %1808 = vst.msk [vmem:[%s213 + $0x18] sm:$0xf] %vm1801, %v1743
      %1809 = vst.msk [vmem:[%s213 + $0x1c] sm:$0xf] %vm1801, %v1744
      %1810 = vst.msk [vmem:[%s213 + $0x20] sm:$0xf] %vm1801, %v1745
      %1811 = vst.msk [vmem:[%s213 + $0x24] sm:$0xf] %vm1801, %v1746
      %1812 = vst.msk [vmem:[%s213 + $0x28] sm:$0xf] %vm1801, %v1747
      %1813 = vst.msk [vmem:[%s213 + $0x2c] sm:$0xf] %vm1801, %v1748
      %1814 = vst.msk [vmem:[%s213 + $0x30] sm:$0xf] %vm1801, %v1749
      %1815 = vst.msk [vmem:[%s213 + $0x34] sm:$0xf] %vm1801, %v1750
      %1816 = vst.msk [vmem:[%s213 + $0x38] sm:$0xf] %vm1801, %v1751
      %1817 = vst.msk [vmem:[%s213 + $0x3c] sm:$0xf] %vm1801, %v1752
      %1818 = vst.msk [vmem:[%s213 + $0x40] sm:$0xf] %vm1801, %v1753
      %1819 = vst.msk [vmem:[%s213 + $0x44] sm:$0xf] %vm1801, %v1754
      %1820 = vst.msk [vmem:[%s213 + $0x48] sm:$0xf] %vm1801, %v1755
      %1821 = vst.msk [vmem:[%s213 + $0x4c] sm:$0xf] %vm1801, %v1756
      %1822 = vst.msk [vmem:[%s213 + $0x50] sm:$0xf] %vm1801, %v1757
      %1823 = vst.msk [vmem:[%s213 + $0x54] sm:$0xf] %vm1801, %v1758
      %1824 = vst.msk [vmem:[%s213 + $0x58] sm:$0xf] %vm1801, %v1759
      %1825 = vst.msk [vmem:[%s213 + $0x5c] sm:$0xf] %vm1801, %v1760
      %1826 = vst.msk [vmem:[%s213 + $0x60] sm:$0xf] %vm1801, %v1761
      %1827 = vst.msk [vmem:[%s213 + $0x64] sm:$0xf] %vm1801, %v1762
      %1828 = vst.msk [vmem:[%s213 + $0x68] sm:$0xf] %vm1801, %v1763
      %1829 = vst.msk [vmem:[%s213 + $0x6c] sm:$0xf] %vm1801, %v1764
      %1830 = vst.msk [vmem:[%s213 + $0x70] sm:$0xf] %vm1801, %v1765
      %1831 = vst.msk [vmem:[%s213 + $0x74] sm:$0xf] %vm1801, %v1766
      %1832 = vst.msk [vmem:[%s213 + $0x78] sm:$0xf] %vm1801, %v1767
      %1833 = vst.msk [vmem:[%s213 + $0x7c] sm:$0xf] %vm1801, %v1768
      %s1834 = smul.u32 16, %s19
      %p1835 = scmp.lt.s32.totalorder %s18, 1
      %s1836 = scalar_select %p1835, %s18, 1
      %p1837 = scmp.lt.s32.totalorder %s1834, 15
      %s1838 = scalar_select %p1837, %s1834, 15
      %s1839 = smul.addr %s1838, 2
      %s1840 = smul.addr %s1836, 32
      %s1841 = sadd.s32 %s1839, %s1840
      %s1842 = smul.addr %s1841, 4
      %s1843 = scalar_lea.vmem %s3, %s1842
      // Predicated region
      $region33: #{pixel_level_module_forward.5} parent=31 // pred_check
        %p1844 = pneg %p116
      $region34: #{pixel_level_module_forward.5} parent=31 // pred_check_branch
        %1846 = sbr.rel (%p1844) target = $region36
      $region35: #{pixel_level_module_forward.5} parent=31 // pred_region
        %s1847 = smul.u32 16, %s19
      $region36: #{pixel_level_module_forward.5} parent=31 // pred_fallthru
        _
    $region32: #{pixel_level_module_forward.5} parent=5 // pred_fallthru
      _
    %p1848 = scmp.le.s32.totalorder 2, %s9
    // Predicated region
    $region37: #{pixel_level_module_forward.5} parent=5 // pred_check
      %p1849 = pneg %p1848
    $region38: #{pixel_level_module_forward.5} parent=5 // pred_check_branch
      %1851 = sbr.rel (%p1849) target = $region40
    $region39: #{pixel_level_module_forward.5} parent=5 // pred_region
      %s1852 = ssub.s32 %s9, 2
      // Predicated region
      $region41: #{pixel_level_module_forward.5} parent=39 // pred_check
        %p1853 = pneg %p122
      $region42: #{pixel_level_module_forward.5} parent=39 // pred_check_branch
        %1855 = sbr.rel (%p1853) target = $region44
      $region43: #{pixel_level_module_forward.5} parent=39 // pred_region
        %s1856 = smul.u32 16, %s21
        %p1857 = scmp.lt.s32.totalorder %s20, 1
        %s1858 = scalar_select %p1857, %s20, 1
        %p1859 = scmp.lt.s32.totalorder %s1856, 15
        %s1860 = scalar_select %p1859, %s1856, 15
        %s1861 = smul.addr %s1860, 2
        %s1862 = smul.addr %s1858, 32
        %s1863 = sadd.s32 %s1861, %s1862
        %s1864 = smul.addr %s1863, 4
        %s1865 = scalar_lea.vmem %s3, %s1864
      $region44: #{pixel_level_module_forward.5} parent=39 // pred_fallthru
        _
    $region40: #{pixel_level_module_forward.5} parent=5 // pred_fallthru
      _
  $region6: #{pixel_level_module_forward.5} parent=0 // loop_footer
    %s13 = sadd.s32 1, %s9
  $region7: #{pixel_level_module_forward.5} parent=0 // loop_footer_branch
    %8 = sbr.rel target = $region3
  $region8: #{pixel_level_module_forward.5} parent=0 // loop_exit
    _

// kernel: pixel_level_module_forward.8
$region0: #{pixel_level_module_forward.8}
  #allocation0 [shape = 'u32[]', space=smem, size = 0x4, offset = 0x4, fixed_abs, tag = 'smem constant byte address 0x4 - core index']
  #allocation1 [shape = 'u32[144,128]{1,0:T(1,128)}', space=vmem, size = 0x12000, scoped, tag = 'internal scratch']
  %s0 = inlined_call_operand.vmem [shape: bf16[2,4,2,64], index: 0, kind: input, shape index: {}]
  %s1 = inlined_call_operand.vmem [shape: bf16[128,64], index: 1, kind: input, shape index: {}]
  %s2 = inlined_call_operand.vmem [shape: f32[1,64], index: 2, kind: input, shape index: {}]
  %s3 = inlined_call_operand.vmem [shape: bf16[2,2,2,64], index: 3, kind: output, shape index: {}]
  %s4 = sld [smem:[#allocation0]]
  $region45: #{pixel_level_module_forward.8} parent=0
    _
  %s6 = ssub.s32 1, %s4
  %s7 = scalar_select 0, %s6, %s4
  loop: start=0, step=1, limit=4
  $region2: #{pixel_level_module_forward.8} parent=0 // loop_pre_header
    _
  $region3: #{pixel_level_module_forward.8} parent=0 // loop_header
    %s9 = sphi 0, %s13
    %p10 = scmp.ge.s32.totalorder %s9, 4
    %s16 = sphi 0, %s28
    %s17 = sphi 0, %s24
    %s18 = sphi 0, %s16
    %s19 = sphi 0, %s17
    %s20 = sphi 0, %s18
    %s21 = sphi 0, %s19
    %s33 = sphi 0, %s35
    %s36 = sphi 0, %s33
    %s37 = sphi 0, %s36
    %s53 = sphi 0, %s37
    %s57 = sphi 0, %s57
    %s59 = sphi 0, %s57
    %s60 = sphi 0, %s59
    %s74 = sphi 0, %s60
    %s78 = sphi 0, %s78
    %s80 = sphi 0, %s78
    %s81 = sphi 0, %s80
    %s95 = sphi 0, %s81
    %s103 = sphi 0, %s105
    %s106 = sphi 0, %s103
    %s107 = sphi 0, %s106
    %s123 = sphi 0, %s107
  $region4: #{pixel_level_module_forward.8} parent=0 // loop_header_branch
    %12 = sbr.rel (%p10) target = $region8
  $region5: #{pixel_level_module_forward.8} parent=0 // loop_body
    %s14 = ssub.s32 %s9, 1
    %s15 = ssub.s32 %s9, 2
    %s22 = sadd.s32 1, %s17
    %p23 = scmp.ge.s32.totalorder %s22, 1
    %s24 = scalar_select %p23, 0, %s22
    %s25 = sadd.s32 1, %s16
    %s26 = scalar_select %p23, %s25, %s16
    %p27 = scmp.ge.s32.totalorder %s26, 2
    %s28 = scalar_select %p27, 0, %s26
    %s29 = ssub.s32 %s16, %s28
    %s30 = ssub.s32 %s17, %s24
    %s31 = sor.u32 %s29, %s30
    %p32 = scmp.eq.s32.totalorder %s31, 0
    %s34 = sadd.s32 %s33, 1
    %s35 = scalar_select %p32, %s33, %s34
    %p38 = pneg %p32
    %p39 = scmp.eq.s32.totalorder %s9, 1
    %p40 = por %p38, %p39
    %p41 = scmp.ne.s32.totalorder %s33, %s36
    %p42 = scmp.eq.s32.totalorder %s9, 0
    %p43 = por %p41, %p42
    %p44 = scmp.ne.s32.totalorder %s33, %s36
    %p45 = scmp.eq.s32.totalorder %s14, 1
    %p46 = por %p44, %p45
    %p47 = scmp.ne.s32.totalorder %s36, %s37
    %p48 = scmp.eq.s32.totalorder %s14, 0
    %p49 = por %p47, %p48
    %p50 = scmp.ne.s32.totalorder %s36, %s37
    %p51 = scmp.eq.s32.totalorder %s15, 1
    %p52 = por %p50, %p51
    %p54 = scmp.ne.s32.totalorder %s37, %s53
    %p55 = scmp.eq.s32.totalorder %s15, 0
    %p56 = por %p54, %p55
    %s58 = sadd.s32 %s57, 1
    %p61 = scmp.eq.s32.totalorder %s9, 1
    %p62 = scmp.ne.s32.totalorder %s57, %s59
    %p63 = scmp.eq.s32.totalorder %s9, 0
    %p64 = por %p62, %p63
    %p65 = scmp.ne.s32.totalorder %s57, %s59
    %p66 = scmp.eq.s32.totalorder %s14, 1
    %p67 = por %p65, %p66
    %p68 = scmp.ne.s32.totalorder %s59, %s60
    %p69 = scmp.eq.s32.totalorder %s14, 0
    %p70 = por %p68, %p69
    %p71 = scmp.ne.s32.totalorder %s59, %s60
    %p72 = scmp.eq.s32.totalorder %s15, 1
    %p73 = por %p71, %p72
    %p75 = scmp.ne.s32.totalorder %s60, %s74
    %p76 = scmp.eq.s32.totalorder %s15, 0
    %p77 = por %p75, %p76
    %s79 = sadd.s32 %s78, 1
    %p82 = scmp.eq.s32.totalorder %s9, 1
    %p83 = scmp.ne.s32.totalorder %s78, %s80
    %p84 = scmp.eq.s32.totalorder %s9, 0
    %p85 = por %p83, %p84
    %p86 = scmp.ne.s32.totalorder %s78, %s80
    %p87 = scmp.eq.s32.totalorder %s14, 1
    %p88 = por %p86, %p87
    %p89 = scmp.ne.s32.totalorder %s80, %s81
    %p90 = scmp.eq.s32.totalorder %s14, 0
    %p91 = por %p89, %p90
    %p92 = scmp.ne.s32.totalorder %s80, %s81
    %p93 = scmp.eq.s32.totalorder %s15, 1
    %p94 = por %p92, %p93
    %p96 = scmp.ne.s32.totalorder %s81, %s95
    %p97 = scmp.eq.s32.totalorder %s15, 0
    %p98 = por %p96, %p97
    %s99 = ssub.s32 %s16, %s28
    %s100 = ssub.s32 %s17, %s24
    %s101 = sor.u32 %s99, %s100
    %p102 = scmp.eq.s32.totalorder %s101, 0
    %s104 = sadd.s32 %s103, 1
    %s105 = scalar_select %p102, %s103, %s104
    %p108 = pneg %p102
    %p109 = scmp.eq.s32.totalorder %s9, 1
    %p110 = por %p108, %p109
    %p111 = scmp.ne.s32.totalorder %s103, %s106
    %p112 = scmp.eq.s32.totalorder %s9, 0
    %p113 = por %p111, %p112
    %p114 = scmp.ne.s32.totalorder %s103, %s106
    %p115 = scmp.eq.s32.totalorder %s14, 1
    %p116 = por %p114, %p115
    %p117 = scmp.ne.s32.totalorder %s106, %s107
    %p118 = scmp.eq.s32.totalorder %s14, 0
    %p119 = por %p117, %p118
    %p120 = scmp.ne.s32.totalorder %s106, %s107
    %p121 = scmp.eq.s32.totalorder %s15, 1
    %p122 = por %p120, %p121
    %p124 = scmp.ne.s32.totalorder %s107, %s123
    %p125 = scmp.eq.s32.totalorder %s15, 0
    %p126 = por %p124, %p125
    %p127 = scmp.le.s32.totalorder 1, %s9
    %p128 = scmp.lt.s32.totalorder %s9, 3
    %p129 = pnand %p127, %p128
    %p130 = pneg %p129
    // Predicated region
    $region9: #{pixel_level_module_forward.8} parent=5 // pred_check
      _
    $region10: #{pixel_level_module_forward.8} parent=5 // pred_check_branch
      %132 = sbr.rel (%p129) target = $region12
    $region11: #{pixel_level_module_forward.8} parent=5 // pred_region
      %s133 = ssub.s32 %s9, 1
      // Predicated region
      $region13: #{pixel_level_module_forward.8} parent=11 // pred_check
        %p134 = pneg %p70
      $region14: #{pixel_level_module_forward.8} parent=11 // pred_check_branch
        %136 = sbr.rel (%p134) target = $region16
      $region15: #{pixel_level_module_forward.8} parent=11 // pred_region
        _
      $region16: #{pixel_level_module_forward.8} parent=11 // pred_fallthru
        _
      // Predicated region
      $region17: #{pixel_level_module_forward.8} parent=11 // pred_check
        %p137 = pneg %p91
      $region18: #{pixel_level_module_forward.8} parent=11 // pred_check_branch
        %139 = sbr.rel (%p137) target = $region20
      $region19: #{pixel_level_module_forward.8} parent=11 // pred_region
        _
      $region20: #{pixel_level_module_forward.8} parent=11 // pred_fallthru
        _
    $region12: #{pixel_level_module_forward.8} parent=5 // pred_fallthru
      _
    %p140 = scmp.lt.s32.totalorder %s9, 2
    // Predicated region
    $region21: #{pixel_level_module_forward.8} parent=5 // pred_check
      %p141 = pneg %p140
    $region22: #{pixel_level_module_forward.8} parent=5 // pred_check_branch
      %143 = sbr.rel (%p141) target = $region24
    $region23: #{pixel_level_module_forward.8} parent=5 // pred_region
      // Predicated region
      $region25: #{pixel_level_module_forward.8} parent=23 // pred_check
        %p144 = pneg %p43
      $region26: #{pixel_level_module_forward.8} parent=23 // pred_check_branch
        %146 = sbr.rel (%p144) target = $region28
      $region27: #{pixel_level_module_forward.8} parent=23 // pred_region
        %s147 = smul.u32 4, %s17
        %p148 = scmp.lt.s32.totalorder %s16, 1
        %s149 = scalar_select %p148, %s16, 1
        %p150 = scmp.lt.s32.totalorder %s147, 3
        %s151 = scalar_select %p150, %s147, 3
        %s152 = smul.addr %s149, 4
        %s153 = sadd.s32 %s151, %s152
        %s154 = scalar_lea.vmem %s0, %s153
        %s155 = smul.u32 4, %s17
      $region28: #{pixel_level_module_forward.8} parent=23 // pred_fallthru
        _
    $region24: #{pixel_level_module_forward.8} parent=5 // pred_fallthru
      _
    %p156 = scmp.le.s32.totalorder 1, %s9
    %p157 = scmp.lt.s32.totalorder %s9, 3
    %p158 = pnand %p156, %p157
    %p159 = pneg %p158
    // Predicated region
    $region29: #{pixel_level_module_forward.8} parent=5 // pred_check
      _
    $region30: #{pixel_level_module_forward.8} parent=5 // pred_check_branch
      %161 = sbr.rel (%p158) target = $region32
    $region31: #{pixel_level_module_forward.8} parent=5 // pred_region
      %s162 = ssub.s32 %s9, 1
      %s163 = smul.u32 4, %s19
      %p164 = scmp.lt.s32.totalorder %s18, 1
      %s165 = scalar_select %p164, %s18, 1
      %p166 = scmp.lt.s32.totalorder %s163, 3
      %s167 = scalar_select %p166, %s163, 3
      %s168 = smul.addr %s165, 4
      %s169 = sadd.s32 %s167, %s168
      %s170 = scalar_lea.vmem %s0, %s169
      %p171 = pneg %p49
      %p172 = pneg %p46
      %p173 = pneg %p70
      %p174 = pneg %p67
      %p175 = pneg %p91
      %p176 = pneg %p88
      %p177 = pneg %p119
      %p178 = pneg %p116
      %s179 = smul.u32 2, %s19
      %p180 = scmp.lt.s32.totalorder %s18, 1
      %s181 = scalar_select %p180, %s18, 1
      %p182 = scmp.lt.s32.totalorder %s179, 1
      %s183 = scalar_select %p182, %s179, 1
      %s184 = smul.addr %s181, 2
      %s185 = sadd.s32 %s183, %s184
      %s186 = scalar_lea.vmem %s3, %s185
      %s187 = smul.u32 4, %s19
      %p188 = scmp.lt.s32.totalorder %s18, 1
      %s189 = scalar_select %p188, %s18, 1
      %p190 = scmp.lt.s32.totalorder %s187, 3
      %s191 = scalar_select %p190, %s187, 3
      %s192 = smul.addr %s189, 4
      %s193 = sadd.s32 %s191, %s192
      %s194 = scalar_lea.vmem %s0, %s193
      %s195 = smul.u32 4, %s19
      %s196 = smul.u32 2, %s19
      %p197 = scmp.lt.s32.totalorder %s18, 1
      %s198 = scalar_select %p197, %s18, 1
      %p199 = scmp.lt.s32.totalorder %s196, 1
      %s200 = scalar_select %p199, %s196, 1
      %s201 = smul.addr %s198, 2
      %s202 = sadd.s32 %s200, %s201
      %s203 = scalar_lea.vmem %s3, %s202
      %s204 = smul.u32 2, %s19
      %v206 = vld [vmem:[%s194] sm:$0x1]
      %v207 = vld [vmem:[%s194 + $0x1] sm:$0x1]
      %v208 = vld [vmem:[%s194 + $0x2] sm:$0x1]
      %v209 = vld [vmem:[%s194 + $0x3] sm:$0x1]
      %v210 = vld [vmem:[%s1] sm:$0xf]
      %v211 = vld [vmem:[%s1 + $0x4] sm:$0xf]
      %v212 = vld [vmem:[%s1 + $0x8] sm:$0xf]
      %v213 = vld [vmem:[%s1 + $0xc] sm:$0xf]
      %v214 = vld [vmem:[%s1 + $0x10] sm:$0xf]
      %v215 = vld [vmem:[%s1 + $0x14] sm:$0xf]
      %v216 = vld [vmem:[%s1 + $0x18] sm:$0xf]
      %v217 = vld [vmem:[%s1 + $0x1c] sm:$0xf]
      %v218 = vld [vmem:[%s1 + $0x20] sm:$0xf]
      %v219 = vld [vmem:[%s1 + $0x24] sm:$0xf]
      %v220 = vld [vmem:[%s1 + $0x28] sm:$0xf]
      %v221 = vld [vmem:[%s1 + $0x2c] sm:$0xf]
      %v222 = vld [vmem:[%s1 + $0x30] sm:$0xf]
      %v223 = vld [vmem:[%s1 + $0x34] sm:$0xf]
      %v224 = vld [vmem:[%s1 + $0x38] sm:$0xf]
      %v225 = vld [vmem:[%s1 + $0x3c] sm:$0xf]
      %v228 = vcombine.low %v207, %v209
      %v230 = vunpack.c.l.s4 1966171168
      %v231 = vunpack.c.0.s8 %v230
      %v232 = vlaneseq
      %v233 = vshrl.u32 %v232, 7
      %v234 = vsub.s32 %v231, %v233
      %v235 = vrot.slane %v228, %v234
      %v237 = vunpack.c.l.s4 1966171168
      %v238 = vunpack.c.0.s8 %v237
      %v239 = vlaneseq
      %v240 = vshrl.u32 %v239, 7
      %v241 = vsub.s32 %v238, %v240
      %v242 = vrot.slane %v235, %v241
      %v251 = vunpack.c.l.b16 %v218
      %v252 = vunpack.c.l.b16 %v219
      %v253 = vunpack.c.l.b16 %v220
      %v254 = vunpack.c.l.b16 %v221
      %v255 = vunpack.c.l.b16 %v222
      %v256 = vunpack.c.l.b16 %v223
      %v257 = vunpack.c.l.b16 %v224
      %v258 = vunpack.c.l.b16 %v225
      %v259 = vpack.c.b16 %v252, %v251
      %v260 = vpack.c.b16 %v254, %v253
      %v261 = vpack.c.b16 %v256, %v255
      %v262 = vpack.c.b16 %v258, %v257
      %vm267 = vcmask 523264
      %v269 = vsel %vm267, %v242, 0
      %271 = vmatprep.subr.bf16.mxu0 0
      %272 = vmatpush1.bf16.msra.mxu0 %v259
      %273 = vmatprep.subr.bf16.mxu0 0
      %274 = vmatpush1.bf16.msra.mxu0 %v260
      %275 = vmatprep.subr.bf16.mxu0 0
      %276 = vmatpush1.bf16.msra.mxu0 %v261
      %277 = vmatprep.subr.bf16.mxu0 0
      %278 = vmatpush1.bf16.msra.mxu0 %v262
      %279 = vmatprep.subr.bf16.mxu0 0
      %280 = vmatpush1.bf16.msra.mxu0 0
      %281 = vmatprep.subr.bf16.mxu0 0
      %282 = vmatpush1.bf16.msra.mxu0 0
      %283 = vmatprep.subr.bf16.mxu0 0
      %284 = vmatpush1.bf16.msra.mxu0 0
      %285 = vmatprep.subr.bf16.mxu0 0
      %286 = vmatpush1.bf16.msra.mxu0 0
      %287 = vmatprep.subr.bf16.mxu0 0
      %288 = vmatpush1.bf16.msra.mxu0 0
      %289 = vmatprep.subr.bf16.mxu0 0
      %290 = vmatpush1.bf16.msra.mxu0 0
      %291 = vmatprep.subr.bf16.mxu0 0
      %292 = vmatpush1.bf16.msra.mxu0 0
      %293 = vmatprep.subr.bf16.mxu0 0
      %294 = vmatpush1.bf16.msra.mxu0 0
      %295 = vmatprep.subr.bf16.mxu0 0
      %296 = vmatpush1.bf16.msra.mxu0 0
      %297 = vmatprep.subr.bf16.mxu0 0
      %298 = vmatpush1.bf16.msra.mxu0 0
      %299 = vmatprep.subr.bf16.mxu0 0
      %300 = vmatpush1.bf16.msra.mxu0 0
      %301 = vmatprep.subr.bf16.mxu0 0
      %302 = vmatpush1.bf16.msra.mxu0 0
      %303 = vmatprep.mubr.bf16.mxu0 0
      %304 = vmatmul.mubr.bf16.gmra.mrb[0].mxu0 %v269
      %v305 = vpop.f32.mrb[0].mxu0
      %v306 = vadd.f32 0.0, %v305
      %v307 = vpop.f32.mrb[0].mxu0
      %v308 = vpop.f32.mrb[0].mxu0
      %v309 = vpop.f32.mrb[0].mxu0
      %310 = vdwg.mxu0
      %v313 = vcombine.low %v206, %v208
      %v315 = vunpack.c.l.s4 1966171168
      %v316 = vunpack.c.0.s8 %v315
      %v317 = vlaneseq
      %v318 = vshrl.u32 %v317, 7
      %v319 = vsub.s32 %v316, %v318
      %v320 = vrot.slane %v313, %v319
      %v322 = vunpack.c.l.s4 1966171168
      %v323 = vunpack.c.0.s8 %v322
      %v324 = vlaneseq
      %v325 = vshrl.u32 %v324, 7
      %v326 = vsub.s32 %v323, %v325
      %v327 = vrot.slane %v320, %v326
      %v336 = vunpack.c.l.b16 %v210
      %v337 = vunpack.c.l.b16 %v211
      %v338 = vunpack.c.l.b16 %v212
      %v339 = vunpack.c.l.b16 %v213
      %v340 = vunpack.c.l.b16 %v214
      %v341 = vunpack.c.l.b16 %v215
      %v342 = vunpack.c.l.b16 %v216
      %v343 = vunpack.c.l.b16 %v217
      %v344 = vpack.c.b16 %v337, %v336
      %v345 = vpack.c.b16 %v339, %v338
      %v346 = vpack.c.b16 %v341, %v340
      %v347 = vpack.c.b16 %v343, %v342
      %v353 = vsel %vm267, %v327, 0
      %355 = vmatprep.subr.bf16.mxu0 0
      %356 = vmatpush1.bf16.msra.mxu0 %v344
      %357 = vmatprep.subr.bf16.mxu0 0
      %358 = vmatpush1.bf16.msra.mxu0 %v345
      %359 = vmatprep.subr.bf16.mxu0 0
      %360 = vmatpush1.bf16.msra.mxu0 %v346
      %361 = vmatprep.subr.bf16.mxu0 0
      %362 = vmatpush1.bf16.msra.mxu0 %v347
      %363 = vmatprep.subr.bf16.mxu0 0
      %364 = vmatpush1.bf16.msra.mxu0 0
      %365 = vmatprep.subr.bf16.mxu0 0
      %366 = vmatpush1.bf16.msra.mxu0 0
      %367 = vmatprep.subr.bf16.mxu0 0
      %368 = vmatpush1.bf16.msra.mxu0 0
      %369 = vmatprep.subr.bf16.mxu0 0
      %370 = vmatpush1.bf16.msra.mxu0 0
      %371 = vmatprep.subr.bf16.mxu0 0
      %372 = vmatpush1.bf16.msra.mxu0 0
      %373 = vmatprep.subr.bf16.mxu0 0
      %374 = vmatpush1.bf16.msra.mxu0 0
      %375 = vmatprep.subr.bf16.mxu0 0
      %376 = vmatpush1.bf16.msra.mxu0 0
      %377 = vmatprep.subr.bf16.mxu0 0
      %378 = vmatpush1.bf16.msra.mxu0 0
      %379 = vmatprep.subr.bf16.mxu0 0
      %380 = vmatpush1.bf16.msra.mxu0 0
      %381 = vmatprep.subr.bf16.mxu0 0
      %382 = vmatpush1.bf16.msra.mxu0 0
      %383 = vmatprep.subr.bf16.mxu0 0
      %384 = vmatpush1.bf16.msra.mxu0 0
      %385 = vmatprep.subr.bf16.mxu0 0
      %386 = vmatpush1.bf16.msra.mxu0 0
      %387 = vmatprep.mubr.bf16.mxu0 0
      %388 = vmatmul.mubr.bf16.gmra.mrb[0].mxu0 %v353
      %v389 = vpop.f32.mrb[0].mxu0
      %v390 = vadd.f32 %v306, %v389
      %v391 = vpop.f32.mrb[0].mxu0
      %v392 = vpop.f32.mrb[0].mxu0
      %v393 = vpop.f32.mrb[0].mxu0
      %394 = vdwg.mxu0
      %v395 = vld [vmem:[%s2] sm:$0x1]
      %v397 = vlaneseq
      %v398 = vshrl.u32 %v397, 7
      %v399 = vsub.s32 0, %v398
      %v400 = vrot.slane %v395, %v399
      %v402 = vadd.f32 %v390, %v400
      %v403 = vmax.f32 %v402, 0.0
      %v406 = vunpack.c.l.s4 1983009808
      %v407 = vunpack.c.0.s8 %v406
      %v408 = vlaneseq
      %v409 = vshrl.u32 %v408, 7
      %v410 = vsub.s32 %v407, %v409
      %v411 = vrot.slane %v403, %v410
      %v412 = vcombine.high %v411, %v411
      %v415 = vpack.c.bf16 %v411, %v411
      %v416 = vpack.c.bf16 %v412, %v412
      %vm417 = vcmask 516096
      %418 = vst.msk [vmem:[%s203] sm:$0x1] %vm417, %v415
      %419 = vst.msk [vmem:[%s203 + $0x1] sm:$0x1] %vm417, %v416
      %s420 = smul.u32 2, %s19
      %p421 = scmp.lt.s32.totalorder %s18, 1
      %s422 = scalar_select %p421, %s18, 1
      %p423 = scmp.lt.s32.totalorder %s420, 1
      %s424 = scalar_select %p423, %s420, 1
      %s425 = smul.addr %s422, 2
      %s426 = sadd.s32 %s424, %s425
      %s427 = scalar_lea.vmem %s3, %s426
      // Predicated region
      $region33: #{pixel_level_module_forward.8} parent=31 // pred_check
        %p428 = pneg %p116
      $region34: #{pixel_level_module_forward.8} parent=31 // pred_check_branch
        %430 = sbr.rel (%p428) target = $region36
      $region35: #{pixel_level_module_forward.8} parent=31 // pred_region
        %s431 = smul.u32 2, %s19
      $region36: #{pixel_level_module_forward.8} parent=31 // pred_fallthru
        _
    $region32: #{pixel_level_module_forward.8} parent=5 // pred_fallthru
      _
    %p432 = scmp.le.s32.totalorder 2, %s9
    // Predicated region
    $region37: #{pixel_level_module_forward.8} parent=5 // pred_check
      %p433 = pneg %p432
    $region38: #{pixel_level_module_forward.8} parent=5 // pred_check_branch
      %435 = sbr.rel (%p433) target = $region40
    $region39: #{pixel_level_module_forward.8} parent=5 // pred_region
      %s436 = ssub.s32 %s9, 2
      // Predicated region
      $region41: #{pixel_level_module_forward.8} parent=39 // pred_check
        %p437 = pneg %p122
      $region42: #{pixel_level_module_forward.8} parent=39 // pred_check_branch
        %439 = sbr.rel (%p437) target = $region44
      $region43: #{pixel_level_module_forward.8} parent=39 // pred_region
        %s440 = smul.u32 2, %s21
        %p441 = scmp.lt.s32.totalorder %s20, 1
        %s442 = scalar_select %p441, %s20, 1
        %p443 = scmp.lt.s32.totalorder %s440, 1
        %s444 = scalar_select %p443, %s440, 1
        %s445 = smul.addr %s442, 2
        %s446 = sadd.s32 %s444, %s445
        %s447 = scalar_lea.vmem %s3, %s446
      $region44: #{pixel_level_module_forward.8} parent=39 // pred_fallthru
        _
    $region40: #{pixel_level_module_forward.8} parent=5 // pred_fallthru
      _
  $region6: #{pixel_level_module_forward.8} parent=0 // loop_footer
    %s13 = sadd.s32 1, %s9
  $region7: #{pixel_level_module_forward.8} parent=0 // loop_footer_branch
    %8 = sbr.rel target = $region3
  $region8: #{pixel_level_module_forward.8} parent=0 // loop_exit
    _

// kernel: pixel_level_module_forward.7
$region0: #{pixel_level_module_forward.7}
  #allocation0 [shape = 'u32[]', space=smem, size = 0x4, offset = 0x4, fixed_abs, tag = 'smem constant byte address 0x4 - core index']
  #allocation1 [shape = 'u32[144,128]{1,0:T(1,128)}', space=vmem, size = 0x12000, scoped, tag = 'internal scratch']
  %s0 = inlined_call_operand.vmem [shape: bf16[2,8,4,32], index: 0, kind: input, shape index: {}]
  %s1 = inlined_call_operand.vmem [shape: bf16[64,32], index: 1, kind: input, shape index: {}]
  %s2 = inlined_call_operand.vmem [shape: f32[1,32], index: 2, kind: input, shape index: {}]
  %s3 = inlined_call_operand.vmem [shape: bf16[2,4,4,32], index: 3, kind: output, shape index: {}]
  %s4 = sld [smem:[#allocation0]]
  $region45: #{pixel_level_module_forward.7} parent=0
    _
  %s6 = ssub.s32 1, %s4
  %s7 = scalar_select 0, %s6, %s4
  loop: start=0, step=1, limit=4
  $region2: #{pixel_level_module_forward.7} parent=0 // loop_pre_header
    _
  $region3: #{pixel_level_module_forward.7} parent=0 // loop_header
    %s9 = sphi 0, %s13
    %p10 = scmp.ge.s32.totalorder %s9, 4
    %s16 = sphi 0, %s28
    %s17 = sphi 0, %s24
    %s18 = sphi 0, %s16
    %s19 = sphi 0, %s17
    %s20 = sphi 0, %s18
    %s21 = sphi 0, %s19
    %s33 = sphi 0, %s35
    %s36 = sphi 0, %s33
    %s37 = sphi 0, %s36
    %s53 = sphi 0, %s37
    %s57 = sphi 0, %s57
    %s59 = sphi 0, %s57
    %s60 = sphi 0, %s59
    %s74 = sphi 0, %s60
    %s78 = sphi 0, %s78
    %s80 = sphi 0, %s78
    %s81 = sphi 0, %s80
    %s95 = sphi 0, %s81
    %s103 = sphi 0, %s105
    %s106 = sphi 0, %s103
    %s107 = sphi 0, %s106
    %s123 = sphi 0, %s107
  $region4: #{pixel_level_module_forward.7} parent=0 // loop_header_branch
    %12 = sbr.rel (%p10) target = $region8
  $region5: #{pixel_level_module_forward.7} parent=0 // loop_body
    %s14 = ssub.s32 %s9, 1
    %s15 = ssub.s32 %s9, 2
    %s22 = sadd.s32 1, %s17
    %p23 = scmp.ge.s32.totalorder %s22, 1
    %s24 = scalar_select %p23, 0, %s22
    %s25 = sadd.s32 1, %s16
    %s26 = scalar_select %p23, %s25, %s16
    %p27 = scmp.ge.s32.totalorder %s26, 2
    %s28 = scalar_select %p27, 0, %s26
    %s29 = ssub.s32 %s16, %s28
    %s30 = ssub.s32 %s17, %s24
    %s31 = sor.u32 %s29, %s30
    %p32 = scmp.eq.s32.totalorder %s31, 0
    %s34 = sadd.s32 %s33, 1
    %s35 = scalar_select %p32, %s33, %s34
    %p38 = pneg %p32
    %p39 = scmp.eq.s32.totalorder %s9, 1
    %p40 = por %p38, %p39
    %p41 = scmp.ne.s32.totalorder %s33, %s36
    %p42 = scmp.eq.s32.totalorder %s9, 0
    %p43 = por %p41, %p42
    %p44 = scmp.ne.s32.totalorder %s33, %s36
    %p45 = scmp.eq.s32.totalorder %s14, 1
    %p46 = por %p44, %p45
    %p47 = scmp.ne.s32.totalorder %s36, %s37
    %p48 = scmp.eq.s32.totalorder %s14, 0
    %p49 = por %p47, %p48
    %p50 = scmp.ne.s32.totalorder %s36, %s37
    %p51 = scmp.eq.s32.totalorder %s15, 1
    %p52 = por %p50, %p51
    %p54 = scmp.ne.s32.totalorder %s37, %s53
    %p55 = scmp.eq.s32.totalorder %s15, 0
    %p56 = por %p54, %p55
    %s58 = sadd.s32 %s57, 1
    %p61 = scmp.eq.s32.totalorder %s9, 1
    %p62 = scmp.ne.s32.totalorder %s57, %s59
    %p63 = scmp.eq.s32.totalorder %s9, 0
    %p64 = por %p62, %p63
    %p65 = scmp.ne.s32.totalorder %s57, %s59
    %p66 = scmp.eq.s32.totalorder %s14, 1
    %p67 = por %p65, %p66
    %p68 = scmp.ne.s32.totalorder %s59, %s60
    %p69 = scmp.eq.s32.totalorder %s14, 0
    %p70 = por %p68, %p69
    %p71 = scmp.ne.s32.totalorder %s59, %s60
    %p72 = scmp.eq.s32.totalorder %s15, 1
    %p73 = por %p71, %p72
    %p75 = scmp.ne.s32.totalorder %s60, %s74
    %p76 = scmp.eq.s32.totalorder %s15, 0
    %p77 = por %p75, %p76
    %s79 = sadd.s32 %s78, 1
    %p82 = scmp.eq.s32.totalorder %s9, 1
    %p83 = scmp.ne.s32.totalorder %s78, %s80
    %p84 = scmp.eq.s32.totalorder %s9, 0
    %p85 = por %p83, %p84
    %p86 = scmp.ne.s32.totalorder %s78, %s80
    %p87 = scmp.eq.s32.totalorder %s14, 1
    %p88 = por %p86, %p87
    %p89 = scmp.ne.s32.totalorder %s80, %s81
    %p90 = scmp.eq.s32.totalorder %s14, 0
    %p91 = por %p89, %p90
    %p92 = scmp.ne.s32.totalorder %s80, %s81
    %p93 = scmp.eq.s32.totalorder %s15, 1
    %p94 = por %p92, %p93
    %p96 = scmp.ne.s32.totalorder %s81, %s95
    %p97 = scmp.eq.s32.totalorder %s15, 0
    %p98 = por %p96, %p97
    %s99 = ssub.s32 %s16, %s28
    %s100 = ssub.s32 %s17, %s24
    %s101 = sor.u32 %s99, %s100
    %p102 = scmp.eq.s32.totalorder %s101, 0
    %s104 = sadd.s32 %s103, 1
    %s105 = scalar_select %p102, %s103, %s104
    %p108 = pneg %p102
    %p109 = scmp.eq.s32.totalorder %s9, 1
    %p110 = por %p108, %p109
    %p111 = scmp.ne.s32.totalorder %s103, %s106
    %p112 = scmp.eq.s32.totalorder %s9, 0
    %p113 = por %p111, %p112
    %p114 = scmp.ne.s32.totalorder %s103, %s106
    %p115 = scmp.eq.s32.totalorder %s14, 1
    %p116 = por %p114, %p115
    %p117 = scmp.ne.s32.totalorder %s106, %s107
    %p118 = scmp.eq.s32.totalorder %s14, 0
    %p119 = por %p117, %p118
    %p120 = scmp.ne.s32.totalorder %s106, %s107
    %p121 = scmp.eq.s32.totalorder %s15, 1
    %p122 = por %p120, %p121
    %p124 = scmp.ne.s32.totalorder %s107, %s123
    %p125 = scmp.eq.s32.totalorder %s15, 0
    %p126 = por %p124, %p125
    %p127 = scmp.le.s32.totalorder 1, %s9
    %p128 = scmp.lt.s32.totalorder %s9, 3
    %p129 = pnand %p127, %p128
    %p130 = pneg %p129
    // Predicated region
    $region9: #{pixel_level_module_forward.7} parent=5 // pred_check
      _
    $region10: #{pixel_level_module_forward.7} parent=5 // pred_check_branch
      %132 = sbr.rel (%p129) target = $region12
    $region11: #{pixel_level_module_forward.7} parent=5 // pred_region
      %s133 = ssub.s32 %s9, 1
      // Predicated region
      $region13: #{pixel_level_module_forward.7} parent=11 // pred_check
        %p134 = pneg %p70
      $region14: #{pixel_level_module_forward.7} parent=11 // pred_check_branch
        %136 = sbr.rel (%p134) target = $region16
      $region15: #{pixel_level_module_forward.7} parent=11 // pred_region
        _
      $region16: #{pixel_level_module_forward.7} parent=11 // pred_fallthru
        _
      // Predicated region
      $region17: #{pixel_level_module_forward.7} parent=11 // pred_check
        %p137 = pneg %p91
      $region18: #{pixel_level_module_forward.7} parent=11 // pred_check_branch
        %139 = sbr.rel (%p137) target = $region20
      $region19: #{pixel_level_module_forward.7} parent=11 // pred_region
        _
      $region20: #{pixel_level_module_forward.7} parent=11 // pred_fallthru
        _
    $region12: #{pixel_level_module_forward.7} parent=5 // pred_fallthru
      _
    %p140 = scmp.lt.s32.totalorder %s9, 2
    // Predicated region
    $region21: #{pixel_level_module_forward.7} parent=5 // pred_check
      %p141 = pneg %p140
    $region22: #{pixel_level_module_forward.7} parent=5 // pred_check_branch
      %143 = sbr.rel (%p141) target = $region24
    $region23: #{pixel_level_module_forward.7} parent=5 // pred_region
      // Predicated region
      $region25: #{pixel_level_module_forward.7} parent=23 // pred_check
        %p144 = pneg %p43
      $region26: #{pixel_level_module_forward.7} parent=23 // pred_check_branch
        %146 = sbr.rel (%p144) target = $region28
      $region27: #{pixel_level_module_forward.7} parent=23 // pred_region
        %s147 = smul.u32 8, %s17
        %p148 = scmp.lt.s32.totalorder %s16, 1
        %s149 = scalar_select %p148, %s16, 1
        %p150 = scmp.lt.s32.totalorder %s147, 7
        %s151 = scalar_select %p150, %s147, 7
        %s152 = smul.addr %s149, 8
        %s153 = sadd.s32 %s151, %s152
        %s154 = smul.addr %s153, 2
        %s155 = scalar_lea.vmem %s0, %s154
        %s156 = smul.u32 8, %s17
      $region28: #{pixel_level_module_forward.7} parent=23 // pred_fallthru
        _
    $region24: #{pixel_level_module_forward.7} parent=5 // pred_fallthru
      _
    %p157 = scmp.le.s32.totalorder 1, %s9
    %p158 = scmp.lt.s32.totalorder %s9, 3
    %p159 = pnand %p157, %p158
    %p160 = pneg %p159
    // Predicated region
    $region29: #{pixel_level_module_forward.7} parent=5 // pred_check
      _
    $region30: #{pixel_level_module_forward.7} parent=5 // pred_check_branch
      %162 = sbr.rel (%p159) target = $region32
    $region31: #{pixel_level_module_forward.7} parent=5 // pred_region
      %s163 = ssub.s32 %s9, 1
      %s164 = smul.u32 8, %s19
      %p165 = scmp.lt.s32.totalorder %s18, 1
      %s166 = scalar_select %p165, %s18, 1
      %p167 = scmp.lt.s32.totalorder %s164, 7
      %s168 = scalar_select %p167, %s164, 7
      %s169 = smul.addr %s166, 8
      %s170 = sadd.s32 %s168, %s169
      %s171 = smul.addr %s170, 2
      %s172 = scalar_lea.vmem %s0, %s171
      %p173 = pneg %p49
      %p174 = pneg %p46
      %p175 = pneg %p70
      %p176 = pneg %p67
      %p177 = pneg %p91
      %p178 = pneg %p88
      %p179 = pneg %p119
      %p180 = pneg %p116
      %s181 = smul.u32 4, %s19
      %p182 = scmp.lt.s32.totalorder %s18, 1
      %s183 = scalar_select %p182, %s18, 1
      %p184 = scmp.lt.s32.totalorder %s181, 3
      %s185 = scalar_select %p184, %s181, 3
      %s186 = smul.addr %s183, 4
      %s187 = sadd.s32 %s185, %s186
      %s188 = smul.addr %s187, 2
      %s189 = scalar_lea.vmem %s3, %s188
      %s190 = smul.u32 8, %s19
      %p191 = scmp.lt.s32.totalorder %s18, 1
      %s192 = scalar_select %p191, %s18, 1
      %p193 = scmp.lt.s32.totalorder %s190, 7
      %s194 = scalar_select %p193, %s190, 7
      %s195 = smul.addr %s192, 8
      %s196 = sadd.s32 %s194, %s195
      %s197 = smul.addr %s196, 2
      %s198 = scalar_lea.vmem %s0, %s197
      %s199 = smul.u32 8, %s19
      %s200 = smul.u32 4, %s19
      %p201 = scmp.lt.s32.totalorder %s18, 1
      %s202 = scalar_select %p201, %s18, 1
      %p203 = scmp.lt.s32.totalorder %s200, 3
      %s204 = scalar_select %p203, %s200, 3
      %s205 = smul.addr %s202, 4
      %s206 = sadd.s32 %s204, %s205
      %s207 = smul.addr %s206, 2
      %s208 = scalar_lea.vmem %s3, %s207
      %s209 = smul.u32 4, %s19
      %v211 = vld [vmem:[%s198] sm:$0x3]
      %v212 = vld [vmem:[%s198 + $0x2] sm:$0x3]
      %v213 = vld [vmem:[%s198 + $0x4] sm:$0x3]
      %v214 = vld [vmem:[%s198 + $0x6] sm:$0x3]
      %v215 = vld [vmem:[%s198 + $0x8] sm:$0x3]
      %v216 = vld [vmem:[%s198 + $0xa] sm:$0x3]
      %v217 = vld [vmem:[%s198 + $0xc] sm:$0x3]
      %v218 = vld [vmem:[%s198 + $0xe] sm:$0x3]
      %v219 = vld [vmem:[%s1] sm:$0xf]
      %v220 = vld [vmem:[%s1 + $0x4] sm:$0xf]
      %v221 = vld [vmem:[%s1 + $0x8] sm:$0xf]
      %v222 = vld [vmem:[%s1 + $0xc] sm:$0xf]
      %v223 = vld [vmem:[%s1 + $0x10] sm:$0xf]
      %v224 = vld [vmem:[%s1 + $0x14] sm:$0xf]
      %v225 = vld [vmem:[%s1 + $0x18] sm:$0xf]
      %v226 = vld [vmem:[%s1 + $0x1c] sm:$0xf]
      %v231 = vcombine.low %v212, %v214
      %v232 = vcombine.low %v216, %v218
      %v234 = vunpack.c.l.s4 1983009808
      %v235 = vunpack.c.0.s8 %v234
      %v236 = vlaneseq
      %v237 = vshrl.u32 %v236, 7
      %v238 = vsub.s32 %v235, %v237
      %v239 = vrot.slane %v231, %v238
      %v241 = vunpack.c.l.s4 1983009808
      %v242 = vunpack.c.0.s8 %v241
      %v243 = vlaneseq
      %v244 = vshrl.u32 %v243, 7
      %v245 = vsub.s32 %v242, %v244
      %v246 = vrot.slane %v232, %v245
      %v247 = vcombine.low %v239, %v246
      %v252 = vunpack.c.l.b16 %v223
      %v253 = vunpack.c.l.b16 %v224
      %v254 = vunpack.c.l.b16 %v225
      %v255 = vunpack.c.l.b16 %v226
      %v256 = vpack.c.b16 %v253, %v252
      %v257 = vpack.c.b16 %v255, %v254
      %vm260 = vcmask 261120
      %v262 = vsel %vm260, %v247, 0
      %264 = vmatprep.subr.bf16.mxu0 0
      %265 = vmatpush1.bf16.msra.mxu0 %v256
      %266 = vmatprep.subr.bf16.mxu0 0
      %267 = vmatpush1.bf16.msra.mxu0 %v257
      %268 = vmatprep.subr.bf16.mxu0 0
      %269 = vmatpush1.bf16.msra.mxu0 0
      %270 = vmatprep.subr.bf16.mxu0 0
      %271 = vmatpush1.bf16.msra.mxu0 0
      %272 = vmatprep.subr.bf16.mxu0 0
      %273 = vmatpush1.bf16.msra.mxu0 0
      %274 = vmatprep.subr.bf16.mxu0 0
      %275 = vmatpush1.bf16.msra.mxu0 0
      %276 = vmatprep.subr.bf16.mxu0 0
      %277 = vmatpush1.bf16.msra.mxu0 0
      %278 = vmatprep.subr.bf16.mxu0 0
      %279 = vmatpush1.bf16.msra.mxu0 0
      %280 = vmatprep.subr.bf16.mxu0 0
      %281 = vmatpush1.bf16.msra.mxu0 0
      %282 = vmatprep.subr.bf16.mxu0 0
      %283 = vmatpush1.bf16.msra.mxu0 0
      %284 = vmatprep.subr.bf16.mxu0 0
      %285 = vmatpush1.bf16.msra.mxu0 0
      %286 = vmatprep.subr.bf16.mxu0 0
      %287 = vmatpush1.bf16.msra.mxu0 0
      %288 = vmatprep.subr.bf16.mxu0 0
      %289 = vmatpush1.bf16.msra.mxu0 0
      %290 = vmatprep.subr.bf16.mxu0 0
      %291 = vmatpush1.bf16.msra.mxu0 0
      %292 = vmatprep.subr.bf16.mxu0 0
      %293 = vmatpush1.bf16.msra.mxu0 0
      %294 = vmatprep.subr.bf16.mxu0 0
      %295 = vmatpush1.bf16.msra.mxu0 0
      %296 = vmatprep.mubr.bf16.mxu0 0
      %297 = vmatmul.mubr.bf16.gmra.mrb[0].mxu0 %v262
      %v298 = vpop.f32.mrb[0].mxu0
      %v299 = vadd.f32 0.0, %v298
      %v300 = vpop.f32.mrb[0].mxu0
      %v301 = vpop.f32.mrb[0].mxu0
      %v302 = vadd.f32 0.0, %v301
      %v303 = vpop.f32.mrb[0].mxu0
      %304 = vdwg.mxu0
      %v309 = vcombine.low %v211, %v213
      %v310 = vcombine.low %v215, %v217
      %v312 = vunpack.c.l.s4 1983009808
      %v313 = vunpack.c.0.s8 %v312
      %v314 = vlaneseq
      %v315 = vshrl.u32 %v314, 7
      %v316 = vsub.s32 %v313, %v315
      %v317 = vrot.slane %v309, %v316
      %v319 = vunpack.c.l.s4 1983009808
      %v320 = vunpack.c.0.s8 %v319
      %v321 = vlaneseq
      %v322 = vshrl.u32 %v321, 7
      %v323 = vsub.s32 %v320, %v322
      %v324 = vrot.slane %v310, %v323
      %v325 = vcombine.low %v317, %v324
      %v330 = vunpack.c.l.b16 %v219
      %v331 = vunpack.c.l.b16 %v220
      %v332 = vunpack.c.l.b16 %v221
      %v333 = vunpack.c.l.b16 %v222
      %v334 = vpack.c.b16 %v331, %v330
      %v335 = vpack.c.b16 %v333, %v332
      %v339 = vsel %vm260, %v325, 0
      %341 = vmatprep.subr.bf16.mxu0 0
      %342 = vmatpush1.bf16.msra.mxu0 %v334
      %343 = vmatprep.subr.bf16.mxu0 0
      %344 = vmatpush1.bf16.msra.mxu0 %v335
      %345 = vmatprep.subr.bf16.mxu0 0
      %346 = vmatpush1.bf16.msra.mxu0 0
      %347 = vmatprep.subr.bf16.mxu0 0
      %348 = vmatpush1.bf16.msra.mxu0 0
      %349 = vmatprep.subr.bf16.mxu0 0
      %350 = vmatpush1.bf16.msra.mxu0 0
      %351 = vmatprep.subr.bf16.mxu0 0
      %352 = vmatpush1.bf16.msra.mxu0 0
      %353 = vmatprep.subr.bf16.mxu0 0
      %354 = vmatpush1.bf16.msra.mxu0 0
      %355 = vmatprep.subr.bf16.mxu0 0
      %356 = vmatpush1.bf16.msra.mxu0 0
      %357 = vmatprep.subr.bf16.mxu0 0
      %358 = vmatpush1.bf16.msra.mxu0 0
      %359 = vmatprep.subr.bf16.mxu0 0
      %360 = vmatpush1.bf16.msra.mxu0 0
      %361 = vmatprep.subr.bf16.mxu0 0
      %362 = vmatpush1.bf16.msra.mxu0 0
      %363 = vmatprep.subr.bf16.mxu0 0
      %364 = vmatpush1.bf16.msra.mxu0 0
      %365 = vmatprep.subr.bf16.mxu0 0
      %366 = vmatpush1.bf16.msra.mxu0 0
      %367 = vmatprep.subr.bf16.mxu0 0
      %368 = vmatpush1.bf16.msra.mxu0 0
      %369 = vmatprep.subr.bf16.mxu0 0
      %370 = vmatpush1.bf16.msra.mxu0 0
      %371 = vmatprep.subr.bf16.mxu0 0
      %372 = vmatpush1.bf16.msra.mxu0 0
      %373 = vmatprep.mubr.bf16.mxu0 0
      %374 = vmatmul.mubr.bf16.gmra.mrb[0].mxu0 %v339
      %v375 = vpop.f32.mrb[0].mxu0
      %v376 = vadd.f32 %v299, %v375
      %v377 = vpop.f32.mrb[0].mxu0
      %v378 = vpop.f32.mrb[0].mxu0
      %v379 = vadd.f32 %v302, %v378
      %v380 = vpop.f32.mrb[0].mxu0
      %381 = vdwg.mxu0
      %v382 = vld [vmem:[%s2] sm:$0x1]
      %v384 = vlaneseq
      %v385 = vshrl.u32 %v384, 7
      %v386 = vsub.s32 0, %v385
      %v387 = vrot.slane %v382, %v386
      %v389 = vadd.f32 %v376, %v387
      %v390 = vadd.f32 %v379, %v387
      %v391 = vmax.f32 %v389, 0.0
      %v392 = vmax.f32 %v390, 0.0
      %v395 = vcombine.high %v391, %v391
      %v396 = vcombine.high %v392, %v392
      %v399 = vpack.c.bf16 %v391, %v391
      %v400 = vpack.c.bf16 %v395, %v395
      %v401 = vpack.c.bf16 %v392, %v392
      %v402 = vpack.c.bf16 %v396, %v396
      %vm403 = vcmask 254976
      %404 = vst.msk [vmem:[%s208] sm:$0x3] %vm403, %v399
      %405 = vst.msk [vmem:[%s208 + $0x2] sm:$0x3] %vm403, %v400
      %406 = vst.msk [vmem:[%s208 + $0x4] sm:$0x3] %vm403, %v401
      %407 = vst.msk [vmem:[%s208 + $0x6] sm:$0x3] %vm403, %v402
      %s408 = smul.u32 4, %s19
      %p409 = scmp.lt.s32.totalorder %s18, 1
      %s410 = scalar_select %p409, %s18, 1
      %p411 = scmp.lt.s32.totalorder %s408, 3
      %s412 = scalar_select %p411, %s408, 3
      %s413 = smul.addr %s410, 4
      %s414 = sadd.s32 %s412, %s413
      %s415 = smul.addr %s414, 2
      %s416 = scalar_lea.vmem %s3, %s415
      // Predicated region
      $region33: #{pixel_level_module_forward.7} parent=31 // pred_check
        %p417 = pneg %p116
      $region34: #{pixel_level_module_forward.7} parent=31 // pred_check_branch
        %419 = sbr.rel (%p417) target = $region36
      $region35: #{pixel_level_module_forward.7} parent=31 // pred_region
        %s420 = smul.u32 4, %s19
      $region36: #{pixel_level_module_forward.7} parent=31 // pred_fallthru
        _
    $region32: #{pixel_level_module_forward.7} parent=5 // pred_fallthru
      _
    %p421 = scmp.le.s32.totalorder 2, %s9
    // Predicated region
    $region37: #{pixel_level_module_forward.7} parent=5 // pred_check
      %p422 = pneg %p421
    $region38: #{pixel_level_module_forward.7} parent=5 // pred_check_branch
      %424 = sbr.rel (%p422) target = $region40
    $region39: #{pixel_level_module_forward.7} parent=5 // pred_region
      %s425 = ssub.s32 %s9, 2
      // Predicated region
      $region41: #{pixel_level_module_forward.7} parent=39 // pred_check
        %p426 = pneg %p122
      $region42: #{pixel_level_module_forward.7} parent=39 // pred_check_branch
        %428 = sbr.rel (%p426) target = $region44
      $region43: #{pixel_level_module_forward.7} parent=39 // pred_region
        %s429 = smul.u32 4, %s21
        %p430 = scmp.lt.s32.totalorder %s20, 1
        %s431 = scalar_select %p430, %s20, 1
        %p432 = scmp.lt.s32.totalorder %s429, 3
        %s433 = scalar_select %p432, %s429, 3
        %s434 = smul.addr %s431, 4
        %s435 = sadd.s32 %s433, %s434
        %s436 = smul.addr %s435, 2
        %s437 = scalar_lea.vmem %s3, %s436
      $region44: #{pixel_level_module_forward.7} parent=39 // pred_fallthru
        _
    $region40: #{pixel_level_module_forward.7} parent=5 // pred_fallthru
      _
  $region6: #{pixel_level_module_forward.7} parent=0 // loop_footer
    %s13 = sadd.s32 1, %s9
  $region7: #{pixel_level_module_forward.7} parent=0 // loop_footer_branch
    %8 = sbr.rel target = $region3
  $region8: #{pixel_level_module_forward.7} parent=0 // loop_exit
    _

// kernel: pixel_level_module_forward.9
$region0: #{pixel_level_module_forward.9}
  #allocation0 [shape = 'u32[]', space=smem, size = 0x4, offset = 0x4, fixed_abs, tag = 'smem constant byte address 0x4 - core index']
  #allocation1 [shape = 'u32[144,128]{1,0:T(1,128)}', space=vmem, size = 0x12000, scoped, tag = 'internal scratch']
  %s0 = inlined_call_operand.vmem [shape: bf16[2,2,2,64], index: 0, kind: input, shape index: {}]
  %s1 = inlined_call_operand.vmem [shape: bf16[2,4,4,32], index: 1, kind: input, shape index: {}]
  %s2 = inlined_call_operand.vmem [shape: bf16[2,8,8,16], index: 2, kind: input, shape index: {}]
  %s3 = inlined_call_operand.vmem [shape: bf16[2,16,16,8], index: 3, kind: input, shape index: {}]
  %s4 = inlined_call_operand.vmem [shape: bf16[64,32], index: 4, kind: input, shape index: {}]
  %s5 = inlined_call_operand.vmem [shape: f32[1,32], index: 5, kind: input, shape index: {}]
  %s6 = inlined_call_operand.vmem [shape: bf16[32,32], index: 6, kind: input, shape index: {}]
  %s7 = inlined_call_operand.vmem [shape: f32[1,32], index: 7, kind: input, shape index: {}]
  %s8 = inlined_call_operand.vmem [shape: bf16[16,32], index: 8, kind: input, shape index: {}]
  %s9 = inlined_call_operand.vmem [shape: f32[1,32], index: 9, kind: input, shape index: {}]
  %s10 = inlined_call_operand.vmem [shape: bf16[8,32], index: 10, kind: input, shape index: {}]
  %s11 = inlined_call_operand.vmem [shape: f32[1,32], index: 11, kind: input, shape index: {}]
  %s12 = inlined_call_operand.vmem [shape: bf16[32,32], index: 12, kind: input, shape index: {}]
  %s13 = inlined_call_operand.vmem [shape: f32[1,32], index: 13, kind: input, shape index: {}]
  %s14 = inlined_call_operand.vmem [shape: bf16[32,32], index: 14, kind: input, shape index: {}]
  %s15 = inlined_call_operand.vmem [shape: f32[1,32], index: 15, kind: input, shape index: {}]
  %s16 = inlined_call_operand.hbm [shape: f32[2,2,2,32], index: 16, kind: output, shape index: {0}]
  %s17 = inlined_call_operand.hbm [shape: f32[2,4,4,32], index: 17, kind: output, shape index: {1}]
  %s18 = inlined_call_operand.hbm [shape: f32[2,8,8,32], index: 18, kind: output, shape index: {2}]
  %s19 = inlined_call_operand.hbm [shape: f32[2,16,16,32], index: 19, kind: output, shape index: {3}]
  %20 = xla_tuple %s16, %s17, %s18, %s19
  %s21 = sld [smem:[#allocation0]]
  $region121: #{pixel_level_module_forward.9} parent=0
    _
  %s23 = ssub.s32 1, %s21
  %s24 = scalar_select 0, %s23, %s21
  $region1: #{pixel_level_module_forward.9} parent=0
    #allocation2 [shape = 'u8[4096]{0}', space=vmem, size = 0x1000, scoped, tag = 'output window, operand 0']
    #allocation3 [shape = 's32[2]{0}', space=sflag, size = 0x8, scoped, tag = 'scoped memory for pixel_level_module_forward.9']
    #allocation4 [shape = 'u8[16384]{0}', space=vmem, size = 0x4000, scoped, tag = 'output window, operand 1']
    #allocation5 [shape = 's32[2]{0}', space=sflag, size = 0x8, scoped, tag = 'scoped memory for pixel_level_module_forward.9']
    #allocation6 [shape = 'u8[65536]{0}', space=vmem, size = 0x10000, scoped, tag = 'output window, operand 2']
    #allocation7 [shape = 'u8[262144]{0}', space=vmem, size = 0x40000, scoped, tag = 'output window, operand 3']
    #allocation8 [shape = 's32[2]{0}', space=sflag, size = 0x8, scoped, tag = 'scoped memory for pixel_level_module_forward.9']
    %25 = vsyncpa [#allocation3], 0
    %s26 = scalar_lea.sflag [#allocation3], 1
    %27 = vsyncpa %s26, 0
    %28 = vsyncpa [#allocation5], 0
    %s29 = scalar_lea.sflag [#allocation5], 1
    %30 = vsyncpa %s29, 0
    %31 = vsyncpa [#allocation8], 0
    %s32 = scalar_lea.sflag [#allocation8], 1
    %33 = vsyncpa %s32, 0
    loop: start=0, step=1, limit=4
    $region2: #{pixel_level_module_forward.9} parent=1 // loop_pre_header
      _
    $region3: #{pixel_level_module_forward.9} parent=1 // loop_header
      %s35 = sphi 0, %s39
      %p36 = scmp.ge.s32.totalorder %s35, 4
      %s42 = sphi 0, %s54
      %s43 = sphi 0, %s50
      %s44 = sphi 0, %s42
      %s45 = sphi 0, %s43
      %s46 = sphi 0, %s44
      %s47 = sphi 0, %s45
      %s59 = sphi 0, %s61
      %s62 = sphi 0, %s59
      %s63 = sphi 0, %s62
      %s79 = sphi 0, %s63
      %s87 = sphi 0, %s89
      %s90 = sphi 0, %s87
      %s91 = sphi 0, %s90
      %s107 = sphi 0, %s91
      %s115 = sphi 0, %s117
      %s118 = sphi 0, %s115
      %s119 = sphi 0, %s118
      %s135 = sphi 0, %s119
      %s143 = sphi 0, %s145
      %s146 = sphi 0, %s143
      %s147 = sphi 0, %s146
      %s163 = sphi 0, %s147
      %s167 = sphi 0, %s167
      %s169 = sphi 0, %s167
      %s170 = sphi 0, %s169
      %s184 = sphi 0, %s170
      %s188 = sphi 0, %s188
      %s190 = sphi 0, %s188
      %s191 = sphi 0, %s190
      %s205 = sphi 0, %s191
      %s209 = sphi 0, %s209
      %s211 = sphi 0, %s209
      %s212 = sphi 0, %s211
      %s226 = sphi 0, %s212
      %s230 = sphi 0, %s230
      %s232 = sphi 0, %s230
      %s233 = sphi 0, %s232
      %s247 = sphi 0, %s233
      %s251 = sphi 0, %s251
      %s253 = sphi 0, %s251
      %s254 = sphi 0, %s253
      %s268 = sphi 0, %s254
      %s272 = sphi 0, %s272
      %s274 = sphi 0, %s272
      %s275 = sphi 0, %s274
      %s289 = sphi 0, %s275
      %s293 = sphi 0, %s293
      %s295 = sphi 0, %s293
      %s296 = sphi 0, %s295
      %s310 = sphi 0, %s296
      %s314 = sphi 0, %s314
      %s316 = sphi 0, %s314
      %s317 = sphi 0, %s316
      %s331 = sphi 0, %s317
      %s335 = sphi 0, %s335
      %s337 = sphi 0, %s335
      %s338 = sphi 0, %s337
      %s352 = sphi 0, %s338
      %s356 = sphi 0, %s356
      %s358 = sphi 0, %s356
      %s359 = sphi 0, %s358
      %s373 = sphi 0, %s359
      %s377 = sphi 0, %s377
      %s379 = sphi 0, %s377
      %s380 = sphi 0, %s379
      %s394 = sphi 0, %s380
      %s398 = sphi 0, %s398
      %s400 = sphi 0, %s398
      %s401 = sphi 0, %s400
      %s415 = sphi 0, %s401
      %s423 = sphi 0, %s425
      %s426 = sphi 0, %s423
      %s427 = sphi 0, %s426
      %s443 = sphi 0, %s427
      %s451 = sphi 0, %s453
      %s454 = sphi 0, %s451
      %s455 = sphi 0, %s454
      %s471 = sphi 0, %s455
      %s479 = sphi 0, %s481
      %s482 = sphi 0, %s479
      %s483 = sphi 0, %s482
      %s499 = sphi 0, %s483
      %s507 = sphi 0, %s509
      %s510 = sphi 0, %s507
      %s511 = sphi 0, %s510
      %s527 = sphi 0, %s511
    $region4: #{pixel_level_module_forward.9} parent=1 // loop_header_branch
      %38 = sbr.rel (%p36) target = $region8
    $region5: #{pixel_level_module_forward.9} parent=1 // loop_body
      %s40 = ssub.s32 %s35, 1
      %s41 = ssub.s32 %s35, 2
      %s48 = sadd.s32 1, %s43
      %p49 = scmp.ge.s32.totalorder %s48, 1
      %s50 = scalar_select %p49, 0, %s48
      %s51 = sadd.s32 1, %s42
      %s52 = scalar_select %p49, %s51, %s42
      %p53 = scmp.ge.s32.totalorder %s52, 2
      %s54 = scalar_select %p53, 0, %s52
      %s55 = ssub.s32 %s42, %s54
      %s56 = ssub.s32 %s43, %s50
      %s57 = sor.u32 %s55, %s56
      %p58 = scmp.eq.s32.totalorder %s57, 0
      %s60 = sadd.s32 %s59, 1
      %s61 = scalar_select %p58, %s59, %s60
      %p64 = pneg %p58
      %p65 = scmp.eq.s32.totalorder %s35, 1
      %p66 = por %p64, %p65
      %p67 = scmp.ne.s32.totalorder %s59, %s62
      %p68 = scmp.eq.s32.totalorder %s35, 0
      %p69 = por %p67, %p68
      %p70 = scmp.ne.s32.totalorder %s59, %s62
      %p71 = scmp.eq.s32.totalorder %s40, 1
      %p72 = por %p70, %p71
      %p73 = scmp.ne.s32.totalorder %s62, %s63
      %p74 = scmp.eq.s32.totalorder %s40, 0
      %p75 = por %p73, %p74
      %p76 = scmp.ne.s32.totalorder %s62, %s63
      %p77 = scmp.eq.s32.totalorder %s41, 1
      %p78 = por %p76, %p77
      %p80 = scmp.ne.s32.totalorder %s63, %s79
      %p81 = scmp.eq.s32.totalorder %s41, 0
      %p82 = por %p80, %p81
      %s83 = ssub.s32 %s42, %s54
      %s84 = ssub.s32 %s43, %s50
      %s85 = sor.u32 %s83, %s84
      %p86 = scmp.eq.s32.totalorder %s85, 0
      %s88 = sadd.s32 %s87, 1
      %s89 = scalar_select %p86, %s87, %s88
      %p92 = pneg %p86
      %p93 = scmp.eq.s32.totalorder %s35, 1
      %p94 = por %p92, %p93
      %p95 = scmp.ne.s32.totalorder %s87, %s90
      %p96 = scmp.eq.s32.totalorder %s35, 0
      %p97 = por %p95, %p96
      %p98 = scmp.ne.s32.totalorder %s87, %s90
      %p99 = scmp.eq.s32.totalorder %s40, 1
      %p100 = por %p98, %p99
      %p101 = scmp.ne.s32.totalorder %s90, %s91
      %p102 = scmp.eq.s32.totalorder %s40, 0
      %p103 = por %p101, %p102
      %p104 = scmp.ne.s32.totalorder %s90, %s91
      %p105 = scmp.eq.s32.totalorder %s41, 1
      %p106 = por %p104, %p105
      %p108 = scmp.ne.s32.totalorder %s91, %s107
      %p109 = scmp.eq.s32.totalorder %s41, 0
      %p110 = por %p108, %p109
      %s111 = ssub.s32 %s42, %s54
      %s112 = ssub.s32 %s43, %s50
      %s113 = sor.u32 %s111, %s112
      %p114 = scmp.eq.s32.totalorder %s113, 0
      %s116 = sadd.s32 %s115, 1
      %s117 = scalar_select %p114, %s115, %s116
      %p120 = pneg %p114
      %p121 = scmp.eq.s32.totalorder %s35, 1
      %p122 = por %p120, %p121
      %p123 = scmp.ne.s32.totalorder %s115, %s118
      %p124 = scmp.eq.s32.totalorder %s35, 0
      %p125 = por %p123, %p124
      %p126 = scmp.ne.s32.totalorder %s115, %s118
      %p127 = scmp.eq.s32.totalorder %s40, 1
      %p128 = por %p126, %p127
      %p129 = scmp.ne.s32.totalorder %s118, %s119
      %p130 = scmp.eq.s32.totalorder %s40, 0
      %p131 = por %p129, %p130
      %p132 = scmp.ne.s32.totalorder %s118, %s119
      %p133 = scmp.eq.s32.totalorder %s41, 1
      %p134 = por %p132, %p133
      %p136 = scmp.ne.s32.totalorder %s119, %s135
      %p137 = scmp.eq.s32.totalorder %s41, 0
      %p138 = por %p136, %p137
      %s139 = ssub.s32 %s42, %s54
      %s140 = ssub.s32 %s43, %s50
      %s141 = sor.u32 %s139, %s140
      %p142 = scmp.eq.s32.totalorder %s141, 0
      %s144 = sadd.s32 %s143, 1
      %s145 = scalar_select %p142, %s143, %s144
      %p148 = pneg %p142
      %p149 = scmp.eq.s32.totalorder %s35, 1
      %p150 = por %p148, %p149
      %p151 = scmp.ne.s32.totalorder %s143, %s146
      %p152 = scmp.eq.s32.totalorder %s35, 0
      %p153 = por %p151, %p152
      %p154 = scmp.ne.s32.totalorder %s143, %s146
      %p155 = scmp.eq.s32.totalorder %s40, 1
      %p156 = por %p154, %p155
      %p157 = scmp.ne.s32.totalorder %s146, %s147
      %p158 = scmp.eq.s32.totalorder %s40, 0
      %p159 = por %p157, %p158
      %p160 = scmp.ne.s32.totalorder %s146, %s147
      %p161 = scmp.eq.s32.totalorder %s41, 1
      %p162 = por %p160, %p161
      %p164 = scmp.ne.s32.totalorder %s147, %s163
      %p165 = scmp.eq.s32.totalorder %s41, 0
      %p166 = por %p164, %p165
      %s168 = sadd.s32 %s167, 1
      %p171 = scmp.eq.s32.totalorder %s35, 1
      %p172 = scmp.ne.s32.totalorder %s167, %s169
      %p173 = scmp.eq.s32.totalorder %s35, 0
      %p174 = por %p172, %p173
      %p175 = scmp.ne.s32.totalorder %s167, %s169
      %p176 = scmp.eq.s32.totalorder %s40, 1
      %p177 = por %p175, %p176
      %p178 = scmp.ne.s32.totalorder %s169, %s170
      %p179 = scmp.eq.s32.totalorder %s40, 0
      %p180 = por %p178, %p179
      %p181 = scmp.ne.s32.totalorder %s169, %s170
      %p182 = scmp.eq.s32.totalorder %s41, 1
      %p183 = por %p181, %p182
      %p185 = scmp.ne.s32.totalorder %s170, %s184
      %p186 = scmp.eq.s32.totalorder %s41, 0
      %p187 = por %p185, %p186
      %s189 = sadd.s32 %s188, 1
      %p192 = scmp.eq.s32.totalorder %s35, 1
      %p193 = scmp.ne.s32.totalorder %s188, %s190
      %p194 = scmp.eq.s32.totalorder %s35, 0
      %p195 = por %p193, %p194
      %p196 = scmp.ne.s32.totalorder %s188, %s190
      %p197 = scmp.eq.s32.totalorder %s40, 1
      %p198 = por %p196, %p197
      %p199 = scmp.ne.s32.totalorder %s190, %s191
      %p200 = scmp.eq.s32.totalorder %s40, 0
      %p201 = por %p199, %p200
      %p202 = scmp.ne.s32.totalorder %s190, %s191
      %p203 = scmp.eq.s32.totalorder %s41, 1
      %p204 = por %p202, %p203
      %p206 = scmp.ne.s32.totalorder %s191, %s205
      %p207 = scmp.eq.s32.totalorder %s41, 0
      %p208 = por %p206, %p207
      %s210 = sadd.s32 %s209, 1
      %p213 = scmp.eq.s32.totalorder %s35, 1
      %p214 = scmp.ne.s32.totalorder %s209, %s211
      %p215 = scmp.eq.s32.totalorder %s35, 0
      %p216 = por %p214, %p215
      %p217 = scmp.ne.s32.totalorder %s209, %s211
      %p218 = scmp.eq.s32.totalorder %s40, 1
      %p219 = por %p217, %p218
      %p220 = scmp.ne.s32.totalorder %s211, %s212
      %p221 = scmp.eq.s32.totalorder %s40, 0
      %p222 = por %p220, %p221
      %p223 = scmp.ne.s32.totalorder %s211, %s212
      %p224 = scmp.eq.s32.totalorder %s41, 1
      %p225 = por %p223, %p224
      %p227 = scmp.ne.s32.totalorder %s212, %s226
      %p228 = scmp.eq.s32.totalorder %s41, 0
      %p229 = por %p227, %p228
      %s231 = sadd.s32 %s230, 1
      %p234 = scmp.eq.s32.totalorder %s35, 1
      %p235 = scmp.ne.s32.totalorder %s230, %s232
      %p236 = scmp.eq.s32.totalorder %s35, 0
      %p237 = por %p235, %p236
      %p238 = scmp.ne.s32.totalorder %s230, %s232
      %p239 = scmp.eq.s32.totalorder %s40, 1
      %p240 = por %p238, %p239
      %p241 = scmp.ne.s32.totalorder %s232, %s233
      %p242 = scmp.eq.s32.totalorder %s40, 0
      %p243 = por %p241, %p242
      %p244 = scmp.ne.s32.totalorder %s232, %s233
      %p245 = scmp.eq.s32.totalorder %s41, 1
      %p246 = por %p244, %p245
      %p248 = scmp.ne.s32.totalorder %s233, %s247
      %p249 = scmp.eq.s32.totalorder %s41, 0
      %p250 = por %p248, %p249
      %s252 = sadd.s32 %s251, 1
      %p255 = scmp.eq.s32.totalorder %s35, 1
      %p256 = scmp.ne.s32.totalorder %s251, %s253
      %p257 = scmp.eq.s32.totalorder %s35, 0
      %p258 = por %p256, %p257
      %p259 = scmp.ne.s32.totalorder %s251, %s253
      %p260 = scmp.eq.s32.totalorder %s40, 1
      %p261 = por %p259, %p260
      %p262 = scmp.ne.s32.totalorder %s253, %s254
      %p263 = scmp.eq.s32.totalorder %s40, 0
      %p264 = por %p262, %p263
      %p265 = scmp.ne.s32.totalorder %s253, %s254
      %p266 = scmp.eq.s32.totalorder %s41, 1
      %p267 = por %p265, %p266
      %p269 = scmp.ne.s32.totalorder %s254, %s268
      %p270 = scmp.eq.s32.totalorder %s41, 0
      %p271 = por %p269, %p270
      %s273 = sadd.s32 %s272, 1
      %p276 = scmp.eq.s32.totalorder %s35, 1
      %p277 = scmp.ne.s32.totalorder %s272, %s274
      %p278 = scmp.eq.s32.totalorder %s35, 0
      %p279 = por %p277, %p278
      %p280 = scmp.ne.s32.totalorder %s272, %s274
      %p281 = scmp.eq.s32.totalorder %s40, 1
      %p282 = por %p280, %p281
      %p283 = scmp.ne.s32.totalorder %s274, %s275
      %p284 = scmp.eq.s32.totalorder %s40, 0
      %p285 = por %p283, %p284
      %p286 = scmp.ne.s32.totalorder %s274, %s275
      %p287 = scmp.eq.s32.totalorder %s41, 1
      %p288 = por %p286, %p287
      %p290 = scmp.ne.s32.totalorder %s275, %s289
      %p291 = scmp.eq.s32.totalorder %s41, 0
      %p292 = por %p290, %p291
      %s294 = sadd.s32 %s293, 1
      %p297 = scmp.eq.s32.totalorder %s35, 1
      %p298 = scmp.ne.s32.totalorder %s293, %s295
      %p299 = scmp.eq.s32.totalorder %s35, 0
      %p300 = por %p298, %p299
      %p301 = scmp.ne.s32.totalorder %s293, %s295
      %p302 = scmp.eq.s32.totalorder %s40, 1
      %p303 = por %p301, %p302
      %p304 = scmp.ne.s32.totalorder %s295, %s296
      %p305 = scmp.eq.s32.totalorder %s40, 0
      %p306 = por %p304, %p305
      %p307 = scmp.ne.s32.totalorder %s295, %s296
      %p308 = scmp.eq.s32.totalorder %s41, 1
      %p309 = por %p307, %p308
      %p311 = scmp.ne.s32.totalorder %s296, %s310
      %p312 = scmp.eq.s32.totalorder %s41, 0
      %p313 = por %p311, %p312
      %s315 = sadd.s32 %s314, 1
      %p318 = scmp.eq.s32.totalorder %s35, 1
      %p319 = scmp.ne.s32.totalorder %s314, %s316
      %p320 = scmp.eq.s32.totalorder %s35, 0
      %p321 = por %p319, %p320
      %p322 = scmp.ne.s32.totalorder %s314, %s316
      %p323 = scmp.eq.s32.totalorder %s40, 1
      %p324 = por %p322, %p323
      %p325 = scmp.ne.s32.totalorder %s316, %s317
      %p326 = scmp.eq.s32.totalorder %s40, 0
      %p327 = por %p325, %p326
      %p328 = scmp.ne.s32.totalorder %s316, %s317
      %p329 = scmp.eq.s32.totalorder %s41, 1
      %p330 = por %p328, %p329
      %p332 = scmp.ne.s32.totalorder %s317, %s331
      %p333 = scmp.eq.s32.totalorder %s41, 0
      %p334 = por %p332, %p333
      %s336 = sadd.s32 %s335, 1
      %p339 = scmp.eq.s32.totalorder %s35, 1
      %p340 = scmp.ne.s32.totalorder %s335, %s337
      %p341 = scmp.eq.s32.totalorder %s35, 0
      %p342 = por %p340, %p341
      %p343 = scmp.ne.s32.totalorder %s335, %s337
      %p344 = scmp.eq.s32.totalorder %s40, 1
      %p345 = por %p343, %p344
      %p346 = scmp.ne.s32.totalorder %s337, %s338
      %p347 = scmp.eq.s32.totalorder %s40, 0
      %p348 = por %p346, %p347
      %p349 = scmp.ne.s32.totalorder %s337, %s338
      %p350 = scmp.eq.s32.totalorder %s41, 1
      %p351 = por %p349, %p350
      %p353 = scmp.ne.s32.totalorder %s338, %s352
      %p354 = scmp.eq.s32.totalorder %s41, 0
      %p355 = por %p353, %p354
      %s357 = sadd.s32 %s356, 1
      %p360 = scmp.eq.s32.totalorder %s35, 1
      %p361 = scmp.ne.s32.totalorder %s356, %s358
      %p362 = scmp.eq.s32.totalorder %s35, 0
      %p363 = por %p361, %p362
      %p364 = scmp.ne.s32.totalorder %s356, %s358
      %p365 = scmp.eq.s32.totalorder %s40, 1
      %p366 = por %p364, %p365
      %p367 = scmp.ne.s32.totalorder %s358, %s359
      %p368 = scmp.eq.s32.totalorder %s40, 0
      %p369 = por %p367, %p368
      %p370 = scmp.ne.s32.totalorder %s358, %s359
      %p371 = scmp.eq.s32.totalorder %s41, 1
      %p372 = por %p370, %p371
      %p374 = scmp.ne.s32.totalorder %s359, %s373
      %p375 = scmp.eq.s32.totalorder %s41, 0
      %p376 = por %p374, %p375
      %s378 = sadd.s32 %s377, 1
      %p381 = scmp.eq.s32.totalorder %s35, 1
      %p382 = scmp.ne.s32.totalorder %s377, %s379
      %p383 = scmp.eq.s32.totalorder %s35, 0
      %p384 = por %p382, %p383
      %p385 = scmp.ne.s32.totalorder %s377, %s379
      %p386 = scmp.eq.s32.totalorder %s40, 1
      %p387 = por %p385, %p386
      %p388 = scmp.ne.s32.totalorder %s379, %s380
      %p389 = scmp.eq.s32.totalorder %s40, 0
      %p390 = por %p388, %p389
      %p391 = scmp.ne.s32.totalorder %s379, %s380
      %p392 = scmp.eq.s32.totalorder %s41, 1
      %p393 = por %p391, %p392
      %p395 = scmp.ne.s32.totalorder %s380, %s394
      %p396 = scmp.eq.s32.totalorder %s41, 0
      %p397 = por %p395, %p396
      %s399 = sadd.s32 %s398, 1
      %p402 = scmp.eq.s32.totalorder %s35, 1
      %p403 = scmp.ne.s32.totalorder %s398, %s400
      %p404 = scmp.eq.s32.totalorder %s35, 0
      %p405 = por %p403, %p404
      %p406 = scmp.ne.s32.totalorder %s398, %s400
      %p407 = scmp.eq.s32.totalorder %s40, 1
      %p408 = por %p406, %p407
      %p409 = scmp.ne.s32.totalorder %s400, %s401
      %p410 = scmp.eq.s32.totalorder %s40, 0
      %p411 = por %p409, %p410
      %p412 = scmp.ne.s32.totalorder %s400, %s401
      %p413 = scmp.eq.s32.totalorder %s41, 1
      %p414 = por %p412, %p413
      %p416 = scmp.ne.s32.totalorder %s401, %s415
      %p417 = scmp.eq.s32.totalorder %s41, 0
      %p418 = por %p416, %p417
      %s419 = ssub.s32 %s42, %s54
      %s420 = ssub.s32 %s43, %s50
      %s421 = sor.u32 %s419, %s420
      %p422 = scmp.eq.s32.totalorder %s421, 0
      %s424 = sadd.s32 %s423, 1
      %s425 = scalar_select %p422, %s423, %s424
      %p428 = pneg %p422
      %p429 = scmp.eq.s32.totalorder %s35, 1
      %p430 = por %p428, %p429
      %p431 = scmp.ne.s32.totalorder %s423, %s426
      %p432 = scmp.eq.s32.totalorder %s35, 0
      %p433 = por %p431, %p432
      %p434 = scmp.ne.s32.totalorder %s423, %s426
      %p435 = scmp.eq.s32.totalorder %s40, 1
      %p436 = por %p434, %p435
      %p437 = scmp.ne.s32.totalorder %s426, %s427
      %p438 = scmp.eq.s32.totalorder %s40, 0
      %p439 = por %p437, %p438
      %p440 = scmp.ne.s32.totalorder %s426, %s427
      %p441 = scmp.eq.s32.totalorder %s41, 1
      %p442 = por %p440, %p441
      %p444 = scmp.ne.s32.totalorder %s427, %s443
      %p445 = scmp.eq.s32.totalorder %s41, 0
      %p446 = por %p444, %p445
      %s447 = ssub.s32 %s42, %s54
      %s448 = ssub.s32 %s43, %s50
      %s449 = sor.u32 %s447, %s448
      %p450 = scmp.eq.s32.totalorder %s449, 0
      %s452 = sadd.s32 %s451, 1
      %s453 = scalar_select %p450, %s451, %s452
      %p456 = pneg %p450
      %p457 = scmp.eq.s32.totalorder %s35, 1
      %p458 = por %p456, %p457
      %p459 = scmp.ne.s32.totalorder %s451, %s454
      %p460 = scmp.eq.s32.totalorder %s35, 0
      %p461 = por %p459, %p460
      %p462 = scmp.ne.s32.totalorder %s451, %s454
      %p463 = scmp.eq.s32.totalorder %s40, 1
      %p464 = por %p462, %p463
      %p465 = scmp.ne.s32.totalorder %s454, %s455
      %p466 = scmp.eq.s32.totalorder %s40, 0
      %p467 = por %p465, %p466
      %p468 = scmp.ne.s32.totalorder %s454, %s455
      %p469 = scmp.eq.s32.totalorder %s41, 1
      %p470 = por %p468, %p469
      %p472 = scmp.ne.s32.totalorder %s455, %s471
      %p473 = scmp.eq.s32.totalorder %s41, 0
      %p474 = por %p472, %p473
      %s475 = ssub.s32 %s42, %s54
      %s476 = ssub.s32 %s43, %s50
      %s477 = sor.u32 %s475, %s476
      %p478 = scmp.eq.s32.totalorder %s477, 0
      %s480 = sadd.s32 %s479, 1
      %s481 = scalar_select %p478, %s479, %s480
      %p484 = pneg %p478
      %p485 = scmp.eq.s32.totalorder %s35, 1
      %p486 = por %p484, %p485
      %p487 = scmp.ne.s32.totalorder %s479, %s482
      %p488 = scmp.eq.s32.totalorder %s35, 0
      %p489 = por %p487, %p488
      %p490 = scmp.ne.s32.totalorder %s479, %s482
      %p491 = scmp.eq.s32.totalorder %s40, 1
      %p492 = por %p490, %p491
      %p493 = scmp.ne.s32.totalorder %s482, %s483
      %p494 = scmp.eq.s32.totalorder %s40, 0
      %p495 = por %p493, %p494
      %p496 = scmp.ne.s32.totalorder %s482, %s483
      %p497 = scmp.eq.s32.totalorder %s41, 1
      %p498 = por %p496, %p497
      %p500 = scmp.ne.s32.totalorder %s483, %s499
      %p501 = scmp.eq.s32.totalorder %s41, 0
      %p502 = por %p500, %p501
      %s503 = ssub.s32 %s42, %s54
      %s504 = ssub.s32 %s43, %s50
      %s505 = sor.u32 %s503, %s504
      %p506 = scmp.eq.s32.totalorder %s505, 0
      %s508 = sadd.s32 %s507, 1
      %s509 = scalar_select %p506, %s507, %s508
      %p512 = pneg %p506
      %p513 = scmp.eq.s32.totalorder %s35, 1
      %p514 = por %p512, %p513
      %p515 = scmp.ne.s32.totalorder %s507, %s510
      %p516 = scmp.eq.s32.totalorder %s35, 0
      %p517 = por %p515, %p516
      %p518 = scmp.ne.s32.totalorder %s507, %s510
      %p519 = scmp.eq.s32.totalorder %s40, 1
      %p520 = por %p518, %p519
      %p521 = scmp.ne.s32.totalorder %s510, %s511
      %p522 = scmp.eq.s32.totalorder %s40, 0
      %p523 = por %p521, %p522
      %p524 = scmp.ne.s32.totalorder %s510, %s511
      %p525 = scmp.eq.s32.totalorder %s41, 1
      %p526 = por %p524, %p525
      %p528 = scmp.ne.s32.totalorder %s511, %s527
      %p529 = scmp.eq.s32.totalorder %s41, 0
      %p530 = por %p528, %p529
      %p531 = scmp.le.s32.totalorder 1, %s35
      %p532 = scmp.lt.s32.totalorder %s35, 3
      %p533 = pnand %p531, %p532
      %p534 = pneg %p533
      // Predicated region
      $region9: #{pixel_level_module_forward.9} parent=5 // pred_check
        _
      $region10: #{pixel_level_module_forward.9} parent=5 // pred_check_branch
        %536 = sbr.rel (%p533) target = $region12
      $region11: #{pixel_level_module_forward.9} parent=5 // pred_region
        %s537 = ssub.s32 %s35, 1
        // Predicated region
        $region13: #{pixel_level_module_forward.9} parent=11 // pred_check
          %p538 = pneg %p180
        $region14: #{pixel_level_module_forward.9} parent=11 // pred_check_branch
          %540 = sbr.rel (%p538) target = $region16
        $region15: #{pixel_level_module_forward.9} parent=11 // pred_region
          _
        $region16: #{pixel_level_module_forward.9} parent=11 // pred_fallthru
          _
        // Predicated region
        $region17: #{pixel_level_module_forward.9} parent=11 // pred_check
          %p541 = pneg %p201
        $region18: #{pixel_level_module_forward.9} parent=11 // pred_check_branch
          %543 = sbr.rel (%p541) target = $region20
        $region19: #{pixel_level_module_forward.9} parent=11 // pred_region
          _
        $region20: #{pixel_level_module_forward.9} parent=11 // pred_fallthru
          _
        // Predicated region
        $region21: #{pixel_level_module_forward.9} parent=11 // pred_check
          %p544 = pneg %p222
        $region22: #{pixel_level_module_forward.9} parent=11 // pred_check_branch
          %546 = sbr.rel (%p544) target = $region24
        $region23: #{pixel_level_module_forward.9} parent=11 // pred_region
          _
        $region24: #{pixel_level_module_forward.9} parent=11 // pred_fallthru
          _
        // Predicated region
        $region25: #{pixel_level_module_forward.9} parent=11 // pred_check
          %p547 = pneg %p243
        $region26: #{pixel_level_module_forward.9} parent=11 // pred_check_branch
          %549 = sbr.rel (%p547) target = $region28
        $region27: #{pixel_level_module_forward.9} parent=11 // pred_region
          _
        $region28: #{pixel_level_module_forward.9} parent=11 // pred_fallthru
          _
        // Predicated region
        $region29: #{pixel_level_module_forward.9} parent=11 // pred_check
          %p550 = pneg %p264
        $region30: #{pixel_level_module_forward.9} parent=11 // pred_check_branch
          %552 = sbr.rel (%p550) target = $region32
        $region31: #{pixel_level_module_forward.9} parent=11 // pred_region
          _
        $region32: #{pixel_level_module_forward.9} parent=11 // pred_fallthru
          _
        // Predicated region
        $region33: #{pixel_level_module_forward.9} parent=11 // pred_check
          %p553 = pneg %p285
        $region34: #{pixel_level_module_forward.9} parent=11 // pred_check_branch
          %555 = sbr.rel (%p553) target = $region36
        $region35: #{pixel_level_module_forward.9} parent=11 // pred_region
          _
        $region36: #{pixel_level_module_forward.9} parent=11 // pred_fallthru
          _
        // Predicated region
        $region37: #{pixel_level_module_forward.9} parent=11 // pred_check
          %p556 = pneg %p306
        $region38: #{pixel_level_module_forward.9} parent=11 // pred_check_branch
          %558 = sbr.rel (%p556) target = $region40
        $region39: #{pixel_level_module_forward.9} parent=11 // pred_region
          _
        $region40: #{pixel_level_module_forward.9} parent=11 // pred_fallthru
          _
        // Predicated region
        $region41: #{pixel_level_module_forward.9} parent=11 // pred_check
          %p559 = pneg %p327
        $region42: #{pixel_level_module_forward.9} parent=11 // pred_check_branch
          %561 = sbr.rel (%p559) target = $region44
        $region43: #{pixel_level_module_forward.9} parent=11 // pred_region
          _
        $region44: #{pixel_level_module_forward.9} parent=11 // pred_fallthru
          _
        // Predicated region
        $region45: #{pixel_level_module_forward.9} parent=11 // pred_check
          %p562 = pneg %p348
        $region46: #{pixel_level_module_forward.9} parent=11 // pred_check_branch
          %564 = sbr.rel (%p562) target = $region48
        $region47: #{pixel_level_module_forward.9} parent=11 // pred_region
          _
        $region48: #{pixel_level_module_forward.9} parent=11 // pred_fallthru
          _
        // Predicated region
        $region49: #{pixel_level_module_forward.9} parent=11 // pred_check
          %p565 = pneg %p369
        $region50: #{pixel_level_module_forward.9} parent=11 // pred_check_branch
          %567 = sbr.rel (%p565) target = $region52
        $region51: #{pixel_level_module_forward.9} parent=11 // pred_region
          _
        $region52: #{pixel_level_module_forward.9} parent=11 // pred_fallthru
          _
        // Predicated region
        $region53: #{pixel_level_module_forward.9} parent=11 // pred_check
          %p568 = pneg %p390
        $region54: #{pixel_level_module_forward.9} parent=11 // pred_check_branch
          %570 = sbr.rel (%p568) target = $region56
        $region55: #{pixel_level_module_forward.9} parent=11 // pred_region
          _
        $region56: #{pixel_level_module_forward.9} parent=11 // pred_fallthru
          _
        // Predicated region
        $region57: #{pixel_level_module_forward.9} parent=11 // pred_check
          %p571 = pneg %p411
        $region58: #{pixel_level_module_forward.9} parent=11 // pred_check_branch
          %573 = sbr.rel (%p571) target = $region60
        $region59: #{pixel_level_module_forward.9} parent=11 // pred_region
          _
        $region60: #{pixel_level_module_forward.9} parent=11 // pred_fallthru
          _
      $region12: #{pixel_level_module_forward.9} parent=5 // pred_fallthru
        _
      %p574 = scmp.lt.s32.totalorder %s35, 2
      // Predicated region
      $region61: #{pixel_level_module_forward.9} parent=5 // pred_check
        %p575 = pneg %p574
      $region62: #{pixel_level_module_forward.9} parent=5 // pred_check_branch
        %577 = sbr.rel (%p575) target = $region64
      $region63: #{pixel_level_module_forward.9} parent=5 // pred_region
        // Predicated region
        $region65: #{pixel_level_module_forward.9} parent=63 // pred_check
          %p578 = pneg %p69
        $region66: #{pixel_level_module_forward.9} parent=63 // pred_check_branch
          %580 = sbr.rel (%p578) target = $region68
        $region67: #{pixel_level_module_forward.9} parent=63 // pred_region
          %s581 = smul.u32 2, %s43
          %p582 = scmp.lt.s32.totalorder %s42, 1
          %s583 = scalar_select %p582, %s42, 1
          %p584 = scmp.lt.s32.totalorder %s581, 1
          %s585 = scalar_select %p584, %s581, 1
          %s586 = smul.addr %s583, 2
          %s587 = sadd.s32 %s585, %s586
          %s588 = scalar_lea.vmem %s0, %s587
          %s589 = smul.u32 2, %s43
        $region68: #{pixel_level_module_forward.9} parent=63 // pred_fallthru
          _
        // Predicated region
        $region69: #{pixel_level_module_forward.9} parent=63 // pred_check
          %p590 = pneg %p97
        $region70: #{pixel_level_module_forward.9} parent=63 // pred_check_branch
          %592 = sbr.rel (%p590) target = $region72
        $region71: #{pixel_level_module_forward.9} parent=63 // pred_region
          %s593 = smul.u32 4, %s43
          %p594 = scmp.lt.s32.totalorder %s42, 1
          %s595 = scalar_select %p594, %s42, 1
          %p596 = scmp.lt.s32.totalorder %s593, 3
          %s597 = scalar_select %p596, %s593, 3
          %s598 = smul.addr %s595, 4
          %s599 = sadd.s32 %s597, %s598
          %s600 = smul.addr %s599, 2
          %s601 = scalar_lea.vmem %s1, %s600
          %s602 = smul.u32 4, %s43
        $region72: #{pixel_level_module_forward.9} parent=63 // pred_fallthru
          _
        // Predicated region
        $region73: #{pixel_level_module_forward.9} parent=63 // pred_check
          %p603 = pneg %p125
        $region74: #{pixel_level_module_forward.9} parent=63 // pred_check_branch
          %605 = sbr.rel (%p603) target = $region76
        $region75: #{pixel_level_module_forward.9} parent=63 // pred_region
          %s606 = smul.u32 8, %s43
          %p607 = scmp.lt.s32.totalorder %s42, 1
          %s608 = scalar_select %p607, %s42, 1
          %p609 = scmp.lt.s32.totalorder %s606, 7
          %s610 = scalar_select %p609, %s606, 7
          %s611 = smul.addr %s608, 8
          %s612 = sadd.s32 %s610, %s611
          %s613 = smul.addr %s612, 4
          %s614 = scalar_lea.vmem %s2, %s613
          %s615 = smul.u32 8, %s43
        $region76: #{pixel_level_module_forward.9} parent=63 // pred_fallthru
          _
        // Predicated region
        $region77: #{pixel_level_module_forward.9} parent=63 // pred_check
          %p616 = pneg %p153
        $region78: #{pixel_level_module_forward.9} parent=63 // pred_check_branch
          %618 = sbr.rel (%p616) target = $region80
        $region79: #{pixel_level_module_forward.9} parent=63 // pred_region
          %s619 = smul.u32 16, %s43
          %p620 = scmp.lt.s32.totalorder %s42, 1
          %s621 = scalar_select %p620, %s42, 1
          %p622 = scmp.lt.s32.totalorder %s619, 15
          %s623 = scalar_select %p622, %s619, 15
          %s624 = smul.addr %s623, 2
          %s625 = smul.addr %s621, 32
          %s626 = sadd.s32 %s624, %s625
          %s627 = smul.addr %s626, 4
          %s628 = scalar_lea.vmem %s3, %s627
          %s629 = smul.u32 16, %s43
        $region80: #{pixel_level_module_forward.9} parent=63 // pred_fallthru
          _
      $region64: #{pixel_level_module_forward.9} parent=5 // pred_fallthru
        _
      %p630 = scmp.le.s32.totalorder 1, %s35
      %p631 = scmp.lt.s32.totalorder %s35, 3
      %p632 = pnand %p630, %p631
      %p633 = pneg %p632
      // Predicated region
      $region81: #{pixel_level_module_forward.9} parent=5 // pred_check
        _
      $region82: #{pixel_level_module_forward.9} parent=5 // pred_check_branch
        %635 = sbr.rel (%p632) target = $region84
      $region83: #{pixel_level_module_forward.9} parent=5 // pred_region
        %s636 = ssub.s32 %s35, 1
        %s637 = smul.u32 2, %s45
        %p638 = scmp.lt.s32.totalorder %s44, 1
        %s639 = scalar_select %p638, %s44, 1
        %p640 = scmp.lt.s32.totalorder %s637, 1
        %s641 = scalar_select %p640, %s637, 1
        %s642 = smul.addr %s639, 2
        %s643 = sadd.s32 %s641, %s642
        %s644 = scalar_lea.vmem %s0, %s643
        %p645 = pneg %p75
        %p646 = pneg %p72
        %s647 = smul.u32 4, %s45
        %p648 = scmp.lt.s32.totalorder %s44, 1
        %s649 = scalar_select %p648, %s44, 1
        %p650 = scmp.lt.s32.totalorder %s647, 3
        %s651 = scalar_select %p650, %s647, 3
        %s652 = smul.addr %s649, 4
        %s653 = sadd.s32 %s651, %s652
        %s654 = smul.addr %s653, 2
        %s655 = scalar_lea.vmem %s1, %s654
        %p656 = pneg %p103
        %p657 = pneg %p100
        %s658 = smul.u32 8, %s45
        %p659 = scmp.lt.s32.totalorder %s44, 1
        %s660 = scalar_select %p659, %s44, 1
        %p661 = scmp.lt.s32.totalorder %s658, 7
        %s662 = scalar_select %p661, %s658, 7
        %s663 = smul.addr %s660, 8
        %s664 = sadd.s32 %s662, %s663
        %s665 = smul.addr %s664, 4
        %s666 = scalar_lea.vmem %s2, %s665
        %p667 = pneg %p131
        %p668 = pneg %p128
        %s669 = smul.u32 16, %s45
        %p670 = scmp.lt.s32.totalorder %s44, 1
        %s671 = scalar_select %p670, %s44, 1
        %p672 = scmp.lt.s32.totalorder %s669, 15
        %s673 = scalar_select %p672, %s669, 15
        %s674 = smul.addr %s673, 2
        %s675 = smul.addr %s671, 32
        %s676 = sadd.s32 %s674, %s675
        %s677 = smul.addr %s676, 4
        %s678 = scalar_lea.vmem %s3, %s677
        %p679 = pneg %p159
        %p680 = pneg %p156
        %p681 = pneg %p180
        %p682 = pneg %p177
        %p683 = pneg %p201
        %p684 = pneg %p198
        %p685 = pneg %p222
        %p686 = pneg %p219
        %p687 = pneg %p243
        %p688 = pneg %p240
        %p689 = pneg %p264
        %p690 = pneg %p261
        %p691 = pneg %p285
        %p692 = pneg %p282
        %p693 = pneg %p306
        %p694 = pneg %p303
        %p695 = pneg %p327
        %p696 = pneg %p324
        %p697 = pneg %p348
        %p698 = pneg %p345
        %p699 = pneg %p369
        %p700 = pneg %p366
        %p701 = pneg %p390
        %p702 = pneg %p387
        %p703 = pneg %p411
        %p704 = pneg %p408
        %p705 = pneg %p439
        %p706 = pneg %p436
        %s707 = sand.u32 %s426, 1
        %s708 = scalar_lea.sflag [#allocation3], %s707
        %s709 = sand.u32 %s426, 1
        %s710 = smul.addr %s709, 4
        %s711 = scalar_lea.vmem [#allocation2], %s710
        %p712 = pneg %p467
        %p713 = pneg %p464
        %s714 = sand.u32 %s40, 1
        %s715 = scalar_lea.sflag [#allocation5], %s714
        %s716 = sand.u32 %s454, 1
        %s717 = smul.addr %s716, 16
        %s718 = scalar_lea.vmem [#allocation4], %s717
        %p719 = pneg %p495
        %p720 = pneg %p492
        %s721 = sand.u32 %s40, 1
        %s722 = scalar_lea.sflag [#allocation5], %s721
        %s723 = sand.u32 %s482, 1
        %s724 = smul.addr %s723, 64
        %s725 = scalar_lea.vmem [#allocation6], %s724
        %p726 = pneg %p523
        %p727 = pneg %p520
        %s728 = sand.u32 %s510, 1
        %s729 = scalar_lea.sflag [#allocation8], %s728
        %s730 = sand.u32 %s510, 1
        %s731 = smul.addr %s730, 256
        %s732 = scalar_lea.vmem [#allocation7], %s731
        %s733 = smul.u32 2, %s45
        %p734 = scmp.lt.s32.totalorder %s44, 1
        %s735 = scalar_select %p734, %s44, 1
        %p736 = scmp.lt.s32.totalorder %s733, 1
        %s737 = scalar_select %p736, %s733, 1
        %s738 = smul.addr %s735, 2
        %s739 = sadd.s32 %s737, %s738
        %s740 = scalar_lea.vmem %s0, %s739
        %s741 = smul.u32 2, %s45
        %s742 = smul.u32 4, %s45
        %p743 = scmp.lt.s32.totalorder %s44, 1
        %s744 = scalar_select %p743, %s44, 1
        %p745 = scmp.lt.s32.totalorder %s742, 3
        %s746 = scalar_select %p745, %s742, 3
        %s747 = smul.addr %s744, 4
        %s748 = sadd.s32 %s746, %s747
        %s749 = smul.addr %s748, 2
        %s750 = scalar_lea.vmem %s1, %s749
        %s751 = smul.u32 4, %s45
        %s752 = smul.u32 8, %s45
        %p753 = scmp.lt.s32.totalorder %s44, 1
        %s754 = scalar_select %p753, %s44, 1
        %p755 = scmp.lt.s32.totalorder %s752, 7
        %s756 = scalar_select %p755, %s752, 7
        %s757 = smul.addr %s754, 8
        %s758 = sadd.s32 %s756, %s757
        %s759 = smul.addr %s758, 4
        %s760 = scalar_lea.vmem %s2, %s759
        %s761 = smul.u32 8, %s45
        %s762 = smul.u32 16, %s45
        %p763 = scmp.lt.s32.totalorder %s44, 1
        %s764 = scalar_select %p763, %s44, 1
        %p765 = scmp.lt.s32.totalorder %s762, 15
        %s766 = scalar_select %p765, %s762, 15
        %s767 = smul.addr %s766, 2
        %s768 = smul.addr %s764, 32
        %s769 = sadd.s32 %s767, %s768
        %s770 = smul.addr %s769, 4
        %s771 = scalar_lea.vmem %s3, %s770
        %s772 = smul.u32 16, %s45
        %s773 = smul.u32 2, %s45
        %s774 = smul.u32 4, %s45
        %s775 = smul.u32 8, %s45
        %s776 = smul.u32 16, %s45
        %v778 = vld [vmem:[%s740] sm:$0x1]
        %v779 = vld [vmem:[%s740 + $0x1] sm:$0x1]
        %v780 = vld [vmem:[%s4] sm:$0xf]
        %v781 = vld [vmem:[%s4 + $0x4] sm:$0xf]
        %v782 = vld [vmem:[%s4 + $0x8] sm:$0xf]
        %v783 = vld [vmem:[%s4 + $0xc] sm:$0xf]
        %v784 = vld [vmem:[%s4 + $0x10] sm:$0xf]
        %v785 = vld [vmem:[%s4 + $0x14] sm:$0xf]
        %v786 = vld [vmem:[%s4 + $0x18] sm:$0xf]
        %v787 = vld [vmem:[%s4 + $0x1c] sm:$0xf]
        %v788 = vld [vmem:[%s5] sm:$0x1]
        %v790 = vlaneseq
        %v791 = vshrl.u32 %v790, 7
        %v792 = vsub.s32 0, %v791
        %v793 = vrot.slane %v788, %v792
        %v797 = vcombine.low %v778, %v779
        %v799 = vunpack.c.l.s4 1966171168
        %v800 = vunpack.c.0.s8 %v799
        %v801 = vlaneseq
        %v802 = vshrl.u32 %v801, 7
        %v803 = vsub.s32 %v800, %v802
        %v804 = vrot.slane %v797, %v803
        %v806 = vunpack.c.l.s4 1966171168
        %v807 = vunpack.c.0.s8 %v806
        %v808 = vlaneseq
        %v809 = vshrl.u32 %v808, 7
        %v810 = vsub.s32 %v807, %v809
        %v811 = vrot.slane %v804, %v810
        %v820 = vunpack.c.l.b16 %v780
        %v821 = vunpack.c.l.b16 %v781
        %v822 = vunpack.c.l.b16 %v782
        %v823 = vunpack.c.l.b16 %v783
        %v824 = vunpack.c.l.b16 %v784
        %v825 = vunpack.c.l.b16 %v785
        %v826 = vunpack.c.l.b16 %v786
        %v827 = vunpack.c.l.b16 %v787
        %v828 = vpack.c.b16 %v821, %v820
        %v829 = vpack.c.b16 %v823, %v822
        %v830 = vpack.c.b16 %v825, %v824
        %v831 = vpack.c.b16 %v827, %v826
        %vm836 = vcmask 523264
        %v838 = vsel %vm836, %v811, 0
        %840 = vmatprep.subr.bf16.mxu0 0
        %841 = vmatpush1.bf16.msra.mxu0 %v828
        %842 = vmatprep.subr.bf16.mxu0 0
        %843 = vmatpush1.bf16.msra.mxu0 %v829
        %844 = vmatprep.subr.bf16.mxu0 0
        %845 = vmatpush1.bf16.msra.mxu0 %v830
        %846 = vmatprep.subr.bf16.mxu0 0
        %847 = vmatpush1.bf16.msra.mxu0 %v831
        %848 = vmatprep.subr.bf16.mxu0 0
        %849 = vmatpush1.bf16.msra.mxu0 0
        %850 = vmatprep.subr.bf16.mxu0 0
        %851 = vmatpush1.bf16.msra.mxu0 0
        %852 = vmatprep.subr.bf16.mxu0 0
        %853 = vmatpush1.bf16.msra.mxu0 0
        %854 = vmatprep.subr.bf16.mxu0 0
        %855 = vmatpush1.bf16.msra.mxu0 0
        %856 = vmatprep.subr.bf16.mxu0 0
        %857 = vmatpush1.bf16.msra.mxu0 0
        %858 = vmatprep.subr.bf16.mxu0 0
        %859 = vmatpush1.bf16.msra.mxu0 0
        %860 = vmatprep.subr.bf16.mxu0 0
        %861 = vmatpush1.bf16.msra.mxu0 0
        %862 = vmatprep.subr.bf16.mxu0 0
        %863 = vmatpush1.bf16.msra.mxu0 0
        %864 = vmatprep.subr.bf16.mxu0 0
        %865 = vmatpush1.bf16.msra.mxu0 0
        %866 = vmatprep.subr.bf16.mxu0 0
        %867 = vmatpush1.bf16.msra.mxu0 0
        %868 = vmatprep.subr.bf16.mxu0 0
        %869 = vmatpush1.bf16.msra.mxu0 0
        %870 = vmatprep.subr.bf16.mxu0 0
        %871 = vmatpush1.bf16.msra.mxu0 0
        %872 = vmatprep.mubr.bf16.mxu0 0
        %873 = vmatmul.mubr.bf16.gmra.mrb[0].mxu0 %v838
        %v874 = vpop.f32.mrb[0].mxu0
        %v875 = vadd.f32 %v793, %v874
        %v876 = vpop.f32.mrb[0].mxu0
        %v877 = vpop.f32.mrb[0].mxu0
        %v878 = vpop.f32.mrb[0].mxu0
        %879 = vdwg.mxu0
        %v882 = vunpack.c.l.s4 1983009808
        %v883 = vunpack.c.0.s8 %v882
        %v884 = vlaneseq
        %v885 = vshrl.u32 %v884, 7
        %v886 = vsub.s32 %v883, %v885
        %v887 = vrot.slane %v875, %v886
        %v888 = vcombine.high %v887, %v887
        %vm891 = vcmask 254976
        %892 = vst.msk [vmem:[%s711] sm:$0x3] %vm891, %v887
        %893 = vst.msk [vmem:[%s711 + $0x2] sm:$0x3] %vm891, %v888
        %v894 = vld [vmem:[%s750] sm:$0x3]
        %v895 = vld [vmem:[%s750 + $0x2] sm:$0x3]
        %v896 = vld [vmem:[%s750 + $0x4] sm:$0x3]
        %v897 = vld [vmem:[%s750 + $0x6] sm:$0x3]
        %v898 = vld [vmem:[%s6] sm:$0xf]
        %v899 = vld [vmem:[%s6 + $0x4] sm:$0xf]
        %v900 = vld [vmem:[%s6 + $0x8] sm:$0xf]
        %v901 = vld [vmem:[%s6 + $0xc] sm:$0xf]
        %v902 = vld [vmem:[%s7] sm:$0x1]
        %v904 = vlaneseq
        %v905 = vshrl.u32 %v904, 7
        %v906 = vsub.s32 0, %v905
        %v907 = vrot.slane %v902, %v906
        %v913 = vcombine.low %v894, %v895
        %v914 = vcombine.low %v896, %v897
        %v916 = vunpack.c.l.s4 1983009808
        %v917 = vunpack.c.0.s8 %v916
        %v918 = vlaneseq
        %v919 = vshrl.u32 %v918, 7
        %v920 = vsub.s32 %v917, %v919
        %v921 = vrot.slane %v913, %v920
        %v923 = vunpack.c.l.s4 1983009808
        %v924 = vunpack.c.0.s8 %v923
        %v925 = vlaneseq
        %v926 = vshrl.u32 %v925, 7
        %v927 = vsub.s32 %v924, %v926
        %v928 = vrot.slane %v914, %v927
        %v929 = vcombine.low %v921, %v928
        %v934 = vunpack.c.l.b16 %v898
        %v935 = vunpack.c.l.b16 %v899
        %v936 = vunpack.c.l.b16 %v900
        %v937 = vunpack.c.l.b16 %v901
        %v938 = vpack.c.b16 %v935, %v934
        %v939 = vpack.c.b16 %v937, %v936
        %vm942 = vcmask 261120
        %v944 = vsel %vm942, %v929, 0
        %946 = vmatprep.subr.bf16.mxu0 0
        %947 = vmatpush1.bf16.msra.mxu0 %v938
        %948 = vmatprep.subr.bf16.mxu0 0
        %949 = vmatpush1.bf16.msra.mxu0 %v939
        %950 = vmatprep.subr.bf16.mxu0 0
        %951 = vmatpush1.bf16.msra.mxu0 0
        %952 = vmatprep.subr.bf16.mxu0 0
        %953 = vmatpush1.bf16.msra.mxu0 0
        %954 = vmatprep.subr.bf16.mxu0 0
        %955 = vmatpush1.bf16.msra.mxu0 0
        %956 = vmatprep.subr.bf16.mxu0 0
        %957 = vmatpush1.bf16.msra.mxu0 0
        %958 = vmatprep.subr.bf16.mxu0 0
        %959 = vmatpush1.bf16.msra.mxu0 0
        %960 = vmatprep.subr.bf16.mxu0 0
        %961 = vmatpush1.bf16.msra.mxu0 0
        %962 = vmatprep.subr.bf16.mxu0 0
        %963 = vmatpush1.bf16.msra.mxu0 0
        %964 = vmatprep.subr.bf16.mxu0 0
        %965 = vmatpush1.bf16.msra.mxu0 0
        %966 = vmatprep.subr.bf16.mxu0 0
        %967 = vmatpush1.bf16.msra.mxu0 0
        %968 = vmatprep.subr.bf16.mxu0 0
        %969 = vmatpush1.bf16.msra.mxu0 0
        %970 = vmatprep.subr.bf16.mxu0 0
        %971 = vmatpush1.bf16.msra.mxu0 0
        %972 = vmatprep.subr.bf16.mxu0 0
        %973 = vmatpush1.bf16.msra.mxu0 0
        %974 = vmatprep.subr.bf16.mxu0 0
        %975 = vmatpush1.bf16.msra.mxu0 0
        %976 = vmatprep.subr.bf16.mxu0 0
        %977 = vmatpush1.bf16.msra.mxu0 0
        %978 = vmatprep.mubr.bf16.mxu0 0
        %979 = vmatmul.mubr.bf16.gmra.mrb[0].mxu0 %v944
        %v980 = vpop.f32.mrb[0].mxu0
        %v981 = vadd.f32 %v907, %v980
        %v982 = vpop.f32.mrb[0].mxu0
        %v983 = vpop.f32.mrb[0].mxu0
        %v984 = vadd.f32 %v907, %v983
        %v985 = vpop.f32.mrb[0].mxu0
        %986 = vdwg.mxu0
        %v989 = vcombine.high %v981, %v981
        %v990 = vcombine.high %v984, %v984
        %v992 = vunpack.c.l.s4 1966171168
        %v993 = vunpack.c.0.s8 %v992
        %v994 = vlaneseq
        %v995 = vshrl.u32 %v994, 7
        %v996 = vsub.s32 %v993, %v995
        %v997 = vrot.slane %v887, %v996
        %v998 = vcombine.high %v997, %v997
        %v1000 = vunpack.c.l.s4 1966171168
        %v1001 = vunpack.c.0.s8 %v1000
        %v1002 = vlaneseq
        %v1003 = vshrl.u32 %v1002, 7
        %v1004 = vsub.s32 %v1001, %v1003
        %v1005 = vrot.slane %v888, %v1004
        %v1006 = vcombine.high %v1005, %v1005
        %v1007 = vlaneseq
        %v1008 = vshrl.u32 %v1007, 7
        %v1009 = vsub.s32 0, %v1008
        %v1010 = vrot.slane %v997, %v1009
        %v1011 = vlaneseq
        %v1012 = vshrl.u32 %v1011, 7
        %v1013 = vsub.s32 0, %v1012
        %v1014 = vrot.slane %v998, %v1013
        %v1015 = vlaneseq
        %v1016 = vshrl.u32 %v1015, 7
        %v1017 = vsub.s32 0, %v1016
        %v1018 = vrot.slane %v1005, %v1017
        %v1019 = vlaneseq
        %v1020 = vshrl.u32 %v1019, 7
        %v1021 = vsub.s32 0, %v1020
        %v1022 = vrot.slane %v1006, %v1021
        %v1028 = vunpack.c.l.s4 1983009808
        %v1029 = vunpack.c.0.s8 %v1028
        %v1030 = vlaneseq
        %v1031 = vshrl.u32 %v1030, 7
        %v1032 = vsub.s32 %v1029, %v1031
        %v1033 = vrot.slane %v981, %v1032
        %v1034 = vcombine.high %v1033, %v1033
        %v1036 = vunpack.c.l.s4 1983009808
        %v1037 = vunpack.c.0.s8 %v1036
        %v1038 = vlaneseq
        %v1039 = vshrl.u32 %v1038, 7
        %v1040 = vsub.s32 %v1037, %v1039
        %v1041 = vrot.slane %v989, %v1040
        %v1042 = vcombine.high %v1041, %v1041
        %v1044 = vunpack.c.l.s4 1983009808
        %v1045 = vunpack.c.0.s8 %v1044
        %v1046 = vlaneseq
        %v1047 = vshrl.u32 %v1046, 7
        %v1048 = vsub.s32 %v1045, %v1047
        %v1049 = vrot.slane %v984, %v1048
        %v1050 = vcombine.high %v1049, %v1049
        %v1052 = vunpack.c.l.s4 1983009808
        %v1053 = vunpack.c.0.s8 %v1052
        %v1054 = vlaneseq
        %v1055 = vshrl.u32 %v1054, 7
        %v1056 = vsub.s32 %v1053, %v1055
        %v1057 = vrot.slane %v990, %v1056
        %v1058 = vcombine.high %v1057, %v1057
        %v1067 = vadd.f32 %v1010, %v1033
        %v1068 = vadd.f32 %v1014, %v1034
        %v1069 = vadd.f32 %v1010, %v1041
        %v1070 = vadd.f32 %v1014, %v1042
        %v1071 = vadd.f32 %v1018, %v1049
        %v1072 = vadd.f32 %v1022, %v1050
        %v1073 = vadd.f32 %v1018, %v1057
        %v1074 = vadd.f32 %v1022, %v1058
        %v1083 = vcombine.low %v1067, %v1068
        %v1085 = vunpack.c.l.s4 1983009808
        %v1086 = vunpack.c.0.s8 %v1085
        %v1087 = vlaneseq
        %v1088 = vshrl.u32 %v1087, 7
        %v1089 = vsub.s32 %v1086, %v1088
        %v1090 = vrot.slane %v1083, %v1089
        %v1091 = vcombine.low %v1069, %v1070
        %v1093 = vunpack.c.l.s4 1983009808
        %v1094 = vunpack.c.0.s8 %v1093
        %v1095 = vlaneseq
        %v1096 = vshrl.u32 %v1095, 7
        %v1097 = vsub.s32 %v1094, %v1096
        %v1098 = vrot.slane %v1091, %v1097
        %v1099 = vcombine.low %v1071, %v1072
        %v1101 = vunpack.c.l.s4 1983009808
        %v1102 = vunpack.c.0.s8 %v1101
        %v1103 = vlaneseq
        %v1104 = vshrl.u32 %v1103, 7
        %v1105 = vsub.s32 %v1102, %v1104
        %v1106 = vrot.slane %v1099, %v1105
        %v1107 = vcombine.low %v1073, %v1074
        %v1109 = vunpack.c.l.s4 1983009808
        %v1110 = vunpack.c.0.s8 %v1109
        %v1111 = vlaneseq
        %v1112 = vshrl.u32 %v1111, 7
        %v1113 = vsub.s32 %v1110, %v1112
        %v1114 = vrot.slane %v1107, %v1113
        %vm1119 = vcmask 257024
        %1120 = vst.msk [vmem:[%s718] sm:$0xf] %vm1119, %v1090
        %1121 = vst.msk [vmem:[%s718 + $0x4] sm:$0xf] %vm1119, %v1098
        %1122 = vst.msk [vmem:[%s718 + $0x8] sm:$0xf] %vm1119, %v1106
        %1123 = vst.msk [vmem:[%s718 + $0xc] sm:$0xf] %vm1119, %v1114
        %v1124 = vld [vmem:[%s760] sm:$0xf]
        %v1125 = vld [vmem:[%s760 + $0x4] sm:$0xf]
        %v1126 = vld [vmem:[%s760 + $0x8] sm:$0xf]
        %v1127 = vld [vmem:[%s760 + $0xc] sm:$0xf]
        %v1128 = vld [vmem:[%s760 + $0x10] sm:$0xf]
        %v1129 = vld [vmem:[%s760 + $0x14] sm:$0xf]
        %v1130 = vld [vmem:[%s760 + $0x18] sm:$0xf]
        %v1131 = vld [vmem:[%s760 + $0x1c] sm:$0xf]
        %v1132 = vld [vmem:[%s8] sm:$0xf]
        %v1133 = vld [vmem:[%s8 + $0x4] sm:$0xf]
        %v1134 = vld [vmem:[%s9] sm:$0x1]
        %v1136 = vlaneseq
        %v1137 = vshrl.u32 %v1136, 7
        %v1138 = vsub.s32 0, %v1137
        %v1139 = vrot.slane %v1134, %v1138
        %v1149 = vunpack.c.l.b16 %v1124
        %v1150 = vunpack.c.l.b16 %v1125
        %v1151 = vunpack.c.l.b16 %v1126
        %v1152 = vunpack.c.l.b16 %v1127
        %v1153 = vunpack.c.l.b16 %v1128
        %v1154 = vunpack.c.l.b16 %v1129
        %v1155 = vunpack.c.l.b16 %v1130
        %v1156 = vunpack.c.l.b16 %v1131
        %v1157 = vpack.c.b16 %v1150, %v1149
        %v1158 = vpack.c.b16 %v1152, %v1151
        %v1159 = vpack.c.b16 %v1154, %v1153
        %v1160 = vpack.c.b16 %v1156, %v1155
        %v1163 = vunpack.c.l.b16 %v1132
        %v1164 = vunpack.c.l.b16 %v1133
        %v1165 = vpack.c.b16 %v1164, %v1163
        %vm1167 = vcmask 130048
        %v1169 = vsel %vm1167, %v1157, 0
        %v1172 = vsel %vm1167, %v1158, 0
        %v1175 = vsel %vm1167, %v1159, 0
        %v1178 = vsel %vm1167, %v1160, 0
        %1180 = vmatprep.subr.bf16.mxu0 0
        %1181 = vmatpush1.bf16.msra.mxu0 %v1165
        %1182 = vmatprep.subr.bf16.mxu0 0
        %1183 = vmatpush1.bf16.msra.mxu0 0
        %1184 = vmatprep.subr.bf16.mxu0 0
        %1185 = vmatpush1.bf16.msra.mxu0 0
        %1186 = vmatprep.subr.bf16.mxu0 0
        %1187 = vmatpush1.bf16.msra.mxu0 0
        %1188 = vmatprep.subr.bf16.mxu0 0
        %1189 = vmatpush1.bf16.msra.mxu0 0
        %1190 = vmatprep.subr.bf16.mxu0 0
        %1191 = vmatpush1.bf16.msra.mxu0 0
        %1192 = vmatprep.subr.bf16.mxu0 0
        %1193 = vmatpush1.bf16.msra.mxu0 0
        %1194 = vmatprep.subr.bf16.mxu0 0
        %1195 = vmatpush1.bf16.msra.mxu0 0
        %1196 = vmatprep.subr.bf16.mxu0 0
        %1197 = vmatpush1.bf16.msra.mxu0 0
        %1198 = vmatprep.subr.bf16.mxu0 0
        %1199 = vmatpush1.bf16.msra.mxu0 0
        %1200 = vmatprep.subr.bf16.mxu0 0
        %1201 = vmatpush1.bf16.msra.mxu0 0
        %1202 = vmatprep.subr.bf16.mxu0 0
        %1203 = vmatpush1.bf16.msra.mxu0 0
        %1204 = vmatprep.subr.bf16.mxu0 0
        %1205 = vmatpush1.bf16.msra.mxu0 0
        %1206 = vmatprep.subr.bf16.mxu0 0
        %1207 = vmatpush1.bf16.msra.mxu0 0
        %1208 = vmatprep.subr.bf16.mxu0 0
        %1209 = vmatpush1.bf16.msra.mxu0 0
        %1210 = vmatprep.subr.bf16.mxu0 0
        %1211 = vmatpush1.bf16.msra.mxu0 0
        %1212 = vmatprep.mubr.bf16.mxu0 0
        %1213 = vmatmul.mubr.bf16.gmra.mrb[0].mxu0 %v1169
        %v1214 = vpop.f32.mrb[0].mxu0
        %v1215 = vadd.f32 %v1139, %v1214
        %v1216 = vpop.f32.mrb[0].mxu0
        %v1217 = vpop.f32.mrb[0].mxu0
        %v1218 = vadd.f32 %v1139, %v1217
        %v1219 = vpop.f32.mrb[0].mxu0
        %1220 = vmatprep.mubr.bf16.mxu0 0
        %1221 = vmatmul.mubr.bf16.gmra.mrb[0].mxu0 %v1172
        %v1222 = vpop.f32.mrb[0].mxu0
        %v1223 = vadd.f32 %v1139, %v1222
        %v1224 = vpop.f32.mrb[0].mxu0
        %v1225 = vpop.f32.mrb[0].mxu0
        %v1226 = vadd.f32 %v1139, %v1225
        %v1227 = vpop.f32.mrb[0].mxu0
        %1228 = vmatprep.mubr.bf16.mxu0 0
        %1229 = vmatmul.mubr.bf16.gmra.mrb[0].mxu0 %v1175
        %v1230 = vpop.f32.mrb[0].mxu0
        %v1231 = vadd.f32 %v1139, %v1230
        %v1232 = vpop.f32.mrb[0].mxu0
        %v1233 = vpop.f32.mrb[0].mxu0
        %v1234 = vadd.f32 %v1139, %v1233
        %v1235 = vpop.f32.mrb[0].mxu0
        %1236 = vmatprep.mubr.bf16.mxu0 0
        %1237 = vmatmul.mubr.bf16.gmra.mrb[0].mxu0 %v1178
        %v1238 = vpop.f32.mrb[0].mxu0
        %v1239 = vadd.f32 %v1139, %v1238
        %v1240 = vpop.f32.mrb[0].mxu0
        %v1241 = vpop.f32.mrb[0].mxu0
        %v1242 = vadd.f32 %v1139, %v1241
        %v1243 = vpop.f32.mrb[0].mxu0
        %1244 = vdwg.mxu0
        %v1246 = vunpack.c.l.s4 1966171168
        %v1247 = vunpack.c.0.s8 %v1246
        %v1248 = vlaneseq
        %v1249 = vshrl.u32 %v1248, 7
        %v1250 = vsub.s32 %v1247, %v1249
        %v1251 = vrot.slane %v1067, %v1250
        %v1252 = vcombine.high %v1251, %v1251
        %v1254 = vunpack.c.l.s4 1966171168
        %v1255 = vunpack.c.0.s8 %v1254
        %v1256 = vlaneseq
        %v1257 = vshrl.u32 %v1256, 7
        %v1258 = vsub.s32 %v1255, %v1257
        %v1259 = vrot.slane %v1068, %v1258
        %v1260 = vcombine.high %v1259, %v1259
        %v1262 = vunpack.c.l.s4 1966171168
        %v1263 = vunpack.c.0.s8 %v1262
        %v1264 = vlaneseq
        %v1265 = vshrl.u32 %v1264, 7
        %v1266 = vsub.s32 %v1263, %v1265
        %v1267 = vrot.slane %v1069, %v1266
        %v1268 = vcombine.high %v1267, %v1267
        %v1270 = vunpack.c.l.s4 1966171168
        %v1271 = vunpack.c.0.s8 %v1270
        %v1272 = vlaneseq
        %v1273 = vshrl.u32 %v1272, 7
        %v1274 = vsub.s32 %v1271, %v1273
        %v1275 = vrot.slane %v1070, %v1274
        %v1276 = vcombine.high %v1275, %v1275
        %v1278 = vunpack.c.l.s4 1966171168
        %v1279 = vunpack.c.0.s8 %v1278
        %v1280 = vlaneseq
        %v1281 = vshrl.u32 %v1280, 7
        %v1282 = vsub.s32 %v1279, %v1281
        %v1283 = vrot.slane %v1071, %v1282
        %v1284 = vcombine.high %v1283, %v1283
        %v1286 = vunpack.c.l.s4 1966171168
        %v1287 = vunpack.c.0.s8 %v1286
        %v1288 = vlaneseq
        %v1289 = vshrl.u32 %v1288, 7
        %v1290 = vsub.s32 %v1287, %v1289
        %v1291 = vrot.slane %v1072, %v1290
        %v1292 = vcombine.high %v1291, %v1291
        %v1294 = vunpack.c.l.s4 1966171168
        %v1295 = vunpack.c.0.s8 %v1294
        %v1296 = vlaneseq
        %v1297 = vshrl.u32 %v1296, 7
        %v1298 = vsub.s32 %v1295, %v1297
        %v1299 = vrot.slane %v1073, %v1298
        %v1300 = vcombine.high %v1299, %v1299
        %v1302 = vunpack.c.l.s4 1966171168
        %v1303 = vunpack.c.0.s8 %v1302
        %v1304 = vlaneseq
        %v1305 = vshrl.u32 %v1304, 7
        %v1306 = vsub.s32 %v1303, %v1305
        %v1307 = vrot.slane %v1074, %v1306
        %v1308 = vcombine.high %v1307, %v1307
        %v1309 = vlaneseq
        %v1310 = vshrl.u32 %v1309, 7
        %v1311 = vsub.s32 0, %v1310
        %v1312 = vrot.slane %v1251, %v1311
        %v1313 = vlaneseq
        %v1314 = vshrl.u32 %v1313, 7
        %v1315 = vsub.s32 0, %v1314
        %v1316 = vrot.slane %v1252, %v1315
        %v1317 = vlaneseq
        %v1318 = vshrl.u32 %v1317, 7
        %v1319 = vsub.s32 0, %v1318
        %v1320 = vrot.slane %v1259, %v1319
        %v1321 = vlaneseq
        %v1322 = vshrl.u32 %v1321, 7
        %v1323 = vsub.s32 0, %v1322
        %v1324 = vrot.slane %v1260, %v1323
        %v1325 = vlaneseq
        %v1326 = vshrl.u32 %v1325, 7
        %v1327 = vsub.s32 0, %v1326
        %v1328 = vrot.slane %v1267, %v1327
        %v1329 = vlaneseq
        %v1330 = vshrl.u32 %v1329, 7
        %v1331 = vsub.s32 0, %v1330
        %v1332 = vrot.slane %v1268, %v1331
        %v1333 = vlaneseq
        %v1334 = vshrl.u32 %v1333, 7
        %v1335 = vsub.s32 0, %v1334
        %v1336 = vrot.slane %v1275, %v1335
        %v1337 = vlaneseq
        %v1338 = vshrl.u32 %v1337, 7
        %v1339 = vsub.s32 0, %v1338
        %v1340 = vrot.slane %v1276, %v1339
        %v1341 = vlaneseq
        %v1342 = vshrl.u32 %v1341, 7
        %v1343 = vsub.s32 0, %v1342
        %v1344 = vrot.slane %v1283, %v1343
        %v1345 = vlaneseq
        %v1346 = vshrl.u32 %v1345, 7
        %v1347 = vsub.s32 0, %v1346
        %v1348 = vrot.slane %v1284, %v1347
        %v1349 = vlaneseq
        %v1350 = vshrl.u32 %v1349, 7
        %v1351 = vsub.s32 0, %v1350
        %v1352 = vrot.slane %v1291, %v1351
        %v1353 = vlaneseq
        %v1354 = vshrl.u32 %v1353, 7
        %v1355 = vsub.s32 0, %v1354
        %v1356 = vrot.slane %v1292, %v1355
        %v1357 = vlaneseq
        %v1358 = vshrl.u32 %v1357, 7
        %v1359 = vsub.s32 0, %v1358
        %v1360 = vrot.slane %v1299, %v1359
        %v1361 = vlaneseq
        %v1362 = vshrl.u32 %v1361, 7
        %v1363 = vsub.s32 0, %v1362
        %v1364 = vrot.slane %v1300, %v1363
        %v1365 = vlaneseq
        %v1366 = vshrl.u32 %v1365, 7
        %v1367 = vsub.s32 0, %v1366
        %v1368 = vrot.slane %v1307, %v1367
        %v1369 = vlaneseq
        %v1370 = vshrl.u32 %v1369, 7
        %v1371 = vsub.s32 0, %v1370
        %v1372 = vrot.slane %v1308, %v1371
        %v1397 = vcombine.high %v1215, %v1215
        %v1399 = vunpack.c.l.s4 1983009808
        %v1400 = vunpack.c.0.s8 %v1399
        %v1401 = vlaneseq
        %v1402 = vshrl.u32 %v1401, 7
        %v1403 = vsub.s32 %v1400, %v1402
        %v1404 = vrot.slane %v1215, %v1403
        %v1406 = vunpack.c.l.s4 1983009808
        %v1407 = vunpack.c.0.s8 %v1406
        %v1408 = vlaneseq
        %v1409 = vshrl.u32 %v1408, 7
        %v1410 = vsub.s32 %v1407, %v1409
        %v1411 = vrot.slane %v1397, %v1410
        %v1412 = vcombine.high %v1404, %v1404
        %v1413 = vcombine.high %v1411, %v1411
        %v1414 = vcombine.high %v1218, %v1218
        %v1416 = vunpack.c.l.s4 1983009808
        %v1417 = vunpack.c.0.s8 %v1416
        %v1418 = vlaneseq
        %v1419 = vshrl.u32 %v1418, 7
        %v1420 = vsub.s32 %v1417, %v1419
        %v1421 = vrot.slane %v1218, %v1420
        %v1423 = vunpack.c.l.s4 1983009808
        %v1424 = vunpack.c.0.s8 %v1423
        %v1425 = vlaneseq
        %v1426 = vshrl.u32 %v1425, 7
        %v1427 = vsub.s32 %v1424, %v1426
        %v1428 = vrot.slane %v1414, %v1427
        %v1429 = vcombine.high %v1421, %v1421
        %v1430 = vcombine.high %v1428, %v1428
        %v1431 = vcombine.high %v1223, %v1223
        %v1433 = vunpack.c.l.s4 1983009808
        %v1434 = vunpack.c.0.s8 %v1433
        %v1435 = vlaneseq
        %v1436 = vshrl.u32 %v1435, 7
        %v1437 = vsub.s32 %v1434, %v1436
        %v1438 = vrot.slane %v1223, %v1437
        %v1440 = vunpack.c.l.s4 1983009808
        %v1441 = vunpack.c.0.s8 %v1440
        %v1442 = vlaneseq
        %v1443 = vshrl.u32 %v1442, 7
        %v1444 = vsub.s32 %v1441, %v1443
        %v1445 = vrot.slane %v1431, %v1444
        %v1446 = vcombine.high %v1438, %v1438
        %v1447 = vcombine.high %v1445, %v1445
        %v1448 = vcombine.high %v1226, %v1226
        %v1450 = vunpack.c.l.s4 1983009808
        %v1451 = vunpack.c.0.s8 %v1450
        %v1452 = vlaneseq
        %v1453 = vshrl.u32 %v1452, 7
        %v1454 = vsub.s32 %v1451, %v1453
        %v1455 = vrot.slane %v1226, %v1454
        %v1457 = vunpack.c.l.s4 1983009808
        %v1458 = vunpack.c.0.s8 %v1457
        %v1459 = vlaneseq
        %v1460 = vshrl.u32 %v1459, 7
        %v1461 = vsub.s32 %v1458, %v1460
        %v1462 = vrot.slane %v1448, %v1461
        %v1463 = vcombine.high %v1455, %v1455
        %v1464 = vcombine.high %v1462, %v1462
        %v1465 = vcombine.high %v1231, %v1231
        %v1467 = vunpack.c.l.s4 1983009808
        %v1468 = vunpack.c.0.s8 %v1467
        %v1469 = vlaneseq
        %v1470 = vshrl.u32 %v1469, 7
        %v1471 = vsub.s32 %v1468, %v1470
        %v1472 = vrot.slane %v1231, %v1471
        %v1474 = vunpack.c.l.s4 1983009808
        %v1475 = vunpack.c.0.s8 %v1474
        %v1476 = vlaneseq
        %v1477 = vshrl.u32 %v1476, 7
        %v1478 = vsub.s32 %v1475, %v1477
        %v1479 = vrot.slane %v1465, %v1478
        %v1480 = vcombine.high %v1472, %v1472
        %v1481 = vcombine.high %v1479, %v1479
        %v1482 = vcombine.high %v1234, %v1234
        %v1484 = vunpack.c.l.s4 1983009808
        %v1485 = vunpack.c.0.s8 %v1484
        %v1486 = vlaneseq
        %v1487 = vshrl.u32 %v1486, 7
        %v1488 = vsub.s32 %v1485, %v1487
        %v1489 = vrot.slane %v1234, %v1488
        %v1491 = vunpack.c.l.s4 1983009808
        %v1492 = vunpack.c.0.s8 %v1491
        %v1493 = vlaneseq
        %v1494 = vshrl.u32 %v1493, 7
        %v1495 = vsub.s32 %v1492, %v1494
        %v1496 = vrot.slane %v1482, %v1495
        %v1497 = vcombine.high %v1489, %v1489
        %v1498 = vcombine.high %v1496, %v1496
        %v1499 = vcombine.high %v1239, %v1239
        %v1501 = vunpack.c.l.s4 1983009808
        %v1502 = vunpack.c.0.s8 %v1501
        %v1503 = vlaneseq
        %v1504 = vshrl.u32 %v1503, 7
        %v1505 = vsub.s32 %v1502, %v1504
        %v1506 = vrot.slane %v1239, %v1505
        %v1508 = vunpack.c.l.s4 1983009808
        %v1509 = vunpack.c.0.s8 %v1508
        %v1510 = vlaneseq
        %v1511 = vshrl.u32 %v1510, 7
        %v1512 = vsub.s32 %v1509, %v1511
        %v1513 = vrot.slane %v1499, %v1512
        %v1514 = vcombine.high %v1506, %v1506
        %v1515 = vcombine.high %v1513, %v1513
        %v1516 = vcombine.high %v1242, %v1242
        %v1518 = vunpack.c.l.s4 1983009808
        %v1519 = vunpack.c.0.s8 %v1518
        %v1520 = vlaneseq
        %v1521 = vshrl.u32 %v1520, 7
        %v1522 = vsub.s32 %v1519, %v1521
        %v1523 = vrot.slane %v1242, %v1522
        %v1525 = vunpack.c.l.s4 1983009808
        %v1526 = vunpack.c.0.s8 %v1525
        %v1527 = vlaneseq
        %v1528 = vshrl.u32 %v1527, 7
        %v1529 = vsub.s32 %v1526, %v1528
        %v1530 = vrot.slane %v1516, %v1529
        %v1531 = vcombine.high %v1523, %v1523
        %v1532 = vcombine.high %v1530, %v1530
        %v1565 = vadd.f32 %v1312, %v1404
        %v1566 = vadd.f32 %v1316, %v1412
        %v1567 = vadd.f32 %v1320, %v1411
        %v1568 = vadd.f32 %v1324, %v1413
        %v1569 = vadd.f32 %v1312, %v1421
        %v1570 = vadd.f32 %v1316, %v1429
        %v1571 = vadd.f32 %v1320, %v1428
        %v1572 = vadd.f32 %v1324, %v1430
        %v1573 = vadd.f32 %v1328, %v1438
        %v1574 = vadd.f32 %v1332, %v1446
        %v1575 = vadd.f32 %v1336, %v1445
        %v1576 = vadd.f32 %v1340, %v1447
        %v1577 = vadd.f32 %v1328, %v1455
        %v1578 = vadd.f32 %v1332, %v1463
        %v1579 = vadd.f32 %v1336, %v1462
        %v1580 = vadd.f32 %v1340, %v1464
        %v1581 = vadd.f32 %v1344, %v1472
        %v1582 = vadd.f32 %v1348, %v1480
        %v1583 = vadd.f32 %v1352, %v1479
        %v1584 = vadd.f32 %v1356, %v1481
        %v1585 = vadd.f32 %v1344, %v1489
        %v1586 = vadd.f32 %v1348, %v1497
        %v1587 = vadd.f32 %v1352, %v1496
        %v1588 = vadd.f32 %v1356, %v1498
        %v1589 = vadd.f32 %v1360, %v1506
        %v1590 = vadd.f32 %v1364, %v1514
        %v1591 = vadd.f32 %v1368, %v1513
        %v1592 = vadd.f32 %v1372, %v1515
        %v1593 = vadd.f32 %v1360, %v1523
        %v1594 = vadd.f32 %v1364, %v1531
        %v1595 = vadd.f32 %v1368, %v1530
        %v1596 = vadd.f32 %v1372, %v1532
        %v1629 = vcombine.low %v1565, %v1566
        %v1630 = vcombine.low %v1567, %v1568
        %v1632 = vunpack.c.l.s4 1983009808
        %v1633 = vunpack.c.0.s8 %v1632
        %v1634 = vlaneseq
        %v1635 = vshrl.u32 %v1634, 7
        %v1636 = vsub.s32 %v1633, %v1635
        %v1637 = vrot.slane %v1629, %v1636
        %v1639 = vunpack.c.l.s4 1983009808
        %v1640 = vunpack.c.0.s8 %v1639
        %v1641 = vlaneseq
        %v1642 = vshrl.u32 %v1641, 7
        %v1643 = vsub.s32 %v1640, %v1642
        %v1644 = vrot.slane %v1630, %v1643
        %v1645 = vcombine.low %v1637, %v1644
        %v1646 = vcombine.low %v1569, %v1570
        %v1647 = vcombine.low %v1571, %v1572
        %v1649 = vunpack.c.l.s4 1983009808
        %v1650 = vunpack.c.0.s8 %v1649
        %v1651 = vlaneseq
        %v1652 = vshrl.u32 %v1651, 7
        %v1653 = vsub.s32 %v1650, %v1652
        %v1654 = vrot.slane %v1646, %v1653
        %v1656 = vunpack.c.l.s4 1983009808
        %v1657 = vunpack.c.0.s8 %v1656
        %v1658 = vlaneseq
        %v1659 = vshrl.u32 %v1658, 7
        %v1660 = vsub.s32 %v1657, %v1659
        %v1661 = vrot.slane %v1647, %v1660
        %v1662 = vcombine.low %v1654, %v1661
        %v1663 = vcombine.low %v1573, %v1574
        %v1664 = vcombine.low %v1575, %v1576
        %v1666 = vunpack.c.l.s4 1983009808
        %v1667 = vunpack.c.0.s8 %v1666
        %v1668 = vlaneseq
        %v1669 = vshrl.u32 %v1668, 7
        %v1670 = vsub.s32 %v1667, %v1669
        %v1671 = vrot.slane %v1663, %v1670
        %v1673 = vunpack.c.l.s4 1983009808
        %v1674 = vunpack.c.0.s8 %v1673
        %v1675 = vlaneseq
        %v1676 = vshrl.u32 %v1675, 7
        %v1677 = vsub.s32 %v1674, %v1676
        %v1678 = vrot.slane %v1664, %v1677
        %v1679 = vcombine.low %v1671, %v1678
        %v1680 = vcombine.low %v1577, %v1578
        %v1681 = vcombine.low %v1579, %v1580
        %v1683 = vunpack.c.l.s4 1983009808
        %v1684 = vunpack.c.0.s8 %v1683
        %v1685 = vlaneseq
        %v1686 = vshrl.u32 %v1685, 7
        %v1687 = vsub.s32 %v1684, %v1686
        %v1688 = vrot.slane %v1680, %v1687
        %v1690 = vunpack.c.l.s4 1983009808
        %v1691 = vunpack.c.0.s8 %v1690
        %v1692 = vlaneseq
        %v1693 = vshrl.u32 %v1692, 7
        %v1694 = vsub.s32 %v1691, %v1693
        %v1695 = vrot.slane %v1681, %v1694
        %v1696 = vcombine.low %v1688, %v1695
        %v1697 = vcombine.low %v1581, %v1582
        %v1698 = vcombine.low %v1583, %v1584
        %v1700 = vunpack.c.l.s4 1983009808
        %v1701 = vunpack.c.0.s8 %v1700
        %v1702 = vlaneseq
        %v1703 = vshrl.u32 %v1702, 7
        %v1704 = vsub.s32 %v1701, %v1703
        %v1705 = vrot.slane %v1697, %v1704
        %v1707 = vunpack.c.l.s4 1983009808
        %v1708 = vunpack.c.0.s8 %v1707
        %v1709 = vlaneseq
        %v1710 = vshrl.u32 %v1709, 7
        %v1711 = vsub.s32 %v1708, %v1710
        %v1712 = vrot.slane %v1698, %v1711
        %v1713 = vcombine.low %v1705, %v1712
        %v1714 = vcombine.low %v1585, %v1586
        %v1715 = vcombine.low %v1587, %v1588
        %v1717 = vunpack.c.l.s4 1983009808
        %v1718 = vunpack.c.0.s8 %v1717
        %v1719 = vlaneseq
        %v1720 = vshrl.u32 %v1719, 7
        %v1721 = vsub.s32 %v1718, %v1720
        %v1722 = vrot.slane %v1714, %v1721
        %v1724 = vunpack.c.l.s4 1983009808
        %v1725 = vunpack.c.0.s8 %v1724
        %v1726 = vlaneseq
        %v1727 = vshrl.u32 %v1726, 7
        %v1728 = vsub.s32 %v1725, %v1727
        %v1729 = vrot.slane %v1715, %v1728
        %v1730 = vcombine.low %v1722, %v1729
        %v1731 = vcombine.low %v1589, %v1590
        %v1732 = vcombine.low %v1591, %v1592
        %v1734 = vunpack.c.l.s4 1983009808
        %v1735 = vunpack.c.0.s8 %v1734
        %v1736 = vlaneseq
        %v1737 = vshrl.u32 %v1736, 7
        %v1738 = vsub.s32 %v1735, %v1737
        %v1739 = vrot.slane %v1731, %v1738
        %v1741 = vunpack.c.l.s4 1983009808
        %v1742 = vunpack.c.0.s8 %v1741
        %v1743 = vlaneseq
        %v1744 = vshrl.u32 %v1743, 7
        %v1745 = vsub.s32 %v1742, %v1744
        %v1746 = vrot.slane %v1732, %v1745
        %v1747 = vcombine.low %v1739, %v1746
        %v1748 = vcombine.low %v1593, %v1594
        %v1749 = vcombine.low %v1595, %v1596
        %v1751 = vunpack.c.l.s4 1983009808
        %v1752 = vunpack.c.0.s8 %v1751
        %v1753 = vlaneseq
        %v1754 = vshrl.u32 %v1753, 7
        %v1755 = vsub.s32 %v1752, %v1754
        %v1756 = vrot.slane %v1748, %v1755
        %v1758 = vunpack.c.l.s4 1983009808
        %v1759 = vunpack.c.0.s8 %v1758
        %v1760 = vlaneseq
        %v1761 = vshrl.u32 %v1760, 7
        %v1762 = vsub.s32 %v1759, %v1761
        %v1763 = vrot.slane %v1749, %v1762
        %v1764 = vcombine.low %v1756, %v1763
        %1773 = vst.msk [vmem:[%s725] sm:$0xff] %vm942, %v1645
        %1774 = vst.msk [vmem:[%s725 + $0x8] sm:$0xff] %vm942, %v1662
        %1775 = vst.msk [vmem:[%s725 + $0x10] sm:$0xff] %vm942, %v1679
        %1776 = vst.msk [vmem:[%s725 + $0x18] sm:$0xff] %vm942, %v1696
        %1777 = vst.msk [vmem:[%s725 + $0x20] sm:$0xff] %vm942, %v1713
        %1778 = vst.msk [vmem:[%s725 + $0x28] sm:$0xff] %vm942, %v1730
        %1779 = vst.msk [vmem:[%s725 + $0x30] sm:$0xff] %vm942, %v1747
        %1780 = vst.msk [vmem:[%s725 + $0x38] sm:$0xff] %vm942, %v1764
        %v1781 = vld [vmem:[%s771] sm:$0xf]
        %v1782 = vld [vmem:[%s771 + $0x4] sm:$0xf]
        %v1783 = vld [vmem:[%s771 + $0x8] sm:$0xf]
        %v1784 = vld [vmem:[%s771 + $0xc] sm:$0xf]
        %v1785 = vld [vmem:[%s771 + $0x10] sm:$0xf]
        %v1786 = vld [vmem:[%s771 + $0x14] sm:$0xf]
        %v1787 = vld [vmem:[%s771 + $0x18] sm:$0xf]
        %v1788 = vld [vmem:[%s771 + $0x1c] sm:$0xf]
        %v1789 = vld [vmem:[%s771 + $0x20] sm:$0xf]
        %v1790 = vld [vmem:[%s771 + $0x24] sm:$0xf]
        %v1791 = vld [vmem:[%s771 + $0x28] sm:$0xf]
        %v1792 = vld [vmem:[%s771 + $0x2c] sm:$0xf]
        %v1793 = vld [vmem:[%s771 + $0x30] sm:$0xf]
        %v1794 = vld [vmem:[%s771 + $0x34] sm:$0xf]
        %v1795 = vld [vmem:[%s771 + $0x38] sm:$0xf]
        %v1796 = vld [vmem:[%s771 + $0x3c] sm:$0xf]
        %v1797 = vld [vmem:[%s771 + $0x40] sm:$0xf]
        %v1798 = vld [vmem:[%s771 + $0x44] sm:$0xf]
        %v1799 = vld [vmem:[%s771 + $0x48] sm:$0xf]
        %v1800 = vld [vmem:[%s771 + $0x4c] sm:$0xf]
        %v1801 = vld [vmem:[%s771 + $0x50] sm:$0xf]
        %v1802 = vld [vmem:[%s771 + $0x54] sm:$0xf]
        %v1803 = vld [vmem:[%s771 + $0x58] sm:$0xf]
        %v1804 = vld [vmem:[%s771 + $0x5c] sm:$0xf]
        %v1805 = vld [vmem:[%s771 + $0x60] sm:$0xf]
        %v1806 = vld [vmem:[%s771 + $0x64] sm:$0xf]
        %v1807 = vld [vmem:[%s771 + $0x68] sm:$0xf]
        %v1808 = vld [vmem:[%s771 + $0x6c] sm:$0xf]
        %v1809 = vld [vmem:[%s771 + $0x70] sm:$0xf]
        %v1810 = vld [vmem:[%s771 + $0x74] sm:$0xf]
        %v1811 = vld [vmem:[%s771 + $0x78] sm:$0xf]
        %v1812 = vld [vmem:[%s771 + $0x7c] sm:$0xf]
        %v1813 = vld [vmem:[%s10] sm:$0xf]
        %v1814 = vld [vmem:[%s11] sm:$0x1]
        %v1816 = vlaneseq
        %v1817 = vshrl.u32 %v1816, 7
        %v1818 = vsub.s32 0, %v1817
        %v1819 = vrot.slane %v1814, %v1818
        %v1853 = vunpack.c.l.b16 %v1781
        %v1854 = vunpack.c.l.b16 %v1782
        %v1855 = vunpack.c.l.b16 %v1783
        %v1856 = vunpack.c.l.b16 %v1784
        %v1857 = vunpack.c.l.b16 %v1785
        %v1858 = vunpack.c.l.b16 %v1786
        %v1859 = vunpack.c.l.b16 %v1787
        %v1860 = vunpack.c.l.b16 %v1788
        %v1861 = vunpack.c.l.b16 %v1789
        %v1862 = vunpack.c.l.b16 %v1790
        %v1863 = vunpack.c.l.b16 %v1791
        %v1864 = vunpack.c.l.b16 %v1792
        %v1865 = vunpack.c.l.b16 %v1793
        %v1866 = vunpack.c.l.b16 %v1794
        %v1867 = vunpack.c.l.b16 %v1795
        %v1868 = vunpack.c.l.b16 %v1796
        %v1869 = vunpack.c.l.b16 %v1797
        %v1870 = vunpack.c.l.b16 %v1798
        %v1871 = vunpack.c.l.b16 %v1799
        %v1872 = vunpack.c.l.b16 %v1800
        %v1873 = vunpack.c.l.b16 %v1801
        %v1874 = vunpack.c.l.b16 %v1802
        %v1875 = vunpack.c.l.b16 %v1803
        %v1876 = vunpack.c.l.b16 %v1804
        %v1877 = vunpack.c.l.b16 %v1805
        %v1878 = vunpack.c.l.b16 %v1806
        %v1879 = vunpack.c.l.b16 %v1807
        %v1880 = vunpack.c.l.b16 %v1808
        %v1881 = vunpack.c.l.b16 %v1809
        %v1882 = vunpack.c.l.b16 %v1810
        %v1883 = vunpack.c.l.b16 %v1811
        %v1884 = vunpack.c.l.b16 %v1812
        %v1885 = vpack.c.b16 %v1854, %v1853
        %v1886 = vpack.c.b16 %v1856, %v1855
        %v1887 = vpack.c.b16 %v1858, %v1857
        %v1888 = vpack.c.b16 %v1860, %v1859
        %v1889 = vpack.c.b16 %v1862, %v1861
        %v1890 = vpack.c.b16 %v1864, %v1863
        %v1891 = vpack.c.b16 %v1866, %v1865
        %v1892 = vpack.c.b16 %v1868, %v1867
        %v1893 = vpack.c.b16 %v1870, %v1869
        %v1894 = vpack.c.b16 %v1872, %v1871
        %v1895 = vpack.c.b16 %v1874, %v1873
        %v1896 = vpack.c.b16 %v1876, %v1875
        %v1897 = vpack.c.b16 %v1878, %v1877
        %v1898 = vpack.c.b16 %v1880, %v1879
        %v1899 = vpack.c.b16 %v1882, %v1881
        %v1900 = vpack.c.b16 %v1884, %v1883
        %vm1901 = vcmask 64512
        %v1903 = vsel %vm1901, %v1885, 0
        %v1906 = vsel %vm1901, %v1886, 0
        %v1909 = vsel %vm1901, %v1887, 0
        %v1912 = vsel %vm1901, %v1888, 0
        %v1915 = vsel %vm1901, %v1889, 0
        %v1918 = vsel %vm1901, %v1890, 0
        %v1921 = vsel %vm1901, %v1891, 0
        %v1924 = vsel %vm1901, %v1892, 0
        %v1927 = vsel %vm1901, %v1893, 0
        %v1930 = vsel %vm1901, %v1894, 0
        %v1933 = vsel %vm1901, %v1895, 0
        %v1936 = vsel %vm1901, %v1896, 0
        %v1939 = vsel %vm1901, %v1897, 0
        %v1942 = vsel %vm1901, %v1898, 0
        %v1945 = vsel %vm1901, %v1899, 0
        %v1948 = vsel %vm1901, %v1900, 0
        %vm1950 = vcmask 1043456
        %v1952 = vsel %vm1950, %v1813, 0
        %1954 = vmatprep.subr.bf16.mxu0 0
        %1955 = vmatpush1.bf16.msra.mxu0 %v1952
        %1956 = vmatprep.subr.bf16.mxu0 0
        %1957 = vmatpush1.bf16.msra.mxu0 0
        %1958 = vmatprep.subr.bf16.mxu0 0
        %1959 = vmatpush1.bf16.msra.mxu0 0
        %1960 = vmatprep.subr.bf16.mxu0 0
        %1961 = vmatpush1.bf16.msra.mxu0 0
        %1962 = vmatprep.subr.bf16.mxu0 0
        %1963 = vmatpush1.bf16.msra.mxu0 0
        %1964 = vmatprep.subr.bf16.mxu0 0
        %1965 = vmatpush1.bf16.msra.mxu0 0
        %1966 = vmatprep.subr.bf16.mxu0 0
        %1967 = vmatpush1.bf16.msra.mxu0 0
        %1968 = vmatprep.subr.bf16.mxu0 0
        %1969 = vmatpush1.bf16.msra.mxu0 0
        %1970 = vmatprep.subr.bf16.mxu0 0
        %1971 = vmatpush1.bf16.msra.mxu0 0
        %1972 = vmatprep.subr.bf16.mxu0 0
        %1973 = vmatpush1.bf16.msra.mxu0 0
        %1974 = vmatprep.subr.bf16.mxu0 0
        %1975 = vmatpush1.bf16.msra.mxu0 0
        %1976 = vmatprep.subr.bf16.mxu0 0
        %1977 = vmatpush1.bf16.msra.mxu0 0
        %1978 = vmatprep.subr.bf16.mxu0 0
        %1979 = vmatpush1.bf16.msra.mxu0 0
        %1980 = vmatprep.subr.bf16.mxu0 0
        %1981 = vmatpush1.bf16.msra.mxu0 0
        %1982 = vmatprep.subr.bf16.mxu0 0
        %1983 = vmatpush1.bf16.msra.mxu0 0
        %1984 = vmatprep.subr.bf16.mxu0 0
        %1985 = vmatpush1.bf16.msra.mxu0 0
        %1986 = vmatprep.mubr.bf16.mxu0 0
        %1987 = vmatmul.mubr.bf16.gmra.mrb[0].mxu0 %v1903
        %v1988 = vpop.f32.mrb[0].mxu0
        %v1989 = vadd.f32 %v1819, %v1988
        %v1990 = vpop.f32.mrb[0].mxu0
        %v1991 = vpop.f32.mrb[0].mxu0
        %v1992 = vadd.f32 %v1819, %v1991
        %v1993 = vpop.f32.mrb[0].mxu0
        %1994 = vmatprep.mubr.bf16.mxu0 0
        %1995 = vmatmul.mubr.bf16.gmra.mrb[0].mxu0 %v1906
        %v1996 = vpop.f32.mrb[0].mxu0
        %v1997 = vadd.f32 %v1819, %v1996
        %v1998 = vpop.f32.mrb[0].mxu0
        %v1999 = vpop.f32.mrb[0].mxu0
        %v2000 = vadd.f32 %v1819, %v1999
        %v2001 = vpop.f32.mrb[0].mxu0
        %2002 = vmatprep.mubr.bf16.mxu0 0
        %2003 = vmatmul.mubr.bf16.gmra.mrb[0].mxu0 %v1909
        %v2004 = vpop.f32.mrb[0].mxu0
        %v2005 = vadd.f32 %v1819, %v2004
        %v2006 = vpop.f32.mrb[0].mxu0
        %v2007 = vpop.f32.mrb[0].mxu0
        %v2008 = vadd.f32 %v1819, %v2007
        %v2009 = vpop.f32.mrb[0].mxu0
        %2010 = vmatprep.mubr.bf16.mxu0 0
        %2011 = vmatmul.mubr.bf16.gmra.mrb[0].mxu0 %v1912
        %v2012 = vpop.f32.mrb[0].mxu0
        %v2013 = vadd.f32 %v1819, %v2012
        %v2014 = vpop.f32.mrb[0].mxu0
        %v2015 = vpop.f32.mrb[0].mxu0
        %v2016 = vadd.f32 %v1819, %v2015
        %v2017 = vpop.f32.mrb[0].mxu0
        %2018 = vmatprep.mubr.bf16.mxu0 0
        %2019 = vmatmul.mubr.bf16.gmra.mrb[0].mxu0 %v1915
        %v2020 = vpop.f32.mrb[0].mxu0
        %v2021 = vadd.f32 %v1819, %v2020
        %v2022 = vpop.f32.mrb[0].mxu0
        %v2023 = vpop.f32.mrb[0].mxu0
        %v2024 = vadd.f32 %v1819, %v2023
        %v2025 = vpop.f32.mrb[0].mxu0
        %2026 = vmatprep.mubr.bf16.mxu0 0
        %2027 = vmatmul.mubr.bf16.gmra.mrb[0].mxu0 %v1918
        %v2028 = vpop.f32.mrb[0].mxu0
        %v2029 = vadd.f32 %v1819, %v2028
        %v2030 = vpop.f32.mrb[0].mxu0
        %v2031 = vpop.f32.mrb[0].mxu0
        %v2032 = vadd.f32 %v1819, %v2031
        %v2033 = vpop.f32.mrb[0].mxu0
        %2034 = vmatprep.mubr.bf16.mxu0 0
        %2035 = vmatmul.mubr.bf16.gmra.mrb[0].mxu0 %v1921
        %v2036 = vpop.f32.mrb[0].mxu0
        %v2037 = vadd.f32 %v1819, %v2036
        %v2038 = vpop.f32.mrb[0].mxu0
        %v2039 = vpop.f32.mrb[0].mxu0
        %v2040 = vadd.f32 %v1819, %v2039
        %v2041 = vpop.f32.mrb[0].mxu0
        %2042 = vmatprep.mubr.bf16.mxu0 0
        %2043 = vmatmul.mubr.bf16.gmra.mrb[0].mxu0 %v1924
        %v2044 = vpop.f32.mrb[0].mxu0
        %v2045 = vadd.f32 %v1819, %v2044
        %v2046 = vpop.f32.mrb[0].mxu0
        %v2047 = vpop.f32.mrb[0].mxu0
        %v2048 = vadd.f32 %v1819, %v2047
        %v2049 = vpop.f32.mrb[0].mxu0
        %2050 = vmatprep.mubr.bf16.mxu0 0
        %2051 = vmatmul.mubr.bf16.gmra.mrb[0].mxu0 %v1927
        %v2052 = vpop.f32.mrb[0].mxu0
        %v2053 = vadd.f32 %v1819, %v2052
        %v2054 = vpop.f32.mrb[0].mxu0
        %v2055 = vpop.f32.mrb[0].mxu0
        %v2056 = vadd.f32 %v1819, %v2055
        %v2057 = vpop.f32.mrb[0].mxu0
        %2058 = vmatprep.mubr.bf16.mxu0 0
        %2059 = vmatmul.mubr.bf16.gmra.mrb[0].mxu0 %v1930
        %v2060 = vpop.f32.mrb[0].mxu0
        %v2061 = vadd.f32 %v1819, %v2060
        %v2062 = vpop.f32.mrb[0].mxu0
        %v2063 = vpop.f32.mrb[0].mxu0
        %v2064 = vadd.f32 %v1819, %v2063
        %v2065 = vpop.f32.mrb[0].mxu0
        %2066 = vmatprep.mubr.bf16.mxu0 0
        %2067 = vmatmul.mubr.bf16.gmra.mrb[0].mxu0 %v1933
        %v2068 = vpop.f32.mrb[0].mxu0
        %v2069 = vadd.f32 %v1819, %v2068
        %v2070 = vpop.f32.mrb[0].mxu0
        %v2071 = vpop.f32.mrb[0].mxu0
        %v2072 = vadd.f32 %v1819, %v2071
        %v2073 = vpop.f32.mrb[0].mxu0
        %2074 = vmatprep.mubr.bf16.mxu0 0
        %2075 = vmatmul.mubr.bf16.gmra.mrb[0].mxu0 %v1936
        %v2076 = vpop.f32.mrb[0].mxu0
        %v2077 = vadd.f32 %v1819, %v2076
        %v2078 = vpop.f32.mrb[0].mxu0
        %v2079 = vpop.f32.mrb[0].mxu0
        %v2080 = vadd.f32 %v1819, %v2079
        %v2081 = vpop.f32.mrb[0].mxu0
        %2082 = vmatprep.mubr.bf16.mxu0 0
        %2083 = vmatmul.mubr.bf16.gmra.mrb[0].mxu0 %v1939
        %v2084 = vpop.f32.mrb[0].mxu0
        %v2085 = vadd.f32 %v1819, %v2084
        %v2086 = vpop.f32.mrb[0].mxu0
        %v2087 = vpop.f32.mrb[0].mxu0
        %v2088 = vadd.f32 %v1819, %v2087
        %v2089 = vpop.f32.mrb[0].mxu0
        %2090 = vmatprep.mubr.bf16.mxu0 0
        %2091 = vmatmul.mubr.bf16.gmra.mrb[0].mxu0 %v1942
        %v2092 = vpop.f32.mrb[0].mxu0
        %v2093 = vadd.f32 %v1819, %v2092
        %v2094 = vpop.f32.mrb[0].mxu0
        %v2095 = vpop.f32.mrb[0].mxu0
        %v2096 = vadd.f32 %v1819, %v2095
        %v2097 = vpop.f32.mrb[0].mxu0
        %2098 = vmatprep.mubr.bf16.mxu0 0
        %2099 = vmatmul.mubr.bf16.gmra.mrb[0].mxu0 %v1945
        %v2100 = vpop.f32.mrb[0].mxu0
        %v2101 = vadd.f32 %v1819, %v2100
        %v2102 = vpop.f32.mrb[0].mxu0
        %v2103 = vpop.f32.mrb[0].mxu0
        %v2104 = vadd.f32 %v1819, %v2103
        %v2105 = vpop.f32.mrb[0].mxu0
        %2106 = vmatprep.mubr.bf16.mxu0 0
        %2107 = vmatmul.mubr.bf16.gmra.mrb[0].mxu0 %v1948
        %v2108 = vpop.f32.mrb[0].mxu0
        %v2109 = vadd.f32 %v1819, %v2108
        %v2110 = vpop.f32.mrb[0].mxu0
        %v2111 = vpop.f32.mrb[0].mxu0
        %v2112 = vadd.f32 %v1819, %v2111
        %v2113 = vpop.f32.mrb[0].mxu0
        %2114 = vdwg.mxu0
        %v2116 = vunpack.c.l.s4 1966171168
        %v2117 = vunpack.c.0.s8 %v2116
        %v2118 = vlaneseq
        %v2119 = vshrl.u32 %v2118, 7
        %v2120 = vsub.s32 %v2117, %v2119
        %v2121 = vrot.slane %v1565, %v2120
        %v2122 = vcombine.high %v2121, %v2121
        %v2124 = vunpack.c.l.s4 1966171168
        %v2125 = vunpack.c.0.s8 %v2124
        %v2126 = vlaneseq
        %v2127 = vshrl.u32 %v2126, 7
        %v2128 = vsub.s32 %v2125, %v2127
        %v2129 = vrot.slane %v1566, %v2128
        %v2130 = vcombine.high %v2129, %v2129
        %v2132 = vunpack.c.l.s4 1966171168
        %v2133 = vunpack.c.0.s8 %v2132
        %v2134 = vlaneseq
        %v2135 = vshrl.u32 %v2134, 7
        %v2136 = vsub.s32 %v2133, %v2135
        %v2137 = vrot.slane %v1567, %v2136
        %v2138 = vcombine.high %v2137, %v2137
        %v2140 = vunpack.c.l.s4 1966171168
        %v2141 = vunpack.c.0.s8 %v2140
        %v2142 = vlaneseq
        %v2143 = vshrl.u32 %v2142, 7
        %v2144 = vsub.s32 %v2141, %v2143
        %v2145 = vrot.slane %v1568, %v2144
        %v2146 = vcombine.high %v2145, %v2145
        %v2148 = vunpack.c.l.s4 1966171168
        %v2149 = vunpack.c.0.s8 %v2148
        %v2150 = vlaneseq
        %v2151 = vshrl.u32 %v2150, 7
        %v2152 = vsub.s32 %v2149, %v2151
        %v2153 = vrot.slane %v1569, %v2152
        %v2154 = vcombine.high %v2153, %v2153
        %v2156 = vunpack.c.l.s4 1966171168
        %v2157 = vunpack.c.0.s8 %v2156
        %v2158 = vlaneseq
        %v2159 = vshrl.u32 %v2158, 7
        %v2160 = vsub.s32 %v2157, %v2159
        %v2161 = vrot.slane %v1570, %v2160
        %v2162 = vcombine.high %v2161, %v2161
        %v2164 = vunpack.c.l.s4 1966171168
        %v2165 = vunpack.c.0.s8 %v2164
        %v2166 = vlaneseq
        %v2167 = vshrl.u32 %v2166, 7
        %v2168 = vsub.s32 %v2165, %v2167
        %v2169 = vrot.slane %v1571, %v2168
        %v2170 = vcombine.high %v2169, %v2169
        %v2172 = vunpack.c.l.s4 1966171168
        %v2173 = vunpack.c.0.s8 %v2172
        %v2174 = vlaneseq
        %v2175 = vshrl.u32 %v2174, 7
        %v2176 = vsub.s32 %v2173, %v2175
        %v2177 = vrot.slane %v1572, %v2176
        %v2178 = vcombine.high %v2177, %v2177
        %v2180 = vunpack.c.l.s4 1966171168
        %v2181 = vunpack.c.0.s8 %v2180
        %v2182 = vlaneseq
        %v2183 = vshrl.u32 %v2182, 7
        %v2184 = vsub.s32 %v2181, %v2183
        %v2185 = vrot.slane %v1573, %v2184
        %v2186 = vcombine.high %v2185, %v2185
        %v2188 = vunpack.c.l.s4 1966171168
        %v2189 = vunpack.c.0.s8 %v2188
        %v2190 = vlaneseq
        %v2191 = vshrl.u32 %v2190, 7
        %v2192 = vsub.s32 %v2189, %v2191
        %v2193 = vrot.slane %v1574, %v2192
        %v2194 = vcombine.high %v2193, %v2193
        %v2196 = vunpack.c.l.s4 1966171168
        %v2197 = vunpack.c.0.s8 %v2196
        %v2198 = vlaneseq
        %v2199 = vshrl.u32 %v2198, 7
        %v2200 = vsub.s32 %v2197, %v2199
        %v2201 = vrot.slane %v1575, %v2200
        %v2202 = vcombine.high %v2201, %v2201
        %v2204 = vunpack.c.l.s4 1966171168
        %v2205 = vunpack.c.0.s8 %v2204
        %v2206 = vlaneseq
        %v2207 = vshrl.u32 %v2206, 7
        %v2208 = vsub.s32 %v2205, %v2207
        %v2209 = vrot.slane %v1576, %v2208
        %v2210 = vcombine.high %v2209, %v2209
        %v2212 = vunpack.c.l.s4 1966171168
        %v2213 = vunpack.c.0.s8 %v2212
        %v2214 = vlaneseq
        %v2215 = vshrl.u32 %v2214, 7
        %v2216 = vsub.s32 %v2213, %v2215
        %v2217 = vrot.slane %v1577, %v2216
        %v2218 = vcombine.high %v2217, %v2217
        %v2220 = vunpack.c.l.s4 1966171168
        %v2221 = vunpack.c.0.s8 %v2220
        %v2222 = vlaneseq
        %v2223 = vshrl.u32 %v2222, 7
        %v2224 = vsub.s32 %v2221, %v2223
        %v2225 = vrot.slane %v1578, %v2224
        %v2226 = vcombine.high %v2225, %v2225
        %v2228 = vunpack.c.l.s4 1966171168
        %v2229 = vunpack.c.0.s8 %v2228
        %v2230 = vlaneseq
        %v2231 = vshrl.u32 %v2230, 7
        %v2232 = vsub.s32 %v2229, %v2231
        %v2233 = vrot.slane %v1579, %v2232
        %v2234 = vcombine.high %v2233, %v2233
        %v2236 = vunpack.c.l.s4 1966171168
        %v2237 = vunpack.c.0.s8 %v2236
        %v2238 = vlaneseq
        %v2239 = vshrl.u32 %v2238, 7
        %v2240 = vsub.s32 %v2237, %v2239
        %v2241 = vrot.slane %v1580, %v2240
        %v2242 = vcombine.high %v2241, %v2241
        %v2244 = vunpack.c.l.s4 1966171168
        %v2245 = vunpack.c.0.s8 %v2244
        %v2246 = vlaneseq
        %v2247 = vshrl.u32 %v2246, 7
        %v2248 = vsub.s32 %v2245, %v2247
        %v2249 = vrot.slane %v1581, %v2248
        %v2250 = vcombine.high %v2249, %v2249
        %v2252 = vunpack.c.l.s4 1966171168
        %v2253 = vunpack.c.0.s8 %v2252
        %v2254 = vlaneseq
        %v2255 = vshrl.u32 %v2254, 7
        %v2256 = vsub.s32 %v2253, %v2255
        %v2257 = vrot.slane %v1582, %v2256
        %v2258 = vcombine.high %v2257, %v2257
        %v2260 = vunpack.c.l.s4 1966171168
        %v2261 = vunpack.c.0.s8 %v2260
        %v2262 = vlaneseq
        %v2263 = vshrl.u32 %v2262, 7
        %v2264 = vsub.s32 %v2261, %v2263
        %v2265 = vrot.slane %v1583, %v2264
        %v2266 = vcombine.high %v2265, %v2265
        %v2268 = vunpack.c.l.s4 1966171168
        %v2269 = vunpack.c.0.s8 %v2268
        %v2270 = vlaneseq
        %v2271 = vshrl.u32 %v2270, 7
        %v2272 = vsub.s32 %v2269, %v2271
        %v2273 = vrot.slane %v1584, %v2272
        %v2274 = vcombine.high %v2273, %v2273
        %v2276 = vunpack.c.l.s4 1966171168
        %v2277 = vunpack.c.0.s8 %v2276
        %v2278 = vlaneseq
        %v2279 = vshrl.u32 %v2278, 7
        %v2280 = vsub.s32 %v2277, %v2279
        %v2281 = vrot.slane %v1585, %v2280
        %v2282 = vcombine.high %v2281, %v2281
        %v2284 = vunpack.c.l.s4 1966171168
        %v2285 = vunpack.c.0.s8 %v2284
        %v2286 = vlaneseq
        %v2287 = vshrl.u32 %v2286, 7
        %v2288 = vsub.s32 %v2285, %v2287
        %v2289 = vrot.slane %v1586, %v2288
        %v2290 = vcombine.high %v2289, %v2289
        %v2292 = vunpack.c.l.s4 1966171168
        %v2293 = vunpack.c.0.s8 %v2292
        %v2294 = vlaneseq
        %v2295 = vshrl.u32 %v2294, 7
        %v2296 = vsub.s32 %v2293, %v2295
        %v2297 = vrot.slane %v1587, %v2296
        %v2298 = vcombine.high %v2297, %v2297
        %v2300 = vunpack.c.l.s4 1966171168
        %v2301 = vunpack.c.0.s8 %v2300
        %v2302 = vlaneseq
        %v2303 = vshrl.u32 %v2302, 7
        %v2304 = vsub.s32 %v2301, %v2303
        %v2305 = vrot.slane %v1588, %v2304
        %v2306 = vcombine.high %v2305, %v2305
        %v2308 = vunpack.c.l.s4 1966171168
        %v2309 = vunpack.c.0.s8 %v2308
        %v2310 = vlaneseq
        %v2311 = vshrl.u32 %v2310, 7
        %v2312 = vsub.s32 %v2309, %v2311
        %v2313 = vrot.slane %v1589, %v2312
        %v2314 = vcombine.high %v2313, %v2313
        %v2316 = vunpack.c.l.s4 1966171168
        %v2317 = vunpack.c.0.s8 %v2316
        %v2318 = vlaneseq
        %v2319 = vshrl.u32 %v2318, 7
        %v2320 = vsub.s32 %v2317, %v2319
        %v2321 = vrot.slane %v1590, %v2320
        %v2322 = vcombine.high %v2321, %v2321
        %v2324 = vunpack.c.l.s4 1966171168
        %v2325 = vunpack.c.0.s8 %v2324
        %v2326 = vlaneseq
        %v2327 = vshrl.u32 %v2326, 7
        %v2328 = vsub.s32 %v2325, %v2327
        %v2329 = vrot.slane %v1591, %v2328
        %v2330 = vcombine.high %v2329, %v2329
        %v2332 = vunpack.c.l.s4 1966171168
        %v2333 = vunpack.c.0.s8 %v2332
        %v2334 = vlaneseq
        %v2335 = vshrl.u32 %v2334, 7
        %v2336 = vsub.s32 %v2333, %v2335
        %v2337 = vrot.slane %v1592, %v2336
        %v2338 = vcombine.high %v2337, %v2337
        %v2340 = vunpack.c.l.s4 1966171168
        %v2341 = vunpack.c.0.s8 %v2340
        %v2342 = vlaneseq
        %v2343 = vshrl.u32 %v2342, 7
        %v2344 = vsub.s32 %v2341, %v2343
        %v2345 = vrot.slane %v1593, %v2344
        %v2346 = vcombine.high %v2345, %v2345
        %v2348 = vunpack.c.l.s4 1966171168
        %v2349 = vunpack.c.0.s8 %v2348
        %v2350 = vlaneseq
        %v2351 = vshrl.u32 %v2350, 7
        %v2352 = vsub.s32 %v2349, %v2351
        %v2353 = vrot.slane %v1594, %v2352
        %v2354 = vcombine.high %v2353, %v2353
        %v2356 = vunpack.c.l.s4 1966171168
        %v2357 = vunpack.c.0.s8 %v2356
        %v2358 = vlaneseq
        %v2359 = vshrl.u32 %v2358, 7
        %v2360 = vsub.s32 %v2357, %v2359
        %v2361 = vrot.slane %v1595, %v2360
        %v2362 = vcombine.high %v2361, %v2361
        %v2364 = vunpack.c.l.s4 1966171168
        %v2365 = vunpack.c.0.s8 %v2364
        %v2366 = vlaneseq
        %v2367 = vshrl.u32 %v2366, 7
        %v2368 = vsub.s32 %v2365, %v2367
        %v2369 = vrot.slane %v1596, %v2368
        %v2370 = vcombine.high %v2369, %v2369
        %v2371 = vlaneseq
        %v2372 = vshrl.u32 %v2371, 7
        %v2373 = vsub.s32 0, %v2372
        %v2374 = vrot.slane %v2121, %v2373
        %v2375 = vlaneseq
        %v2376 = vshrl.u32 %v2375, 7
        %v2377 = vsub.s32 0, %v2376
        %v2378 = vrot.slane %v2122, %v2377
        %v2379 = vlaneseq
        %v2380 = vshrl.u32 %v2379, 7
        %v2381 = vsub.s32 0, %v2380
        %v2382 = vrot.slane %v2129, %v2381
        %v2383 = vlaneseq
        %v2384 = vshrl.u32 %v2383, 7
        %v2385 = vsub.s32 0, %v2384
        %v2386 = vrot.slane %v2130, %v2385
        %v2387 = vlaneseq
        %v2388 = vshrl.u32 %v2387, 7
        %v2389 = vsub.s32 0, %v2388
        %v2390 = vrot.slane %v2137, %v2389
        %v2391 = vlaneseq
        %v2392 = vshrl.u32 %v2391, 7
        %v2393 = vsub.s32 0, %v2392
        %v2394 = vrot.slane %v2138, %v2393
        %v2395 = vlaneseq
        %v2396 = vshrl.u32 %v2395, 7
        %v2397 = vsub.s32 0, %v2396
        %v2398 = vrot.slane %v2145, %v2397
        %v2399 = vlaneseq
        %v2400 = vshrl.u32 %v2399, 7
        %v2401 = vsub.s32 0, %v2400
        %v2402 = vrot.slane %v2146, %v2401
        %v2403 = vlaneseq
        %v2404 = vshrl.u32 %v2403, 7
        %v2405 = vsub.s32 0, %v2404
        %v2406 = vrot.slane %v2153, %v2405
        %v2407 = vlaneseq
        %v2408 = vshrl.u32 %v2407, 7
        %v2409 = vsub.s32 0, %v2408
        %v2410 = vrot.slane %v2154, %v2409
        %v2411 = vlaneseq
        %v2412 = vshrl.u32 %v2411, 7
        %v2413 = vsub.s32 0, %v2412
        %v2414 = vrot.slane %v2161, %v2413
        %v2415 = vlaneseq
        %v2416 = vshrl.u32 %v2415, 7
        %v2417 = vsub.s32 0, %v2416
        %v2418 = vrot.slane %v2162, %v2417
        %v2419 = vlaneseq
        %v2420 = vshrl.u32 %v2419, 7
        %v2421 = vsub.s32 0, %v2420
        %v2422 = vrot.slane %v2169, %v2421
        %v2423 = vlaneseq
        %v2424 = vshrl.u32 %v2423, 7
        %v2425 = vsub.s32 0, %v2424
        %v2426 = vrot.slane %v2170, %v2425
        %v2427 = vlaneseq
        %v2428 = vshrl.u32 %v2427, 7
        %v2429 = vsub.s32 0, %v2428
        %v2430 = vrot.slane %v2177, %v2429
        %v2431 = vlaneseq
        %v2432 = vshrl.u32 %v2431, 7
        %v2433 = vsub.s32 0, %v2432
        %v2434 = vrot.slane %v2178, %v2433
        %v2435 = vlaneseq
        %v2436 = vshrl.u32 %v2435, 7
        %v2437 = vsub.s32 0, %v2436
        %v2438 = vrot.slane %v2185, %v2437
        %v2439 = vlaneseq
        %v2440 = vshrl.u32 %v2439, 7
        %v2441 = vsub.s32 0, %v2440
        %v2442 = vrot.slane %v2186, %v2441
        %v2443 = vlaneseq
        %v2444 = vshrl.u32 %v2443, 7
        %v2445 = vsub.s32 0, %v2444
        %v2446 = vrot.slane %v2193, %v2445
        %v2447 = vlaneseq
        %v2448 = vshrl.u32 %v2447, 7
        %v2449 = vsub.s32 0, %v2448
        %v2450 = vrot.slane %v2194, %v2449
        %v2451 = vlaneseq
        %v2452 = vshrl.u32 %v2451, 7
        %v2453 = vsub.s32 0, %v2452
        %v2454 = vrot.slane %v2201, %v2453
        %v2455 = vlaneseq
        %v2456 = vshrl.u32 %v2455, 7
        %v2457 = vsub.s32 0, %v2456
        %v2458 = vrot.slane %v2202, %v2457
        %v2459 = vlaneseq
        %v2460 = vshrl.u32 %v2459, 7
        %v2461 = vsub.s32 0, %v2460
        %v2462 = vrot.slane %v2209, %v2461
        %v2463 = vlaneseq
        %v2464 = vshrl.u32 %v2463, 7
        %v2465 = vsub.s32 0, %v2464
        %v2466 = vrot.slane %v2210, %v2465
        %v2467 = vlaneseq
        %v2468 = vshrl.u32 %v2467, 7
        %v2469 = vsub.s32 0, %v2468
        %v2470 = vrot.slane %v2217, %v2469
        %v2471 = vlaneseq
        %v2472 = vshrl.u32 %v2471, 7
        %v2473 = vsub.s32 0, %v2472
        %v2474 = vrot.slane %v2218, %v2473
        %v2475 = vlaneseq
        %v2476 = vshrl.u32 %v2475, 7
        %v2477 = vsub.s32 0, %v2476
        %v2478 = vrot.slane %v2225, %v2477
        %v2479 = vlaneseq
        %v2480 = vshrl.u32 %v2479, 7
        %v2481 = vsub.s32 0, %v2480
        %v2482 = vrot.slane %v2226, %v2481
        %v2483 = vlaneseq
        %v2484 = vshrl.u32 %v2483, 7
        %v2485 = vsub.s32 0, %v2484
        %v2486 = vrot.slane %v2233, %v2485
        %v2487 = vlaneseq
        %v2488 = vshrl.u32 %v2487, 7
        %v2489 = vsub.s32 0, %v2488
        %v2490 = vrot.slane %v2234, %v2489
        %v2491 = vlaneseq
        %v2492 = vshrl.u32 %v2491, 7
        %v2493 = vsub.s32 0, %v2492
        %v2494 = vrot.slane %v2241, %v2493
        %v2495 = vlaneseq
        %v2496 = vshrl.u32 %v2495, 7
        %v2497 = vsub.s32 0, %v2496
        %v2498 = vrot.slane %v2242, %v2497
        %v2499 = vlaneseq
        %v2500 = vshrl.u32 %v2499, 7
        %v2501 = vsub.s32 0, %v2500
        %v2502 = vrot.slane %v2249, %v2501
        %v2503 = vlaneseq
        %v2504 = vshrl.u32 %v2503, 7
        %v2505 = vsub.s32 0, %v2504
        %v2506 = vrot.slane %v2250, %v2505
        %v2507 = vlaneseq
        %v2508 = vshrl.u32 %v2507, 7
        %v2509 = vsub.s32 0, %v2508
        %v2510 = vrot.slane %v2257, %v2509
        %v2511 = vlaneseq
        %v2512 = vshrl.u32 %v2511, 7
        %v2513 = vsub.s32 0, %v2512
        %v2514 = vrot.slane %v2258, %v2513
        %v2515 = vlaneseq
        %v2516 = vshrl.u32 %v2515, 7
        %v2517 = vsub.s32 0, %v2516
        %v2518 = vrot.slane %v2265, %v2517
        %v2519 = vlaneseq
        %v2520 = vshrl.u32 %v2519, 7
        %v2521 = vsub.s32 0, %v2520
        %v2522 = vrot.slane %v2266, %v2521
        %v2523 = vlaneseq
        %v2524 = vshrl.u32 %v2523, 7
        %v2525 = vsub.s32 0, %v2524
        %v2526 = vrot.slane %v2273, %v2525
        %v2527 = vlaneseq
        %v2528 = vshrl.u32 %v2527, 7
        %v2529 = vsub.s32 0, %v2528
        %v2530 = vrot.slane %v2274, %v2529
        %v2531 = vlaneseq
        %v2532 = vshrl.u32 %v2531, 7
        %v2533 = vsub.s32 0, %v2532
        %v2534 = vrot.slane %v2281, %v2533
        %v2535 = vlaneseq
        %v2536 = vshrl.u32 %v2535, 7
        %v2537 = vsub.s32 0, %v2536
        %v2538 = vrot.slane %v2282, %v2537
        %v2539 = vlaneseq
        %v2540 = vshrl.u32 %v2539, 7
        %v2541 = vsub.s32 0, %v2540
        %v2542 = vrot.slane %v2289, %v2541
        %v2543 = vlaneseq
        %v2544 = vshrl.u32 %v2543, 7
        %v2545 = vsub.s32 0, %v2544
        %v2546 = vrot.slane %v2290, %v2545
        %v2547 = vlaneseq
        %v2548 = vshrl.u32 %v2547, 7
        %v2549 = vsub.s32 0, %v2548
        %v2550 = vrot.slane %v2297, %v2549
        %v2551 = vlaneseq
        %v2552 = vshrl.u32 %v2551, 7
        %v2553 = vsub.s32 0, %v2552
        %v2554 = vrot.slane %v2298, %v2553
        %v2555 = vlaneseq
        %v2556 = vshrl.u32 %v2555, 7
        %v2557 = vsub.s32 0, %v2556
        %v2558 = vrot.slane %v2305, %v2557
        %v2559 = vlaneseq
        %v2560 = vshrl.u32 %v2559, 7
        %v2561 = vsub.s32 0, %v2560
        %v2562 = vrot.slane %v2306, %v2561
        %v2563 = vlaneseq
        %v2564 = vshrl.u32 %v2563, 7
        %v2565 = vsub.s32 0, %v2564
        %v2566 = vrot.slane %v2313, %v2565
        %v2567 = vlaneseq
        %v2568 = vshrl.u32 %v2567, 7
        %v2569 = vsub.s32 0, %v2568
        %v2570 = vrot.slane %v2314, %v2569
        %v2571 = vlaneseq
        %v2572 = vshrl.u32 %v2571, 7
        %v2573 = vsub.s32 0, %v2572
        %v2574 = vrot.slane %v2321, %v2573
        %v2575 = vlaneseq
        %v2576 = vshrl.u32 %v2575, 7
        %v2577 = vsub.s32 0, %v2576
        %v2578 = vrot.slane %v2322, %v2577
        %v2579 = vlaneseq
        %v2580 = vshrl.u32 %v2579, 7
        %v2581 = vsub.s32 0, %v2580
        %v2582 = vrot.slane %v2329, %v2581
        %v2583 = vlaneseq
        %v2584 = vshrl.u32 %v2583, 7
        %v2585 = vsub.s32 0, %v2584
        %v2586 = vrot.slane %v2330, %v2585
        %v2587 = vlaneseq
        %v2588 = vshrl.u32 %v2587, 7
        %v2589 = vsub.s32 0, %v2588
        %v2590 = vrot.slane %v2337, %v2589
        %v2591 = vlaneseq
        %v2592 = vshrl.u32 %v2591, 7
        %v2593 = vsub.s32 0, %v2592
        %v2594 = vrot.slane %v2338, %v2593
        %v2595 = vlaneseq
        %v2596 = vshrl.u32 %v2595, 7
        %v2597 = vsub.s32 0, %v2596
        %v2598 = vrot.slane %v2345, %v2597
        %v2599 = vlaneseq
        %v2600 = vshrl.u32 %v2599, 7
        %v2601 = vsub.s32 0, %v2600
        %v2602 = vrot.slane %v2346, %v2601
        %v2603 = vlaneseq
        %v2604 = vshrl.u32 %v2603, 7
        %v2605 = vsub.s32 0, %v2604
        %v2606 = vrot.slane %v2353, %v2605
        %v2607 = vlaneseq
        %v2608 = vshrl.u32 %v2607, 7
        %v2609 = vsub.s32 0, %v2608
        %v2610 = vrot.slane %v2354, %v2609
        %v2611 = vlaneseq
        %v2612 = vshrl.u32 %v2611, 7
        %v2613 = vsub.s32 0, %v2612
        %v2614 = vrot.slane %v2361, %v2613
        %v2615 = vlaneseq
        %v2616 = vshrl.u32 %v2615, 7
        %v2617 = vsub.s32 0, %v2616
        %v2618 = vrot.slane %v2362, %v2617
        %v2619 = vlaneseq
        %v2620 = vshrl.u32 %v2619, 7
        %v2621 = vsub.s32 0, %v2620
        %v2622 = vrot.slane %v2369, %v2621
        %v2623 = vlaneseq
        %v2624 = vshrl.u32 %v2623, 7
        %v2625 = vsub.s32 0, %v2624
        %v2626 = vrot.slane %v2370, %v2625
        %v2723 = vcombine.high %v1989, %v1989
        %v2725 = vunpack.c.l.s4 1983009808
        %v2726 = vunpack.c.0.s8 %v2725
        %v2727 = vlaneseq
        %v2728 = vshrl.u32 %v2727, 7
        %v2729 = vsub.s32 %v2726, %v2728
        %v2730 = vrot.slane %v1989, %v2729
        %v2732 = vunpack.c.l.s4 1983009808
        %v2733 = vunpack.c.0.s8 %v2732
        %v2734 = vlaneseq
        %v2735 = vshrl.u32 %v2734, 7
        %v2736 = vsub.s32 %v2733, %v2735
        %v2737 = vrot.slane %v2723, %v2736
        %v2738 = vcombine.high %v2730, %v2730
        %v2739 = vcombine.high %v2737, %v2737
        %v2740 = vcombine.high %v1992, %v1992
        %v2742 = vunpack.c.l.s4 1983009808
        %v2743 = vunpack.c.0.s8 %v2742
        %v2744 = vlaneseq
        %v2745 = vshrl.u32 %v2744, 7
        %v2746 = vsub.s32 %v2743, %v2745
        %v2747 = vrot.slane %v1992, %v2746
        %v2749 = vunpack.c.l.s4 1983009808
        %v2750 = vunpack.c.0.s8 %v2749
        %v2751 = vlaneseq
        %v2752 = vshrl.u32 %v2751, 7
        %v2753 = vsub.s32 %v2750, %v2752
        %v2754 = vrot.slane %v2740, %v2753
        %v2755 = vcombine.high %v2747, %v2747
        %v2756 = vcombine.high %v2754, %v2754
        %v2757 = vcombine.high %v1997, %v1997
        %v2759 = vunpack.c.l.s4 1983009808
        %v2760 = vunpack.c.0.s8 %v2759
        %v2761 = vlaneseq
        %v2762 = vshrl.u32 %v2761, 7
        %v2763 = vsub.s32 %v2760, %v2762
        %v2764 = vrot.slane %v1997, %v2763
        %v2766 = vunpack.c.l.s4 1983009808
        %v2767 = vunpack.c.0.s8 %v2766
        %v2768 = vlaneseq
        %v2769 = vshrl.u32 %v2768, 7
        %v2770 = vsub.s32 %v2767, %v2769
        %v2771 = vrot.slane %v2757, %v2770
        %v2772 = vcombine.high %v2764, %v2764
        %v2773 = vcombine.high %v2771, %v2771
        %v2774 = vcombine.high %v2000, %v2000
        %v2776 = vunpack.c.l.s4 1983009808
        %v2777 = vunpack.c.0.s8 %v2776
        %v2778 = vlaneseq
        %v2779 = vshrl.u32 %v2778, 7
        %v2780 = vsub.s32 %v2777, %v2779
        %v2781 = vrot.slane %v2000, %v2780
        %v2783 = vunpack.c.l.s4 1983009808
        %v2784 = vunpack.c.0.s8 %v2783
        %v2785 = vlaneseq
        %v2786 = vshrl.u32 %v2785, 7
        %v2787 = vsub.s32 %v2784, %v2786
        %v2788 = vrot.slane %v2774, %v2787
        %v2789 = vcombine.high %v2781, %v2781
        %v2790 = vcombine.high %v2788, %v2788
        %v2791 = vcombine.high %v2005, %v2005
        %v2793 = vunpack.c.l.s4 1983009808
        %v2794 = vunpack.c.0.s8 %v2793
        %v2795 = vlaneseq
        %v2796 = vshrl.u32 %v2795, 7
        %v2797 = vsub.s32 %v2794, %v2796
        %v2798 = vrot.slane %v2005, %v2797
        %v2800 = vunpack.c.l.s4 1983009808
        %v2801 = vunpack.c.0.s8 %v2800
        %v2802 = vlaneseq
        %v2803 = vshrl.u32 %v2802, 7
        %v2804 = vsub.s32 %v2801, %v2803
        %v2805 = vrot.slane %v2791, %v2804
        %v2806 = vcombine.high %v2798, %v2798
        %v2807 = vcombine.high %v2805, %v2805
        %v2808 = vcombine.high %v2008, %v2008
        %v2810 = vunpack.c.l.s4 1983009808
        %v2811 = vunpack.c.0.s8 %v2810
        %v2812 = vlaneseq
        %v2813 = vshrl.u32 %v2812, 7
        %v2814 = vsub.s32 %v2811, %v2813
        %v2815 = vrot.slane %v2008, %v2814
        %v2817 = vunpack.c.l.s4 1983009808
        %v2818 = vunpack.c.0.s8 %v2817
        %v2819 = vlaneseq
        %v2820 = vshrl.u32 %v2819, 7
        %v2821 = vsub.s32 %v2818, %v2820
        %v2822 = vrot.slane %v2808, %v2821
        %v2823 = vcombine.high %v2815, %v2815
        %v2824 = vcombine.high %v2822, %v2822
        %v2825 = vcombine.high %v2013, %v2013
        %v2827 = vunpack.c.l.s4 1983009808
        %v2828 = vunpack.c.0.s8 %v2827
        %v2829 = vlaneseq
        %v2830 = vshrl.u32 %v2829, 7
        %v2831 = vsub.s32 %v2828, %v2830
        %v2832 = vrot.slane %v2013, %v2831
        %v2834 = vunpack.c.l.s4 1983009808
        %v2835 = vunpack.c.0.s8 %v2834
        %v2836 = vlaneseq
        %v2837 = vshrl.u32 %v2836, 7
        %v2838 = vsub.s32 %v2835, %v2837
        %v2839 = vrot.slane %v2825, %v2838
        %v2840 = vcombine.high %v2832, %v2832
        %v2841 = vcombine.high %v2839, %v2839
        %v2842 = vcombine.high %v2016, %v2016
        %v2844 = vunpack.c.l.s4 1983009808
        %v2845 = vunpack.c.0.s8 %v2844
        %v2846 = vlaneseq
        %v2847 = vshrl.u32 %v2846, 7
        %v2848 = vsub.s32 %v2845, %v2847
        %v2849 = vrot.slane %v2016, %v2848
        %v2851 = vunpack.c.l.s4 1983009808
        %v2852 = vunpack.c.0.s8 %v2851
        %v2853 = vlaneseq
        %v2854 = vshrl.u32 %v2853, 7
        %v2855 = vsub.s32 %v2852, %v2854
        %v2856 = vrot.slane %v2842, %v2855
        %v2857 = vcombine.high %v2849, %v2849
        %v2858 = vcombine.high %v2856, %v2856
        %v2859 = vcombine.high %v2021, %v2021
        %v2861 = vunpack.c.l.s4 1983009808
        %v2862 = vunpack.c.0.s8 %v2861
        %v2863 = vlaneseq
        %v2864 = vshrl.u32 %v2863, 7
        %v2865 = vsub.s32 %v2862, %v2864
        %v2866 = vrot.slane %v2021, %v2865
        %v2868 = vunpack.c.l.s4 1983009808
        %v2869 = vunpack.c.0.s8 %v2868
        %v2870 = vlaneseq
        %v2871 = vshrl.u32 %v2870, 7
        %v2872 = vsub.s32 %v2869, %v2871
        %v2873 = vrot.slane %v2859, %v2872
        %v2874 = vcombine.high %v2866, %v2866
        %v2875 = vcombine.high %v2873, %v2873
        %v2876 = vcombine.high %v2024, %v2024
        %v2878 = vunpack.c.l.s4 1983009808
        %v2879 = vunpack.c.0.s8 %v2878
        %v2880 = vlaneseq
        %v2881 = vshrl.u32 %v2880, 7
        %v2882 = vsub.s32 %v2879, %v2881
        %v2883 = vrot.slane %v2024, %v2882
        %v2885 = vunpack.c.l.s4 1983009808
        %v2886 = vunpack.c.0.s8 %v2885
        %v2887 = vlaneseq
        %v2888 = vshrl.u32 %v2887, 7
        %v2889 = vsub.s32 %v2886, %v2888
        %v2890 = vrot.slane %v2876, %v2889
        %v2891 = vcombine.high %v2883, %v2883
        %v2892 = vcombine.high %v2890, %v2890
        %v2893 = vcombine.high %v2029, %v2029
        %v2895 = vunpack.c.l.s4 1983009808
        %v2896 = vunpack.c.0.s8 %v2895
        %v2897 = vlaneseq
        %v2898 = vshrl.u32 %v2897, 7
        %v2899 = vsub.s32 %v2896, %v2898
        %v2900 = vrot.slane %v2029, %v2899
        %v2902 = vunpack.c.l.s4 1983009808
        %v2903 = vunpack.c.0.s8 %v2902
        %v2904 = vlaneseq
        %v2905 = vshrl.u32 %v2904, 7
        %v2906 = vsub.s32 %v2903, %v2905
        %v2907 = vrot.slane %v2893, %v2906
        %v2908 = vcombine.high %v2900, %v2900
        %v2909 = vcombine.high %v2907, %v2907
        %v2910 = vcombine.high %v2032, %v2032
        %v2912 = vunpack.c.l.s4 1983009808
        %v2913 = vunpack.c.0.s8 %v2912
        %v2914 = vlaneseq
        %v2915 = vshrl.u32 %v2914, 7
        %v2916 = vsub.s32 %v2913, %v2915
        %v2917 = vrot.slane %v2032, %v2916
        %v2919 = vunpack.c.l.s4 1983009808
        %v2920 = vunpack.c.0.s8 %v2919
        %v2921 = vlaneseq
        %v2922 = vshrl.u32 %v2921, 7
        %v2923 = vsub.s32 %v2920, %v2922
        %v2924 = vrot.slane %v2910, %v2923
        %v2925 = vcombine.high %v2917, %v2917
        %v2926 = vcombine.high %v2924, %v2924
        %v2927 = vcombine.high %v2037, %v2037
        %v2929 = vunpack.c.l.s4 1983009808
        %v2930 = vunpack.c.0.s8 %v2929
        %v2931 = vlaneseq
        %v2932 = vshrl.u32 %v2931, 7
        %v2933 = vsub.s32 %v2930, %v2932
        %v2934 = vrot.slane %v2037, %v2933
        %v2936 = vunpack.c.l.s4 1983009808
        %v2937 = vunpack.c.0.s8 %v2936
        %v2938 = vlaneseq
        %v2939 = vshrl.u32 %v2938, 7
        %v2940 = vsub.s32 %v2937, %v2939
        %v2941 = vrot.slane %v2927, %v2940
        %v2942 = vcombine.high %v2934, %v2934
        %v2943 = vcombine.high %v2941, %v2941
        %v2944 = vcombine.high %v2040, %v2040
        %v2946 = vunpack.c.l.s4 1983009808
        %v2947 = vunpack.c.0.s8 %v2946
        %v2948 = vlaneseq
        %v2949 = vshrl.u32 %v2948, 7
        %v2950 = vsub.s32 %v2947, %v2949
        %v2951 = vrot.slane %v2040, %v2950
        %v2953 = vunpack.c.l.s4 1983009808
        %v2954 = vunpack.c.0.s8 %v2953
        %v2955 = vlaneseq
        %v2956 = vshrl.u32 %v2955, 7
        %v2957 = vsub.s32 %v2954, %v2956
        %v2958 = vrot.slane %v2944, %v2957
        %v2959 = vcombine.high %v2951, %v2951
        %v2960 = vcombine.high %v2958, %v2958
        %v2961 = vcombine.high %v2045, %v2045
        %v2963 = vunpack.c.l.s4 1983009808
        %v2964 = vunpack.c.0.s8 %v2963
        %v2965 = vlaneseq
        %v2966 = vshrl.u32 %v2965, 7
        %v2967 = vsub.s32 %v2964, %v2966
        %v2968 = vrot.slane %v2045, %v2967
        %v2970 = vunpack.c.l.s4 1983009808
        %v2971 = vunpack.c.0.s8 %v2970
        %v2972 = vlaneseq
        %v2973 = vshrl.u32 %v2972, 7
        %v2974 = vsub.s32 %v2971, %v2973
        %v2975 = vrot.slane %v2961, %v2974
        %v2976 = vcombine.high %v2968, %v2968
        %v2977 = vcombine.high %v2975, %v2975
        %v2978 = vcombine.high %v2048, %v2048
        %v2980 = vunpack.c.l.s4 1983009808
        %v2981 = vunpack.c.0.s8 %v2980
        %v2982 = vlaneseq
        %v2983 = vshrl.u32 %v2982, 7
        %v2984 = vsub.s32 %v2981, %v2983
        %v2985 = vrot.slane %v2048, %v2984
        %v2987 = vunpack.c.l.s4 1983009808
        %v2988 = vunpack.c.0.s8 %v2987
        %v2989 = vlaneseq
        %v2990 = vshrl.u32 %v2989, 7
        %v2991 = vsub.s32 %v2988, %v2990
        %v2992 = vrot.slane %v2978, %v2991
        %v2993 = vcombine.high %v2985, %v2985
        %v2994 = vcombine.high %v2992, %v2992
        %v2995 = vcombine.high %v2053, %v2053
        %v2997 = vunpack.c.l.s4 1983009808
        %v2998 = vunpack.c.0.s8 %v2997
        %v2999 = vlaneseq
        %v3000 = vshrl.u32 %v2999, 7
        %v3001 = vsub.s32 %v2998, %v3000
        %v3002 = vrot.slane %v2053, %v3001
        %v3004 = vunpack.c.l.s4 1983009808
        %v3005 = vunpack.c.0.s8 %v3004
        %v3006 = vlaneseq
        %v3007 = vshrl.u32 %v3006, 7
        %v3008 = vsub.s32 %v3005, %v3007
        %v3009 = vrot.slane %v2995, %v3008
        %v3010 = vcombine.high %v3002, %v3002
        %v3011 = vcombine.high %v3009, %v3009
        %v3012 = vcombine.high %v2056, %v2056
        %v3014 = vunpack.c.l.s4 1983009808
        %v3015 = vunpack.c.0.s8 %v3014
        %v3016 = vlaneseq
        %v3017 = vshrl.u32 %v3016, 7
        %v3018 = vsub.s32 %v3015, %v3017
        %v3019 = vrot.slane %v2056, %v3018
        %v3021 = vunpack.c.l.s4 1983009808
        %v3022 = vunpack.c.0.s8 %v3021
        %v3023 = vlaneseq
        %v3024 = vshrl.u32 %v3023, 7
        %v3025 = vsub.s32 %v3022, %v3024
        %v3026 = vrot.slane %v3012, %v3025
        %v3027 = vcombine.high %v3019, %v3019
        %v3028 = vcombine.high %v3026, %v3026
        %v3029 = vcombine.high %v2061, %v2061
        %v3031 = vunpack.c.l.s4 1983009808
        %v3032 = vunpack.c.0.s8 %v3031
        %v3033 = vlaneseq
        %v3034 = vshrl.u32 %v3033, 7
        %v3035 = vsub.s32 %v3032, %v3034
        %v3036 = vrot.slane %v2061, %v3035
        %v3038 = vunpack.c.l.s4 1983009808
        %v3039 = vunpack.c.0.s8 %v3038
        %v3040 = vlaneseq
        %v3041 = vshrl.u32 %v3040, 7
        %v3042 = vsub.s32 %v3039, %v3041
        %v3043 = vrot.slane %v3029, %v3042
        %v3044 = vcombine.high %v3036, %v3036
        %v3045 = vcombine.high %v3043, %v3043
        %v3046 = vcombine.high %v2064, %v2064
        %v3048 = vunpack.c.l.s4 1983009808
        %v3049 = vunpack.c.0.s8 %v3048
        %v3050 = vlaneseq
        %v3051 = vshrl.u32 %v3050, 7
        %v3052 = vsub.s32 %v3049, %v3051
        %v3053 = vrot.slane %v2064, %v3052
        %v3055 = vunpack.c.l.s4 1983009808
        %v3056 = vunpack.c.0.s8 %v3055
        %v3057 = vlaneseq
        %v3058 = vshrl.u32 %v3057, 7
        %v3059 = vsub.s32 %v3056, %v3058
        %v3060 = vrot.slane %v3046, %v3059
        %v3061 = vcombine.high %v3053, %v3053
        %v3062 = vcombine.high %v3060, %v3060
        %v3063 = vcombine.high %v2069, %v2069
        %v3065 = vunpack.c.l.s4 1983009808
        %v3066 = vunpack.c.0.s8 %v3065
        %v3067 = vlaneseq
        %v3068 = vshrl.u32 %v3067, 7
        %v3069 = vsub.s32 %v3066, %v3068
        %v3070 = vrot.slane %v2069, %v3069
        %v3072 = vunpack.c.l.s4 1983009808
        %v3073 = vunpack.c.0.s8 %v3072
        %v3074 = vlaneseq
        %v3075 = vshrl.u32 %v3074, 7
        %v3076 = vsub.s32 %v3073, %v3075
        %v3077 = vrot.slane %v3063, %v3076
        %v3078 = vcombine.high %v3070, %v3070
        %v3079 = vcombine.high %v3077, %v3077
        %v3080 = vcombine.high %v2072, %v2072
        %v3082 = vunpack.c.l.s4 1983009808
        %v3083 = vunpack.c.0.s8 %v3082
        %v3084 = vlaneseq
        %v3085 = vshrl.u32 %v3084, 7
        %v3086 = vsub.s32 %v3083, %v3085
        %v3087 = vrot.slane %v2072, %v3086
        %v3089 = vunpack.c.l.s4 1983009808
        %v3090 = vunpack.c.0.s8 %v3089
        %v3091 = vlaneseq
        %v3092 = vshrl.u32 %v3091, 7
        %v3093 = vsub.s32 %v3090, %v3092
        %v3094 = vrot.slane %v3080, %v3093
        %v3095 = vcombine.high %v3087, %v3087
        %v3096 = vcombine.high %v3094, %v3094
        %v3097 = vcombine.high %v2077, %v2077
        %v3099 = vunpack.c.l.s4 1983009808
        %v3100 = vunpack.c.0.s8 %v3099
        %v3101 = vlaneseq
        %v3102 = vshrl.u32 %v3101, 7
        %v3103 = vsub.s32 %v3100, %v3102
        %v3104 = vrot.slane %v2077, %v3103
        %v3106 = vunpack.c.l.s4 1983009808
        %v3107 = vunpack.c.0.s8 %v3106
        %v3108 = vlaneseq
        %v3109 = vshrl.u32 %v3108, 7
        %v3110 = vsub.s32 %v3107, %v3109
        %v3111 = vrot.slane %v3097, %v3110
        %v3112 = vcombine.high %v3104, %v3104
        %v3113 = vcombine.high %v3111, %v3111
        %v3114 = vcombine.high %v2080, %v2080
        %v3116 = vunpack.c.l.s4 1983009808
        %v3117 = vunpack.c.0.s8 %v3116
        %v3118 = vlaneseq
        %v3119 = vshrl.u32 %v3118, 7
        %v3120 = vsub.s32 %v3117, %v3119
        %v3121 = vrot.slane %v2080, %v3120
        %v3123 = vunpack.c.l.s4 1983009808
        %v3124 = vunpack.c.0.s8 %v3123
        %v3125 = vlaneseq
        %v3126 = vshrl.u32 %v3125, 7
        %v3127 = vsub.s32 %v3124, %v3126
        %v3128 = vrot.slane %v3114, %v3127
        %v3129 = vcombine.high %v3121, %v3121
        %v3130 = vcombine.high %v3128, %v3128
        %v3131 = vcombine.high %v2085, %v2085
        %v3133 = vunpack.c.l.s4 1983009808
        %v3134 = vunpack.c.0.s8 %v3133
        %v3135 = vlaneseq
        %v3136 = vshrl.u32 %v3135, 7
        %v3137 = vsub.s32 %v3134, %v3136
        %v3138 = vrot.slane %v2085, %v3137
        %v3140 = vunpack.c.l.s4 1983009808
        %v3141 = vunpack.c.0.s8 %v3140
        %v3142 = vlaneseq
        %v3143 = vshrl.u32 %v3142, 7
        %v3144 = vsub.s32 %v3141, %v3143
        %v3145 = vrot.slane %v3131, %v3144
        %v3146 = vcombine.high %v3138, %v3138
        %v3147 = vcombine.high %v3145, %v3145
        %v3148 = vcombine.high %v2088, %v2088
        %v3150 = vunpack.c.l.s4 1983009808
        %v3151 = vunpack.c.0.s8 %v3150
        %v3152 = vlaneseq
        %v3153 = vshrl.u32 %v3152, 7
        %v3154 = vsub.s32 %v3151, %v3153
        %v3155 = vrot.slane %v2088, %v3154
        %v3157 = vunpack.c.l.s4 1983009808
        %v3158 = vunpack.c.0.s8 %v3157
        %v3159 = vlaneseq
        %v3160 = vshrl.u32 %v3159, 7
        %v3161 = vsub.s32 %v3158, %v3160
        %v3162 = vrot.slane %v3148, %v3161
        %v3163 = vcombine.high %v3155, %v3155
        %v3164 = vcombine.high %v3162, %v3162
        %v3165 = vcombine.high %v2093, %v2093
        %v3167 = vunpack.c.l.s4 1983009808
        %v3168 = vunpack.c.0.s8 %v3167
        %v3169 = vlaneseq
        %v3170 = vshrl.u32 %v3169, 7
        %v3171 = vsub.s32 %v3168, %v3170
        %v3172 = vrot.slane %v2093, %v3171
        %v3174 = vunpack.c.l.s4 1983009808
        %v3175 = vunpack.c.0.s8 %v3174
        %v3176 = vlaneseq
        %v3177 = vshrl.u32 %v3176, 7
        %v3178 = vsub.s32 %v3175, %v3177
        %v3179 = vrot.slane %v3165, %v3178
        %v3180 = vcombine.high %v3172, %v3172
        %v3181 = vcombine.high %v3179, %v3179
        %v3182 = vcombine.high %v2096, %v2096
        %v3184 = vunpack.c.l.s4 1983009808
        %v3185 = vunpack.c.0.s8 %v3184
        %v3186 = vlaneseq
        %v3187 = vshrl.u32 %v3186, 7
        %v3188 = vsub.s32 %v3185, %v3187
        %v3189 = vrot.slane %v2096, %v3188
        %v3191 = vunpack.c.l.s4 1983009808
        %v3192 = vunpack.c.0.s8 %v3191
        %v3193 = vlaneseq
        %v3194 = vshrl.u32 %v3193, 7
        %v3195 = vsub.s32 %v3192, %v3194
        %v3196 = vrot.slane %v3182, %v3195
        %v3197 = vcombine.high %v3189, %v3189
        %v3198 = vcombine.high %v3196, %v3196
        %v3199 = vcombine.high %v2101, %v2101
        %v3201 = vunpack.c.l.s4 1983009808
        %v3202 = vunpack.c.0.s8 %v3201
        %v3203 = vlaneseq
        %v3204 = vshrl.u32 %v3203, 7
        %v3205 = vsub.s32 %v3202, %v3204
        %v3206 = vrot.slane %v2101, %v3205
        %v3208 = vunpack.c.l.s4 1983009808
        %v3209 = vunpack.c.0.s8 %v3208
        %v3210 = vlaneseq
        %v3211 = vshrl.u32 %v3210, 7
        %v3212 = vsub.s32 %v3209, %v3211
        %v3213 = vrot.slane %v3199, %v3212
        %v3214 = vcombine.high %v3206, %v3206
        %v3215 = vcombine.high %v3213, %v3213
        %v3216 = vcombine.high %v2104, %v2104
        %v3218 = vunpack.c.l.s4 1983009808
        %v3219 = vunpack.c.0.s8 %v3218
        %v3220 = vlaneseq
        %v3221 = vshrl.u32 %v3220, 7
        %v3222 = vsub.s32 %v3219, %v3221
        %v3223 = vrot.slane %v2104, %v3222
        %v3225 = vunpack.c.l.s4 1983009808
        %v3226 = vunpack.c.0.s8 %v3225
        %v3227 = vlaneseq
        %v3228 = vshrl.u32 %v3227, 7
        %v3229 = vsub.s32 %v3226, %v3228
        %v3230 = vrot.slane %v3216, %v3229
        %v3231 = vcombine.high %v3223, %v3223
        %v3232 = vcombine.high %v3230, %v3230
        %v3233 = vcombine.high %v2109, %v2109
        %v3235 = vunpack.c.l.s4 1983009808
        %v3236 = vunpack.c.0.s8 %v3235
        %v3237 = vlaneseq
        %v3238 = vshrl.u32 %v3237, 7
        %v3239 = vsub.s32 %v3236, %v3238
        %v3240 = vrot.slane %v2109, %v3239
        %v3242 = vunpack.c.l.s4 1983009808
        %v3243 = vunpack.c.0.s8 %v3242
        %v3244 = vlaneseq
        %v3245 = vshrl.u32 %v3244, 7
        %v3246 = vsub.s32 %v3243, %v3245
        %v3247 = vrot.slane %v3233, %v3246
        %v3248 = vcombine.high %v3240, %v3240
        %v3249 = vcombine.high %v3247, %v3247
        %v3250 = vcombine.high %v2112, %v2112
        %v3252 = vunpack.c.l.s4 1983009808
        %v3253 = vunpack.c.0.s8 %v3252
        %v3254 = vlaneseq
        %v3255 = vshrl.u32 %v3254, 7
        %v3256 = vsub.s32 %v3253, %v3255
        %v3257 = vrot.slane %v2112, %v3256
        %v3259 = vunpack.c.l.s4 1983009808
        %v3260 = vunpack.c.0.s8 %v3259
        %v3261 = vlaneseq
        %v3262 = vshrl.u32 %v3261, 7
        %v3263 = vsub.s32 %v3260, %v3262
        %v3264 = vrot.slane %v3250, %v3263
        %v3265 = vcombine.high %v3257, %v3257
        %v3266 = vcombine.high %v3264, %v3264
        %v3395 = vadd.f32 %v2374, %v2730
        %v3396 = vadd.f32 %v2378, %v2738
        %v3397 = vadd.f32 %v2382, %v2737
        %v3398 = vadd.f32 %v2386, %v2739
        %v3399 = vadd.f32 %v2390, %v2747
        %v3400 = vadd.f32 %v2394, %v2755
        %v3401 = vadd.f32 %v2398, %v2754
        %v3402 = vadd.f32 %v2402, %v2756
        %v3403 = vadd.f32 %v2374, %v2764
        %v3404 = vadd.f32 %v2378, %v2772
        %v3405 = vadd.f32 %v2382, %v2771
        %v3406 = vadd.f32 %v2386, %v2773
        %v3407 = vadd.f32 %v2390, %v2781
        %v3408 = vadd.f32 %v2394, %v2789
        %v3409 = vadd.f32 %v2398, %v2788
        %v3410 = vadd.f32 %v2402, %v2790
        %v3411 = vadd.f32 %v2406, %v2798
        %v3412 = vadd.f32 %v2410, %v2806
        %v3413 = vadd.f32 %v2414, %v2805
        %v3414 = vadd.f32 %v2418, %v2807
        %v3415 = vadd.f32 %v2422, %v2815
        %v3416 = vadd.f32 %v2426, %v2823
        %v3417 = vadd.f32 %v2430, %v2822
        %v3418 = vadd.f32 %v2434, %v2824
        %v3419 = vadd.f32 %v2406, %v2832
        %v3420 = vadd.f32 %v2410, %v2840
        %v3421 = vadd.f32 %v2414, %v2839
        %v3422 = vadd.f32 %v2418, %v2841
        %v3423 = vadd.f32 %v2422, %v2849
        %v3424 = vadd.f32 %v2426, %v2857
        %v3425 = vadd.f32 %v2430, %v2856
        %v3426 = vadd.f32 %v2434, %v2858
        %v3427 = vadd.f32 %v2438, %v2866
        %v3428 = vadd.f32 %v2442, %v2874
        %v3429 = vadd.f32 %v2446, %v2873
        %v3430 = vadd.f32 %v2450, %v2875
        %v3431 = vadd.f32 %v2454, %v2883
        %v3432 = vadd.f32 %v2458, %v2891
        %v3433 = vadd.f32 %v2462, %v2890
        %v3434 = vadd.f32 %v2466, %v2892
        %v3435 = vadd.f32 %v2438, %v2900
        %v3436 = vadd.f32 %v2442, %v2908
        %v3437 = vadd.f32 %v2446, %v2907
        %v3438 = vadd.f32 %v2450, %v2909
        %v3439 = vadd.f32 %v2454, %v2917
        %v3440 = vadd.f32 %v2458, %v2925
        %v3441 = vadd.f32 %v2462, %v2924
        %v3442 = vadd.f32 %v2466, %v2926
        %v3443 = vadd.f32 %v2470, %v2934
        %v3444 = vadd.f32 %v2474, %v2942
        %v3445 = vadd.f32 %v2478, %v2941
        %v3446 = vadd.f32 %v2482, %v2943
        %v3447 = vadd.f32 %v2486, %v2951
        %v3448 = vadd.f32 %v2490, %v2959
        %v3449 = vadd.f32 %v2494, %v2958
        %v3450 = vadd.f32 %v2498, %v2960
        %v3451 = vadd.f32 %v2470, %v2968
        %v3452 = vadd.f32 %v2474, %v2976
        %v3453 = vadd.f32 %v2478, %v2975
        %v3454 = vadd.f32 %v2482, %v2977
        %v3455 = vadd.f32 %v2486, %v2985
        %v3456 = vadd.f32 %v2490, %v2993
        %v3457 = vadd.f32 %v2494, %v2992
        %v3458 = vadd.f32 %v2498, %v2994
        %v3459 = vadd.f32 %v2502, %v3002
        %v3460 = vadd.f32 %v2506, %v3010
        %v3461 = vadd.f32 %v2510, %v3009
        %v3462 = vadd.f32 %v2514, %v3011
        %v3463 = vadd.f32 %v2518, %v3019
        %v3464 = vadd.f32 %v2522, %v3027
        %v3465 = vadd.f32 %v2526, %v3026
        %v3466 = vadd.f32 %v2530, %v3028
        %v3467 = vadd.f32 %v2502, %v3036
        %v3468 = vadd.f32 %v2506, %v3044
        %v3469 = vadd.f32 %v2510, %v3043
        %v3470 = vadd.f32 %v2514, %v3045
        %v3471 = vadd.f32 %v2518, %v3053
        %v3472 = vadd.f32 %v2522, %v3061
        %v3473 = vadd.f32 %v2526, %v3060
        %v3474 = vadd.f32 %v2530, %v3062
        %v3475 = vadd.f32 %v2534, %v3070
        %v3476 = vadd.f32 %v2538, %v3078
        %v3477 = vadd.f32 %v2542, %v3077
        %v3478 = vadd.f32 %v2546, %v3079
        %v3479 = vadd.f32 %v2550, %v3087
        %v3480 = vadd.f32 %v2554, %v3095
        %v3481 = vadd.f32 %v2558, %v3094
        %v3482 = vadd.f32 %v2562, %v3096
        %v3483 = vadd.f32 %v2534, %v3104
        %v3484 = vadd.f32 %v2538, %v3112
        %v3485 = vadd.f32 %v2542, %v3111
        %v3486 = vadd.f32 %v2546, %v3113
        %v3487 = vadd.f32 %v2550, %v3121
        %v3488 = vadd.f32 %v2554, %v3129
        %v3489 = vadd.f32 %v2558, %v3128
        %v3490 = vadd.f32 %v2562, %v3130
        %v3491 = vadd.f32 %v2566, %v3138
        %v3492 = vadd.f32 %v2570, %v3146
        %v3493 = vadd.f32 %v2574, %v3145
        %v3494 = vadd.f32 %v2578, %v3147
        %v3495 = vadd.f32 %v2582, %v3155
        %v3496 = vadd.f32 %v2586, %v3163
        %v3497 = vadd.f32 %v2590, %v3162
        %v3498 = vadd.f32 %v2594, %v3164
        %v3499 = vadd.f32 %v2566, %v3172
        %v3500 = vadd.f32 %v2570, %v3180
        %v3501 = vadd.f32 %v2574, %v3179
        %v3502 = vadd.f32 %v2578, %v3181
        %v3503 = vadd.f32 %v2582, %v3189
        %v3504 = vadd.f32 %v2586, %v3197
        %v3505 = vadd.f32 %v2590, %v3196
        %v3506 = vadd.f32 %v2594, %v3198
        %v3507 = vadd.f32 %v2598, %v3206
        %v3508 = vadd.f32 %v2602, %v3214
        %v3509 = vadd.f32 %v2606, %v3213
        %v3510 = vadd.f32 %v2610, %v3215
        %v3511 = vadd.f32 %v2614, %v3223
        %v3512 = vadd.f32 %v2618, %v3231
        %v3513 = vadd.f32 %v2622, %v3230
        %v3514 = vadd.f32 %v2626, %v3232
        %v3515 = vadd.f32 %v2598, %v3240
        %v3516 = vadd.f32 %v2602, %v3248
        %v3517 = vadd.f32 %v2606, %v3247
        %v3518 = vadd.f32 %v2610, %v3249
        %v3519 = vadd.f32 %v2614, %v3257
        %v3520 = vadd.f32 %v2618, %v3265
        %v3521 = vadd.f32 %v2622, %v3264
        %v3522 = vadd.f32 %v2626, %v3266
        %v3651 = vcombine.low %v3395, %v3396
        %v3652 = vcombine.low %v3397, %v3398
        %v3654 = vunpack.c.l.s4 1983009808
        %v3655 = vunpack.c.0.s8 %v3654
        %v3656 = vlaneseq
        %v3657 = vshrl.u32 %v3656, 7
        %v3658 = vsub.s32 %v3655, %v3657
        %v3659 = vrot.slane %v3651, %v3658
        %v3661 = vunpack.c.l.s4 1983009808
        %v3662 = vunpack.c.0.s8 %v3661
        %v3663 = vlaneseq
        %v3664 = vshrl.u32 %v3663, 7
        %v3665 = vsub.s32 %v3662, %v3664
        %v3666 = vrot.slane %v3652, %v3665
        %v3667 = vcombine.low %v3659, %v3666
        %v3668 = vcombine.low %v3399, %v3400
        %v3669 = vcombine.low %v3401, %v3402
        %v3671 = vunpack.c.l.s4 1983009808
        %v3672 = vunpack.c.0.s8 %v3671
        %v3673 = vlaneseq
        %v3674 = vshrl.u32 %v3673, 7
        %v3675 = vsub.s32 %v3672, %v3674
        %v3676 = vrot.slane %v3668, %v3675
        %v3678 = vunpack.c.l.s4 1983009808
        %v3679 = vunpack.c.0.s8 %v3678
        %v3680 = vlaneseq
        %v3681 = vshrl.u32 %v3680, 7
        %v3682 = vsub.s32 %v3679, %v3681
        %v3683 = vrot.slane %v3669, %v3682
        %v3684 = vcombine.low %v3676, %v3683
        %v3685 = vcombine.low %v3403, %v3404
        %v3686 = vcombine.low %v3405, %v3406
        %v3688 = vunpack.c.l.s4 1983009808
        %v3689 = vunpack.c.0.s8 %v3688
        %v3690 = vlaneseq
        %v3691 = vshrl.u32 %v3690, 7
        %v3692 = vsub.s32 %v3689, %v3691
        %v3693 = vrot.slane %v3685, %v3692
        %v3695 = vunpack.c.l.s4 1983009808
        %v3696 = vunpack.c.0.s8 %v3695
        %v3697 = vlaneseq
        %v3698 = vshrl.u32 %v3697, 7
        %v3699 = vsub.s32 %v3696, %v3698
        %v3700 = vrot.slane %v3686, %v3699
        %v3701 = vcombine.low %v3693, %v3700
        %v3702 = vcombine.low %v3407, %v3408
        %v3703 = vcombine.low %v3409, %v3410
        %v3705 = vunpack.c.l.s4 1983009808
        %v3706 = vunpack.c.0.s8 %v3705
        %v3707 = vlaneseq
        %v3708 = vshrl.u32 %v3707, 7
        %v3709 = vsub.s32 %v3706, %v3708
        %v3710 = vrot.slane %v3702, %v3709
        %v3712 = vunpack.c.l.s4 1983009808
        %v3713 = vunpack.c.0.s8 %v3712
        %v3714 = vlaneseq
        %v3715 = vshrl.u32 %v3714, 7
        %v3716 = vsub.s32 %v3713, %v3715
        %v3717 = vrot.slane %v3703, %v3716
        %v3718 = vcombine.low %v3710, %v3717
        %v3719 = vcombine.low %v3411, %v3412
        %v3720 = vcombine.low %v3413, %v3414
        %v3722 = vunpack.c.l.s4 1983009808
        %v3723 = vunpack.c.0.s8 %v3722
        %v3724 = vlaneseq
        %v3725 = vshrl.u32 %v3724, 7
        %v3726 = vsub.s32 %v3723, %v3725
        %v3727 = vrot.slane %v3719, %v3726
        %v3729 = vunpack.c.l.s4 1983009808
        %v3730 = vunpack.c.0.s8 %v3729
        %v3731 = vlaneseq
        %v3732 = vshrl.u32 %v3731, 7
        %v3733 = vsub.s32 %v3730, %v3732
        %v3734 = vrot.slane %v3720, %v3733
        %v3735 = vcombine.low %v3727, %v3734
        %v3736 = vcombine.low %v3415, %v3416
        %v3737 = vcombine.low %v3417, %v3418
        %v3739 = vunpack.c.l.s4 1983009808
        %v3740 = vunpack.c.0.s8 %v3739
        %v3741 = vlaneseq
        %v3742 = vshrl.u32 %v3741, 7
        %v3743 = vsub.s32 %v3740, %v3742
        %v3744 = vrot.slane %v3736, %v3743
        %v3746 = vunpack.c.l.s4 1983009808
        %v3747 = vunpack.c.0.s8 %v3746
        %v3748 = vlaneseq
        %v3749 = vshrl.u32 %v3748, 7
        %v3750 = vsub.s32 %v3747, %v3749
        %v3751 = vrot.slane %v3737, %v3750
        %v3752 = vcombine.low %v3744, %v3751
        %v3753 = vcombine.low %v3419, %v3420
        %v3754 = vcombine.low %v3421, %v3422
        %v3756 = vunpack.c.l.s4 1983009808
        %v3757 = vunpack.c.0.s8 %v3756
        %v3758 = vlaneseq
        %v3759 = vshrl.u32 %v3758, 7
        %v3760 = vsub.s32 %v3757, %v3759
        %v3761 = vrot.slane %v3753, %v3760
        %v3763 = vunpack.c.l.s4 1983009808
        %v3764 = vunpack.c.0.s8 %v3763
        %v3765 = vlaneseq
        %v3766 = vshrl.u32 %v3765, 7
        %v3767 = vsub.s32 %v3764, %v3766
        %v3768 = vrot.slane %v3754, %v3767
        %v3769 = vcombine.low %v3761, %v3768
        %v3770 = vcombine.low %v3423, %v3424
        %v3771 = vcombine.low %v3425, %v3426
        %v3773 = vunpack.c.l.s4 1983009808
        %v3774 = vunpack.c.0.s8 %v3773
        %v3775 = vlaneseq
        %v3776 = vshrl.u32 %v3775, 7
        %v3777 = vsub.s32 %v3774, %v3776
        %v3778 = vrot.slane %v3770, %v3777
        %v3780 = vunpack.c.l.s4 1983009808
        %v3781 = vunpack.c.0.s8 %v3780
        %v3782 = vlaneseq
        %v3783 = vshrl.u32 %v3782, 7
        %v3784 = vsub.s32 %v3781, %v3783
        %v3785 = vrot.slane %v3771, %v3784
        %v3786 = vcombine.low %v3778, %v3785
        %v3787 = vcombine.low %v3427, %v3428
        %v3788 = vcombine.low %v3429, %v3430
        %v3790 = vunpack.c.l.s4 1983009808
        %v3791 = vunpack.c.0.s8 %v3790
        %v3792 = vlaneseq
        %v3793 = vshrl.u32 %v3792, 7
        %v3794 = vsub.s32 %v3791, %v3793
        %v3795 = vrot.slane %v3787, %v3794
        %v3797 = vunpack.c.l.s4 1983009808
        %v3798 = vunpack.c.0.s8 %v3797
        %v3799 = vlaneseq
        %v3800 = vshrl.u32 %v3799, 7
        %v3801 = vsub.s32 %v3798, %v3800
        %v3802 = vrot.slane %v3788, %v3801
        %v3803 = vcombine.low %v3795, %v3802
        %v3804 = vcombine.low %v3431, %v3432
        %v3805 = vcombine.low %v3433, %v3434
        %v3807 = vunpack.c.l.s4 1983009808
        %v3808 = vunpack.c.0.s8 %v3807
        %v3809 = vlaneseq
        %v3810 = vshrl.u32 %v3809, 7
        %v3811 = vsub.s32 %v3808, %v3810
        %v3812 = vrot.slane %v3804, %v3811
        %v3814 = vunpack.c.l.s4 1983009808
        %v3815 = vunpack.c.0.s8 %v3814
        %v3816 = vlaneseq
        %v3817 = vshrl.u32 %v3816, 7
        %v3818 = vsub.s32 %v3815, %v3817
        %v3819 = vrot.slane %v3805, %v3818
        %v3820 = vcombine.low %v3812, %v3819
        %v3821 = vcombine.low %v3435, %v3436
        %v3822 = vcombine.low %v3437, %v3438
        %v3824 = vunpack.c.l.s4 1983009808
        %v3825 = vunpack.c.0.s8 %v3824
        %v3826 = vlaneseq
        %v3827 = vshrl.u32 %v3826, 7
        %v3828 = vsub.s32 %v3825, %v3827
        %v3829 = vrot.slane %v3821, %v3828
        %v3831 = vunpack.c.l.s4 1983009808
        %v3832 = vunpack.c.0.s8 %v3831
        %v3833 = vlaneseq
        %v3834 = vshrl.u32 %v3833, 7
        %v3835 = vsub.s32 %v3832, %v3834
        %v3836 = vrot.slane %v3822, %v3835
        %v3837 = vcombine.low %v3829, %v3836
        %v3838 = vcombine.low %v3439, %v3440
        %v3839 = vcombine.low %v3441, %v3442
        %v3841 = vunpack.c.l.s4 1983009808
        %v3842 = vunpack.c.0.s8 %v3841
        %v3843 = vlaneseq
        %v3844 = vshrl.u32 %v3843, 7
        %v3845 = vsub.s32 %v3842, %v3844
        %v3846 = vrot.slane %v3838, %v3845
        %v3848 = vunpack.c.l.s4 1983009808
        %v3849 = vunpack.c.0.s8 %v3848
        %v3850 = vlaneseq
        %v3851 = vshrl.u32 %v3850, 7
        %v3852 = vsub.s32 %v3849, %v3851
        %v3853 = vrot.slane %v3839, %v3852
        %v3854 = vcombine.low %v3846, %v3853
        %v3855 = vcombine.low %v3443, %v3444
        %v3856 = vcombine.low %v3445, %v3446
        %v3858 = vunpack.c.l.s4 1983009808
        %v3859 = vunpack.c.0.s8 %v3858
        %v3860 = vlaneseq
        %v3861 = vshrl.u32 %v3860, 7
        %v3862 = vsub.s32 %v3859, %v3861
        %v3863 = vrot.slane %v3855, %v3862
        %v3865 = vunpack.c.l.s4 1983009808
        %v3866 = vunpack.c.0.s8 %v3865
        %v3867 = vlaneseq
        %v3868 = vshrl.u32 %v3867, 7
        %v3869 = vsub.s32 %v3866, %v3868
        %v3870 = vrot.slane %v3856, %v3869
        %v3871 = vcombine.low %v3863, %v3870
        %v3872 = vcombine.low %v3447, %v3448
        %v3873 = vcombine.low %v3449, %v3450
        %v3875 = vunpack.c.l.s4 1983009808
        %v3876 = vunpack.c.0.s8 %v3875
        %v3877 = vlaneseq
        %v3878 = vshrl.u32 %v3877, 7
        %v3879 = vsub.s32 %v3876, %v3878
        %v3880 = vrot.slane %v3872, %v3879
        %v3882 = vunpack.c.l.s4 1983009808
        %v3883 = vunpack.c.0.s8 %v3882
        %v3884 = vlaneseq
        %v3885 = vshrl.u32 %v3884, 7
        %v3886 = vsub.s32 %v3883, %v3885
        %v3887 = vrot.slane %v3873, %v3886
        %v3888 = vcombine.low %v3880, %v3887
        %v3889 = vcombine.low %v3451, %v3452
        %v3890 = vcombine.low %v3453, %v3454
        %v3892 = vunpack.c.l.s4 1983009808
        %v3893 = vunpack.c.0.s8 %v3892
        %v3894 = vlaneseq
        %v3895 = vshrl.u32 %v3894, 7
        %v3896 = vsub.s32 %v3893, %v3895
        %v3897 = vrot.slane %v3889, %v3896
        %v3899 = vunpack.c.l.s4 1983009808
        %v3900 = vunpack.c.0.s8 %v3899
        %v3901 = vlaneseq
        %v3902 = vshrl.u32 %v3901, 7
        %v3903 = vsub.s32 %v3900, %v3902
        %v3904 = vrot.slane %v3890, %v3903
        %v3905 = vcombine.low %v3897, %v3904
        %v3906 = vcombine.low %v3455, %v3456
        %v3907 = vcombine.low %v3457, %v3458
        %v3909 = vunpack.c.l.s4 1983009808
        %v3910 = vunpack.c.0.s8 %v3909
        %v3911 = vlaneseq
        %v3912 = vshrl.u32 %v3911, 7
        %v3913 = vsub.s32 %v3910, %v3912
        %v3914 = vrot.slane %v3906, %v3913
        %v3916 = vunpack.c.l.s4 1983009808
        %v3917 = vunpack.c.0.s8 %v3916
        %v3918 = vlaneseq
        %v3919 = vshrl.u32 %v3918, 7
        %v3920 = vsub.s32 %v3917, %v3919
        %v3921 = vrot.slane %v3907, %v3920
        %v3922 = vcombine.low %v3914, %v3921
        %v3923 = vcombine.low %v3459, %v3460
        %v3924 = vcombine.low %v3461, %v3462
        %v3926 = vunpack.c.l.s4 1983009808
        %v3927 = vunpack.c.0.s8 %v3926
        %v3928 = vlaneseq
        %v3929 = vshrl.u32 %v3928, 7
        %v3930 = vsub.s32 %v3927, %v3929
        %v3931 = vrot.slane %v3923, %v3930
        %v3933 = vunpack.c.l.s4 1983009808
        %v3934 = vunpack.c.0.s8 %v3933
        %v3935 = vlaneseq
        %v3936 = vshrl.u32 %v3935, 7
        %v3937 = vsub.s32 %v3934, %v3936
        %v3938 = vrot.slane %v3924, %v3937
        %v3939 = vcombine.low %v3931, %v3938
        %v3940 = vcombine.low %v3463, %v3464
        %v3941 = vcombine.low %v3465, %v3466
        %v3943 = vunpack.c.l.s4 1983009808
        %v3944 = vunpack.c.0.s8 %v3943
        %v3945 = vlaneseq
        %v3946 = vshrl.u32 %v3945, 7
        %v3947 = vsub.s32 %v3944, %v3946
        %v3948 = vrot.slane %v3940, %v3947
        %v3950 = vunpack.c.l.s4 1983009808
        %v3951 = vunpack.c.0.s8 %v3950
        %v3952 = vlaneseq
        %v3953 = vshrl.u32 %v3952, 7
        %v3954 = vsub.s32 %v3951, %v3953
        %v3955 = vrot.slane %v3941, %v3954
        %v3956 = vcombine.low %v3948, %v3955
        %v3957 = vcombine.low %v3467, %v3468
        %v3958 = vcombine.low %v3469, %v3470
        %v3960 = vunpack.c.l.s4 1983009808
        %v3961 = vunpack.c.0.s8 %v3960
        %v3962 = vlaneseq
        %v3963 = vshrl.u32 %v3962, 7
        %v3964 = vsub.s32 %v3961, %v3963
        %v3965 = vrot.slane %v3957, %v3964
        %v3967 = vunpack.c.l.s4 1983009808
        %v3968 = vunpack.c.0.s8 %v3967
        %v3969 = vlaneseq
        %v3970 = vshrl.u32 %v3969, 7
        %v3971 = vsub.s32 %v3968, %v3970
        %v3972 = vrot.slane %v3958, %v3971
        %v3973 = vcombine.low %v3965, %v3972
        %v3974 = vcombine.low %v3471, %v3472
        %v3975 = vcombine.low %v3473, %v3474
        %v3977 = vunpack.c.l.s4 1983009808
        %v3978 = vunpack.c.0.s8 %v3977
        %v3979 = vlaneseq
        %v3980 = vshrl.u32 %v3979, 7
        %v3981 = vsub.s32 %v3978, %v3980
        %v3982 = vrot.slane %v3974, %v3981
        %v3984 = vunpack.c.l.s4 1983009808
        %v3985 = vunpack.c.0.s8 %v3984
        %v3986 = vlaneseq
        %v3987 = vshrl.u32 %v3986, 7
        %v3988 = vsub.s32 %v3985, %v3987
        %v3989 = vrot.slane %v3975, %v3988
        %v3990 = vcombine.low %v3982, %v3989
        %v3991 = vcombine.low %v3475, %v3476
        %v3992 = vcombine.low %v3477, %v3478
        %v3994 = vunpack.c.l.s4 1983009808
        %v3995 = vunpack.c.0.s8 %v3994
        %v3996 = vlaneseq
        %v3997 = vshrl.u32 %v3996, 7
        %v3998 = vsub.s32 %v3995, %v3997
        %v3999 = vrot.slane %v3991, %v3998
        %v4001 = vunpack.c.l.s4 1983009808
        %v4002 = vunpack.c.0.s8 %v4001
        %v4003 = vlaneseq
        %v4004 = vshrl.u32 %v4003, 7
        %v4005 = vsub.s32 %v4002, %v4004
        %v4006 = vrot.slane %v3992, %v4005
        %v4007 = vcombine.low %v3999, %v4006
        %v4008 = vcombine.low %v3479, %v3480
        %v4009 = vcombine.low %v3481, %v3482
        %v4011 = vunpack.c.l.s4 1983009808
        %v4012 = vunpack.c.0.s8 %v4011
        %v4013 = vlaneseq
        %v4014 = vshrl.u32 %v4013, 7
        %v4015 = vsub.s32 %v4012, %v4014
        %v4016 = vrot.slane %v4008, %v4015
        %v4018 = vunpack.c.l.s4 1983009808
        %v4019 = vunpack.c.0.s8 %v4018
        %v4020 = vlaneseq
        %v4021 = vshrl.u32 %v4020, 7
        %v4022 = vsub.s32 %v4019, %v4021
        %v4023 = vrot.slane %v4009, %v4022
        %v4024 = vcombine.low %v4016, %v4023
        %v4025 = vcombine.low %v3483, %v3484
        %v4026 = vcombine.low %v3485, %v3486
        %v4028 = vunpack.c.l.s4 1983009808
        %v4029 = vunpack.c.0.s8 %v4028
        %v4030 = vlaneseq
        %v4031 = vshrl.u32 %v4030, 7
        %v4032 = vsub.s32 %v4029, %v4031
        %v4033 = vrot.slane %v4025, %v4032
        %v4035 = vunpack.c.l.s4 1983009808
        %v4036 = vunpack.c.0.s8 %v4035
        %v4037 = vlaneseq
        %v4038 = vshrl.u32 %v4037, 7
        %v4039 = vsub.s32 %v4036, %v4038
        %v4040 = vrot.slane %v4026, %v4039
        %v4041 = vcombine.low %v4033, %v4040
        %v4042 = vcombine.low %v3487, %v3488
        %v4043 = vcombine.low %v3489, %v3490
        %v4045 = vunpack.c.l.s4 1983009808
        %v4046 = vunpack.c.0.s8 %v4045
        %v4047 = vlaneseq
        %v4048 = vshrl.u32 %v4047, 7
        %v4049 = vsub.s32 %v4046, %v4048
        %v4050 = vrot.slane %v4042, %v4049
        %v4052 = vunpack.c.l.s4 1983009808
        %v4053 = vunpack.c.0.s8 %v4052
        %v4054 = vlaneseq
        %v4055 = vshrl.u32 %v4054, 7
        %v4056 = vsub.s32 %v4053, %v4055
        %v4057 = vrot.slane %v4043, %v4056
        %v4058 = vcombine.low %v4050, %v4057
        %v4059 = vcombine.low %v3491, %v3492
        %v4060 = vcombine.low %v3493, %v3494
        %v4062 = vunpack.c.l.s4 1983009808
        %v4063 = vunpack.c.0.s8 %v4062
        %v4064 = vlaneseq
        %v4065 = vshrl.u32 %v4064, 7
        %v4066 = vsub.s32 %v4063, %v4065
        %v4067 = vrot.slane %v4059, %v4066
        %v4069 = vunpack.c.l.s4 1983009808
        %v4070 = vunpack.c.0.s8 %v4069
        %v4071 = vlaneseq
        %v4072 = vshrl.u32 %v4071, 7
        %v4073 = vsub.s32 %v4070, %v4072
        %v4074 = vrot.slane %v4060, %v4073
        %v4075 = vcombine.low %v4067, %v4074
        %v4076 = vcombine.low %v3495, %v3496
        %v4077 = vcombine.low %v3497, %v3498
        %v4079 = vunpack.c.l.s4 1983009808
        %v4080 = vunpack.c.0.s8 %v4079
        %v4081 = vlaneseq
        %v4082 = vshrl.u32 %v4081, 7
        %v4083 = vsub.s32 %v4080, %v4082
        %v4084 = vrot.slane %v4076, %v4083
        %v4086 = vunpack.c.l.s4 1983009808
        %v4087 = vunpack.c.0.s8 %v4086
        %v4088 = vlaneseq
        %v4089 = vshrl.u32 %v4088, 7
        %v4090 = vsub.s32 %v4087, %v4089
        %v4091 = vrot.slane %v4077, %v4090
        %v4092 = vcombine.low %v4084, %v4091
        %v4093 = vcombine.low %v3499, %v3500
        %v4094 = vcombine.low %v3501, %v3502
        %v4096 = vunpack.c.l.s4 1983009808
        %v4097 = vunpack.c.0.s8 %v4096
        %v4098 = vlaneseq
        %v4099 = vshrl.u32 %v4098, 7
        %v4100 = vsub.s32 %v4097, %v4099
        %v4101 = vrot.slane %v4093, %v4100
        %v4103 = vunpack.c.l.s4 1983009808
        %v4104 = vunpack.c.0.s8 %v4103
        %v4105 = vlaneseq
        %v4106 = vshrl.u32 %v4105, 7
        %v4107 = vsub.s32 %v4104, %v4106
        %v4108 = vrot.slane %v4094, %v4107
        %v4109 = vcombine.low %v4101, %v4108
        %v4110 = vcombine.low %v3503, %v3504
        %v4111 = vcombine.low %v3505, %v3506
        %v4113 = vunpack.c.l.s4 1983009808
        %v4114 = vunpack.c.0.s8 %v4113
        %v4115 = vlaneseq
        %v4116 = vshrl.u32 %v4115, 7
        %v4117 = vsub.s32 %v4114, %v4116
        %v4118 = vrot.slane %v4110, %v4117
        %v4120 = vunpack.c.l.s4 1983009808
        %v4121 = vunpack.c.0.s8 %v4120
        %v4122 = vlaneseq
        %v4123 = vshrl.u32 %v4122, 7
        %v4124 = vsub.s32 %v4121, %v4123
        %v4125 = vrot.slane %v4111, %v4124
        %v4126 = vcombine.low %v4118, %v4125
        %v4127 = vcombine.low %v3507, %v3508
        %v4128 = vcombine.low %v3509, %v3510
        %v4130 = vunpack.c.l.s4 1983009808
        %v4131 = vunpack.c.0.s8 %v4130
        %v4132 = vlaneseq
        %v4133 = vshrl.u32 %v4132, 7
        %v4134 = vsub.s32 %v4131, %v4133
        %v4135 = vrot.slane %v4127, %v4134
        %v4137 = vunpack.c.l.s4 1983009808
        %v4138 = vunpack.c.0.s8 %v4137
        %v4139 = vlaneseq
        %v4140 = vshrl.u32 %v4139, 7
        %v4141 = vsub.s32 %v4138, %v4140
        %v4142 = vrot.slane %v4128, %v4141
        %v4143 = vcombine.low %v4135, %v4142
        %v4144 = vcombine.low %v3511, %v3512
        %v4145 = vcombine.low %v3513, %v3514
        %v4147 = vunpack.c.l.s4 1983009808
        %v4148 = vunpack.c.0.s8 %v4147
        %v4149 = vlaneseq
        %v4150 = vshrl.u32 %v4149, 7
        %v4151 = vsub.s32 %v4148, %v4150
        %v4152 = vrot.slane %v4144, %v4151
        %v4154 = vunpack.c.l.s4 1983009808
        %v4155 = vunpack.c.0.s8 %v4154
        %v4156 = vlaneseq
        %v4157 = vshrl.u32 %v4156, 7
        %v4158 = vsub.s32 %v4155, %v4157
        %v4159 = vrot.slane %v4145, %v4158
        %v4160 = vcombine.low %v4152, %v4159
        %v4161 = vcombine.low %v3515, %v3516
        %v4162 = vcombine.low %v3517, %v3518
        %v4164 = vunpack.c.l.s4 1983009808
        %v4165 = vunpack.c.0.s8 %v4164
        %v4166 = vlaneseq
        %v4167 = vshrl.u32 %v4166, 7
        %v4168 = vsub.s32 %v4165, %v4167
        %v4169 = vrot.slane %v4161, %v4168
        %v4171 = vunpack.c.l.s4 1983009808
        %v4172 = vunpack.c.0.s8 %v4171
        %v4173 = vlaneseq
        %v4174 = vshrl.u32 %v4173, 7
        %v4175 = vsub.s32 %v4172, %v4174
        %v4176 = vrot.slane %v4162, %v4175
        %v4177 = vcombine.low %v4169, %v4176
        %v4178 = vcombine.low %v3519, %v3520
        %v4179 = vcombine.low %v3521, %v3522
        %v4181 = vunpack.c.l.s4 1983009808
        %v4182 = vunpack.c.0.s8 %v4181
        %v4183 = vlaneseq
        %v4184 = vshrl.u32 %v4183, 7
        %v4185 = vsub.s32 %v4182, %v4184
        %v4186 = vrot.slane %v4178, %v4185
        %v4188 = vunpack.c.l.s4 1983009808
        %v4189 = vunpack.c.0.s8 %v4188
        %v4190 = vlaneseq
        %v4191 = vshrl.u32 %v4190, 7
        %v4192 = vsub.s32 %v4189, %v4191
        %v4193 = vrot.slane %v4179, %v4192
        %v4194 = vcombine.low %v4186, %v4193
        %v4227 = vpack.c.bf16 %v3684, %v3667
        %v4228 = vpack.c.bf16 %v3718, %v3701
        %v4229 = vpack.c.bf16 %v3752, %v3735
        %v4230 = vpack.c.bf16 %v3786, %v3769
        %v4231 = vpack.c.bf16 %v3820, %v3803
        %v4232 = vpack.c.bf16 %v3854, %v3837
        %v4233 = vpack.c.bf16 %v3888, %v3871
        %v4234 = vpack.c.bf16 %v3922, %v3905
        %v4235 = vpack.c.bf16 %v3956, %v3939
        %v4236 = vpack.c.bf16 %v3990, %v3973
        %v4237 = vpack.c.bf16 %v4024, %v4007
        %v4238 = vpack.c.bf16 %v4058, %v4041
        %v4239 = vpack.c.bf16 %v4092, %v4075
        %v4240 = vpack.c.bf16 %v4126, %v4109
        %v4241 = vpack.c.bf16 %v4160, %v4143
        %v4242 = vpack.c.bf16 %v4194, %v4177
        %v4243 = vld [vmem:[%s12] sm:$0xf]
        %v4244 = vld [vmem:[%s12 + $0x4] sm:$0xf]
        %v4245 = vld [vmem:[%s12 + $0x8] sm:$0xf]
        %v4246 = vld [vmem:[%s12 + $0xc] sm:$0xf]
        %v4247 = vld [vmem:[%s13] sm:$0x1]
        %v4249 = vlaneseq
        %v4250 = vshrl.u32 %v4249, 7
        %v4251 = vsub.s32 0, %v4250
        %v4252 = vrot.slane %v4247, %v4251
        %v4258 = vunpack.c.l.b16 %v4243
        %v4259 = vunpack.c.l.b16 %v4244
        %v4260 = vunpack.c.l.b16 %v4245
        %v4261 = vunpack.c.l.b16 %v4246
        %v4262 = vpack.c.b16 %v4259, %v4258
        %v4263 = vpack.c.b16 %v4261, %v4260
        %v4267 = vsel %vm942, %v4227, 0
        %v4270 = vsel %vm942, %v4228, 0
        %v4273 = vsel %vm942, %v4229, 0
        %v4276 = vsel %vm942, %v4230, 0
        %v4279 = vsel %vm942, %v4231, 0
        %v4282 = vsel %vm942, %v4232, 0
        %v4285 = vsel %vm942, %v4233, 0
        %v4288 = vsel %vm942, %v4234, 0
        %v4291 = vsel %vm942, %v4235, 0
        %v4294 = vsel %vm942, %v4236, 0
        %v4297 = vsel %vm942, %v4237, 0
        %v4300 = vsel %vm942, %v4238, 0
        %v4303 = vsel %vm942, %v4239, 0
        %v4306 = vsel %vm942, %v4240, 0
        %v4309 = vsel %vm942, %v4241, 0
        %v4312 = vsel %vm942, %v4242, 0
        %4314 = vmatprep.subr.bf16.mxu0 0
        %4315 = vmatpush1.bf16.msra.mxu0 %v4262
        %4316 = vmatprep.subr.bf16.mxu0 0
        %4317 = vmatpush1.bf16.msra.mxu0 %v4263
        %4318 = vmatprep.subr.bf16.mxu0 0
        %4319 = vmatpush1.bf16.msra.mxu0 0
        %4320 = vmatprep.subr.bf16.mxu0 0
        %4321 = vmatpush1.bf16.msra.mxu0 0
        %4322 = vmatprep.subr.bf16.mxu0 0
        %4323 = vmatpush1.bf16.msra.mxu0 0
        %4324 = vmatprep.subr.bf16.mxu0 0
        %4325 = vmatpush1.bf16.msra.mxu0 0
        %4326 = vmatprep.subr.bf16.mxu0 0
        %4327 = vmatpush1.bf16.msra.mxu0 0
        %4328 = vmatprep.subr.bf16.mxu0 0
        %4329 = vmatpush1.bf16.msra.mxu0 0
        %4330 = vmatprep.subr.bf16.mxu0 0
        %4331 = vmatpush1.bf16.msra.mxu0 0
        %4332 = vmatprep.subr.bf16.mxu0 0
        %4333 = vmatpush1.bf16.msra.mxu0 0
        %4334 = vmatprep.subr.bf16.mxu0 0
        %4335 = vmatpush1.bf16.msra.mxu0 0
        %4336 = vmatprep.subr.bf16.mxu0 0
        %4337 = vmatpush1.bf16.msra.mxu0 0
        %4338 = vmatprep.subr.bf16.mxu0 0
        %4339 = vmatpush1.bf16.msra.mxu0 0
        %4340 = vmatprep.subr.bf16.mxu0 0
        %4341 = vmatpush1.bf16.msra.mxu0 0
        %4342 = vmatprep.subr.bf16.mxu0 0
        %4343 = vmatpush1.bf16.msra.mxu0 0
        %4344 = vmatprep.subr.bf16.mxu0 0
        %4345 = vmatpush1.bf16.msra.mxu0 0
        %4346 = vmatprep.mubr.bf16.mxu0 0
        %4347 = vmatmul.mubr.bf16.gmra.mrb[0].mxu0 %v4267
        %v4348 = vpop.f32.mrb[0].mxu0
        %v4349 = vadd.f32 %v4252, %v4348
        %v4350 = vpop.f32.mrb[0].mxu0
        %v4351 = vpop.f32.mrb[0].mxu0
        %v4352 = vadd.f32 %v4252, %v4351
        %v4353 = vpop.f32.mrb[0].mxu0
        %4354 = vmatprep.mubr.bf16.mxu0 0
        %4355 = vmatmul.mubr.bf16.gmra.mrb[0].mxu0 %v4270
        %v4356 = vpop.f32.mrb[0].mxu0
        %v4357 = vadd.f32 %v4252, %v4356
        %v4358 = vpop.f32.mrb[0].mxu0
        %v4359 = vpop.f32.mrb[0].mxu0
        %v4360 = vadd.f32 %v4252, %v4359
        %v4361 = vpop.f32.mrb[0].mxu0
        %4362 = vmatprep.mubr.bf16.mxu0 0
        %4363 = vmatmul.mubr.bf16.gmra.mrb[0].mxu0 %v4273
        %v4364 = vpop.f32.mrb[0].mxu0
        %v4365 = vadd.f32 %v4252, %v4364
        %v4366 = vpop.f32.mrb[0].mxu0
        %v4367 = vpop.f32.mrb[0].mxu0
        %v4368 = vadd.f32 %v4252, %v4367
        %v4369 = vpop.f32.mrb[0].mxu0
        %4370 = vmatprep.mubr.bf16.mxu0 0
        %4371 = vmatmul.mubr.bf16.gmra.mrb[0].mxu0 %v4276
        %v4372 = vpop.f32.mrb[0].mxu0
        %v4373 = vadd.f32 %v4252, %v4372
        %v4374 = vpop.f32.mrb[0].mxu0
        %v4375 = vpop.f32.mrb[0].mxu0
        %v4376 = vadd.f32 %v4252, %v4375
        %v4377 = vpop.f32.mrb[0].mxu0
        %4378 = vmatprep.mubr.bf16.mxu0 0
        %4379 = vmatmul.mubr.bf16.gmra.mrb[0].mxu0 %v4279
        %v4380 = vpop.f32.mrb[0].mxu0
        %v4381 = vadd.f32 %v4252, %v4380
        %v4382 = vpop.f32.mrb[0].mxu0
        %v4383 = vpop.f32.mrb[0].mxu0
        %v4384 = vadd.f32 %v4252, %v4383
        %v4385 = vpop.f32.mrb[0].mxu0
        %4386 = vmatprep.mubr.bf16.mxu0 0
        %4387 = vmatmul.mubr.bf16.gmra.mrb[0].mxu0 %v4282
        %v4388 = vpop.f32.mrb[0].mxu0
        %v4389 = vadd.f32 %v4252, %v4388
        %v4390 = vpop.f32.mrb[0].mxu0
        %v4391 = vpop.f32.mrb[0].mxu0
        %v4392 = vadd.f32 %v4252, %v4391
        %v4393 = vpop.f32.mrb[0].mxu0
        %4394 = vmatprep.mubr.bf16.mxu0 0
        %4395 = vmatmul.mubr.bf16.gmra.mrb[0].mxu0 %v4285
        %v4396 = vpop.f32.mrb[0].mxu0
        %v4397 = vadd.f32 %v4252, %v4396
        %v4398 = vpop.f32.mrb[0].mxu0
        %v4399 = vpop.f32.mrb[0].mxu0
        %v4400 = vadd.f32 %v4252, %v4399
        %v4401 = vpop.f32.mrb[0].mxu0
        %4402 = vmatprep.mubr.bf16.mxu0 0
        %4403 = vmatmul.mubr.bf16.gmra.mrb[0].mxu0 %v4288
        %v4404 = vpop.f32.mrb[0].mxu0
        %v4405 = vadd.f32 %v4252, %v4404
        %v4406 = vpop.f32.mrb[0].mxu0
        %v4407 = vpop.f32.mrb[0].mxu0
        %v4408 = vadd.f32 %v4252, %v4407
        %v4409 = vpop.f32.mrb[0].mxu0
        %4410 = vmatprep.mubr.bf16.mxu0 0
        %4411 = vmatmul.mubr.bf16.gmra.mrb[0].mxu0 %v4291
        %v4412 = vpop.f32.mrb[0].mxu0
        %v4413 = vadd.f32 %v4252, %v4412
        %v4414 = vpop.f32.mrb[0].mxu0
        %v4415 = vpop.f32.mrb[0].mxu0
        %v4416 = vadd.f32 %v4252, %v4415
        %v4417 = vpop.f32.mrb[0].mxu0
        %4418 = vmatprep.mubr.bf16.mxu0 0
        %4419 = vmatmul.mubr.bf16.gmra.mrb[0].mxu0 %v4294
        %v4420 = vpop.f32.mrb[0].mxu0
        %v4421 = vadd.f32 %v4252, %v4420
        %v4422 = vpop.f32.mrb[0].mxu0
        %v4423 = vpop.f32.mrb[0].mxu0
        %v4424 = vadd.f32 %v4252, %v4423
        %v4425 = vpop.f32.mrb[0].mxu0
        %4426 = vmatprep.mubr.bf16.mxu0 0
        %4427 = vmatmul.mubr.bf16.gmra.mrb[0].mxu0 %v4297
        %v4428 = vpop.f32.mrb[0].mxu0
        %v4429 = vadd.f32 %v4252, %v4428
        %v4430 = vpop.f32.mrb[0].mxu0
        %v4431 = vpop.f32.mrb[0].mxu0
        %v4432 = vadd.f32 %v4252, %v4431
        %v4433 = vpop.f32.mrb[0].mxu0
        %4434 = vmatprep.mubr.bf16.mxu0 0
        %4435 = vmatmul.mubr.bf16.gmra.mrb[0].mxu0 %v4300
        %v4436 = vpop.f32.mrb[0].mxu0
        %v4437 = vadd.f32 %v4252, %v4436
        %v4438 = vpop.f32.mrb[0].mxu0
        %v4439 = vpop.f32.mrb[0].mxu0
        %v4440 = vadd.f32 %v4252, %v4439
        %v4441 = vpop.f32.mrb[0].mxu0
        %4442 = vmatprep.mubr.bf16.mxu0 0
        %4443 = vmatmul.mubr.bf16.gmra.mrb[0].mxu0 %v4303
        %v4444 = vpop.f32.mrb[0].mxu0
        %v4445 = vadd.f32 %v4252, %v4444
        %v4446 = vpop.f32.mrb[0].mxu0
        %v4447 = vpop.f32.mrb[0].mxu0
        %v4448 = vadd.f32 %v4252, %v4447
        %v4449 = vpop.f32.mrb[0].mxu0
        %4450 = vmatprep.mubr.bf16.mxu0 0
        %4451 = vmatmul.mubr.bf16.gmra.mrb[0].mxu0 %v4306
        %v4452 = vpop.f32.mrb[0].mxu0
        %v4453 = vadd.f32 %v4252, %v4452
        %v4454 = vpop.f32.mrb[0].mxu0
        %v4455 = vpop.f32.mrb[0].mxu0
        %v4456 = vadd.f32 %v4252, %v4455
        %v4457 = vpop.f32.mrb[0].mxu0
        %4458 = vmatprep.mubr.bf16.mxu0 0
        %4459 = vmatmul.mubr.bf16.gmra.mrb[0].mxu0 %v4309
        %v4460 = vpop.f32.mrb[0].mxu0
        %v4461 = vadd.f32 %v4252, %v4460
        %v4462 = vpop.f32.mrb[0].mxu0
        %v4463 = vpop.f32.mrb[0].mxu0
        %v4464 = vadd.f32 %v4252, %v4463
        %v4465 = vpop.f32.mrb[0].mxu0
        %4466 = vmatprep.mubr.bf16.mxu0 0
        %4467 = vmatmul.mubr.bf16.gmra.mrb[0].mxu0 %v4312
        %v4468 = vpop.f32.mrb[0].mxu0
        %v4469 = vadd.f32 %v4252, %v4468
        %v4470 = vpop.f32.mrb[0].mxu0
        %v4471 = vpop.f32.mrb[0].mxu0
        %v4472 = vadd.f32 %v4252, %v4471
        %v4473 = vpop.f32.mrb[0].mxu0
        %4474 = vdwg.mxu0
        %v4475 = vmax.f32 %v4349, 0.0
        %v4476 = vmax.f32 %v4352, 0.0
        %v4477 = vmax.f32 %v4357, 0.0
        %v4478 = vmax.f32 %v4360, 0.0
        %v4479 = vmax.f32 %v4365, 0.0
        %v4480 = vmax.f32 %v4368, 0.0
        %v4481 = vmax.f32 %v4373, 0.0
        %v4482 = vmax.f32 %v4376, 0.0
        %v4483 = vmax.f32 %v4381, 0.0
        %v4484 = vmax.f32 %v4384, 0.0
        %v4485 = vmax.f32 %v4389, 0.0
        %v4486 = vmax.f32 %v4392, 0.0
        %v4487 = vmax.f32 %v4397, 0.0
        %v4488 = vmax.f32 %v4400, 0.0
        %v4489 = vmax.f32 %v4405, 0.0
        %v4490 = vmax.f32 %v4408, 0.0
        %v4491 = vmax.f32 %v4413, 0.0
        %v4492 = vmax.f32 %v4416, 0.0
        %v4493 = vmax.f32 %v4421, 0.0
        %v4494 = vmax.f32 %v4424, 0.0
        %v4495 = vmax.f32 %v4429, 0.0
        %v4496 = vmax.f32 %v4432, 0.0
        %v4497 = vmax.f32 %v4437, 0.0
        %v4498 = vmax.f32 %v4440, 0.0
        %v4499 = vmax.f32 %v4445, 0.0
        %v4500 = vmax.f32 %v4448, 0.0
        %v4501 = vmax.f32 %v4453, 0.0
        %v4502 = vmax.f32 %v4456, 0.0
        %v4503 = vmax.f32 %v4461, 0.0
        %v4504 = vmax.f32 %v4464, 0.0
        %v4505 = vmax.f32 %v4469, 0.0
        %v4506 = vmax.f32 %v4472, 0.0
        %v4507 = vpack.c.bf16 %v4476, %v4475
        %v4508 = vpack.c.bf16 %v4478, %v4477
        %v4509 = vpack.c.bf16 %v4480, %v4479
        %v4510 = vpack.c.bf16 %v4482, %v4481
        %v4511 = vpack.c.bf16 %v4484, %v4483
        %v4512 = vpack.c.bf16 %v4486, %v4485
        %v4513 = vpack.c.bf16 %v4488, %v4487
        %v4514 = vpack.c.bf16 %v4490, %v4489
        %v4515 = vpack.c.bf16 %v4492, %v4491
        %v4516 = vpack.c.bf16 %v4494, %v4493
        %v4517 = vpack.c.bf16 %v4496, %v4495
        %v4518 = vpack.c.bf16 %v4498, %v4497
        %v4519 = vpack.c.bf16 %v4500, %v4499
        %v4520 = vpack.c.bf16 %v4502, %v4501
        %v4521 = vpack.c.bf16 %v4504, %v4503
        %v4522 = vpack.c.bf16 %v4506, %v4505
        %v4523 = vld [vmem:[%s14] sm:$0xf]
        %v4524 = vld [vmem:[%s14 + $0x4] sm:$0xf]
        %v4525 = vld [vmem:[%s14 + $0x8] sm:$0xf]
        %v4526 = vld [vmem:[%s14 + $0xc] sm:$0xf]
        %v4527 = vld [vmem:[%s15] sm:$0x1]
        %v4529 = vlaneseq
        %v4530 = vshrl.u32 %v4529, 7
        %v4531 = vsub.s32 0, %v4530
        %v4532 = vrot.slane %v4527, %v4531
        %v4538 = vunpack.c.l.b16 %v4523
        %v4539 = vunpack.c.l.b16 %v4524
        %v4540 = vunpack.c.l.b16 %v4525
        %v4541 = vunpack.c.l.b16 %v4526
        %v4542 = vpack.c.b16 %v4539, %v4538
        %v4543 = vpack.c.b16 %v4541, %v4540
        %v4547 = vsel %vm942, %v4507, 0
        %v4550 = vsel %vm942, %v4508, 0
        %v4553 = vsel %vm942, %v4509, 0
        %v4556 = vsel %vm942, %v4510, 0
        %v4559 = vsel %vm942, %v4511, 0
        %v4562 = vsel %vm942, %v4512, 0
        %v4565 = vsel %vm942, %v4513, 0
        %v4568 = vsel %vm942, %v4514, 0
        %v4571 = vsel %vm942, %v4515, 0
        %v4574 = vsel %vm942, %v4516, 0
        %v4577 = vsel %vm942, %v4517, 0
        %v4580 = vsel %vm942, %v4518, 0
        %v4583 = vsel %vm942, %v4519, 0
        %v4586 = vsel %vm942, %v4520, 0
        %v4589 = vsel %vm942, %v4521, 0
        %v4592 = vsel %vm942, %v4522, 0
        %4594 = vmatprep.subr.bf16.mxu0 0
        %4595 = vmatpush1.bf16.msra.mxu0 %v4542
        %4596 = vmatprep.subr.bf16.mxu0 0
        %4597 = vmatpush1.bf16.msra.mxu0 %v4543
        %4598 = vmatprep.subr.bf16.mxu0 0
        %4599 = vmatpush1.bf16.msra.mxu0 0
        %4600 = vmatprep.subr.bf16.mxu0 0
        %4601 = vmatpush1.bf16.msra.mxu0 0
        %4602 = vmatprep.subr.bf16.mxu0 0
        %4603 = vmatpush1.bf16.msra.mxu0 0
        %4604 = vmatprep.subr.bf16.mxu0 0
        %4605 = vmatpush1.bf16.msra.mxu0 0
        %4606 = vmatprep.subr.bf16.mxu0 0
        %4607 = vmatpush1.bf16.msra.mxu0 0
        %4608 = vmatprep.subr.bf16.mxu0 0
        %4609 = vmatpush1.bf16.msra.mxu0 0
        %4610 = vmatprep.subr.bf16.mxu0 0
        %4611 = vmatpush1.bf16.msra.mxu0 0
        %4612 = vmatprep.subr.bf16.mxu0 0
        %4613 = vmatpush1.bf16.msra.mxu0 0
        %4614 = vmatprep.subr.bf16.mxu0 0
        %4615 = vmatpush1.bf16.msra.mxu0 0
        %4616 = vmatprep.subr.bf16.mxu0 0
        %4617 = vmatpush1.bf16.msra.mxu0 0
        %4618 = vmatprep.subr.bf16.mxu0 0
        %4619 = vmatpush1.bf16.msra.mxu0 0
        %4620 = vmatprep.subr.bf16.mxu0 0
        %4621 = vmatpush1.bf16.msra.mxu0 0
        %4622 = vmatprep.subr.bf16.mxu0 0
        %4623 = vmatpush1.bf16.msra.mxu0 0
        %4624 = vmatprep.subr.bf16.mxu0 0
        %4625 = vmatpush1.bf16.msra.mxu0 0
        %4626 = vmatprep.mubr.bf16.mxu0 0
        %4627 = vmatmul.mubr.bf16.gmra.mrb[0].mxu0 %v4547
        %v4628 = vpop.f32.mrb[0].mxu0
        %v4629 = vadd.f32 %v4532, %v4628
        %v4630 = vpop.f32.mrb[0].mxu0
        %v4631 = vpop.f32.mrb[0].mxu0
        %v4632 = vadd.f32 %v4532, %v4631
        %v4633 = vpop.f32.mrb[0].mxu0
        %4634 = vmatprep.mubr.bf16.mxu0 0
        %4635 = vmatmul.mubr.bf16.gmra.mrb[0].mxu0 %v4550
        %v4636 = vpop.f32.mrb[0].mxu0
        %v4637 = vadd.f32 %v4532, %v4636
        %v4638 = vpop.f32.mrb[0].mxu0
        %v4639 = vpop.f32.mrb[0].mxu0
        %v4640 = vadd.f32 %v4532, %v4639
        %v4641 = vpop.f32.mrb[0].mxu0
        %4642 = vmatprep.mubr.bf16.mxu0 0
        %4643 = vmatmul.mubr.bf16.gmra.mrb[0].mxu0 %v4553
        %v4644 = vpop.f32.mrb[0].mxu0
        %v4645 = vadd.f32 %v4532, %v4644
        %v4646 = vpop.f32.mrb[0].mxu0
        %v4647 = vpop.f32.mrb[0].mxu0
        %v4648 = vadd.f32 %v4532, %v4647
        %v4649 = vpop.f32.mrb[0].mxu0
        %4650 = vmatprep.mubr.bf16.mxu0 0
        %4651 = vmatmul.mubr.bf16.gmra.mrb[0].mxu0 %v4556
        %v4652 = vpop.f32.mrb[0].mxu0
        %v4653 = vadd.f32 %v4532, %v4652
        %v4654 = vpop.f32.mrb[0].mxu0
        %v4655 = vpop.f32.mrb[0].mxu0
        %v4656 = vadd.f32 %v4532, %v4655
        %v4657 = vpop.f32.mrb[0].mxu0
        %4658 = vmatprep.mubr.bf16.mxu0 0
        %4659 = vmatmul.mubr.bf16.gmra.mrb[0].mxu0 %v4559
        %v4660 = vpop.f32.mrb[0].mxu0
        %v4661 = vadd.f32 %v4532, %v4660
        %v4662 = vpop.f32.mrb[0].mxu0
        %v4663 = vpop.f32.mrb[0].mxu0
        %v4664 = vadd.f32 %v4532, %v4663
        %v4665 = vpop.f32.mrb[0].mxu0
        %4666 = vmatprep.mubr.bf16.mxu0 0
        %4667 = vmatmul.mubr.bf16.gmra.mrb[0].mxu0 %v4562
        %v4668 = vpop.f32.mrb[0].mxu0
        %v4669 = vadd.f32 %v4532, %v4668
        %v4670 = vpop.f32.mrb[0].mxu0
        %v4671 = vpop.f32.mrb[0].mxu0
        %v4672 = vadd.f32 %v4532, %v4671
        %v4673 = vpop.f32.mrb[0].mxu0
        %4674 = vmatprep.mubr.bf16.mxu0 0
        %4675 = vmatmul.mubr.bf16.gmra.mrb[0].mxu0 %v4565
        %v4676 = vpop.f32.mrb[0].mxu0
        %v4677 = vadd.f32 %v4532, %v4676
        %v4678 = vpop.f32.mrb[0].mxu0
        %v4679 = vpop.f32.mrb[0].mxu0
        %v4680 = vadd.f32 %v4532, %v4679
        %v4681 = vpop.f32.mrb[0].mxu0
        %4682 = vmatprep.mubr.bf16.mxu0 0
        %4683 = vmatmul.mubr.bf16.gmra.mrb[0].mxu0 %v4568
        %v4684 = vpop.f32.mrb[0].mxu0
        %v4685 = vadd.f32 %v4532, %v4684
        %v4686 = vpop.f32.mrb[0].mxu0
        %v4687 = vpop.f32.mrb[0].mxu0
        %v4688 = vadd.f32 %v4532, %v4687
        %v4689 = vpop.f32.mrb[0].mxu0
        %4690 = vmatprep.mubr.bf16.mxu0 0
        %4691 = vmatmul.mubr.bf16.gmra.mrb[0].mxu0 %v4571
        %v4692 = vpop.f32.mrb[0].mxu0
        %v4693 = vadd.f32 %v4532, %v4692
        %v4694 = vpop.f32.mrb[0].mxu0
        %v4695 = vpop.f32.mrb[0].mxu0
        %v4696 = vadd.f32 %v4532, %v4695
        %v4697 = vpop.f32.mrb[0].mxu0
        %4698 = vmatprep.mubr.bf16.mxu0 0
        %4699 = vmatmul.mubr.bf16.gmra.mrb[0].mxu0 %v4574
        %v4700 = vpop.f32.mrb[0].mxu0
        %v4701 = vadd.f32 %v4532, %v4700
        %v4702 = vpop.f32.mrb[0].mxu0
        %v4703 = vpop.f32.mrb[0].mxu0
        %v4704 = vadd.f32 %v4532, %v4703
        %v4705 = vpop.f32.mrb[0].mxu0
        %4706 = vmatprep.mubr.bf16.mxu0 0
        %4707 = vmatmul.mubr.bf16.gmra.mrb[0].mxu0 %v4577
        %v4708 = vpop.f32.mrb[0].mxu0
        %v4709 = vadd.f32 %v4532, %v4708
        %v4710 = vpop.f32.mrb[0].mxu0
        %v4711 = vpop.f32.mrb[0].mxu0
        %v4712 = vadd.f32 %v4532, %v4711
        %v4713 = vpop.f32.mrb[0].mxu0
        %4714 = vmatprep.mubr.bf16.mxu0 0
        %4715 = vmatmul.mubr.bf16.gmra.mrb[0].mxu0 %v4580
        %v4716 = vpop.f32.mrb[0].mxu0
        %v4717 = vadd.f32 %v4532, %v4716
        %v4718 = vpop.f32.mrb[0].mxu0
        %v4719 = vpop.f32.mrb[0].mxu0
        %v4720 = vadd.f32 %v4532, %v4719
        %v4721 = vpop.f32.mrb[0].mxu0
        %4722 = vmatprep.mubr.bf16.mxu0 0
        %4723 = vmatmul.mubr.bf16.gmra.mrb[0].mxu0 %v4583
        %v4724 = vpop.f32.mrb[0].mxu0
        %v4725 = vadd.f32 %v4532, %v4724
        %v4726 = vpop.f32.mrb[0].mxu0
        %v4727 = vpop.f32.mrb[0].mxu0
        %v4728 = vadd.f32 %v4532, %v4727
        %v4729 = vpop.f32.mrb[0].mxu0
        %4730 = vmatprep.mubr.bf16.mxu0 0
        %4731 = vmatmul.mubr.bf16.gmra.mrb[0].mxu0 %v4586
        %v4732 = vpop.f32.mrb[0].mxu0
        %v4733 = vadd.f32 %v4532, %v4732
        %v4734 = vpop.f32.mrb[0].mxu0
        %v4735 = vpop.f32.mrb[0].mxu0
        %v4736 = vadd.f32 %v4532, %v4735
        %v4737 = vpop.f32.mrb[0].mxu0
        %4738 = vmatprep.mubr.bf16.mxu0 0
        %4739 = vmatmul.mubr.bf16.gmra.mrb[0].mxu0 %v4589
        %v4740 = vpop.f32.mrb[0].mxu0
        %v4741 = vadd.f32 %v4532, %v4740
        %v4742 = vpop.f32.mrb[0].mxu0
        %v4743 = vpop.f32.mrb[0].mxu0
        %v4744 = vadd.f32 %v4532, %v4743
        %v4745 = vpop.f32.mrb[0].mxu0
        %4746 = vmatprep.mubr.bf16.mxu0 0
        %4747 = vmatmul.mubr.bf16.gmra.mrb[0].mxu0 %v4592
        %v4748 = vpop.f32.mrb[0].mxu0
        %v4749 = vadd.f32 %v4532, %v4748
        %v4750 = vpop.f32.mrb[0].mxu0
        %v4751 = vpop.f32.mrb[0].mxu0
        %v4752 = vadd.f32 %v4532, %v4751
        %v4753 = vpop.f32.mrb[0].mxu0
        %4754 = vdwg.mxu0
        %4755 = vst.msk [vmem:[%s732] sm:$0xff] %vm942, %v4629
        %4756 = vst.msk [vmem:[%s732 + $0x8] sm:$0xff] %vm942, %v4632
        %4757 = vst.msk [vmem:[%s732 + $0x10] sm:$0xff] %vm942, %v4637
        %4758 = vst.msk [vmem:[%s732 + $0x18] sm:$0xff] %vm942, %v4640
        %4759 = vst.msk [vmem:[%s732 + $0x20] sm:$0xff] %vm942, %v4645
        %4760 = vst.msk [vmem:[%s732 + $0x28] sm:$0xff] %vm942, %v4648
        %4761 = vst.msk [vmem:[%s732 + $0x30] sm:$0xff] %vm942, %v4653
        %4762 = vst.msk [vmem:[%s732 + $0x38] sm:$0xff] %vm942, %v4656
        %4763 = vst.msk [vmem:[%s732 + $0x40] sm:$0xff] %vm942, %v4661
        %4764 = vst.msk [vmem:[%s732 + $0x48] sm:$0xff] %vm942, %v4664
        %4765 = vst.msk [vmem:[%s732 + $0x50] sm:$0xff] %vm942, %v4669
        %4766 = vst.msk [vmem:[%s732 + $0x58] sm:$0xff] %vm942, %v4672
        %4767 = vst.msk [vmem:[%s732 + $0x60] sm:$0xff] %vm942, %v4677
        %4768 = vst.msk [vmem:[%s732 + $0x68] sm:$0xff] %vm942, %v4680
        %4769 = vst.msk [vmem:[%s732 + $0x70] sm:$0xff] %vm942, %v4685
        %4770 = vst.msk [vmem:[%s732 + $0x78] sm:$0xff] %vm942, %v4688
        %4771 = vst.msk [vmem:[%s732 + $0x80] sm:$0xff] %vm942, %v4693
        %4772 = vst.msk [vmem:[%s732 + $0x88] sm:$0xff] %vm942, %v4696
        %4773 = vst.msk [vmem:[%s732 + $0x90] sm:$0xff] %vm942, %v4701
        %4774 = vst.msk [vmem:[%s732 + $0x98] sm:$0xff] %vm942, %v4704
        %4775 = vst.msk [vmem:[%s732 + $0xa0] sm:$0xff] %vm942, %v4709
        %4776 = vst.msk [vmem:[%s732 + $0xa8] sm:$0xff] %vm942, %v4712
        %4777 = vst.msk [vmem:[%s732 + $0xb0] sm:$0xff] %vm942, %v4717
        %4778 = vst.msk [vmem:[%s732 + $0xb8] sm:$0xff] %vm942, %v4720
        %4779 = vst.msk [vmem:[%s732 + $0xc0] sm:$0xff] %vm942, %v4725
        %4780 = vst.msk [vmem:[%s732 + $0xc8] sm:$0xff] %vm942, %v4728
        %4781 = vst.msk [vmem:[%s732 + $0xd0] sm:$0xff] %vm942, %v4733
        %4782 = vst.msk [vmem:[%s732 + $0xd8] sm:$0xff] %vm942, %v4736
        %4783 = vst.msk [vmem:[%s732 + $0xe0] sm:$0xff] %vm942, %v4741
        %4784 = vst.msk [vmem:[%s732 + $0xe8] sm:$0xff] %vm942, %v4744
        %4785 = vst.msk [vmem:[%s732 + $0xf0] sm:$0xff] %vm942, %v4749
        %4786 = vst.msk [vmem:[%s732 + $0xf8] sm:$0xff] %vm942, %v4752
        %s4787 = sand.u32 %s426, 1
        %s4788 = scalar_lea.sflag [#allocation3], %s4787
        %s4789 = sand.u32 %s426, 1
        %s4790 = smul.addr %s4789, 4
        %s4791 = scalar_lea.vmem [#allocation2], %s4790
        %s4792 = sand.u32 %s40, 1
        %s4793 = scalar_lea.sflag [#allocation5], %s4792
        %s4794 = sand.u32 %s454, 1
        %s4795 = smul.addr %s4794, 16
        %s4796 = scalar_lea.vmem [#allocation4], %s4795
        %s4797 = sand.u32 %s40, 1
        %s4798 = scalar_lea.sflag [#allocation5], %s4797
        %s4799 = sand.u32 %s482, 1
        %s4800 = smul.addr %s4799, 64
        %s4801 = scalar_lea.vmem [#allocation6], %s4800
        %s4802 = sand.u32 %s510, 1
        %s4803 = scalar_lea.sflag [#allocation8], %s4802
        %s4804 = sand.u32 %s510, 1
        %s4805 = smul.addr %s4804, 256
        %s4806 = scalar_lea.vmem [#allocation7], %s4805
        // Predicated region
        $region85: #{pixel_level_module_forward.9} parent=83 // pred_check
          %p4807 = pneg %p436
        $region86: #{pixel_level_module_forward.9} parent=83 // pred_check_branch
          %4809 = sbr.rel (%p4807) target = $region88
        $region87: #{pixel_level_module_forward.9} parent=83 // pred_region
          %s4810 = smul.u32 2, %s45
          %s4812 = ssub.s32 64, 64
          %4813 = vsyncadd %s4788, %s4812
          %s4814 = smul.addr %s44, 2
          %s4815 = sadd.s32 %s4810, %s4814
          %s4816 = smul.addr %s4815, 32
          %s4817 = scalar_lea.hbm %s16, %s4816
          %s4818 = sshll.u32 %s4791, 4
          %s4819 = int_to_ptr.vmem [resolvable:$true] %s4818
          %4824 = dma.vmem_to_hbm [thread:$0]  %s4819, 64, %s4817, %s4788, 32, 32, 2
        $region88: #{pixel_level_module_forward.9} parent=83 // pred_fallthru
          _
        // Predicated region
        $region89: #{pixel_level_module_forward.9} parent=83 // pred_check
          %p4825 = pneg %p464
        $region90: #{pixel_level_module_forward.9} parent=83 // pred_check_branch
          %4827 = sbr.rel (%p4825) target = $region92
        $region91: #{pixel_level_module_forward.9} parent=83 // pred_region
          %s4828 = smul.u32 4, %s45
          %s4830 = ssub.s32 256, 256
          %4831 = vsyncadd %s4793, %s4830
          %s4832 = smul.addr %s44, 4
          %s4833 = sadd.s32 %s4828, %s4832
          %s4834 = smul.addr %s4833, 64
          %s4835 = scalar_lea.hbm %s17, %s4834
          %s4836 = sshll.u32 %s4796, 4
          %s4837 = int_to_ptr.vmem [resolvable:$true] %s4836
          %4842 = dma.vmem_to_hbm [thread:$0]  %s4837, 256, %s4835, %s4793, 64, 64, 4
        $region92: #{pixel_level_module_forward.9} parent=83 // pred_fallthru
          _
        // Predicated region
        $region93: #{pixel_level_module_forward.9} parent=83 // pred_check
          %p4843 = pneg %p492
        $region94: #{pixel_level_module_forward.9} parent=83 // pred_check_branch
          %4845 = sbr.rel (%p4843) target = $region96
        $region95: #{pixel_level_module_forward.9} parent=83 // pred_region
          %s4846 = smul.u32 8, %s45
          %s4848 = ssub.s32 1024, 1024
          %4849 = vsyncadd %s4798, %s4848
          %s4850 = smul.addr %s44, 8
          %s4851 = sadd.s32 %s4846, %s4850
          %s4852 = smul.addr %s4851, 128
          %s4853 = scalar_lea.hbm %s18, %s4852
          %s4854 = sshll.u32 %s4801, 4
          %s4855 = int_to_ptr.vmem [resolvable:$true] %s4854
          %4860 = dma.vmem_to_hbm [thread:$0]  %s4855, 1024, %s4853, %s4798, 128, 128, 8
        $region96: #{pixel_level_module_forward.9} parent=83 // pred_fallthru
          _
        // Predicated region
        $region97: #{pixel_level_module_forward.9} parent=83 // pred_check
          %p4861 = pneg %p520
        $region98: #{pixel_level_module_forward.9} parent=83 // pred_check_branch
          %4863 = sbr.rel (%p4861) target = $region100
        $region99: #{pixel_level_module_forward.9} parent=83 // pred_region
          %s4864 = smul.u32 16, %s45
          %s4866 = ssub.s32 4096, 4096
          %4867 = vsyncadd %s4803, %s4866
          %s4868 = smul.addr %s4864, 2
          %s4869 = smul.addr %s44, 32
          %s4870 = sadd.s32 %s4868, %s4869
          %s4871 = smul.addr %s4870, 128
          %s4872 = scalar_lea.hbm %s19, %s4871
          %s4873 = sshll.u32 %s4806, 4
          %s4874 = int_to_ptr.vmem [resolvable:$true] %s4873
          %4879 = dma.vmem_to_hbm [thread:$0]  %s4874, 4096, %s4872, %s4803, 128, 128, 8
        $region100: #{pixel_level_module_forward.9} parent=83 // pred_fallthru
          _
      $region84: #{pixel_level_module_forward.9} parent=5 // pred_fallthru
        _
      %p4880 = scmp.le.s32.totalorder 2, %s35
      // Predicated region
      $region101: #{pixel_level_module_forward.9} parent=5 // pred_check
        %p4881 = pneg %p4880
      $region102: #{pixel_level_module_forward.9} parent=5 // pred_check_branch
        %4883 = sbr.rel (%p4881) target = $region104
      $region103: #{pixel_level_module_forward.9} parent=5 // pred_region
        %s4884 = ssub.s32 %s35, 2
        // Predicated region
        $region105: #{pixel_level_module_forward.9} parent=103 // pred_check
          %p4885 = pneg %p442
        $region106: #{pixel_level_module_forward.9} parent=103 // pred_check_branch
          %4887 = sbr.rel (%p4885) target = $region108
        $region107: #{pixel_level_module_forward.9} parent=103 // pred_region
          %s4888 = sand.u32 %s427, 1
          %s4889 = scalar_lea.sflag [#allocation3], %s4888
          %s4890 = sand.u32 %s427, 1
          %s4891 = smul.addr %s4890, 4
          %s4892 = scalar_lea.vmem [#allocation2], %s4891
          %4893 = dma.done %s4889, 64
        $region108: #{pixel_level_module_forward.9} parent=103 // pred_fallthru
          _
        // Predicated region
        $region109: #{pixel_level_module_forward.9} parent=103 // pred_check
          %p4894 = pneg %p470
        $region110: #{pixel_level_module_forward.9} parent=103 // pred_check_branch
          %4896 = sbr.rel (%p4894) target = $region112
        $region111: #{pixel_level_module_forward.9} parent=103 // pred_region
          %s4897 = sand.u32 %s41, 1
          %s4898 = scalar_lea.sflag [#allocation5], %s4897
          %s4899 = sand.u32 %s455, 1
          %s4900 = smul.addr %s4899, 16
          %s4901 = scalar_lea.vmem [#allocation4], %s4900
          %4902 = dma.done %s4898, 256
        $region112: #{pixel_level_module_forward.9} parent=103 // pred_fallthru
          _
        // Predicated region
        $region113: #{pixel_level_module_forward.9} parent=103 // pred_check
          %p4903 = pneg %p498
        $region114: #{pixel_level_module_forward.9} parent=103 // pred_check_branch
          %4905 = sbr.rel (%p4903) target = $region116
        $region115: #{pixel_level_module_forward.9} parent=103 // pred_region
          %s4906 = sand.u32 %s41, 1
          %s4907 = scalar_lea.sflag [#allocation5], %s4906
          %s4908 = sand.u32 %s483, 1
          %s4909 = smul.addr %s4908, 64
          %s4910 = scalar_lea.vmem [#allocation6], %s4909
          %4911 = dma.done %s4907, 1024
        $region116: #{pixel_level_module_forward.9} parent=103 // pred_fallthru
          _
        // Predicated region
        $region117: #{pixel_level_module_forward.9} parent=103 // pred_check
          %p4912 = pneg %p526
        $region118: #{pixel_level_module_forward.9} parent=103 // pred_check_branch
          %4914 = sbr.rel (%p4912) target = $region120
        $region119: #{pixel_level_module_forward.9} parent=103 // pred_region
          %s4915 = sand.u32 %s511, 1
          %s4916 = scalar_lea.sflag [#allocation8], %s4915
          %s4917 = sand.u32 %s511, 1
          %s4918 = smul.addr %s4917, 256
          %s4919 = scalar_lea.vmem [#allocation7], %s4918
          %4920 = dma.done %s4916, 4096
        $region120: #{pixel_level_module_forward.9} parent=103 // pred_fallthru
          _
      $region104: #{pixel_level_module_forward.9} parent=5 // pred_fallthru
        _
    $region6: #{pixel_level_module_forward.9} parent=1 // loop_footer
      %s39 = sadd.s32 1, %s35
    $region7: #{pixel_level_module_forward.9} parent=1 // loop_footer_branch
      %34 = sbr.rel target = $region3
    $region8: #{pixel_level_module_forward.9} parent=1 // loop_exit
      _
    %4921 = vsyncpa [#allocation3], 1
    %s4922 = scalar_lea.sflag [#allocation3], 1
    %4923 = vsyncpa %s4922, 1
    %4924 = vsyncpa [#allocation5], 1
    %s4925 = scalar_lea.sflag [#allocation5], 1
    %4926 = vsyncpa %s4925, 1
    %4927 = vsyncpa [#allocation8], 1
    %s4928 = scalar_lea.sflag [#allocation8], 1
    %4929 = vsyncpa %s4928, 1

</llo_original>
